<compile_context>
chip_gen: v5e
topology: v5e:2x2
jax: 0.10.0
libtpu: 0.0.40
codegen_flags: <defaults>
</compile_context>

<pallas_src>
import functools

import jax
import jax.numpy as jnp
from jax import lax
from jax.experimental import pallas as pl
from jax.experimental.pallas import tpu as pltpu

HIGH = jax.lax.Precision.HIGHEST


def _relu6(x):
    return jnp.minimum(jnp.maximum(x, 0.0), 6.0)


def _hswish(x):
    return x * _relu6(x + 3.0) * (1.0 / 6.0)


def _hsigmoid(x):
    return _relu6(x + 3.0) * (1.0 / 6.0)


# ------------------------------ Pallas kernel --------------------------------

def block_kernel(x_ref, m_ref, wexp_ref, wd_ref, wse1_ref, wse2_ref, w3_ref,
                 b_ref, o_ref, *, N, H, W, K, use_se, nolinear, shortcut):
    """Whole-batch MobileNetV3 Block on flattened (N*H*W, C) activation rows."""
    f32 = jnp.float32
    R = N * H * W
    E = wd_ref.shape[1]
    Cout = w3_ref.shape[1]
    Cexp = wexp_ref.shape[1]          # E (+ Cout when the conv shortcut is fused)
    P = K // 2
    nl = _relu6 if nolinear == "RE" else _hswish

    x = x_ref[...].astype(f32)                         # (R, Cin)
    masks = m_ref[...]                                 # (R, 2K + N) {0,1} float
    col_ok = [masks[:, kj:kj + 1] for kj in range(K)]          # W-boundary masks
    row_ok = [masks[:, K + ki:K + ki + 1] for ki in range(K)]  # H-boundary masks

    # -- unpack the packed (1, *) bias vector (BN scales are folded in weights)
    b = b_ref[...]
    bexp = b[:, :Cexp]
    off = Cexp
    b2 = b[:, off:off + E]
    off += E
    if use_se:
        Er = wse1_ref.shape[1]
        bse1 = b[:, off:off + Er]
        off += Er
        bse2 = b[:, off:off + E]
        off += E
    b3 = b[:, off:off + Cout]

    # --- fused 1x1 expand conv (+ optional 1x1 conv shortcut), BN folded -----
    pre = jnp.dot(x, wexp_ref[...], preferred_element_type=f32, precision=HIGH)
    pre = pre + bexp                                   # (R, E [+ Cout])
    a = nl(pre[:, :E])                                 # expanded activation

    # --- depthwise KxK conv, stride 1, padding K//2 (BN scale folded in wd) ---
    # Spatial tap (di, dj) == static row shift by di*W + dj of the flattened
    # rows, masked at image-row / image-column boundaries.  `a` stays resident;
    # no padded scratch buffer and no unaligned strided re-reads.
    def shift_rows(v, s):
        if s == 0:
            return v
        z = jnp.zeros((abs(s), v.shape[1]), f32)
        if s > 0:
            return jnp.concatenate([v[s:, :], z], axis=0)
        return jnp.concatenate([z, v[:s, :]], axis=0)

    wd = wd_ref[...].astype(f32)                       # (K*K, E)
    d = jnp.zeros((R, E), f32)
    for kj in range(K):
        dj = kj - P
        cshift = shift_rows(a, dj) * col_ok[kj]        # column tap, W-masked
        for ki in range(K):
            di = ki - P
            tap = shift_rows(cshift, di * W) * row_ok[ki]   # row tap, H-masked
            d = d + tap * wd[ki * K + kj:ki * K + kj + 1, :]
    y = d + b2                                         # folded BN bias

    # --- squeeze-and-excite (AdaptiveAvgPool2d over each image's H*W rows) ----
    if use_se:
        img_sel = [masks[:, 2 * K + n:2 * K + n + 1] for n in range(N)]
        hw_inv = 1.0 / float(H * W)
        pooled = jnp.concatenate(
            [jnp.sum(y * img_sel[n], axis=0, keepdims=True) * hw_inv
             for n in range(N)], axis=0)               # (N, E)
        t = jnp.dot(pooled, wse1_ref[...], preferred_element_type=f32, precision=HIGH)
        t = _relu6(t + bse1)
        t = jnp.dot(t, wse2_ref[...], preferred_element_type=f32, precision=HIGH)
        t = _hsigmoid(t + bse2)                        # (N, E) per-image gates
        gate = img_sel[0] * t[0:1, :]
        for n in range(1, N):
            gate = gate + img_sel[n] * t[n:n + 1, :]
        y = y * gate

    y = nl(y)

    # --- 1x1 project conv, BN folded ------------------------------------------
    out = jnp.dot(y, w3_ref[...], preferred_element_type=f32, precision=HIGH)
    out = out + b3                                     # (R, Cout)

    # --- residual shortcut (stride == 1 only) ----------------------------------
    if shortcut == "conv":
        out = out + pre[:, E:]                         # fused conv-shortcut columns
    elif shortcut == "identity":
        out = out + x                                  # requires Cin == Cout

    o_ref[...] = out.astype(o_ref.dtype)


# -------------------------------- wrapper ------------------------------------

def _row_masks(N, H, W, K):
    """Per-row {0,1} masks: K column-tap masks, K row-tap masks, N image one-hots."""
    P = K // 2
    r = jnp.arange(N * H * W, dtype=jnp.int32)
    col = r % W
    row = (r // W) % H
    img = r // (H * W)
    cols = [(col + dj >= 0) & (col + dj < W) for dj in range(-P, P + 1)]
    rows = [(row + di >= 0) & (row + di < H) for di in range(-P, P + 1)]
    imgs = [img == n for n in range(N)]
    return jnp.stack(cols + rows + imgs, axis=1).astype(jnp.float32)   # (R, 2K+N)


def block_forward_pallas(x_nchw, fp, *, K, stride, use_se, nolinear, shortcut):
    """Block forward pass. x_nchw: (N, Cin, H, W), same interface as the PyTorch module."""
    if stride != 1:
        # TODO(synk): stride > 1 depthwise subsampling is not implemented in-kernel.
        raise NotImplementedError("stride > 1 not supported by this kernel")
    N, Cin, H, W = x_nchw.shape
    R = N * H * W
    Cout = fp["w3"].shape[1]
    if shortcut == "identity":
        assert Cin == Cout, "identity shortcut requires Cin == Cout"

    x_rows = jnp.transpose(x_nchw, (0, 2, 3, 1)).reshape(R, Cin)   # NHWC rows
    masks = _row_masks(N, H, W, K)

    kernel = functools.partial(
        block_kernel, N=N, H=H, W=W, K=K,
        use_se=use_se, nolinear=nolinear, shortcut=shortcut)

    args = [x_rows, masks, fp["wexp"], fp["wd"], fp["wse1"], fp["wse2"],
            fp["w3"], fp["b_all"]]

    def _spec(a):
        return pl.BlockSpec(a.shape, lambda i, _nd=a.ndim: (0,) * _nd)

    out_rows = pl.pallas_call(
        kernel,
        out_shape=jax.ShapeDtypeStruct((R, Cout), x_nchw.dtype),
        grid_spec=pltpu.PrefetchScalarGridSpec(
            num_scalar_prefetch=0,
            grid=(1,),                                 # whole batch in one step
            in_specs=[_spec(a) for a in args],
            out_specs=pl.BlockSpec((R, Cout), lambda i: (0, 0))),
        compiler_params=pltpu.CompilerParams(dimension_semantics=("arbitrary",)),
    )(*args)

    return jnp.transpose(out_rows.reshape(N, H, W, Cout), (0, 3, 1, 2))


# --------------------- parameters (PyTorch layout + folding) -----------------

def _fold_bn(gamma, beta, mean, var, eps=1e-5):
    s = gamma / jnp.sqrt(var + eps)
    return s, beta - mean * s


def make_torch_params(key, K, Cin, E, Cout, reduce=4):
    """Random PyTorch-shaped (OIHW) weights and BatchNorm statistics."""
    Er = E // reduce
    ks = jax.random.split(key, 12)

    def bn_stats(k, c):
        k1, k2, k3, k4 = jax.random.split(k, 4)
        gamma = 1.0 + 0.1 * jax.random.normal(k1, (c,), jnp.float32)
        beta = 0.1 * jax.random.normal(k2, (c,), jnp.float32)
        mean = 0.1 * jax.random.normal(k3, (c,), jnp.float32)
        var = 0.5 + 0.5 * jax.random.uniform(k4, (c,), jnp.float32)
        return (gamma, beta, mean, var)

    return dict(
        w1=0.3 * jax.random.normal(ks[0], (E, Cin, 1, 1), jnp.float32),
        bn1=bn_stats(ks[6], E),
        wd=0.3 * jax.random.normal(ks[1], (E, 1, K, K), jnp.float32),
        bn2=bn_stats(ks[7], E),
        wse1=0.3 * jax.random.normal(ks[2], (Er, E, 1, 1), jnp.float32),
        se_bn1=bn_stats(ks[8], Er),
        wse2=0.3 * jax.random.normal(ks[3], (E, Er, 1, 1), jnp.float32),
        se_bn2=bn_stats(ks[9], E),
        w3=0.3 * jax.random.normal(ks[4], (Cout, E, 1, 1), jnp.float32),
        bn3=bn_stats(ks[10], Cout),
        wsc=0.3 * jax.random.normal(ks[5], (Cout, Cin, 1, 1), jnp.float32),
        sc_bn=bn_stats(ks[11], Cout),
    )


def fold_block_params(tp, *, K, use_se, shortcut):
    """Fold inference-mode BatchNorms into conv weights; pack biases into one array."""
    E = tp["w1"].shape[0]
    s1, b1 = _fold_bn(*tp["bn1"])
    s2, b2 = _fold_bn(*tp["bn2"])
    s3, b3 = _fold_bn(*tp["bn3"])

    w1 = tp["w1"][:, :, 0, 0].T * s1[None, :]                       # (Cin, E)
    wd = jnp.transpose(tp["wd"][:, 0], (1, 2, 0)).reshape(K * K, E) * s2[None, :]
    w3 = tp["w3"][:, :, 0, 0].T * s3[None, :]                       # (E, Cout)

    if shortcut == "conv":
        ssc, bsc = _fold_bn(*tp["sc_bn"])
        wsc = tp["wsc"][:, :, 0, 0].T * ssc[None, :]                # (Cin, Cout)
        wexp = jnp.concatenate([w1, wsc], axis=1)
        bexp = jnp.concatenate([b1[None, :], bsc[None, :]], axis=1)
    else:
        wexp, bexp = w1, b1[None, :]

    biases = [bexp, b2[None, :]]
    if use_se:
        sse1, bse1 = _fold_bn(*tp["se_bn1"])
        sse2, bse2 = _fold_bn(*tp["se_bn2"])
        wse1 = tp["wse1"][:, :, 0, 0].T * sse1[None, :]             # (E, Er)
        wse2 = tp["wse2"][:, :, 0, 0].T * sse2[None, :]             # (Er, E)
        biases += [bse1[None, :], bse2[None, :]]
    else:
        wse1 = wse2 = jnp.zeros((1, 1), jnp.float32)
    biases.append(b3[None, :])

    return dict(wexp=wexp, wd=wd, wse1=wse1, wse2=wse2, w3=w3,
                b_all=jnp.concatenate(biases, axis=1))


# ----------------------------- pure-JAX reference ----------------------------

def block_reference(x_nchw, tp, *, K, stride, use_se, nolinear, shortcut):
    nl = _relu6 if nolinear == "RE" else _hswish

    def bn(v, p, eps=1e-5):
        g, b, m, var = p
        return (v - m) / jnp.sqrt(var + eps) * g + b

    x = jnp.transpose(x_nchw, (0, 2, 3, 1))                         # NHWC
    a = jnp.einsum("nhwc,ec->nhwe", x, tp["w1"][:, :, 0, 0], precision=HIGH)
    a = nl(bn(a, tp["bn1"]))
    wd_hwio = jnp.transpose(tp["wd"], (2, 3, 1, 0))                 # (K, K, 1, E)
    d = lax.conv_general_dilated(
        a, wd_hwio, window_strides=(stride, stride),
        padding=[(K // 2, K // 2)] * 2,
        dimension_numbers=("NHWC", "HWIO", "NHWC"),
        feature_group_count=a.shape[-1], precision=HIGH)
    d = bn(d, tp["bn2"])
    if use_se:
        pooled = jnp.mean(d, axis=(1, 2), keepdims=True)
        t = jnp.einsum("nhwe,re->nhwr", pooled, tp["wse1"][:, :, 0, 0], precision=HIGH)
        t = _relu6(bn(t, tp["se_bn1"]))
        t = jnp.einsum("nhwr,er->nhwe", t, tp["wse2"][:, :, 0, 0], precision=HIGH)
        t = _hsigmoid(bn(t, tp["se_bn2"]))
        d = d * t
    d = nl(d)
    out = jnp.einsum("nhwe,oe->nhwo", d, tp["w3"][:, :, 0, 0], precision=HIGH)
    out = bn(out, tp["bn3"])
    if stride == 1:
        if shortcut == "conv":
            sc = jnp.einsum("nhwc,oc->nhwo", x, tp["wsc"][:, :, 0, 0], precision=HIGH)
            sc = bn(sc, tp["sc_bn"])
        else:
            sc = x
        out = out + sc
    return jnp.transpose(out, (0, 3, 1, 2))                         # back to NCHW


# ------------------------------------ main ------------------------------------

if __name__ == "__main__":
    # Block(kernel_size=3, in_channels=4, expand_size=16, out_channels=8, stride=1,
    #       se=True, nolinear='HS') -> conv 1x1 + BN shortcut (Cin != Cout, stride 1)
    K, Cin, E, Cout = 3, 4, 16, 8
    stride, use_se, nolinear = 1, True, "HS"
    if stride == 1 and Cin != Cout:
        shortcut = "conv"
    elif stride == 1:
        shortcut = "identity"
    else:
        shortcut = "none"
    N, H, W = 2, 16, 16

    root = jax.random.PRNGKey(0)
    kx, kp = jax.random.split(root)
    tp = make_torch_params(kp, K, Cin, E, Cout)
    fp = fold_block_params(tp, K=K, use_se=use_se, shortcut=shortcut)

    x_nchw = jax.random.normal(kx, (N, Cin, H, W), jnp.float32)     # PyTorch NCHW input

    y = block_forward_pallas(
        x_nchw, fp, K=K, stride=stride, use_se=use_se,
        nolinear=nolinear, shortcut=shortcut)
    y = jax.block_until_ready(y)

    y_ref = block_reference(
        x_nchw, tp, K=K, stride=stride, use_se=use_se,
        nolinear=nolinear, shortcut=shortcut)

    err = float(jnp.max(jnp.abs(y - y_ref)))
    assert y.shape == (N, Cout, H, W), y.shape
    assert err < 1e-3, f"mismatch vs reference: {err}"
    print("KERNEL_OK")
</pallas_src>

<mosaic_0001>
module attributes {stable_mosaic.version = 11 : i64} {
  func.func @block_kernel(%arg0: i32, %arg1: memref<512x4xf32, #tpu.memory_space<vmem>>, %arg2: memref<512x8xf32, #tpu.memory_space<vmem>>, %arg3: memref<4x24xf32, #tpu.memory_space<vmem>>, %arg4: memref<9x16xf32, #tpu.memory_space<vmem>>, %arg5: memref<16x4xf32, #tpu.memory_space<vmem>>, %arg6: memref<4x16xf32, #tpu.memory_space<vmem>>, %arg7: memref<16x8xf32, #tpu.memory_space<vmem>>, %arg8: memref<1x68xf32, #tpu.memory_space<vmem>>, %arg9: memref<512x8xf32, #tpu.memory_space<vmem>>) attributes {dimension_semantics = [#tpu.dimension_semantics<arbitrary>], iteration_bounds = array<i64: 1>, scalar_prefetch = 0 : i64, scratch_operands = 0 : i64, tpu.core_type = #tpu.core_type<tc>, window_params = [{pipeline_mode = #tpu.pipeline_mode<synchronous>, transform_indices = @transform_0, window_bounds = array<i64: 512, 4>}, {pipeline_mode = #tpu.pipeline_mode<synchronous>, transform_indices = @transform_1, window_bounds = array<i64: 512, 8>}, {pipeline_mode = #tpu.pipeline_mode<synchronous>, transform_indices = @transform_2, window_bounds = array<i64: 4, 24>}, {pipeline_mode = #tpu.pipeline_mode<synchronous>, transform_indices = @transform_3, window_bounds = array<i64: 9, 16>}, {pipeline_mode = #tpu.pipeline_mode<synchronous>, transform_indices = @transform_4, window_bounds = array<i64: 16, 4>}, {pipeline_mode = #tpu.pipeline_mode<synchronous>, transform_indices = @transform_5, window_bounds = array<i64: 4, 16>}, {pipeline_mode = #tpu.pipeline_mode<synchronous>, transform_indices = @transform_6, window_bounds = array<i64: 16, 8>}, {pipeline_mode = #tpu.pipeline_mode<synchronous>, transform_indices = @transform_7, window_bounds = array<i64: 1, 68>}, {pipeline_mode = #tpu.pipeline_mode<synchronous>, transform_indices = @transform_8, window_bounds = array<i64: 512, 8>}]} {
    %c0 = arith.constant 0 : index
    %c0_0 = arith.constant 0 : index
    %0 = vector.load %arg1[%c0, %c0_0] : memref<512x4xf32, #tpu.memory_space<vmem>>, vector<512x4xf32>
    %c0_1 = arith.constant 0 : index
    %c0_2 = arith.constant 0 : index
    %1 = vector.load %arg2[%c0_1, %c0_2] : memref<512x8xf32, #tpu.memory_space<vmem>>, vector<512x8xf32>
    %2 = vector.extract_strided_slice %1 {offsets = [0, 0], sizes = [512, 1], strides = [1, 1]} : vector<512x8xf32> to vector<512x1xf32>
    %3 = vector.extract_strided_slice %1 {offsets = [0, 1], sizes = [512, 1], strides = [1, 1]} : vector<512x8xf32> to vector<512x1xf32>
    %4 = vector.extract_strided_slice %1 {offsets = [0, 2], sizes = [512, 1], strides = [1, 1]} : vector<512x8xf32> to vector<512x1xf32>
    %5 = vector.extract_strided_slice %1 {offsets = [0, 3], sizes = [512, 1], strides = [1, 1]} : vector<512x8xf32> to vector<512x1xf32>
    %6 = vector.extract_strided_slice %1 {offsets = [0, 4], sizes = [512, 1], strides = [1, 1]} : vector<512x8xf32> to vector<512x1xf32>
    %7 = vector.extract_strided_slice %1 {offsets = [0, 5], sizes = [512, 1], strides = [1, 1]} : vector<512x8xf32> to vector<512x1xf32>
    %c0_3 = arith.constant 0 : index
    %c0_4 = arith.constant 0 : index
    %8 = vector.load %arg8[%c0_3, %c0_4] : memref<1x68xf32, #tpu.memory_space<vmem>>, vector<1x68xf32>
    %9 = vector.extract_strided_slice %8 {offsets = [0, 0], sizes = [1, 24], strides = [1, 1]} : vector<1x68xf32> to vector<1x24xf32>
    %10 = vector.extract_strided_slice %8 {offsets = [0, 24], sizes = [1, 16], strides = [1, 1]} : vector<1x68xf32> to vector<1x16xf32>
    %11 = vector.extract_strided_slice %8 {offsets = [0, 40], sizes = [1, 4], strides = [1, 1]} : vector<1x68xf32> to vector<1x4xf32>
    %12 = vector.extract_strided_slice %8 {offsets = [0, 44], sizes = [1, 16], strides = [1, 1]} : vector<1x68xf32> to vector<1x16xf32>
    %13 = vector.extract_strided_slice %8 {offsets = [0, 60], sizes = [1, 8], strides = [1, 1]} : vector<1x68xf32> to vector<1x8xf32>
    %c0_5 = arith.constant 0 : index
    %c0_6 = arith.constant 0 : index
    %14 = vector.load %arg3[%c0_5, %c0_6] : memref<4x24xf32, #tpu.memory_space<vmem>>, vector<4x24xf32>
    %cst = arith.constant dense<0.000000e+00> : vector<512x24xf32>
    %15 = tpu.matmul %0, %14, %cst {dimension_numbers = #tpu.dot_dimension_numbers<[1], [0], [0], [1], [0, 0, 1, 1], [], []>, precision = #tpu.contract_precision<fp32>} : vector<512x4xf32>, vector<4x24xf32>, vector<512x24xf32> -> vector<512x24xf32>
    %16 = vector.broadcast %9 : vector<1x24xf32> to vector<512x24xf32>
    %17 = arith.addf %15, %16 : vector<512x24xf32>
    %18 = vector.extract_strided_slice %17 {offsets = [0, 0], sizes = [512, 16], strides = [1, 1]} : vector<512x24xf32> to vector<512x16xf32>
    %cst_7 = arith.constant 3.000000e+00 : f32
    %19 = vector.broadcast %cst_7 : f32 to vector<512x16xf32>
    %20 = arith.addf %18, %19 : vector<512x16xf32>
    %cst_8 = arith.constant 0.000000e+00 : f32
    %21 = vector.broadcast %cst_8 : f32 to vector<512x16xf32>
    %22 = arith.maximumf %20, %21 : vector<512x16xf32>
    %cst_9 = arith.constant 6.000000e+00 : f32
    %23 = vector.broadcast %cst_9 : f32 to vector<512x16xf32>
    %24 = arith.minimumf %22, %23 : vector<512x16xf32>
    %25 = arith.mulf %18, %24 : vector<512x16xf32>
    %cst_10 = arith.constant 0.166666672 : f32
    %26 = vector.broadcast %cst_10 : f32 to vector<512x16xf32>
    %27 = arith.mulf %25, %26 : vector<512x16xf32>
    %c0_11 = arith.constant 0 : index
    %c0_12 = arith.constant 0 : index
    %28 = vector.load %arg4[%c0_11, %c0_12] : memref<9x16xf32, #tpu.memory_space<vmem>>, vector<9x16xf32>
    %cst_13 = arith.constant 0.000000e+00 : f32
    %29 = vector.broadcast %cst_13 : f32 to vector<512x16xf32>
    %cst_14 = arith.constant 0.000000e+00 : f32
    %30 = vector.broadcast %cst_14 : f32 to vector<1x16xf32>
    %31 = vector.extract_strided_slice %27 {offsets = [0, 0], sizes = [511, 16], strides = [1, 1]} : vector<512x16xf32> to vector<511x16xf32>
    %32 = tpu.concatenate %30, %31 in 0 : vector<1x16xf32>, vector<511x16xf32> -> vector<512x16xf32>
    %33 = vector.broadcast %2 : vector<512x1xf32> to vector<512x16xf32>
    %34 = arith.mulf %32, %33 : vector<512x16xf32>
    %cst_15 = arith.constant 0.000000e+00 : f32
    %35 = vector.broadcast %cst_15 : f32 to vector<16x16xf32>
    %36 = vector.extract_strided_slice %34 {offsets = [0, 0], sizes = [496, 16], strides = [1, 1]} : vector<512x16xf32> to vector<496x16xf32>
    %37 = tpu.concatenate %35, %36 in 0 : vector<16x16xf32>, vector<496x16xf32> -> vector<512x16xf32>
    %38 = vector.broadcast %5 : vector<512x1xf32> to vector<512x16xf32>
    %39 = arith.mulf %37, %38 : vector<512x16xf32>
    %40 = vector.extract_strided_slice %28 {offsets = [0, 0], sizes = [1, 16], strides = [1, 1]} : vector<9x16xf32> to vector<1x16xf32>
    %41 = vector.broadcast %40 : vector<1x16xf32> to vector<512x16xf32>
    %42 = arith.mulf %39, %41 : vector<512x16xf32>
    %43 = arith.addf %29, %42 : vector<512x16xf32>
    %44 = vector.broadcast %6 : vector<512x1xf32> to vector<512x16xf32>
    %45 = arith.mulf %34, %44 : vector<512x16xf32>
    %46 = vector.extract_strided_slice %28 {offsets = [3, 0], sizes = [1, 16], strides = [1, 1]} : vector<9x16xf32> to vector<1x16xf32>
    %47 = vector.broadcast %46 : vector<1x16xf32> to vector<512x16xf32>
    %48 = arith.mulf %45, %47 : vector<512x16xf32>
    %49 = arith.addf %43, %48 : vector<512x16xf32>
    %cst_16 = arith.constant 0.000000e+00 : f32
    %50 = vector.broadcast %cst_16 : f32 to vector<16x16xf32>
    %51 = vector.extract_strided_slice %34 {offsets = [16, 0], sizes = [496, 16], strides = [1, 1]} : vector<512x16xf32> to vector<496x16xf32>
    %52 = tpu.concatenate %51, %50 in 0 : vector<496x16xf32>, vector<16x16xf32> -> vector<512x16xf32>
    %53 = vector.broadcast %7 : vector<512x1xf32> to vector<512x16xf32>
    %54 = arith.mulf %52, %53 : vector<512x16xf32>
    %55 = vector.extract_strided_slice %28 {offsets = [6, 0], sizes = [1, 16], strides = [1, 1]} : vector<9x16xf32> to vector<1x16xf32>
    %56 = vector.broadcast %55 : vector<1x16xf32> to vector<512x16xf32>
    %57 = arith.mulf %54, %56 : vector<512x16xf32>
    %58 = arith.addf %49, %57 : vector<512x16xf32>
    %59 = vector.broadcast %3 : vector<512x1xf32> to vector<512x16xf32>
    %60 = arith.mulf %27, %59 : vector<512x16xf32>
    %cst_17 = arith.constant 0.000000e+00 : f32
    %61 = vector.broadcast %cst_17 : f32 to vector<16x16xf32>
    %62 = vector.extract_strided_slice %60 {offsets = [0, 0], sizes = [496, 16], strides = [1, 1]} : vector<512x16xf32> to vector<496x16xf32>
    %63 = tpu.concatenate %61, %62 in 0 : vector<16x16xf32>, vector<496x16xf32> -> vector<512x16xf32>
    %64 = vector.broadcast %5 : vector<512x1xf32> to vector<512x16xf32>
    %65 = arith.mulf %63, %64 : vector<512x16xf32>
    %66 = vector.extract_strided_slice %28 {offsets = [1, 0], sizes = [1, 16], strides = [1, 1]} : vector<9x16xf32> to vector<1x16xf32>
    %67 = vector.broadcast %66 : vector<1x16xf32> to vector<512x16xf32>
    %68 = arith.mulf %65, %67 : vector<512x16xf32>
    %69 = arith.addf %58, %68 : vector<512x16xf32>
    %70 = vector.broadcast %6 : vector<512x1xf32> to vector<512x16xf32>
    %71 = arith.mulf %60, %70 : vector<512x16xf32>
    %72 = vector.extract_strided_slice %28 {offsets = [4, 0], sizes = [1, 16], strides = [1, 1]} : vector<9x16xf32> to vector<1x16xf32>
    %73 = vector.broadcast %72 : vector<1x16xf32> to vector<512x16xf32>
    %74 = arith.mulf %71, %73 : vector<512x16xf32>
    %75 = arith.addf %69, %74 : vector<512x16xf32>
    %cst_18 = arith.constant 0.000000e+00 : f32
    %76 = vector.broadcast %cst_18 : f32 to vector<16x16xf32>
    %77 = vector.extract_strided_slice %60 {offsets = [16, 0], sizes = [496, 16], strides = [1, 1]} : vector<512x16xf32> to vector<496x16xf32>
    %78 = tpu.concatenate %77, %76 in 0 : vector<496x16xf32>, vector<16x16xf32> -> vector<512x16xf32>
    %79 = vector.broadcast %7 : vector<512x1xf32> to vector<512x16xf32>
    %80 = arith.mulf %78, %79 : vector<512x16xf32>
    %81 = vector.extract_strided_slice %28 {offsets = [7, 0], sizes = [1, 16], strides = [1, 1]} : vector<9x16xf32> to vector<1x16xf32>
    %82 = vector.broadcast %81 : vector<1x16xf32> to vector<512x16xf32>
    %83 = arith.mulf %80, %82 : vector<512x16xf32>
    %84 = arith.addf %75, %83 : vector<512x16xf32>
    %cst_19 = arith.constant 0.000000e+00 : f32
    %85 = vector.broadcast %cst_19 : f32 to vector<1x16xf32>
    %86 = vector.extract_strided_slice %27 {offsets = [1, 0], sizes = [511, 16], strides = [1, 1]} : vector<512x16xf32> to vector<511x16xf32>
    %87 = tpu.concatenate %86, %85 in 0 : vector<511x16xf32>, vector<1x16xf32> -> vector<512x16xf32>
    %88 = vector.broadcast %4 : vector<512x1xf32> to vector<512x16xf32>
    %89 = arith.mulf %87, %88 : vector<512x16xf32>
    %cst_20 = arith.constant 0.000000e+00 : f32
    %90 = vector.broadcast %cst_20 : f32 to vector<16x16xf32>
    %91 = vector.extract_strided_slice %89 {offsets = [0, 0], sizes = [496, 16], strides = [1, 1]} : vector<512x16xf32> to vector<496x16xf32>
    %92 = tpu.concatenate %90, %91 in 0 : vector<16x16xf32>, vector<496x16xf32> -> vector<512x16xf32>
    %93 = vector.broadcast %5 : vector<512x1xf32> to vector<512x16xf32>
    %94 = arith.mulf %92, %93 : vector<512x16xf32>
    %95 = vector.extract_strided_slice %28 {offsets = [2, 0], sizes = [1, 16], strides = [1, 1]} : vector<9x16xf32> to vector<1x16xf32>
    %96 = vector.broadcast %95 : vector<1x16xf32> to vector<512x16xf32>
    %97 = arith.mulf %94, %96 : vector<512x16xf32>
    %98 = arith.addf %84, %97 : vector<512x16xf32>
    %99 = vector.broadcast %6 : vector<512x1xf32> to vector<512x16xf32>
    %100 = arith.mulf %89, %99 : vector<512x16xf32>
    %101 = vector.extract_strided_slice %28 {offsets = [5, 0], sizes = [1, 16], strides = [1, 1]} : vector<9x16xf32> to vector<1x16xf32>
    %102 = vector.broadcast %101 : vector<1x16xf32> to vector<512x16xf32>
    %103 = arith.mulf %100, %102 : vector<512x16xf32>
    %104 = arith.addf %98, %103 : vector<512x16xf32>
    %cst_21 = arith.constant 0.000000e+00 : f32
    %105 = vector.broadcast %cst_21 : f32 to vector<16x16xf32>
    %106 = vector.extract_strided_slice %89 {offsets = [16, 0], sizes = [496, 16], strides = [1, 1]} : vector<512x16xf32> to vector<496x16xf32>
    %107 = tpu.concatenate %106, %105 in 0 : vector<496x16xf32>, vector<16x16xf32> -> vector<512x16xf32>
    %108 = vector.broadcast %7 : vector<512x1xf32> to vector<512x16xf32>
    %109 = arith.mulf %107, %108 : vector<512x16xf32>
    %110 = vector.extract_strided_slice %28 {offsets = [8, 0], sizes = [1, 16], strides = [1, 1]} : vector<9x16xf32> to vector<1x16xf32>
    %111 = vector.broadcast %110 : vector<1x16xf32> to vector<512x16xf32>
    %112 = arith.mulf %109, %111 : vector<512x16xf32>
    %113 = arith.addf %104, %112 : vector<512x16xf32>
    %114 = vector.broadcast %10 : vector<1x16xf32> to vector<512x16xf32>
    %115 = arith.addf %113, %114 : vector<512x16xf32>
    %116 = vector.extract_strided_slice %1 {offsets = [0, 6], sizes = [512, 1], strides = [1, 1]} : vector<512x8xf32> to vector<512x1xf32>
    %117 = vector.extract_strided_slice %1 {offsets = [0, 7], sizes = [512, 1], strides = [1, 1]} : vector<512x8xf32> to vector<512x1xf32>
    %118 = vector.broadcast %116 : vector<512x1xf32> to vector<512x16xf32>
    %119 = arith.mulf %115, %118 : vector<512x16xf32>
    %cst_22 = arith.constant dense<0.000000e+00> : vector<16xf32>
    %120 = vector.multi_reduction <add>, %119, %cst_22 [0] : vector<512x16xf32> to vector<16xf32>
    %121 = vector.shape_cast %120 : vector<16xf32> to vector<1x16xf32>
    %cst_23 = arith.constant 3.906250e-03 : f32
    %122 = vector.broadcast %cst_23 : f32 to vector<1x16xf32>
    %123 = arith.mulf %121, %122 : vector<1x16xf32>
    %124 = vector.broadcast %117 : vector<512x1xf32> to vector<512x16xf32>
    %125 = arith.mulf %115, %124 : vector<512x16xf32>
    %cst_24 = arith.constant dense<0.000000e+00> : vector<16xf32>
    %126 = vector.multi_reduction <add>, %125, %cst_24 [0] : vector<512x16xf32> to vector<16xf32>
    %127 = vector.shape_cast %126 : vector<16xf32> to vector<1x16xf32>
    %cst_25 = arith.constant 3.906250e-03 : f32
    %128 = vector.broadcast %cst_25 : f32 to vector<1x16xf32>
    %129 = arith.mulf %127, %128 : vector<1x16xf32>
    %130 = tpu.concatenate %123, %129 in 0 : vector<1x16xf32>, vector<1x16xf32> -> vector<2x16xf32>
    %c0_26 = arith.constant 0 : index
    %c0_27 = arith.constant 0 : index
    %131 = vector.load %arg5[%c0_26, %c0_27] : memref<16x4xf32, #tpu.memory_space<vmem>>, vector<16x4xf32>
    %cst_28 = arith.constant dense<0.000000e+00> : vector<2x4xf32>
    %132 = tpu.matmul %130, %131, %cst_28 {dimension_numbers = #tpu.dot_dimension_numbers<[1], [0], [0], [1], [0, 0, 1, 1], [], []>, precision = #tpu.contract_precision<fp32>} : vector<2x16xf32>, vector<16x4xf32>, vector<2x4xf32> -> vector<2x4xf32>
    %133 = vector.broadcast %11 : vector<1x4xf32> to vector<2x4xf32>
    %134 = arith.addf %132, %133 : vector<2x4xf32>
    %cst_29 = arith.constant 0.000000e+00 : f32
    %135 = vector.broadcast %cst_29 : f32 to vector<2x4xf32>
    %136 = arith.maximumf %134, %135 : vector<2x4xf32>
    %cst_30 = arith.constant 6.000000e+00 : f32
    %137 = vector.broadcast %cst_30 : f32 to vector<2x4xf32>
    %138 = arith.minimumf %136, %137 : vector<2x4xf32>
    %c0_31 = arith.constant 0 : index
    %c0_32 = arith.constant 0 : index
    %139 = vector.load %arg6[%c0_31, %c0_32] : memref<4x16xf32, #tpu.memory_space<vmem>>, vector<4x16xf32>
    %cst_33 = arith.constant dense<0.000000e+00> : vector<2x16xf32>
    %140 = tpu.matmul %138, %139, %cst_33 {dimension_numbers = #tpu.dot_dimension_numbers<[1], [0], [0], [1], [0, 0, 1, 1], [], []>, precision = #tpu.contract_precision<fp32>} : vector<2x4xf32>, vector<4x16xf32>, vector<2x16xf32> -> vector<2x16xf32>
    %141 = vector.broadcast %12 : vector<1x16xf32> to vector<2x16xf32>
    %142 = arith.addf %140, %141 : vector<2x16xf32>
    %cst_34 = arith.constant 3.000000e+00 : f32
    %143 = vector.broadcast %cst_34 : f32 to vector<2x16xf32>
    %144 = arith.addf %142, %143 : vector<2x16xf32>
    %cst_35 = arith.constant 0.000000e+00 : f32
    %145 = vector.broadcast %cst_35 : f32 to vector<2x16xf32>
    %146 = arith.maximumf %144, %145 : vector<2x16xf32>
    %cst_36 = arith.constant 6.000000e+00 : f32
    %147 = vector.broadcast %cst_36 : f32 to vector<2x16xf32>
    %148 = arith.minimumf %146, %147 : vector<2x16xf32>
    %cst_37 = arith.constant 0.166666672 : f32
    %149 = vector.broadcast %cst_37 : f32 to vector<2x16xf32>
    %150 = arith.mulf %148, %149 : vector<2x16xf32>
    %151 = vector.extract_strided_slice %150 {offsets = [0, 0], sizes = [1, 16], strides = [1, 1]} : vector<2x16xf32> to vector<1x16xf32>
    %152 = vector.broadcast %116 : vector<512x1xf32> to vector<512x16xf32>
    %153 = vector.broadcast %151 : vector<1x16xf32> to vector<512x16xf32>
    %154 = arith.mulf %152, %153 : vector<512x16xf32>
    %155 = vector.extract_strided_slice %150 {offsets = [1, 0], sizes = [1, 16], strides = [1, 1]} : vector<2x16xf32> to vector<1x16xf32>
    %156 = vector.broadcast %117 : vector<512x1xf32> to vector<512x16xf32>
    %157 = vector.broadcast %155 : vector<1x16xf32> to vector<512x16xf32>
    %158 = arith.mulf %156, %157 : vector<512x16xf32>
    %159 = arith.addf %154, %158 : vector<512x16xf32>
    %160 = arith.mulf %115, %159 : vector<512x16xf32>
    %cst_38 = arith.constant 3.000000e+00 : f32
    %161 = vector.broadcast %cst_38 : f32 to vector<512x16xf32>
    %162 = arith.addf %160, %161 : vector<512x16xf32>
    %cst_39 = arith.constant 0.000000e+00 : f32
    %163 = vector.broadcast %cst_39 : f32 to vector<512x16xf32>
    %164 = arith.maximumf %162, %163 : vector<512x16xf32>
    %cst_40 = arith.constant 6.000000e+00 : f32
    %165 = vector.broadcast %cst_40 : f32 to vector<512x16xf32>
    %166 = arith.minimumf %164, %165 : vector<512x16xf32>
    %167 = arith.mulf %160, %166 : vector<512x16xf32>
    %cst_41 = arith.constant 0.166666672 : f32
    %168 = vector.broadcast %cst_41 : f32 to vector<512x16xf32>
    %169 = arith.mulf %167, %168 : vector<512x16xf32>
    %c0_42 = arith.constant 0 : index
    %c0_43 = arith.constant 0 : index
    %170 = vector.load %arg7[%c0_42, %c0_43] : memref<16x8xf32, #tpu.memory_space<vmem>>, vector<16x8xf32>
    %cst_44 = arith.constant dense<0.000000e+00> : vector<512x8xf32>
    %171 = tpu.matmul %169, %170, %cst_44 {dimension_numbers = #tpu.dot_dimension_numbers<[1], [0], [0], [1], [0, 0, 1, 1], [], []>, precision = #tpu.contract_precision<fp32>} : vector<512x16xf32>, vector<16x8xf32>, vector<512x8xf32> -> vector<512x8xf32>
    %172 = vector.broadcast %13 : vector<1x8xf32> to vector<512x8xf32>
    %173 = arith.addf %171, %172 : vector<512x8xf32>
    %174 = vector.extract_strided_slice %17 {offsets = [0, 16], sizes = [512, 8], strides = [1, 1]} : vector<512x24xf32> to vector<512x8xf32>
    %175 = arith.addf %173, %174 : vector<512x8xf32>
    %c0_45 = arith.constant 0 : index
    %c0_46 = arith.constant 0 : index
    %176 = vector.load %arg9[%c0_45, %c0_46] : memref<512x8xf32, #tpu.memory_space<vmem>>, vector<512x8xf32>
    tpu.vector_store %arg9[%c0_45, %c0_46], %175 {strides = array<i32>} : memref<512x8xf32, #tpu.memory_space<vmem>>, vector<512x8xf32>,
    return
  }
  func.func @transform_0(%arg0: i32) -> (i32, i32) {
    %c0_i32 = arith.constant 0 : i32
    %c0_i32_0 = arith.constant 0 : i32
    %c0_i32_1 = arith.constant 0 : i32
    return %c0_i32, %c0_i32_0 : i32, i32
  }
  func.func @transform_1(%arg0: i32) -> (i32, i32) {
    %c0_i32 = arith.constant 0 : i32
    %c0_i32_0 = arith.constant 0 : i32
    %c0_i32_1 = arith.constant 0 : i32
    return %c0_i32, %c0_i32_0 : i32, i32
  }
  func.func @transform_2(%arg0: i32) -> (i32, i32) {
    %c0_i32 = arith.constant 0 : i32
    %c0_i32_0 = arith.constant 0 : i32
    %c0_i32_1 = arith.constant 0 : i32
    return %c0_i32, %c0_i32_0 : i32, i32
  }
  func.func @transform_3(%arg0: i32) -> (i32, i32) {
    %c0_i32 = arith.constant 0 : i32
    %c0_i32_0 = arith.constant 0 : i32
    %c0_i32_1 = arith.constant 0 : i32
    return %c0_i32, %c0_i32_0 : i32, i32
  }
  func.func @transform_4(%arg0: i32) -> (i32, i32) {
    %c0_i32 = arith.constant 0 : i32
    %c0_i32_0 = arith.constant 0 : i32
    %c0_i32_1 = arith.constant 0 : i32
    return %c0_i32, %c0_i32_0 : i32, i32
  }
  func.func @transform_5(%arg0: i32) -> (i32, i32) {
    %c0_i32 = arith.constant 0 : i32
    %c0_i32_0 = arith.constant 0 : i32
    %c0_i32_1 = arith.constant 0 : i32
    return %c0_i32, %c0_i32_0 : i32, i32
  }
  func.func @transform_6(%arg0: i32) -> (i32, i32) {
    %c0_i32 = arith.constant 0 : i32
    %c0_i32_0 = arith.constant 0 : i32
    %c0_i32_1 = arith.constant 0 : i32
    return %c0_i32, %c0_i32_0 : i32, i32
  }
  func.func @transform_7(%arg0: i32) -> (i32, i32) {
    %c0_i32 = arith.constant 0 : i32
    %c0_i32_0 = arith.constant 0 : i32
    %c0_i32_1 = arith.constant 0 : i32
    return %c0_i32, %c0_i32_0 : i32, i32
  }
  func.func @transform_8(%arg0: i32) -> (i32, i32) {
    %c0_i32 = arith.constant 0 : i32
    %c0_i32_0 = arith.constant 0 : i32
    %c0_i32_1 = arith.constant 0 : i32
    return %c0_i32, %c0_i32_0 : i32, i32
  }
}

</mosaic_0001>

<llo_original>
// kernel: tpu_custom_call.1
$region0: #{tpu_custom_call.1}
  #allocation0 [shape = 'u32[]', space=smem, size = 0x4, offset = 0x4, fixed_abs, tag = 'smem constant byte address 0x4 - core index']
  #allocation1 [shape = 'u32[72,128]{1,0:T(1,128)}', space=vmem, size = 0x9000, scoped, tag = 'internal scratch']
  %s0 = inlined_call_operand.vmem [shape: f32[512,4], index: 0, kind: input, shape index: {}]
  %s1 = inlined_call_operand.vmem [shape: f32[512,8], index: 1, kind: input, shape index: {}]
  %s2 = inlined_call_operand.vmem [shape: f32[4,24], index: 2, kind: input, shape index: {}]
  %s3 = inlined_call_operand.vmem [shape: f32[9,16], index: 3, kind: input, shape index: {}]
  %s4 = inlined_call_operand.vmem [shape: f32[16,4], index: 4, kind: input, shape index: {}]
  %s5 = inlined_call_operand.vmem [shape: f32[4,16], index: 5, kind: input, shape index: {}]
  %s6 = inlined_call_operand.vmem [shape: f32[16,8], index: 6, kind: input, shape index: {}]
  %s7 = inlined_call_operand.vmem [shape: f32[1,68], index: 7, kind: input, shape index: {}]
  %s8 = inlined_call_operand.vmem [shape: f32[512,8], index: 8, kind: output, shape index: {}]
  %s9 = sld [smem:[#allocation0]]
  $region42: #{tpu_custom_call.1} parent=0
    _
  %s11 = ssub.s32 1, %s9
  %s12 = scalar_select 0, %s11, %s9
  // Predicated region
  $region2: #{tpu_custom_call.1} parent=0 // pred_check
    _
  $region3: #{tpu_custom_call.1} parent=0 // pred_check_branch
    %14 = sbr.rel (0) target = $region5
  $region4: #{tpu_custom_call.1} parent=0 // pred_region
    _
  $region5: #{tpu_custom_call.1} parent=0 // pred_fallthru
    _
  // Predicated region
  $region6: #{tpu_custom_call.1} parent=0 // pred_check
    _
  $region7: #{tpu_custom_call.1} parent=0 // pred_check_branch
    %16 = sbr.rel (0) target = $region9
  $region8: #{tpu_custom_call.1} parent=0 // pred_region
    _
  $region9: #{tpu_custom_call.1} parent=0 // pred_fallthru
    _
  // Predicated region
  $region10: #{tpu_custom_call.1} parent=0 // pred_check
    _
  $region11: #{tpu_custom_call.1} parent=0 // pred_check_branch
    %18 = sbr.rel (0) target = $region13
  $region12: #{tpu_custom_call.1} parent=0 // pred_region
    _
  $region13: #{tpu_custom_call.1} parent=0 // pred_fallthru
    _
  // Predicated region
  $region14: #{tpu_custom_call.1} parent=0 // pred_check
    _
  $region15: #{tpu_custom_call.1} parent=0 // pred_check_branch
    %20 = sbr.rel (0) target = $region17
  $region16: #{tpu_custom_call.1} parent=0 // pred_region
    _
  $region17: #{tpu_custom_call.1} parent=0 // pred_fallthru
    _
  // Predicated region
  $region18: #{tpu_custom_call.1} parent=0 // pred_check
    _
  $region19: #{tpu_custom_call.1} parent=0 // pred_check_branch
    %22 = sbr.rel (0) target = $region21
  $region20: #{tpu_custom_call.1} parent=0 // pred_region
    _
  $region21: #{tpu_custom_call.1} parent=0 // pred_fallthru
    _
  // Predicated region
  $region22: #{tpu_custom_call.1} parent=0 // pred_check
    _
  $region23: #{tpu_custom_call.1} parent=0 // pred_check_branch
    %24 = sbr.rel (0) target = $region25
  $region24: #{tpu_custom_call.1} parent=0 // pred_region
    _
  $region25: #{tpu_custom_call.1} parent=0 // pred_fallthru
    _
  // Predicated region
  $region26: #{tpu_custom_call.1} parent=0 // pred_check
    _
  $region27: #{tpu_custom_call.1} parent=0 // pred_check_branch
    %26 = sbr.rel (0) target = $region29
  $region28: #{tpu_custom_call.1} parent=0 // pred_region
    _
  $region29: #{tpu_custom_call.1} parent=0 // pred_fallthru
    _
  // Predicated region
  $region30: #{tpu_custom_call.1} parent=0 // pred_check
    _
  $region31: #{tpu_custom_call.1} parent=0 // pred_check_branch
    %28 = sbr.rel (0) target = $region33
  $region32: #{tpu_custom_call.1} parent=0 // pred_region
    _
  $region33: #{tpu_custom_call.1} parent=0 // pred_fallthru
    _
  %v29 = vld [vmem:[%s0] sm:$0xff]
  %v30 = vld [vmem:[%s0 + $0x8] sm:$0xff]
  %v31 = vld [vmem:[%s0 + $0x10] sm:$0xff]
  %v32 = vld [vmem:[%s0 + $0x18] sm:$0xff]
  %v33 = vld [vmem:[%s0 + $0x20] sm:$0xff]
  %v34 = vld [vmem:[%s0 + $0x28] sm:$0xff]
  %v35 = vld [vmem:[%s0 + $0x30] sm:$0xff]
  %v36 = vld [vmem:[%s0 + $0x38] sm:$0xff]
  %v37 = vld [vmem:[%s0 + $0x40] sm:$0xff]
  %v38 = vld [vmem:[%s0 + $0x48] sm:$0xff]
  %v39 = vld [vmem:[%s0 + $0x50] sm:$0xff]
  %v40 = vld [vmem:[%s0 + $0x58] sm:$0xff]
  %v41 = vld [vmem:[%s0 + $0x60] sm:$0xff]
  %v42 = vld [vmem:[%s0 + $0x68] sm:$0xff]
  %v43 = vld [vmem:[%s0 + $0x70] sm:$0xff]
  %v44 = vld [vmem:[%s0 + $0x78] sm:$0xff]
  %v45 = vld [vmem:[%s0 + $0x80] sm:$0xff]
  %v46 = vld [vmem:[%s0 + $0x88] sm:$0xff]
  %v47 = vld [vmem:[%s0 + $0x90] sm:$0xff]
  %v48 = vld [vmem:[%s0 + $0x98] sm:$0xff]
  %v49 = vld [vmem:[%s0 + $0xa0] sm:$0xff]
  %v50 = vld [vmem:[%s0 + $0xa8] sm:$0xff]
  %v51 = vld [vmem:[%s0 + $0xb0] sm:$0xff]
  %v52 = vld [vmem:[%s0 + $0xb8] sm:$0xff]
  %v53 = vld [vmem:[%s0 + $0xc0] sm:$0xff]
  %v54 = vld [vmem:[%s0 + $0xc8] sm:$0xff]
  %v55 = vld [vmem:[%s0 + $0xd0] sm:$0xff]
  %v56 = vld [vmem:[%s0 + $0xd8] sm:$0xff]
  %v57 = vld [vmem:[%s0 + $0xe0] sm:$0xff]
  %v58 = vld [vmem:[%s0 + $0xe8] sm:$0xff]
  %v59 = vld [vmem:[%s0 + $0xf0] sm:$0xff]
  %v60 = vld [vmem:[%s0 + $0xf8] sm:$0xff]
  %v61 = vld [vmem:[%s0 + $0x100] sm:$0xff]
  %v62 = vld [vmem:[%s0 + $0x108] sm:$0xff]
  %v63 = vld [vmem:[%s0 + $0x110] sm:$0xff]
  %v64 = vld [vmem:[%s0 + $0x118] sm:$0xff]
  %v65 = vld [vmem:[%s0 + $0x120] sm:$0xff]
  %v66 = vld [vmem:[%s0 + $0x128] sm:$0xff]
  %v67 = vld [vmem:[%s0 + $0x130] sm:$0xff]
  %v68 = vld [vmem:[%s0 + $0x138] sm:$0xff]
  %v69 = vld [vmem:[%s0 + $0x140] sm:$0xff]
  %v70 = vld [vmem:[%s0 + $0x148] sm:$0xff]
  %v71 = vld [vmem:[%s0 + $0x150] sm:$0xff]
  %v72 = vld [vmem:[%s0 + $0x158] sm:$0xff]
  %v73 = vld [vmem:[%s0 + $0x160] sm:$0xff]
  %v74 = vld [vmem:[%s0 + $0x168] sm:$0xff]
  %v75 = vld [vmem:[%s0 + $0x170] sm:$0xff]
  %v76 = vld [vmem:[%s0 + $0x178] sm:$0xff]
  %v77 = vld [vmem:[%s0 + $0x180] sm:$0xff]
  %v78 = vld [vmem:[%s0 + $0x188] sm:$0xff]
  %v79 = vld [vmem:[%s0 + $0x190] sm:$0xff]
  %v80 = vld [vmem:[%s0 + $0x198] sm:$0xff]
  %v81 = vld [vmem:[%s0 + $0x1a0] sm:$0xff]
  %v82 = vld [vmem:[%s0 + $0x1a8] sm:$0xff]
  %v83 = vld [vmem:[%s0 + $0x1b0] sm:$0xff]
  %v84 = vld [vmem:[%s0 + $0x1b8] sm:$0xff]
  %v85 = vld [vmem:[%s0 + $0x1c0] sm:$0xff]
  %v86 = vld [vmem:[%s0 + $0x1c8] sm:$0xff]
  %v87 = vld [vmem:[%s0 + $0x1d0] sm:$0xff]
  %v88 = vld [vmem:[%s0 + $0x1d8] sm:$0xff]
  %v89 = vld [vmem:[%s0 + $0x1e0] sm:$0xff]
  %v90 = vld [vmem:[%s0 + $0x1e8] sm:$0xff]
  %v91 = vld [vmem:[%s0 + $0x1f0] sm:$0xff]
  %v92 = vld [vmem:[%s0 + $0x1f8] sm:$0xff]
  %v93 = vld [vmem:[%s1] sm:$0xff]
  %v94 = vld [vmem:[%s1 + $0x8] sm:$0xff]
  %v95 = vld [vmem:[%s1 + $0x10] sm:$0xff]
  %v96 = vld [vmem:[%s1 + $0x18] sm:$0xff]
  %v97 = vld [vmem:[%s1 + $0x20] sm:$0xff]
  %v98 = vld [vmem:[%s1 + $0x28] sm:$0xff]
  %v99 = vld [vmem:[%s1 + $0x30] sm:$0xff]
  %v100 = vld [vmem:[%s1 + $0x38] sm:$0xff]
  %v101 = vld [vmem:[%s1 + $0x40] sm:$0xff]
  %v102 = vld [vmem:[%s1 + $0x48] sm:$0xff]
  %v103 = vld [vmem:[%s1 + $0x50] sm:$0xff]
  %v104 = vld [vmem:[%s1 + $0x58] sm:$0xff]
  %v105 = vld [vmem:[%s1 + $0x60] sm:$0xff]
  %v106 = vld [vmem:[%s1 + $0x68] sm:$0xff]
  %v107 = vld [vmem:[%s1 + $0x70] sm:$0xff]
  %v108 = vld [vmem:[%s1 + $0x78] sm:$0xff]
  %v109 = vld [vmem:[%s1 + $0x80] sm:$0xff]
  %v110 = vld [vmem:[%s1 + $0x88] sm:$0xff]
  %v111 = vld [vmem:[%s1 + $0x90] sm:$0xff]
  %v112 = vld [vmem:[%s1 + $0x98] sm:$0xff]
  %v113 = vld [vmem:[%s1 + $0xa0] sm:$0xff]
  %v114 = vld [vmem:[%s1 + $0xa8] sm:$0xff]
  %v115 = vld [vmem:[%s1 + $0xb0] sm:$0xff]
  %v116 = vld [vmem:[%s1 + $0xb8] sm:$0xff]
  %v117 = vld [vmem:[%s1 + $0xc0] sm:$0xff]
  %v118 = vld [vmem:[%s1 + $0xc8] sm:$0xff]
  %v119 = vld [vmem:[%s1 + $0xd0] sm:$0xff]
  %v120 = vld [vmem:[%s1 + $0xd8] sm:$0xff]
  %v121 = vld [vmem:[%s1 + $0xe0] sm:$0xff]
  %v122 = vld [vmem:[%s1 + $0xe8] sm:$0xff]
  %v123 = vld [vmem:[%s1 + $0xf0] sm:$0xff]
  %v124 = vld [vmem:[%s1 + $0xf8] sm:$0xff]
  %v125 = vld [vmem:[%s1 + $0x100] sm:$0xff]
  %v126 = vld [vmem:[%s1 + $0x108] sm:$0xff]
  %v127 = vld [vmem:[%s1 + $0x110] sm:$0xff]
  %v128 = vld [vmem:[%s1 + $0x118] sm:$0xff]
  %v129 = vld [vmem:[%s1 + $0x120] sm:$0xff]
  %v130 = vld [vmem:[%s1 + $0x128] sm:$0xff]
  %v131 = vld [vmem:[%s1 + $0x130] sm:$0xff]
  %v132 = vld [vmem:[%s1 + $0x138] sm:$0xff]
  %v133 = vld [vmem:[%s1 + $0x140] sm:$0xff]
  %v134 = vld [vmem:[%s1 + $0x148] sm:$0xff]
  %v135 = vld [vmem:[%s1 + $0x150] sm:$0xff]
  %v136 = vld [vmem:[%s1 + $0x158] sm:$0xff]
  %v137 = vld [vmem:[%s1 + $0x160] sm:$0xff]
  %v138 = vld [vmem:[%s1 + $0x168] sm:$0xff]
  %v139 = vld [vmem:[%s1 + $0x170] sm:$0xff]
  %v140 = vld [vmem:[%s1 + $0x178] sm:$0xff]
  %v141 = vld [vmem:[%s1 + $0x180] sm:$0xff]
  %v142 = vld [vmem:[%s1 + $0x188] sm:$0xff]
  %v143 = vld [vmem:[%s1 + $0x190] sm:$0xff]
  %v144 = vld [vmem:[%s1 + $0x198] sm:$0xff]
  %v145 = vld [vmem:[%s1 + $0x1a0] sm:$0xff]
  %v146 = vld [vmem:[%s1 + $0x1a8] sm:$0xff]
  %v147 = vld [vmem:[%s1 + $0x1b0] sm:$0xff]
  %v148 = vld [vmem:[%s1 + $0x1b8] sm:$0xff]
  %v149 = vld [vmem:[%s1 + $0x1c0] sm:$0xff]
  %v150 = vld [vmem:[%s1 + $0x1c8] sm:$0xff]
  %v151 = vld [vmem:[%s1 + $0x1d0] sm:$0xff]
  %v152 = vld [vmem:[%s1 + $0x1d8] sm:$0xff]
  %v153 = vld [vmem:[%s1 + $0x1e0] sm:$0xff]
  %v154 = vld [vmem:[%s1 + $0x1e8] sm:$0xff]
  %v155 = vld [vmem:[%s1 + $0x1f0] sm:$0xff]
  %v156 = vld [vmem:[%s1 + $0x1f8] sm:$0xff]
  %v157 = vld [vmem:[%s7] sm:$0x1]
  %v158 = vld [vmem:[%s2] sm:$0xf]
  %v160 = vperm.slane %v157, 0
  %vm162 = vcmask 31744
  %v164 = vsel %vm162, %v29, 0
  %v167 = vsel %vm162, %v30, 0
  %v170 = vsel %vm162, %v31, 0
  %v173 = vsel %vm162, %v32, 0
  %v176 = vsel %vm162, %v33, 0
  %v179 = vsel %vm162, %v34, 0
  %v182 = vsel %vm162, %v35, 0
  %v185 = vsel %vm162, %v36, 0
  %v188 = vsel %vm162, %v37, 0
  %v191 = vsel %vm162, %v38, 0
  %v194 = vsel %vm162, %v39, 0
  %v197 = vsel %vm162, %v40, 0
  %v200 = vsel %vm162, %v41, 0
  %v203 = vsel %vm162, %v42, 0
  %v206 = vsel %vm162, %v43, 0
  %v209 = vsel %vm162, %v44, 0
  %v212 = vsel %vm162, %v45, 0
  %v215 = vsel %vm162, %v46, 0
  %v218 = vsel %vm162, %v47, 0
  %v221 = vsel %vm162, %v48, 0
  %v224 = vsel %vm162, %v49, 0
  %v227 = vsel %vm162, %v50, 0
  %v230 = vsel %vm162, %v51, 0
  %v233 = vsel %vm162, %v52, 0
  %v236 = vsel %vm162, %v53, 0
  %v239 = vsel %vm162, %v54, 0
  %v242 = vsel %vm162, %v55, 0
  %v245 = vsel %vm162, %v56, 0
  %v248 = vsel %vm162, %v57, 0
  %v251 = vsel %vm162, %v58, 0
  %v254 = vsel %vm162, %v59, 0
  %v257 = vsel %vm162, %v60, 0
  %v260 = vsel %vm162, %v61, 0
  %v263 = vsel %vm162, %v62, 0
  %v266 = vsel %vm162, %v63, 0
  %v269 = vsel %vm162, %v64, 0
  %v272 = vsel %vm162, %v65, 0
  %v275 = vsel %vm162, %v66, 0
  %v278 = vsel %vm162, %v67, 0
  %v281 = vsel %vm162, %v68, 0
  %v284 = vsel %vm162, %v69, 0
  %v287 = vsel %vm162, %v70, 0
  %v290 = vsel %vm162, %v71, 0
  %v293 = vsel %vm162, %v72, 0
  %v296 = vsel %vm162, %v73, 0
  %v299 = vsel %vm162, %v74, 0
  %v302 = vsel %vm162, %v75, 0
  %v305 = vsel %vm162, %v76, 0
  %v308 = vsel %vm162, %v77, 0
  %v311 = vsel %vm162, %v78, 0
  %v314 = vsel %vm162, %v79, 0
  %v317 = vsel %vm162, %v80, 0
  %v320 = vsel %vm162, %v81, 0
  %v323 = vsel %vm162, %v82, 0
  %v326 = vsel %vm162, %v83, 0
  %v329 = vsel %vm162, %v84, 0
  %v332 = vsel %vm162, %v85, 0
  %v335 = vsel %vm162, %v86, 0
  %v338 = vsel %vm162, %v87, 0
  %v341 = vsel %vm162, %v88, 0
  %v344 = vsel %vm162, %v89, 0
  %v347 = vsel %vm162, %v90, 0
  %v350 = vsel %vm162, %v91, 0
  %v353 = vsel %vm162, %v92, 0
  %vm355 = vcmask 1043456
  %v357 = vsel %vm355, %v158, 0
  %359 = vmatpush.msra.mxu0 0.0
  %360 = vmatpush.msra.mxu0 0.0
  %361 = vmatpush.msra.mxu0 0.0
  %362 = vmatpush.msra.mxu0 0.0
  %363 = vmatpush.msra.mxu0 0.0
  %364 = vmatpush.msra.mxu0 0.0
  %365 = vmatpush.msra.mxu0 0.0
  %366 = vmatpush.msra.mxu0 0.0
  %367 = vmatpush.msra.mxu0 0.0
  %368 = vmatpush.msra.mxu0 0.0
  %369 = vmatpush.msra.mxu0 0.0
  %370 = vmatpush.msra.mxu0 0.0
  %371 = vmatpush.msra.mxu0 0.0
  %372 = vmatpush.msra.mxu0 0.0
  %373 = vmatpush.msra.mxu0 0.0
  %v374 = vand.u32 %v357, 4294901760
  %375 = vmatpush.msra.mxu0 %v374
  %v376 = vand.u32 %v164, 4294901760
  %v377 = vsub.f32 %v164, %v376
  %v378 = vand.u32 %v377, 4294901760
  %v379 = vsub.f32 %v377, %v378
  %v380 = vand.u32 %v379, 4294901760
  %381 = vmatmul.f32.gmra.mxu0 %v380
  %v382 = vpop.f32.mrf.mxu0
  %v383 = vadd.f32 %v160, %v382
  %v384 = vand.u32 %v167, 4294901760
  %v385 = vsub.f32 %v167, %v384
  %v386 = vand.u32 %v385, 4294901760
  %v387 = vsub.f32 %v385, %v386
  %v388 = vand.u32 %v387, 4294901760
  %389 = vmatmul.f32.gmra.mxu0 %v388
  %v390 = vpop.f32.mrf.mxu0
  %v391 = vadd.f32 %v160, %v390
  %v392 = vand.u32 %v170, 4294901760
  %v393 = vsub.f32 %v170, %v392
  %v394 = vand.u32 %v393, 4294901760
  %v395 = vsub.f32 %v393, %v394
  %v396 = vand.u32 %v395, 4294901760
  %397 = vmatmul.f32.gmra.mxu0 %v396
  %v398 = vpop.f32.mrf.mxu0
  %v399 = vadd.f32 %v160, %v398
  %v400 = vand.u32 %v173, 4294901760
  %v401 = vsub.f32 %v173, %v400
  %v402 = vand.u32 %v401, 4294901760
  %v403 = vsub.f32 %v401, %v402
  %v404 = vand.u32 %v403, 4294901760
  %405 = vmatmul.f32.gmra.mxu0 %v404
  %v406 = vpop.f32.mrf.mxu0
  %v407 = vadd.f32 %v160, %v406
  %v408 = vand.u32 %v176, 4294901760
  %v409 = vsub.f32 %v176, %v408
  %v410 = vand.u32 %v409, 4294901760
  %v411 = vsub.f32 %v409, %v410
  %v412 = vand.u32 %v411, 4294901760
  %413 = vmatmul.f32.gmra.mxu0 %v412
  %v414 = vpop.f32.mrf.mxu0
  %v415 = vadd.f32 %v160, %v414
  %v416 = vand.u32 %v179, 4294901760
  %v417 = vsub.f32 %v179, %v416
  %v418 = vand.u32 %v417, 4294901760
  %v419 = vsub.f32 %v417, %v418
  %v420 = vand.u32 %v419, 4294901760
  %421 = vmatmul.f32.gmra.mxu0 %v420
  %v422 = vpop.f32.mrf.mxu0
  %v423 = vadd.f32 %v160, %v422
  %v424 = vand.u32 %v182, 4294901760
  %v425 = vsub.f32 %v182, %v424
  %v426 = vand.u32 %v425, 4294901760
  %v427 = vsub.f32 %v425, %v426
  %v428 = vand.u32 %v427, 4294901760
  %429 = vmatmul.f32.gmra.mxu0 %v428
  %v430 = vpop.f32.mrf.mxu0
  %v431 = vadd.f32 %v160, %v430
  %v432 = vand.u32 %v185, 4294901760
  %v433 = vsub.f32 %v185, %v432
  %v434 = vand.u32 %v433, 4294901760
  %v435 = vsub.f32 %v433, %v434
  %v436 = vand.u32 %v435, 4294901760
  %437 = vmatmul.f32.gmra.mxu0 %v436
  %v438 = vpop.f32.mrf.mxu0
  %v439 = vadd.f32 %v160, %v438
  %v440 = vand.u32 %v188, 4294901760
  %v441 = vsub.f32 %v188, %v440
  %v442 = vand.u32 %v441, 4294901760
  %v443 = vsub.f32 %v441, %v442
  %v444 = vand.u32 %v443, 4294901760
  %445 = vmatmul.f32.gmra.mxu0 %v444
  %v446 = vpop.f32.mrf.mxu0
  %v447 = vadd.f32 %v160, %v446
  %v448 = vand.u32 %v191, 4294901760
  %v449 = vsub.f32 %v191, %v448
  %v450 = vand.u32 %v449, 4294901760
  %v451 = vsub.f32 %v449, %v450
  %v452 = vand.u32 %v451, 4294901760
  %453 = vmatmul.f32.gmra.mxu0 %v452
  %v454 = vpop.f32.mrf.mxu0
  %v455 = vadd.f32 %v160, %v454
  %v456 = vand.u32 %v194, 4294901760
  %v457 = vsub.f32 %v194, %v456
  %v458 = vand.u32 %v457, 4294901760
  %v459 = vsub.f32 %v457, %v458
  %v460 = vand.u32 %v459, 4294901760
  %461 = vmatmul.f32.gmra.mxu0 %v460
  %v462 = vpop.f32.mrf.mxu0
  %v463 = vadd.f32 %v160, %v462
  %v464 = vand.u32 %v197, 4294901760
  %v465 = vsub.f32 %v197, %v464
  %v466 = vand.u32 %v465, 4294901760
  %v467 = vsub.f32 %v465, %v466
  %v468 = vand.u32 %v467, 4294901760
  %469 = vmatmul.f32.gmra.mxu0 %v468
  %v470 = vpop.f32.mrf.mxu0
  %v471 = vadd.f32 %v160, %v470
  %v472 = vand.u32 %v200, 4294901760
  %v473 = vsub.f32 %v200, %v472
  %v474 = vand.u32 %v473, 4294901760
  %v475 = vsub.f32 %v473, %v474
  %v476 = vand.u32 %v475, 4294901760
  %477 = vmatmul.f32.gmra.mxu0 %v476
  %v478 = vpop.f32.mrf.mxu0
  %v479 = vadd.f32 %v160, %v478
  %v480 = vand.u32 %v203, 4294901760
  %v481 = vsub.f32 %v203, %v480
  %v482 = vand.u32 %v481, 4294901760
  %v483 = vsub.f32 %v481, %v482
  %v484 = vand.u32 %v483, 4294901760
  %485 = vmatmul.f32.gmra.mxu0 %v484
  %v486 = vpop.f32.mrf.mxu0
  %v487 = vadd.f32 %v160, %v486
  %v488 = vand.u32 %v206, 4294901760
  %v489 = vsub.f32 %v206, %v488
  %v490 = vand.u32 %v489, 4294901760
  %v491 = vsub.f32 %v489, %v490
  %v492 = vand.u32 %v491, 4294901760
  %493 = vmatmul.f32.gmra.mxu0 %v492
  %v494 = vpop.f32.mrf.mxu0
  %v495 = vadd.f32 %v160, %v494
  %v496 = vand.u32 %v209, 4294901760
  %v497 = vsub.f32 %v209, %v496
  %v498 = vand.u32 %v497, 4294901760
  %v499 = vsub.f32 %v497, %v498
  %v500 = vand.u32 %v499, 4294901760
  %501 = vmatmul.f32.gmra.mxu0 %v500
  %v502 = vpop.f32.mrf.mxu0
  %v503 = vadd.f32 %v160, %v502
  %v504 = vand.u32 %v212, 4294901760
  %v505 = vsub.f32 %v212, %v504
  %v506 = vand.u32 %v505, 4294901760
  %v507 = vsub.f32 %v505, %v506
  %v508 = vand.u32 %v507, 4294901760
  %509 = vmatmul.f32.gmra.mxu0 %v508
  %v510 = vpop.f32.mrf.mxu0
  %v511 = vadd.f32 %v160, %v510
  %v512 = vand.u32 %v215, 4294901760
  %v513 = vsub.f32 %v215, %v512
  %v514 = vand.u32 %v513, 4294901760
  %v515 = vsub.f32 %v513, %v514
  %v516 = vand.u32 %v515, 4294901760
  %517 = vmatmul.f32.gmra.mxu0 %v516
  %v518 = vpop.f32.mrf.mxu0
  %v519 = vadd.f32 %v160, %v518
  %v520 = vand.u32 %v218, 4294901760
  %v521 = vsub.f32 %v218, %v520
  %v522 = vand.u32 %v521, 4294901760
  %v523 = vsub.f32 %v521, %v522
  %v524 = vand.u32 %v523, 4294901760
  %525 = vmatmul.f32.gmra.mxu0 %v524
  %v526 = vpop.f32.mrf.mxu0
  %v527 = vadd.f32 %v160, %v526
  %v528 = vand.u32 %v221, 4294901760
  %v529 = vsub.f32 %v221, %v528
  %v530 = vand.u32 %v529, 4294901760
  %v531 = vsub.f32 %v529, %v530
  %v532 = vand.u32 %v531, 4294901760
  %533 = vmatmul.f32.gmra.mxu0 %v532
  %v534 = vpop.f32.mrf.mxu0
  %v535 = vadd.f32 %v160, %v534
  %v536 = vand.u32 %v224, 4294901760
  %v537 = vsub.f32 %v224, %v536
  %v538 = vand.u32 %v537, 4294901760
  %v539 = vsub.f32 %v537, %v538
  %v540 = vand.u32 %v539, 4294901760
  %541 = vmatmul.f32.gmra.mxu0 %v540
  %v542 = vpop.f32.mrf.mxu0
  %v543 = vadd.f32 %v160, %v542
  %v544 = vand.u32 %v227, 4294901760
  %v545 = vsub.f32 %v227, %v544
  %v546 = vand.u32 %v545, 4294901760
  %v547 = vsub.f32 %v545, %v546
  %v548 = vand.u32 %v547, 4294901760
  %549 = vmatmul.f32.gmra.mxu0 %v548
  %v550 = vpop.f32.mrf.mxu0
  %v551 = vadd.f32 %v160, %v550
  %v552 = vand.u32 %v230, 4294901760
  %v553 = vsub.f32 %v230, %v552
  %v554 = vand.u32 %v553, 4294901760
  %v555 = vsub.f32 %v553, %v554
  %v556 = vand.u32 %v555, 4294901760
  %557 = vmatmul.f32.gmra.mxu0 %v556
  %v558 = vpop.f32.mrf.mxu0
  %v559 = vadd.f32 %v160, %v558
  %v560 = vand.u32 %v233, 4294901760
  %v561 = vsub.f32 %v233, %v560
  %v562 = vand.u32 %v561, 4294901760
  %v563 = vsub.f32 %v561, %v562
  %v564 = vand.u32 %v563, 4294901760
  %565 = vmatmul.f32.gmra.mxu0 %v564
  %v566 = vpop.f32.mrf.mxu0
  %v567 = vadd.f32 %v160, %v566
  %v568 = vand.u32 %v236, 4294901760
  %v569 = vsub.f32 %v236, %v568
  %v570 = vand.u32 %v569, 4294901760
  %v571 = vsub.f32 %v569, %v570
  %v572 = vand.u32 %v571, 4294901760
  %573 = vmatmul.f32.gmra.mxu0 %v572
  %v574 = vpop.f32.mrf.mxu0
  %v575 = vadd.f32 %v160, %v574
  %v576 = vand.u32 %v239, 4294901760
  %v577 = vsub.f32 %v239, %v576
  %v578 = vand.u32 %v577, 4294901760
  %v579 = vsub.f32 %v577, %v578
  %v580 = vand.u32 %v579, 4294901760
  %581 = vmatmul.f32.gmra.mxu0 %v580
  %v582 = vpop.f32.mrf.mxu0
  %v583 = vadd.f32 %v160, %v582
  %v584 = vand.u32 %v242, 4294901760
  %v585 = vsub.f32 %v242, %v584
  %v586 = vand.u32 %v585, 4294901760
  %v587 = vsub.f32 %v585, %v586
  %v588 = vand.u32 %v587, 4294901760
  %589 = vmatmul.f32.gmra.mxu0 %v588
  %v590 = vpop.f32.mrf.mxu0
  %v591 = vadd.f32 %v160, %v590
  %v592 = vand.u32 %v245, 4294901760
  %v593 = vsub.f32 %v245, %v592
  %v594 = vand.u32 %v593, 4294901760
  %v595 = vsub.f32 %v593, %v594
  %v596 = vand.u32 %v595, 4294901760
  %597 = vmatmul.f32.gmra.mxu0 %v596
  %v598 = vpop.f32.mrf.mxu0
  %v599 = vadd.f32 %v160, %v598
  %v600 = vand.u32 %v248, 4294901760
  %v601 = vsub.f32 %v248, %v600
  %v602 = vand.u32 %v601, 4294901760
  %v603 = vsub.f32 %v601, %v602
  %v604 = vand.u32 %v603, 4294901760
  %605 = vmatmul.f32.gmra.mxu0 %v604
  %v606 = vpop.f32.mrf.mxu0
  %v607 = vadd.f32 %v160, %v606
  %v608 = vand.u32 %v251, 4294901760
  %v609 = vsub.f32 %v251, %v608
  %v610 = vand.u32 %v609, 4294901760
  %v611 = vsub.f32 %v609, %v610
  %v612 = vand.u32 %v611, 4294901760
  %613 = vmatmul.f32.gmra.mxu0 %v612
  %v614 = vpop.f32.mrf.mxu0
  %v615 = vadd.f32 %v160, %v614
  %v616 = vand.u32 %v254, 4294901760
  %v617 = vsub.f32 %v254, %v616
  %v618 = vand.u32 %v617, 4294901760
  %v619 = vsub.f32 %v617, %v618
  %v620 = vand.u32 %v619, 4294901760
  %621 = vmatmul.f32.gmra.mxu0 %v620
  %v622 = vpop.f32.mrf.mxu0
  %v623 = vadd.f32 %v160, %v622
  %v624 = vand.u32 %v257, 4294901760
  %v625 = vsub.f32 %v257, %v624
  %v626 = vand.u32 %v625, 4294901760
  %v627 = vsub.f32 %v625, %v626
  %v628 = vand.u32 %v627, 4294901760
  %629 = vmatmul.f32.gmra.mxu0 %v628
  %v630 = vpop.f32.mrf.mxu0
  %v631 = vadd.f32 %v160, %v630
  %v632 = vand.u32 %v260, 4294901760
  %v633 = vsub.f32 %v260, %v632
  %v634 = vand.u32 %v633, 4294901760
  %v635 = vsub.f32 %v633, %v634
  %v636 = vand.u32 %v635, 4294901760
  %637 = vmatmul.f32.gmra.mxu0 %v636
  %v638 = vpop.f32.mrf.mxu0
  %v639 = vadd.f32 %v160, %v638
  %v640 = vand.u32 %v263, 4294901760
  %v641 = vsub.f32 %v263, %v640
  %v642 = vand.u32 %v641, 4294901760
  %v643 = vsub.f32 %v641, %v642
  %v644 = vand.u32 %v643, 4294901760
  %645 = vmatmul.f32.gmra.mxu0 %v644
  %v646 = vpop.f32.mrf.mxu0
  %v647 = vadd.f32 %v160, %v646
  %v648 = vand.u32 %v266, 4294901760
  %v649 = vsub.f32 %v266, %v648
  %v650 = vand.u32 %v649, 4294901760
  %v651 = vsub.f32 %v649, %v650
  %v652 = vand.u32 %v651, 4294901760
  %653 = vmatmul.f32.gmra.mxu0 %v652
  %v654 = vpop.f32.mrf.mxu0
  %v655 = vadd.f32 %v160, %v654
  %v656 = vand.u32 %v269, 4294901760
  %v657 = vsub.f32 %v269, %v656
  %v658 = vand.u32 %v657, 4294901760
  %v659 = vsub.f32 %v657, %v658
  %v660 = vand.u32 %v659, 4294901760
  %661 = vmatmul.f32.gmra.mxu0 %v660
  %v662 = vpop.f32.mrf.mxu0
  %v663 = vadd.f32 %v160, %v662
  %v664 = vand.u32 %v272, 4294901760
  %v665 = vsub.f32 %v272, %v664
  %v666 = vand.u32 %v665, 4294901760
  %v667 = vsub.f32 %v665, %v666
  %v668 = vand.u32 %v667, 4294901760
  %669 = vmatmul.f32.gmra.mxu0 %v668
  %v670 = vpop.f32.mrf.mxu0
  %v671 = vadd.f32 %v160, %v670
  %v672 = vand.u32 %v275, 4294901760
  %v673 = vsub.f32 %v275, %v672
  %v674 = vand.u32 %v673, 4294901760
  %v675 = vsub.f32 %v673, %v674
  %v676 = vand.u32 %v675, 4294901760
  %677 = vmatmul.f32.gmra.mxu0 %v676
  %v678 = vpop.f32.mrf.mxu0
  %v679 = vadd.f32 %v160, %v678
  %v680 = vand.u32 %v278, 4294901760
  %v681 = vsub.f32 %v278, %v680
  %v682 = vand.u32 %v681, 4294901760
  %v683 = vsub.f32 %v681, %v682
  %v684 = vand.u32 %v683, 4294901760
  %685 = vmatmul.f32.gmra.mxu0 %v684
  %v686 = vpop.f32.mrf.mxu0
  %v687 = vadd.f32 %v160, %v686
  %v688 = vand.u32 %v281, 4294901760
  %v689 = vsub.f32 %v281, %v688
  %v690 = vand.u32 %v689, 4294901760
  %v691 = vsub.f32 %v689, %v690
  %v692 = vand.u32 %v691, 4294901760
  %693 = vmatmul.f32.gmra.mxu0 %v692
  %v694 = vpop.f32.mrf.mxu0
  %v695 = vadd.f32 %v160, %v694
  %v696 = vand.u32 %v284, 4294901760
  %v697 = vsub.f32 %v284, %v696
  %v698 = vand.u32 %v697, 4294901760
  %v699 = vsub.f32 %v697, %v698
  %v700 = vand.u32 %v699, 4294901760
  %701 = vmatmul.f32.gmra.mxu0 %v700
  %v702 = vpop.f32.mrf.mxu0
  %v703 = vadd.f32 %v160, %v702
  %v704 = vand.u32 %v287, 4294901760
  %v705 = vsub.f32 %v287, %v704
  %v706 = vand.u32 %v705, 4294901760
  %v707 = vsub.f32 %v705, %v706
  %v708 = vand.u32 %v707, 4294901760
  %709 = vmatmul.f32.gmra.mxu0 %v708
  %v710 = vpop.f32.mrf.mxu0
  %v711 = vadd.f32 %v160, %v710
  %v712 = vand.u32 %v290, 4294901760
  %v713 = vsub.f32 %v290, %v712
  %v714 = vand.u32 %v713, 4294901760
  %v715 = vsub.f32 %v713, %v714
  %v716 = vand.u32 %v715, 4294901760
  %717 = vmatmul.f32.gmra.mxu0 %v716
  %v718 = vpop.f32.mrf.mxu0
  %v719 = vadd.f32 %v160, %v718
  %v720 = vand.u32 %v293, 4294901760
  %v721 = vsub.f32 %v293, %v720
  %v722 = vand.u32 %v721, 4294901760
  %v723 = vsub.f32 %v721, %v722
  %v724 = vand.u32 %v723, 4294901760
  %725 = vmatmul.f32.gmra.mxu0 %v724
  %v726 = vpop.f32.mrf.mxu0
  %v727 = vadd.f32 %v160, %v726
  %v728 = vand.u32 %v296, 4294901760
  %v729 = vsub.f32 %v296, %v728
  %v730 = vand.u32 %v729, 4294901760
  %v731 = vsub.f32 %v729, %v730
  %v732 = vand.u32 %v731, 4294901760
  %733 = vmatmul.f32.gmra.mxu0 %v732
  %v734 = vpop.f32.mrf.mxu0
  %v735 = vadd.f32 %v160, %v734
  %v736 = vand.u32 %v299, 4294901760
  %v737 = vsub.f32 %v299, %v736
  %v738 = vand.u32 %v737, 4294901760
  %v739 = vsub.f32 %v737, %v738
  %v740 = vand.u32 %v739, 4294901760
  %741 = vmatmul.f32.gmra.mxu0 %v740
  %v742 = vpop.f32.mrf.mxu0
  %v743 = vadd.f32 %v160, %v742
  %v744 = vand.u32 %v302, 4294901760
  %v745 = vsub.f32 %v302, %v744
  %v746 = vand.u32 %v745, 4294901760
  %v747 = vsub.f32 %v745, %v746
  %v748 = vand.u32 %v747, 4294901760
  %749 = vmatmul.f32.gmra.mxu0 %v748
  %v750 = vpop.f32.mrf.mxu0
  %v751 = vadd.f32 %v160, %v750
  %v752 = vand.u32 %v305, 4294901760
  %v753 = vsub.f32 %v305, %v752
  %v754 = vand.u32 %v753, 4294901760
  %v755 = vsub.f32 %v753, %v754
  %v756 = vand.u32 %v755, 4294901760
  %757 = vmatmul.f32.gmra.mxu0 %v756
  %v758 = vpop.f32.mrf.mxu0
  %v759 = vadd.f32 %v160, %v758
  %v760 = vand.u32 %v308, 4294901760
  %v761 = vsub.f32 %v308, %v760
  %v762 = vand.u32 %v761, 4294901760
  %v763 = vsub.f32 %v761, %v762
  %v764 = vand.u32 %v763, 4294901760
  %765 = vmatmul.f32.gmra.mxu0 %v764
  %v766 = vpop.f32.mrf.mxu0
  %v767 = vadd.f32 %v160, %v766
  %v768 = vand.u32 %v311, 4294901760
  %v769 = vsub.f32 %v311, %v768
  %v770 = vand.u32 %v769, 4294901760
  %v771 = vsub.f32 %v769, %v770
  %v772 = vand.u32 %v771, 4294901760
  %773 = vmatmul.f32.gmra.mxu0 %v772
  %v774 = vpop.f32.mrf.mxu0
  %v775 = vadd.f32 %v160, %v774
  %v776 = vand.u32 %v314, 4294901760
  %v777 = vsub.f32 %v314, %v776
  %v778 = vand.u32 %v777, 4294901760
  %v779 = vsub.f32 %v777, %v778
  %v780 = vand.u32 %v779, 4294901760
  %781 = vmatmul.f32.gmra.mxu0 %v780
  %v782 = vpop.f32.mrf.mxu0
  %v783 = vadd.f32 %v160, %v782
  %v784 = vand.u32 %v317, 4294901760
  %v785 = vsub.f32 %v317, %v784
  %v786 = vand.u32 %v785, 4294901760
  %v787 = vsub.f32 %v785, %v786
  %v788 = vand.u32 %v787, 4294901760
  %789 = vmatmul.f32.gmra.mxu0 %v788
  %v790 = vpop.f32.mrf.mxu0
  %v791 = vadd.f32 %v160, %v790
  %v792 = vand.u32 %v320, 4294901760
  %v793 = vsub.f32 %v320, %v792
  %v794 = vand.u32 %v793, 4294901760
  %v795 = vsub.f32 %v793, %v794
  %v796 = vand.u32 %v795, 4294901760
  %797 = vmatmul.f32.gmra.mxu0 %v796
  %v798 = vpop.f32.mrf.mxu0
  %v799 = vadd.f32 %v160, %v798
  %v800 = vand.u32 %v323, 4294901760
  %v801 = vsub.f32 %v323, %v800
  %v802 = vand.u32 %v801, 4294901760
  %v803 = vsub.f32 %v801, %v802
  %v804 = vand.u32 %v803, 4294901760
  %805 = vmatmul.f32.gmra.mxu0 %v804
  %v806 = vpop.f32.mrf.mxu0
  %v807 = vadd.f32 %v160, %v806
  %v808 = vand.u32 %v326, 4294901760
  %v809 = vsub.f32 %v326, %v808
  %v810 = vand.u32 %v809, 4294901760
  %v811 = vsub.f32 %v809, %v810
  %v812 = vand.u32 %v811, 4294901760
  %813 = vmatmul.f32.gmra.mxu0 %v812
  %v814 = vpop.f32.mrf.mxu0
  %v815 = vadd.f32 %v160, %v814
  %v816 = vand.u32 %v329, 4294901760
  %v817 = vsub.f32 %v329, %v816
  %v818 = vand.u32 %v817, 4294901760
  %v819 = vsub.f32 %v817, %v818
  %v820 = vand.u32 %v819, 4294901760
  %821 = vmatmul.f32.gmra.mxu0 %v820
  %v822 = vpop.f32.mrf.mxu0
  %v823 = vadd.f32 %v160, %v822
  %v824 = vand.u32 %v332, 4294901760
  %v825 = vsub.f32 %v332, %v824
  %v826 = vand.u32 %v825, 4294901760
  %v827 = vsub.f32 %v825, %v826
  %v828 = vand.u32 %v827, 4294901760
  %829 = vmatmul.f32.gmra.mxu0 %v828
  %v830 = vpop.f32.mrf.mxu0
  %v831 = vadd.f32 %v160, %v830
  %v832 = vand.u32 %v335, 4294901760
  %v833 = vsub.f32 %v335, %v832
  %v834 = vand.u32 %v833, 4294901760
  %v835 = vsub.f32 %v833, %v834
  %v836 = vand.u32 %v835, 4294901760
  %837 = vmatmul.f32.gmra.mxu0 %v836
  %v838 = vpop.f32.mrf.mxu0
  %v839 = vadd.f32 %v160, %v838
  %v840 = vand.u32 %v338, 4294901760
  %v841 = vsub.f32 %v338, %v840
  %v842 = vand.u32 %v841, 4294901760
  %v843 = vsub.f32 %v841, %v842
  %v844 = vand.u32 %v843, 4294901760
  %845 = vmatmul.f32.gmra.mxu0 %v844
  %v846 = vpop.f32.mrf.mxu0
  %v847 = vadd.f32 %v160, %v846
  %v848 = vand.u32 %v341, 4294901760
  %v849 = vsub.f32 %v341, %v848
  %v850 = vand.u32 %v849, 4294901760
  %v851 = vsub.f32 %v849, %v850
  %v852 = vand.u32 %v851, 4294901760
  %853 = vmatmul.f32.gmra.mxu0 %v852
  %v854 = vpop.f32.mrf.mxu0
  %v855 = vadd.f32 %v160, %v854
  %v856 = vand.u32 %v344, 4294901760
  %v857 = vsub.f32 %v344, %v856
  %v858 = vand.u32 %v857, 4294901760
  %v859 = vsub.f32 %v857, %v858
  %v860 = vand.u32 %v859, 4294901760
  %861 = vmatmul.f32.gmra.mxu0 %v860
  %v862 = vpop.f32.mrf.mxu0
  %v863 = vadd.f32 %v160, %v862
  %v864 = vand.u32 %v347, 4294901760
  %v865 = vsub.f32 %v347, %v864
  %v866 = vand.u32 %v865, 4294901760
  %v867 = vsub.f32 %v865, %v866
  %v868 = vand.u32 %v867, 4294901760
  %869 = vmatmul.f32.gmra.mxu0 %v868
  %v870 = vpop.f32.mrf.mxu0
  %v871 = vadd.f32 %v160, %v870
  %v872 = vand.u32 %v350, 4294901760
  %v873 = vsub.f32 %v350, %v872
  %v874 = vand.u32 %v873, 4294901760
  %v875 = vsub.f32 %v873, %v874
  %v876 = vand.u32 %v875, 4294901760
  %877 = vmatmul.f32.gmra.mxu0 %v876
  %v878 = vpop.f32.mrf.mxu0
  %v879 = vadd.f32 %v160, %v878
  %v880 = vand.u32 %v353, 4294901760
  %v881 = vsub.f32 %v353, %v880
  %v882 = vand.u32 %v881, 4294901760
  %v883 = vsub.f32 %v881, %v882
  %v884 = vand.u32 %v883, 4294901760
  %885 = vmatmul.f32.gmra.mxu0 %v884
  %v886 = vpop.f32.mrf.mxu0
  %v887 = vadd.f32 %v160, %v886
  %888 = vdwg.mxu0
  %889 = vmatpush.msra.mxu0 0.0
  %890 = vmatpush.msra.mxu0 0.0
  %891 = vmatpush.msra.mxu0 0.0
  %892 = vmatpush.msra.mxu0 0.0
  %893 = vmatpush.msra.mxu0 0.0
  %894 = vmatpush.msra.mxu0 0.0
  %895 = vmatpush.msra.mxu0 0.0
  %896 = vmatpush.msra.mxu0 0.0
  %897 = vmatpush.msra.mxu0 0.0
  %898 = vmatpush.msra.mxu0 0.0
  %899 = vmatpush.msra.mxu0 0.0
  %900 = vmatpush.msra.mxu0 0.0
  %901 = vmatpush.msra.mxu0 0.0
  %902 = vmatpush.msra.mxu0 0.0
  %903 = vmatpush.msra.mxu0 0.0
  %v904 = vand.u32 %v357, 4294901760
  %v905 = vsub.f32 %v357, %v904
  %v906 = vand.u32 %v905, 4294901760
  %v907 = vsub.f32 %v905, %v906
  %v908 = vand.u32 %v907, 4294901760
  %909 = vmatpush.msra.mxu0 %v908
  %v910 = vand.u32 %v164, 4294901760
  %911 = vmatmul.f32.gmra.mxu0 %v910
  %v912 = vpop.f32.mrf.mxu0
  %v913 = vadd.f32 %v383, %v912
  %v914 = vand.u32 %v167, 4294901760
  %915 = vmatmul.f32.gmra.mxu0 %v914
  %v916 = vpop.f32.mrf.mxu0
  %v917 = vadd.f32 %v391, %v916
  %v918 = vand.u32 %v170, 4294901760
  %919 = vmatmul.f32.gmra.mxu0 %v918
  %v920 = vpop.f32.mrf.mxu0
  %v921 = vadd.f32 %v399, %v920
  %v922 = vand.u32 %v173, 4294901760
  %923 = vmatmul.f32.gmra.mxu0 %v922
  %v924 = vpop.f32.mrf.mxu0
  %v925 = vadd.f32 %v407, %v924
  %v926 = vand.u32 %v176, 4294901760
  %927 = vmatmul.f32.gmra.mxu0 %v926
  %v928 = vpop.f32.mrf.mxu0
  %v929 = vadd.f32 %v415, %v928
  %v930 = vand.u32 %v179, 4294901760
  %931 = vmatmul.f32.gmra.mxu0 %v930
  %v932 = vpop.f32.mrf.mxu0
  %v933 = vadd.f32 %v423, %v932
  %v934 = vand.u32 %v182, 4294901760
  %935 = vmatmul.f32.gmra.mxu0 %v934
  %v936 = vpop.f32.mrf.mxu0
  %v937 = vadd.f32 %v431, %v936
  %v938 = vand.u32 %v185, 4294901760
  %939 = vmatmul.f32.gmra.mxu0 %v938
  %v940 = vpop.f32.mrf.mxu0
  %v941 = vadd.f32 %v439, %v940
  %v942 = vand.u32 %v188, 4294901760
  %943 = vmatmul.f32.gmra.mxu0 %v942
  %v944 = vpop.f32.mrf.mxu0
  %v945 = vadd.f32 %v447, %v944
  %v946 = vand.u32 %v191, 4294901760
  %947 = vmatmul.f32.gmra.mxu0 %v946
  %v948 = vpop.f32.mrf.mxu0
  %v949 = vadd.f32 %v455, %v948
  %v950 = vand.u32 %v194, 4294901760
  %951 = vmatmul.f32.gmra.mxu0 %v950
  %v952 = vpop.f32.mrf.mxu0
  %v953 = vadd.f32 %v463, %v952
  %v954 = vand.u32 %v197, 4294901760
  %955 = vmatmul.f32.gmra.mxu0 %v954
  %v956 = vpop.f32.mrf.mxu0
  %v957 = vadd.f32 %v471, %v956
  %v958 = vand.u32 %v200, 4294901760
  %959 = vmatmul.f32.gmra.mxu0 %v958
  %v960 = vpop.f32.mrf.mxu0
  %v961 = vadd.f32 %v479, %v960
  %v962 = vand.u32 %v203, 4294901760
  %963 = vmatmul.f32.gmra.mxu0 %v962
  %v964 = vpop.f32.mrf.mxu0
  %v965 = vadd.f32 %v487, %v964
  %v966 = vand.u32 %v206, 4294901760
  %967 = vmatmul.f32.gmra.mxu0 %v966
  %v968 = vpop.f32.mrf.mxu0
  %v969 = vadd.f32 %v495, %v968
  %v970 = vand.u32 %v209, 4294901760
  %971 = vmatmul.f32.gmra.mxu0 %v970
  %v972 = vpop.f32.mrf.mxu0
  %v973 = vadd.f32 %v503, %v972
  %v974 = vand.u32 %v212, 4294901760
  %975 = vmatmul.f32.gmra.mxu0 %v974
  %v976 = vpop.f32.mrf.mxu0
  %v977 = vadd.f32 %v511, %v976
  %v978 = vand.u32 %v215, 4294901760
  %979 = vmatmul.f32.gmra.mxu0 %v978
  %v980 = vpop.f32.mrf.mxu0
  %v981 = vadd.f32 %v519, %v980
  %v982 = vand.u32 %v218, 4294901760
  %983 = vmatmul.f32.gmra.mxu0 %v982
  %v984 = vpop.f32.mrf.mxu0
  %v985 = vadd.f32 %v527, %v984
  %v986 = vand.u32 %v221, 4294901760
  %987 = vmatmul.f32.gmra.mxu0 %v986
  %v988 = vpop.f32.mrf.mxu0
  %v989 = vadd.f32 %v535, %v988
  %v990 = vand.u32 %v224, 4294901760
  %991 = vmatmul.f32.gmra.mxu0 %v990
  %v992 = vpop.f32.mrf.mxu0
  %v993 = vadd.f32 %v543, %v992
  %v994 = vand.u32 %v227, 4294901760
  %995 = vmatmul.f32.gmra.mxu0 %v994
  %v996 = vpop.f32.mrf.mxu0
  %v997 = vadd.f32 %v551, %v996
  %v998 = vand.u32 %v230, 4294901760
  %999 = vmatmul.f32.gmra.mxu0 %v998
  %v1000 = vpop.f32.mrf.mxu0
  %v1001 = vadd.f32 %v559, %v1000
  %v1002 = vand.u32 %v233, 4294901760
  %1003 = vmatmul.f32.gmra.mxu0 %v1002
  %v1004 = vpop.f32.mrf.mxu0
  %v1005 = vadd.f32 %v567, %v1004
  %v1006 = vand.u32 %v236, 4294901760
  %1007 = vmatmul.f32.gmra.mxu0 %v1006
  %v1008 = vpop.f32.mrf.mxu0
  %v1009 = vadd.f32 %v575, %v1008
  %v1010 = vand.u32 %v239, 4294901760
  %1011 = vmatmul.f32.gmra.mxu0 %v1010
  %v1012 = vpop.f32.mrf.mxu0
  %v1013 = vadd.f32 %v583, %v1012
  %v1014 = vand.u32 %v242, 4294901760
  %1015 = vmatmul.f32.gmra.mxu0 %v1014
  %v1016 = vpop.f32.mrf.mxu0
  %v1017 = vadd.f32 %v591, %v1016
  %v1018 = vand.u32 %v245, 4294901760
  %1019 = vmatmul.f32.gmra.mxu0 %v1018
  %v1020 = vpop.f32.mrf.mxu0
  %v1021 = vadd.f32 %v599, %v1020
  %v1022 = vand.u32 %v248, 4294901760
  %1023 = vmatmul.f32.gmra.mxu0 %v1022
  %v1024 = vpop.f32.mrf.mxu0
  %v1025 = vadd.f32 %v607, %v1024
  %v1026 = vand.u32 %v251, 4294901760
  %1027 = vmatmul.f32.gmra.mxu0 %v1026
  %v1028 = vpop.f32.mrf.mxu0
  %v1029 = vadd.f32 %v615, %v1028
  %v1030 = vand.u32 %v254, 4294901760
  %1031 = vmatmul.f32.gmra.mxu0 %v1030
  %v1032 = vpop.f32.mrf.mxu0
  %v1033 = vadd.f32 %v623, %v1032
  %v1034 = vand.u32 %v257, 4294901760
  %1035 = vmatmul.f32.gmra.mxu0 %v1034
  %v1036 = vpop.f32.mrf.mxu0
  %v1037 = vadd.f32 %v631, %v1036
  %v1038 = vand.u32 %v260, 4294901760
  %1039 = vmatmul.f32.gmra.mxu0 %v1038
  %v1040 = vpop.f32.mrf.mxu0
  %v1041 = vadd.f32 %v639, %v1040
  %v1042 = vand.u32 %v263, 4294901760
  %1043 = vmatmul.f32.gmra.mxu0 %v1042
  %v1044 = vpop.f32.mrf.mxu0
  %v1045 = vadd.f32 %v647, %v1044
  %v1046 = vand.u32 %v266, 4294901760
  %1047 = vmatmul.f32.gmra.mxu0 %v1046
  %v1048 = vpop.f32.mrf.mxu0
  %v1049 = vadd.f32 %v655, %v1048
  %v1050 = vand.u32 %v269, 4294901760
  %1051 = vmatmul.f32.gmra.mxu0 %v1050
  %v1052 = vpop.f32.mrf.mxu0
  %v1053 = vadd.f32 %v663, %v1052
  %v1054 = vand.u32 %v272, 4294901760
  %1055 = vmatmul.f32.gmra.mxu0 %v1054
  %v1056 = vpop.f32.mrf.mxu0
  %v1057 = vadd.f32 %v671, %v1056
  %v1058 = vand.u32 %v275, 4294901760
  %1059 = vmatmul.f32.gmra.mxu0 %v1058
  %v1060 = vpop.f32.mrf.mxu0
  %v1061 = vadd.f32 %v679, %v1060
  %v1062 = vand.u32 %v278, 4294901760
  %1063 = vmatmul.f32.gmra.mxu0 %v1062
  %v1064 = vpop.f32.mrf.mxu0
  %v1065 = vadd.f32 %v687, %v1064
  %v1066 = vand.u32 %v281, 4294901760
  %1067 = vmatmul.f32.gmra.mxu0 %v1066
  %v1068 = vpop.f32.mrf.mxu0
  %v1069 = vadd.f32 %v695, %v1068
  %v1070 = vand.u32 %v284, 4294901760
  %1071 = vmatmul.f32.gmra.mxu0 %v1070
  %v1072 = vpop.f32.mrf.mxu0
  %v1073 = vadd.f32 %v703, %v1072
  %v1074 = vand.u32 %v287, 4294901760
  %1075 = vmatmul.f32.gmra.mxu0 %v1074
  %v1076 = vpop.f32.mrf.mxu0
  %v1077 = vadd.f32 %v711, %v1076
  %v1078 = vand.u32 %v290, 4294901760
  %1079 = vmatmul.f32.gmra.mxu0 %v1078
  %v1080 = vpop.f32.mrf.mxu0
  %v1081 = vadd.f32 %v719, %v1080
  %v1082 = vand.u32 %v293, 4294901760
  %1083 = vmatmul.f32.gmra.mxu0 %v1082
  %v1084 = vpop.f32.mrf.mxu0
  %v1085 = vadd.f32 %v727, %v1084
  %v1086 = vand.u32 %v296, 4294901760
  %1087 = vmatmul.f32.gmra.mxu0 %v1086
  %v1088 = vpop.f32.mrf.mxu0
  %v1089 = vadd.f32 %v735, %v1088
  %v1090 = vand.u32 %v299, 4294901760
  %1091 = vmatmul.f32.gmra.mxu0 %v1090
  %v1092 = vpop.f32.mrf.mxu0
  %v1093 = vadd.f32 %v743, %v1092
  %v1094 = vand.u32 %v302, 4294901760
  %1095 = vmatmul.f32.gmra.mxu0 %v1094
  %v1096 = vpop.f32.mrf.mxu0
  %v1097 = vadd.f32 %v751, %v1096
  %v1098 = vand.u32 %v305, 4294901760
  %1099 = vmatmul.f32.gmra.mxu0 %v1098
  %v1100 = vpop.f32.mrf.mxu0
  %v1101 = vadd.f32 %v759, %v1100
  %v1102 = vand.u32 %v308, 4294901760
  %1103 = vmatmul.f32.gmra.mxu0 %v1102
  %v1104 = vpop.f32.mrf.mxu0
  %v1105 = vadd.f32 %v767, %v1104
  %v1106 = vand.u32 %v311, 4294901760
  %1107 = vmatmul.f32.gmra.mxu0 %v1106
  %v1108 = vpop.f32.mrf.mxu0
  %v1109 = vadd.f32 %v775, %v1108
  %v1110 = vand.u32 %v314, 4294901760
  %1111 = vmatmul.f32.gmra.mxu0 %v1110
  %v1112 = vpop.f32.mrf.mxu0
  %v1113 = vadd.f32 %v783, %v1112
  %v1114 = vand.u32 %v317, 4294901760
  %1115 = vmatmul.f32.gmra.mxu0 %v1114
  %v1116 = vpop.f32.mrf.mxu0
  %v1117 = vadd.f32 %v791, %v1116
  %v1118 = vand.u32 %v320, 4294901760
  %1119 = vmatmul.f32.gmra.mxu0 %v1118
  %v1120 = vpop.f32.mrf.mxu0
  %v1121 = vadd.f32 %v799, %v1120
  %v1122 = vand.u32 %v323, 4294901760
  %1123 = vmatmul.f32.gmra.mxu0 %v1122
  %v1124 = vpop.f32.mrf.mxu0
  %v1125 = vadd.f32 %v807, %v1124
  %v1126 = vand.u32 %v326, 4294901760
  %1127 = vmatmul.f32.gmra.mxu0 %v1126
  %v1128 = vpop.f32.mrf.mxu0
  %v1129 = vadd.f32 %v815, %v1128
  %v1130 = vand.u32 %v329, 4294901760
  %1131 = vmatmul.f32.gmra.mxu0 %v1130
  %v1132 = vpop.f32.mrf.mxu0
  %v1133 = vadd.f32 %v823, %v1132
  %v1134 = vand.u32 %v332, 4294901760
  %1135 = vmatmul.f32.gmra.mxu0 %v1134
  %v1136 = vpop.f32.mrf.mxu0
  %v1137 = vadd.f32 %v831, %v1136
  %v1138 = vand.u32 %v335, 4294901760
  %1139 = vmatmul.f32.gmra.mxu0 %v1138
  %v1140 = vpop.f32.mrf.mxu0
  %v1141 = vadd.f32 %v839, %v1140
  %v1142 = vand.u32 %v338, 4294901760
  %1143 = vmatmul.f32.gmra.mxu0 %v1142
  %v1144 = vpop.f32.mrf.mxu0
  %v1145 = vadd.f32 %v847, %v1144
  %v1146 = vand.u32 %v341, 4294901760
  %1147 = vmatmul.f32.gmra.mxu0 %v1146
  %v1148 = vpop.f32.mrf.mxu0
  %v1149 = vadd.f32 %v855, %v1148
  %v1150 = vand.u32 %v344, 4294901760
  %1151 = vmatmul.f32.gmra.mxu0 %v1150
  %v1152 = vpop.f32.mrf.mxu0
  %v1153 = vadd.f32 %v863, %v1152
  %v1154 = vand.u32 %v347, 4294901760
  %1155 = vmatmul.f32.gmra.mxu0 %v1154
  %v1156 = vpop.f32.mrf.mxu0
  %v1157 = vadd.f32 %v871, %v1156
  %v1158 = vand.u32 %v350, 4294901760
  %1159 = vmatmul.f32.gmra.mxu0 %v1158
  %v1160 = vpop.f32.mrf.mxu0
  %v1161 = vadd.f32 %v879, %v1160
  %v1162 = vand.u32 %v353, 4294901760
  %1163 = vmatmul.f32.gmra.mxu0 %v1162
  %v1164 = vpop.f32.mrf.mxu0
  %v1165 = vadd.f32 %v887, %v1164
  %1166 = vdwg.mxu0
  %1167 = vmatpush.msra.mxu0 0.0
  %1168 = vmatpush.msra.mxu0 0.0
  %1169 = vmatpush.msra.mxu0 0.0
  %1170 = vmatpush.msra.mxu0 0.0
  %1171 = vmatpush.msra.mxu0 0.0
  %1172 = vmatpush.msra.mxu0 0.0
  %1173 = vmatpush.msra.mxu0 0.0
  %1174 = vmatpush.msra.mxu0 0.0
  %1175 = vmatpush.msra.mxu0 0.0
  %1176 = vmatpush.msra.mxu0 0.0
  %1177 = vmatpush.msra.mxu0 0.0
  %1178 = vmatpush.msra.mxu0 0.0
  %1179 = vmatpush.msra.mxu0 0.0
  %1180 = vmatpush.msra.mxu0 0.0
  %1181 = vmatpush.msra.mxu0 0.0
  %v1182 = vand.u32 %v357, 4294901760
  %v1183 = vsub.f32 %v357, %v1182
  %1184 = vmatpush.msra.mxu0 %v1183
  %v1185 = vand.u32 %v164, 4294901760
  %v1186 = vsub.f32 %v164, %v1185
  %1187 = vmatmul.f32.gmra.mxu0 %v1186
  %v1188 = vpop.f32.mrf.mxu0
  %v1189 = vadd.f32 %v913, %v1188
  %v1190 = vand.u32 %v167, 4294901760
  %v1191 = vsub.f32 %v167, %v1190
  %1192 = vmatmul.f32.gmra.mxu0 %v1191
  %v1193 = vpop.f32.mrf.mxu0
  %v1194 = vadd.f32 %v917, %v1193
  %v1195 = vand.u32 %v170, 4294901760
  %v1196 = vsub.f32 %v170, %v1195
  %1197 = vmatmul.f32.gmra.mxu0 %v1196
  %v1198 = vpop.f32.mrf.mxu0
  %v1199 = vadd.f32 %v921, %v1198
  %v1200 = vand.u32 %v173, 4294901760
  %v1201 = vsub.f32 %v173, %v1200
  %1202 = vmatmul.f32.gmra.mxu0 %v1201
  %v1203 = vpop.f32.mrf.mxu0
  %v1204 = vadd.f32 %v925, %v1203
  %v1205 = vand.u32 %v176, 4294901760
  %v1206 = vsub.f32 %v176, %v1205
  %1207 = vmatmul.f32.gmra.mxu0 %v1206
  %v1208 = vpop.f32.mrf.mxu0
  %v1209 = vadd.f32 %v929, %v1208
  %v1210 = vand.u32 %v179, 4294901760
  %v1211 = vsub.f32 %v179, %v1210
  %1212 = vmatmul.f32.gmra.mxu0 %v1211
  %v1213 = vpop.f32.mrf.mxu0
  %v1214 = vadd.f32 %v933, %v1213
  %v1215 = vand.u32 %v182, 4294901760
  %v1216 = vsub.f32 %v182, %v1215
  %1217 = vmatmul.f32.gmra.mxu0 %v1216
  %v1218 = vpop.f32.mrf.mxu0
  %v1219 = vadd.f32 %v937, %v1218
  %v1220 = vand.u32 %v185, 4294901760
  %v1221 = vsub.f32 %v185, %v1220
  %1222 = vmatmul.f32.gmra.mxu0 %v1221
  %v1223 = vpop.f32.mrf.mxu0
  %v1224 = vadd.f32 %v941, %v1223
  %v1225 = vand.u32 %v188, 4294901760
  %v1226 = vsub.f32 %v188, %v1225
  %1227 = vmatmul.f32.gmra.mxu0 %v1226
  %v1228 = vpop.f32.mrf.mxu0
  %v1229 = vadd.f32 %v945, %v1228
  %v1230 = vand.u32 %v191, 4294901760
  %v1231 = vsub.f32 %v191, %v1230
  %1232 = vmatmul.f32.gmra.mxu0 %v1231
  %v1233 = vpop.f32.mrf.mxu0
  %v1234 = vadd.f32 %v949, %v1233
  %v1235 = vand.u32 %v194, 4294901760
  %v1236 = vsub.f32 %v194, %v1235
  %1237 = vmatmul.f32.gmra.mxu0 %v1236
  %v1238 = vpop.f32.mrf.mxu0
  %v1239 = vadd.f32 %v953, %v1238
  %v1240 = vand.u32 %v197, 4294901760
  %v1241 = vsub.f32 %v197, %v1240
  %1242 = vmatmul.f32.gmra.mxu0 %v1241
  %v1243 = vpop.f32.mrf.mxu0
  %v1244 = vadd.f32 %v957, %v1243
  %v1245 = vand.u32 %v200, 4294901760
  %v1246 = vsub.f32 %v200, %v1245
  %1247 = vmatmul.f32.gmra.mxu0 %v1246
  %v1248 = vpop.f32.mrf.mxu0
  %v1249 = vadd.f32 %v961, %v1248
  %v1250 = vand.u32 %v203, 4294901760
  %v1251 = vsub.f32 %v203, %v1250
  %1252 = vmatmul.f32.gmra.mxu0 %v1251
  %v1253 = vpop.f32.mrf.mxu0
  %v1254 = vadd.f32 %v965, %v1253
  %v1255 = vand.u32 %v206, 4294901760
  %v1256 = vsub.f32 %v206, %v1255
  %1257 = vmatmul.f32.gmra.mxu0 %v1256
  %v1258 = vpop.f32.mrf.mxu0
  %v1259 = vadd.f32 %v969, %v1258
  %v1260 = vand.u32 %v209, 4294901760
  %v1261 = vsub.f32 %v209, %v1260
  %1262 = vmatmul.f32.gmra.mxu0 %v1261
  %v1263 = vpop.f32.mrf.mxu0
  %v1264 = vadd.f32 %v973, %v1263
  %v1265 = vand.u32 %v212, 4294901760
  %v1266 = vsub.f32 %v212, %v1265
  %1267 = vmatmul.f32.gmra.mxu0 %v1266
  %v1268 = vpop.f32.mrf.mxu0
  %v1269 = vadd.f32 %v977, %v1268
  %v1270 = vand.u32 %v215, 4294901760
  %v1271 = vsub.f32 %v215, %v1270
  %1272 = vmatmul.f32.gmra.mxu0 %v1271
  %v1273 = vpop.f32.mrf.mxu0
  %v1274 = vadd.f32 %v981, %v1273
  %v1275 = vand.u32 %v218, 4294901760
  %v1276 = vsub.f32 %v218, %v1275
  %1277 = vmatmul.f32.gmra.mxu0 %v1276
  %v1278 = vpop.f32.mrf.mxu0
  %v1279 = vadd.f32 %v985, %v1278
  %v1280 = vand.u32 %v221, 4294901760
  %v1281 = vsub.f32 %v221, %v1280
  %1282 = vmatmul.f32.gmra.mxu0 %v1281
  %v1283 = vpop.f32.mrf.mxu0
  %v1284 = vadd.f32 %v989, %v1283
  %v1285 = vand.u32 %v224, 4294901760
  %v1286 = vsub.f32 %v224, %v1285
  %1287 = vmatmul.f32.gmra.mxu0 %v1286
  %v1288 = vpop.f32.mrf.mxu0
  %v1289 = vadd.f32 %v993, %v1288
  %v1290 = vand.u32 %v227, 4294901760
  %v1291 = vsub.f32 %v227, %v1290
  %1292 = vmatmul.f32.gmra.mxu0 %v1291
  %v1293 = vpop.f32.mrf.mxu0
  %v1294 = vadd.f32 %v997, %v1293
  %v1295 = vand.u32 %v230, 4294901760
  %v1296 = vsub.f32 %v230, %v1295
  %1297 = vmatmul.f32.gmra.mxu0 %v1296
  %v1298 = vpop.f32.mrf.mxu0
  %v1299 = vadd.f32 %v1001, %v1298
  %v1300 = vand.u32 %v233, 4294901760
  %v1301 = vsub.f32 %v233, %v1300
  %1302 = vmatmul.f32.gmra.mxu0 %v1301
  %v1303 = vpop.f32.mrf.mxu0
  %v1304 = vadd.f32 %v1005, %v1303
  %v1305 = vand.u32 %v236, 4294901760
  %v1306 = vsub.f32 %v236, %v1305
  %1307 = vmatmul.f32.gmra.mxu0 %v1306
  %v1308 = vpop.f32.mrf.mxu0
  %v1309 = vadd.f32 %v1009, %v1308
  %v1310 = vand.u32 %v239, 4294901760
  %v1311 = vsub.f32 %v239, %v1310
  %1312 = vmatmul.f32.gmra.mxu0 %v1311
  %v1313 = vpop.f32.mrf.mxu0
  %v1314 = vadd.f32 %v1013, %v1313
  %v1315 = vand.u32 %v242, 4294901760
  %v1316 = vsub.f32 %v242, %v1315
  %1317 = vmatmul.f32.gmra.mxu0 %v1316
  %v1318 = vpop.f32.mrf.mxu0
  %v1319 = vadd.f32 %v1017, %v1318
  %v1320 = vand.u32 %v245, 4294901760
  %v1321 = vsub.f32 %v245, %v1320
  %1322 = vmatmul.f32.gmra.mxu0 %v1321
  %v1323 = vpop.f32.mrf.mxu0
  %v1324 = vadd.f32 %v1021, %v1323
  %v1325 = vand.u32 %v248, 4294901760
  %v1326 = vsub.f32 %v248, %v1325
  %1327 = vmatmul.f32.gmra.mxu0 %v1326
  %v1328 = vpop.f32.mrf.mxu0
  %v1329 = vadd.f32 %v1025, %v1328
  %v1330 = vand.u32 %v251, 4294901760
  %v1331 = vsub.f32 %v251, %v1330
  %1332 = vmatmul.f32.gmra.mxu0 %v1331
  %v1333 = vpop.f32.mrf.mxu0
  %v1334 = vadd.f32 %v1029, %v1333
  %v1335 = vand.u32 %v254, 4294901760
  %v1336 = vsub.f32 %v254, %v1335
  %1337 = vmatmul.f32.gmra.mxu0 %v1336
  %v1338 = vpop.f32.mrf.mxu0
  %v1339 = vadd.f32 %v1033, %v1338
  %v1340 = vand.u32 %v257, 4294901760
  %v1341 = vsub.f32 %v257, %v1340
  %1342 = vmatmul.f32.gmra.mxu0 %v1341
  %v1343 = vpop.f32.mrf.mxu0
  %v1344 = vadd.f32 %v1037, %v1343
  %v1345 = vand.u32 %v260, 4294901760
  %v1346 = vsub.f32 %v260, %v1345
  %1347 = vmatmul.f32.gmra.mxu0 %v1346
  %v1348 = vpop.f32.mrf.mxu0
  %v1349 = vadd.f32 %v1041, %v1348
  %v1350 = vand.u32 %v263, 4294901760
  %v1351 = vsub.f32 %v263, %v1350
  %1352 = vmatmul.f32.gmra.mxu0 %v1351
  %v1353 = vpop.f32.mrf.mxu0
  %v1354 = vadd.f32 %v1045, %v1353
  %v1355 = vand.u32 %v266, 4294901760
  %v1356 = vsub.f32 %v266, %v1355
  %1357 = vmatmul.f32.gmra.mxu0 %v1356
  %v1358 = vpop.f32.mrf.mxu0
  %v1359 = vadd.f32 %v1049, %v1358
  %v1360 = vand.u32 %v269, 4294901760
  %v1361 = vsub.f32 %v269, %v1360
  %1362 = vmatmul.f32.gmra.mxu0 %v1361
  %v1363 = vpop.f32.mrf.mxu0
  %v1364 = vadd.f32 %v1053, %v1363
  %v1365 = vand.u32 %v272, 4294901760
  %v1366 = vsub.f32 %v272, %v1365
  %1367 = vmatmul.f32.gmra.mxu0 %v1366
  %v1368 = vpop.f32.mrf.mxu0
  %v1369 = vadd.f32 %v1057, %v1368
  %v1370 = vand.u32 %v275, 4294901760
  %v1371 = vsub.f32 %v275, %v1370
  %1372 = vmatmul.f32.gmra.mxu0 %v1371
  %v1373 = vpop.f32.mrf.mxu0
  %v1374 = vadd.f32 %v1061, %v1373
  %v1375 = vand.u32 %v278, 4294901760
  %v1376 = vsub.f32 %v278, %v1375
  %1377 = vmatmul.f32.gmra.mxu0 %v1376
  %v1378 = vpop.f32.mrf.mxu0
  %v1379 = vadd.f32 %v1065, %v1378
  %v1380 = vand.u32 %v281, 4294901760
  %v1381 = vsub.f32 %v281, %v1380
  %1382 = vmatmul.f32.gmra.mxu0 %v1381
  %v1383 = vpop.f32.mrf.mxu0
  %v1384 = vadd.f32 %v1069, %v1383
  %v1385 = vand.u32 %v284, 4294901760
  %v1386 = vsub.f32 %v284, %v1385
  %1387 = vmatmul.f32.gmra.mxu0 %v1386
  %v1388 = vpop.f32.mrf.mxu0
  %v1389 = vadd.f32 %v1073, %v1388
  %v1390 = vand.u32 %v287, 4294901760
  %v1391 = vsub.f32 %v287, %v1390
  %1392 = vmatmul.f32.gmra.mxu0 %v1391
  %v1393 = vpop.f32.mrf.mxu0
  %v1394 = vadd.f32 %v1077, %v1393
  %v1395 = vand.u32 %v290, 4294901760
  %v1396 = vsub.f32 %v290, %v1395
  %1397 = vmatmul.f32.gmra.mxu0 %v1396
  %v1398 = vpop.f32.mrf.mxu0
  %v1399 = vadd.f32 %v1081, %v1398
  %v1400 = vand.u32 %v293, 4294901760
  %v1401 = vsub.f32 %v293, %v1400
  %1402 = vmatmul.f32.gmra.mxu0 %v1401
  %v1403 = vpop.f32.mrf.mxu0
  %v1404 = vadd.f32 %v1085, %v1403
  %v1405 = vand.u32 %v296, 4294901760
  %v1406 = vsub.f32 %v296, %v1405
  %1407 = vmatmul.f32.gmra.mxu0 %v1406
  %v1408 = vpop.f32.mrf.mxu0
  %v1409 = vadd.f32 %v1089, %v1408
  %v1410 = vand.u32 %v299, 4294901760
  %v1411 = vsub.f32 %v299, %v1410
  %1412 = vmatmul.f32.gmra.mxu0 %v1411
  %v1413 = vpop.f32.mrf.mxu0
  %v1414 = vadd.f32 %v1093, %v1413
  %v1415 = vand.u32 %v302, 4294901760
  %v1416 = vsub.f32 %v302, %v1415
  %1417 = vmatmul.f32.gmra.mxu0 %v1416
  %v1418 = vpop.f32.mrf.mxu0
  %v1419 = vadd.f32 %v1097, %v1418
  %v1420 = vand.u32 %v305, 4294901760
  %v1421 = vsub.f32 %v305, %v1420
  %1422 = vmatmul.f32.gmra.mxu0 %v1421
  %v1423 = vpop.f32.mrf.mxu0
  %v1424 = vadd.f32 %v1101, %v1423
  %v1425 = vand.u32 %v308, 4294901760
  %v1426 = vsub.f32 %v308, %v1425
  %1427 = vmatmul.f32.gmra.mxu0 %v1426
  %v1428 = vpop.f32.mrf.mxu0
  %v1429 = vadd.f32 %v1105, %v1428
  %v1430 = vand.u32 %v311, 4294901760
  %v1431 = vsub.f32 %v311, %v1430
  %1432 = vmatmul.f32.gmra.mxu0 %v1431
  %v1433 = vpop.f32.mrf.mxu0
  %v1434 = vadd.f32 %v1109, %v1433
  %v1435 = vand.u32 %v314, 4294901760
  %v1436 = vsub.f32 %v314, %v1435
  %1437 = vmatmul.f32.gmra.mxu0 %v1436
  %v1438 = vpop.f32.mrf.mxu0
  %v1439 = vadd.f32 %v1113, %v1438
  %v1440 = vand.u32 %v317, 4294901760
  %v1441 = vsub.f32 %v317, %v1440
  %1442 = vmatmul.f32.gmra.mxu0 %v1441
  %v1443 = vpop.f32.mrf.mxu0
  %v1444 = vadd.f32 %v1117, %v1443
  %v1445 = vand.u32 %v320, 4294901760
  %v1446 = vsub.f32 %v320, %v1445
  %1447 = vmatmul.f32.gmra.mxu0 %v1446
  %v1448 = vpop.f32.mrf.mxu0
  %v1449 = vadd.f32 %v1121, %v1448
  %v1450 = vand.u32 %v323, 4294901760
  %v1451 = vsub.f32 %v323, %v1450
  %1452 = vmatmul.f32.gmra.mxu0 %v1451
  %v1453 = vpop.f32.mrf.mxu0
  %v1454 = vadd.f32 %v1125, %v1453
  %v1455 = vand.u32 %v326, 4294901760
  %v1456 = vsub.f32 %v326, %v1455
  %1457 = vmatmul.f32.gmra.mxu0 %v1456
  %v1458 = vpop.f32.mrf.mxu0
  %v1459 = vadd.f32 %v1129, %v1458
  %v1460 = vand.u32 %v329, 4294901760
  %v1461 = vsub.f32 %v329, %v1460
  %1462 = vmatmul.f32.gmra.mxu0 %v1461
  %v1463 = vpop.f32.mrf.mxu0
  %v1464 = vadd.f32 %v1133, %v1463
  %v1465 = vand.u32 %v332, 4294901760
  %v1466 = vsub.f32 %v332, %v1465
  %1467 = vmatmul.f32.gmra.mxu0 %v1466
  %v1468 = vpop.f32.mrf.mxu0
  %v1469 = vadd.f32 %v1137, %v1468
  %v1470 = vand.u32 %v335, 4294901760
  %v1471 = vsub.f32 %v335, %v1470
  %1472 = vmatmul.f32.gmra.mxu0 %v1471
  %v1473 = vpop.f32.mrf.mxu0
  %v1474 = vadd.f32 %v1141, %v1473
  %v1475 = vand.u32 %v338, 4294901760
  %v1476 = vsub.f32 %v338, %v1475
  %1477 = vmatmul.f32.gmra.mxu0 %v1476
  %v1478 = vpop.f32.mrf.mxu0
  %v1479 = vadd.f32 %v1145, %v1478
  %v1480 = vand.u32 %v341, 4294901760
  %v1481 = vsub.f32 %v341, %v1480
  %1482 = vmatmul.f32.gmra.mxu0 %v1481
  %v1483 = vpop.f32.mrf.mxu0
  %v1484 = vadd.f32 %v1149, %v1483
  %v1485 = vand.u32 %v344, 4294901760
  %v1486 = vsub.f32 %v344, %v1485
  %1487 = vmatmul.f32.gmra.mxu0 %v1486
  %v1488 = vpop.f32.mrf.mxu0
  %v1489 = vadd.f32 %v1153, %v1488
  %v1490 = vand.u32 %v347, 4294901760
  %v1491 = vsub.f32 %v347, %v1490
  %1492 = vmatmul.f32.gmra.mxu0 %v1491
  %v1493 = vpop.f32.mrf.mxu0
  %v1494 = vadd.f32 %v1157, %v1493
  %v1495 = vand.u32 %v350, 4294901760
  %v1496 = vsub.f32 %v350, %v1495
  %1497 = vmatmul.f32.gmra.mxu0 %v1496
  %v1498 = vpop.f32.mrf.mxu0
  %v1499 = vadd.f32 %v1161, %v1498
  %v1500 = vand.u32 %v353, 4294901760
  %v1501 = vsub.f32 %v353, %v1500
  %1502 = vmatmul.f32.gmra.mxu0 %v1501
  %v1503 = vpop.f32.mrf.mxu0
  %v1504 = vadd.f32 %v1165, %v1503
  %1505 = vdwg.mxu0
  %1506 = vmatpush.msra.mxu0 0.0
  %1507 = vmatpush.msra.mxu0 0.0
  %1508 = vmatpush.msra.mxu0 0.0
  %1509 = vmatpush.msra.mxu0 0.0
  %1510 = vmatpush.msra.mxu0 0.0
  %1511 = vmatpush.msra.mxu0 0.0
  %1512 = vmatpush.msra.mxu0 0.0
  %1513 = vmatpush.msra.mxu0 0.0
  %1514 = vmatpush.msra.mxu0 0.0
  %1515 = vmatpush.msra.mxu0 0.0
  %1516 = vmatpush.msra.mxu0 0.0
  %1517 = vmatpush.msra.mxu0 0.0
  %1518 = vmatpush.msra.mxu0 0.0
  %1519 = vmatpush.msra.mxu0 0.0
  %1520 = vmatpush.msra.mxu0 0.0
  %v1521 = vand.u32 %v357, 4294901760
  %1522 = vmatpush.msra.mxu0 %v1521
  %v1523 = vand.u32 %v164, 4294901760
  %v1524 = vsub.f32 %v164, %v1523
  %v1525 = vand.u32 %v1524, 4294901760
  %1526 = vmatmul.f32.gmra.mxu0 %v1525
  %v1527 = vpop.f32.mrf.mxu0
  %v1528 = vadd.f32 %v1189, %v1527
  %v1529 = vand.u32 %v167, 4294901760
  %v1530 = vsub.f32 %v167, %v1529
  %v1531 = vand.u32 %v1530, 4294901760
  %1532 = vmatmul.f32.gmra.mxu0 %v1531
  %v1533 = vpop.f32.mrf.mxu0
  %v1534 = vadd.f32 %v1194, %v1533
  %v1535 = vand.u32 %v170, 4294901760
  %v1536 = vsub.f32 %v170, %v1535
  %v1537 = vand.u32 %v1536, 4294901760
  %1538 = vmatmul.f32.gmra.mxu0 %v1537
  %v1539 = vpop.f32.mrf.mxu0
  %v1540 = vadd.f32 %v1199, %v1539
  %v1541 = vand.u32 %v173, 4294901760
  %v1542 = vsub.f32 %v173, %v1541
  %v1543 = vand.u32 %v1542, 4294901760
  %1544 = vmatmul.f32.gmra.mxu0 %v1543
  %v1545 = vpop.f32.mrf.mxu0
  %v1546 = vadd.f32 %v1204, %v1545
  %v1547 = vand.u32 %v176, 4294901760
  %v1548 = vsub.f32 %v176, %v1547
  %v1549 = vand.u32 %v1548, 4294901760
  %1550 = vmatmul.f32.gmra.mxu0 %v1549
  %v1551 = vpop.f32.mrf.mxu0
  %v1552 = vadd.f32 %v1209, %v1551
  %v1553 = vand.u32 %v179, 4294901760
  %v1554 = vsub.f32 %v179, %v1553
  %v1555 = vand.u32 %v1554, 4294901760
  %1556 = vmatmul.f32.gmra.mxu0 %v1555
  %v1557 = vpop.f32.mrf.mxu0
  %v1558 = vadd.f32 %v1214, %v1557
  %v1559 = vand.u32 %v182, 4294901760
  %v1560 = vsub.f32 %v182, %v1559
  %v1561 = vand.u32 %v1560, 4294901760
  %1562 = vmatmul.f32.gmra.mxu0 %v1561
  %v1563 = vpop.f32.mrf.mxu0
  %v1564 = vadd.f32 %v1219, %v1563
  %v1565 = vand.u32 %v185, 4294901760
  %v1566 = vsub.f32 %v185, %v1565
  %v1567 = vand.u32 %v1566, 4294901760
  %1568 = vmatmul.f32.gmra.mxu0 %v1567
  %v1569 = vpop.f32.mrf.mxu0
  %v1570 = vadd.f32 %v1224, %v1569
  %v1571 = vand.u32 %v188, 4294901760
  %v1572 = vsub.f32 %v188, %v1571
  %v1573 = vand.u32 %v1572, 4294901760
  %1574 = vmatmul.f32.gmra.mxu0 %v1573
  %v1575 = vpop.f32.mrf.mxu0
  %v1576 = vadd.f32 %v1229, %v1575
  %v1577 = vand.u32 %v191, 4294901760
  %v1578 = vsub.f32 %v191, %v1577
  %v1579 = vand.u32 %v1578, 4294901760
  %1580 = vmatmul.f32.gmra.mxu0 %v1579
  %v1581 = vpop.f32.mrf.mxu0
  %v1582 = vadd.f32 %v1234, %v1581
  %v1583 = vand.u32 %v194, 4294901760
  %v1584 = vsub.f32 %v194, %v1583
  %v1585 = vand.u32 %v1584, 4294901760
  %1586 = vmatmul.f32.gmra.mxu0 %v1585
  %v1587 = vpop.f32.mrf.mxu0
  %v1588 = vadd.f32 %v1239, %v1587
  %v1589 = vand.u32 %v197, 4294901760
  %v1590 = vsub.f32 %v197, %v1589
  %v1591 = vand.u32 %v1590, 4294901760
  %1592 = vmatmul.f32.gmra.mxu0 %v1591
  %v1593 = vpop.f32.mrf.mxu0
  %v1594 = vadd.f32 %v1244, %v1593
  %v1595 = vand.u32 %v200, 4294901760
  %v1596 = vsub.f32 %v200, %v1595
  %v1597 = vand.u32 %v1596, 4294901760
  %1598 = vmatmul.f32.gmra.mxu0 %v1597
  %v1599 = vpop.f32.mrf.mxu0
  %v1600 = vadd.f32 %v1249, %v1599
  %v1601 = vand.u32 %v203, 4294901760
  %v1602 = vsub.f32 %v203, %v1601
  %v1603 = vand.u32 %v1602, 4294901760
  %1604 = vmatmul.f32.gmra.mxu0 %v1603
  %v1605 = vpop.f32.mrf.mxu0
  %v1606 = vadd.f32 %v1254, %v1605
  %v1607 = vand.u32 %v206, 4294901760
  %v1608 = vsub.f32 %v206, %v1607
  %v1609 = vand.u32 %v1608, 4294901760
  %1610 = vmatmul.f32.gmra.mxu0 %v1609
  %v1611 = vpop.f32.mrf.mxu0
  %v1612 = vadd.f32 %v1259, %v1611
  %v1613 = vand.u32 %v209, 4294901760
  %v1614 = vsub.f32 %v209, %v1613
  %v1615 = vand.u32 %v1614, 4294901760
  %1616 = vmatmul.f32.gmra.mxu0 %v1615
  %v1617 = vpop.f32.mrf.mxu0
  %v1618 = vadd.f32 %v1264, %v1617
  %v1619 = vand.u32 %v212, 4294901760
  %v1620 = vsub.f32 %v212, %v1619
  %v1621 = vand.u32 %v1620, 4294901760
  %1622 = vmatmul.f32.gmra.mxu0 %v1621
  %v1623 = vpop.f32.mrf.mxu0
  %v1624 = vadd.f32 %v1269, %v1623
  %v1625 = vand.u32 %v215, 4294901760
  %v1626 = vsub.f32 %v215, %v1625
  %v1627 = vand.u32 %v1626, 4294901760
  %1628 = vmatmul.f32.gmra.mxu0 %v1627
  %v1629 = vpop.f32.mrf.mxu0
  %v1630 = vadd.f32 %v1274, %v1629
  %v1631 = vand.u32 %v218, 4294901760
  %v1632 = vsub.f32 %v218, %v1631
  %v1633 = vand.u32 %v1632, 4294901760
  %1634 = vmatmul.f32.gmra.mxu0 %v1633
  %v1635 = vpop.f32.mrf.mxu0
  %v1636 = vadd.f32 %v1279, %v1635
  %v1637 = vand.u32 %v221, 4294901760
  %v1638 = vsub.f32 %v221, %v1637
  %v1639 = vand.u32 %v1638, 4294901760
  %1640 = vmatmul.f32.gmra.mxu0 %v1639
  %v1641 = vpop.f32.mrf.mxu0
  %v1642 = vadd.f32 %v1284, %v1641
  %v1643 = vand.u32 %v224, 4294901760
  %v1644 = vsub.f32 %v224, %v1643
  %v1645 = vand.u32 %v1644, 4294901760
  %1646 = vmatmul.f32.gmra.mxu0 %v1645
  %v1647 = vpop.f32.mrf.mxu0
  %v1648 = vadd.f32 %v1289, %v1647
  %v1649 = vand.u32 %v227, 4294901760
  %v1650 = vsub.f32 %v227, %v1649
  %v1651 = vand.u32 %v1650, 4294901760
  %1652 = vmatmul.f32.gmra.mxu0 %v1651
  %v1653 = vpop.f32.mrf.mxu0
  %v1654 = vadd.f32 %v1294, %v1653
  %v1655 = vand.u32 %v230, 4294901760
  %v1656 = vsub.f32 %v230, %v1655
  %v1657 = vand.u32 %v1656, 4294901760
  %1658 = vmatmul.f32.gmra.mxu0 %v1657
  %v1659 = vpop.f32.mrf.mxu0
  %v1660 = vadd.f32 %v1299, %v1659
  %v1661 = vand.u32 %v233, 4294901760
  %v1662 = vsub.f32 %v233, %v1661
  %v1663 = vand.u32 %v1662, 4294901760
  %1664 = vmatmul.f32.gmra.mxu0 %v1663
  %v1665 = vpop.f32.mrf.mxu0
  %v1666 = vadd.f32 %v1304, %v1665
  %v1667 = vand.u32 %v236, 4294901760
  %v1668 = vsub.f32 %v236, %v1667
  %v1669 = vand.u32 %v1668, 4294901760
  %1670 = vmatmul.f32.gmra.mxu0 %v1669
  %v1671 = vpop.f32.mrf.mxu0
  %v1672 = vadd.f32 %v1309, %v1671
  %v1673 = vand.u32 %v239, 4294901760
  %v1674 = vsub.f32 %v239, %v1673
  %v1675 = vand.u32 %v1674, 4294901760
  %1676 = vmatmul.f32.gmra.mxu0 %v1675
  %v1677 = vpop.f32.mrf.mxu0
  %v1678 = vadd.f32 %v1314, %v1677
  %v1679 = vand.u32 %v242, 4294901760
  %v1680 = vsub.f32 %v242, %v1679
  %v1681 = vand.u32 %v1680, 4294901760
  %1682 = vmatmul.f32.gmra.mxu0 %v1681
  %v1683 = vpop.f32.mrf.mxu0
  %v1684 = vadd.f32 %v1319, %v1683
  %v1685 = vand.u32 %v245, 4294901760
  %v1686 = vsub.f32 %v245, %v1685
  %v1687 = vand.u32 %v1686, 4294901760
  %1688 = vmatmul.f32.gmra.mxu0 %v1687
  %v1689 = vpop.f32.mrf.mxu0
  %v1690 = vadd.f32 %v1324, %v1689
  %v1691 = vand.u32 %v248, 4294901760
  %v1692 = vsub.f32 %v248, %v1691
  %v1693 = vand.u32 %v1692, 4294901760
  %1694 = vmatmul.f32.gmra.mxu0 %v1693
  %v1695 = vpop.f32.mrf.mxu0
  %v1696 = vadd.f32 %v1329, %v1695
  %v1697 = vand.u32 %v251, 4294901760
  %v1698 = vsub.f32 %v251, %v1697
  %v1699 = vand.u32 %v1698, 4294901760
  %1700 = vmatmul.f32.gmra.mxu0 %v1699
  %v1701 = vpop.f32.mrf.mxu0
  %v1702 = vadd.f32 %v1334, %v1701
  %v1703 = vand.u32 %v254, 4294901760
  %v1704 = vsub.f32 %v254, %v1703
  %v1705 = vand.u32 %v1704, 4294901760
  %1706 = vmatmul.f32.gmra.mxu0 %v1705
  %v1707 = vpop.f32.mrf.mxu0
  %v1708 = vadd.f32 %v1339, %v1707
  %v1709 = vand.u32 %v257, 4294901760
  %v1710 = vsub.f32 %v257, %v1709
  %v1711 = vand.u32 %v1710, 4294901760
  %1712 = vmatmul.f32.gmra.mxu0 %v1711
  %v1713 = vpop.f32.mrf.mxu0
  %v1714 = vadd.f32 %v1344, %v1713
  %v1715 = vand.u32 %v260, 4294901760
  %v1716 = vsub.f32 %v260, %v1715
  %v1717 = vand.u32 %v1716, 4294901760
  %1718 = vmatmul.f32.gmra.mxu0 %v1717
  %v1719 = vpop.f32.mrf.mxu0
  %v1720 = vadd.f32 %v1349, %v1719
  %v1721 = vand.u32 %v263, 4294901760
  %v1722 = vsub.f32 %v263, %v1721
  %v1723 = vand.u32 %v1722, 4294901760
  %1724 = vmatmul.f32.gmra.mxu0 %v1723
  %v1725 = vpop.f32.mrf.mxu0
  %v1726 = vadd.f32 %v1354, %v1725
  %v1727 = vand.u32 %v266, 4294901760
  %v1728 = vsub.f32 %v266, %v1727
  %v1729 = vand.u32 %v1728, 4294901760
  %1730 = vmatmul.f32.gmra.mxu0 %v1729
  %v1731 = vpop.f32.mrf.mxu0
  %v1732 = vadd.f32 %v1359, %v1731
  %v1733 = vand.u32 %v269, 4294901760
  %v1734 = vsub.f32 %v269, %v1733
  %v1735 = vand.u32 %v1734, 4294901760
  %1736 = vmatmul.f32.gmra.mxu0 %v1735
  %v1737 = vpop.f32.mrf.mxu0
  %v1738 = vadd.f32 %v1364, %v1737
  %v1739 = vand.u32 %v272, 4294901760
  %v1740 = vsub.f32 %v272, %v1739
  %v1741 = vand.u32 %v1740, 4294901760
  %1742 = vmatmul.f32.gmra.mxu0 %v1741
  %v1743 = vpop.f32.mrf.mxu0
  %v1744 = vadd.f32 %v1369, %v1743
  %v1745 = vand.u32 %v275, 4294901760
  %v1746 = vsub.f32 %v275, %v1745
  %v1747 = vand.u32 %v1746, 4294901760
  %1748 = vmatmul.f32.gmra.mxu0 %v1747
  %v1749 = vpop.f32.mrf.mxu0
  %v1750 = vadd.f32 %v1374, %v1749
  %v1751 = vand.u32 %v278, 4294901760
  %v1752 = vsub.f32 %v278, %v1751
  %v1753 = vand.u32 %v1752, 4294901760
  %1754 = vmatmul.f32.gmra.mxu0 %v1753
  %v1755 = vpop.f32.mrf.mxu0
  %v1756 = vadd.f32 %v1379, %v1755
  %v1757 = vand.u32 %v281, 4294901760
  %v1758 = vsub.f32 %v281, %v1757
  %v1759 = vand.u32 %v1758, 4294901760
  %1760 = vmatmul.f32.gmra.mxu0 %v1759
  %v1761 = vpop.f32.mrf.mxu0
  %v1762 = vadd.f32 %v1384, %v1761
  %v1763 = vand.u32 %v284, 4294901760
  %v1764 = vsub.f32 %v284, %v1763
  %v1765 = vand.u32 %v1764, 4294901760
  %1766 = vmatmul.f32.gmra.mxu0 %v1765
  %v1767 = vpop.f32.mrf.mxu0
  %v1768 = vadd.f32 %v1389, %v1767
  %v1769 = vand.u32 %v287, 4294901760
  %v1770 = vsub.f32 %v287, %v1769
  %v1771 = vand.u32 %v1770, 4294901760
  %1772 = vmatmul.f32.gmra.mxu0 %v1771
  %v1773 = vpop.f32.mrf.mxu0
  %v1774 = vadd.f32 %v1394, %v1773
  %v1775 = vand.u32 %v290, 4294901760
  %v1776 = vsub.f32 %v290, %v1775
  %v1777 = vand.u32 %v1776, 4294901760
  %1778 = vmatmul.f32.gmra.mxu0 %v1777
  %v1779 = vpop.f32.mrf.mxu0
  %v1780 = vadd.f32 %v1399, %v1779
  %v1781 = vand.u32 %v293, 4294901760
  %v1782 = vsub.f32 %v293, %v1781
  %v1783 = vand.u32 %v1782, 4294901760
  %1784 = vmatmul.f32.gmra.mxu0 %v1783
  %v1785 = vpop.f32.mrf.mxu0
  %v1786 = vadd.f32 %v1404, %v1785
  %v1787 = vand.u32 %v296, 4294901760
  %v1788 = vsub.f32 %v296, %v1787
  %v1789 = vand.u32 %v1788, 4294901760
  %1790 = vmatmul.f32.gmra.mxu0 %v1789
  %v1791 = vpop.f32.mrf.mxu0
  %v1792 = vadd.f32 %v1409, %v1791
  %v1793 = vand.u32 %v299, 4294901760
  %v1794 = vsub.f32 %v299, %v1793
  %v1795 = vand.u32 %v1794, 4294901760
  %1796 = vmatmul.f32.gmra.mxu0 %v1795
  %v1797 = vpop.f32.mrf.mxu0
  %v1798 = vadd.f32 %v1414, %v1797
  %v1799 = vand.u32 %v302, 4294901760
  %v1800 = vsub.f32 %v302, %v1799
  %v1801 = vand.u32 %v1800, 4294901760
  %1802 = vmatmul.f32.gmra.mxu0 %v1801
  %v1803 = vpop.f32.mrf.mxu0
  %v1804 = vadd.f32 %v1419, %v1803
  %v1805 = vand.u32 %v305, 4294901760
  %v1806 = vsub.f32 %v305, %v1805
  %v1807 = vand.u32 %v1806, 4294901760
  %1808 = vmatmul.f32.gmra.mxu0 %v1807
  %v1809 = vpop.f32.mrf.mxu0
  %v1810 = vadd.f32 %v1424, %v1809
  %v1811 = vand.u32 %v308, 4294901760
  %v1812 = vsub.f32 %v308, %v1811
  %v1813 = vand.u32 %v1812, 4294901760
  %1814 = vmatmul.f32.gmra.mxu0 %v1813
  %v1815 = vpop.f32.mrf.mxu0
  %v1816 = vadd.f32 %v1429, %v1815
  %v1817 = vand.u32 %v311, 4294901760
  %v1818 = vsub.f32 %v311, %v1817
  %v1819 = vand.u32 %v1818, 4294901760
  %1820 = vmatmul.f32.gmra.mxu0 %v1819
  %v1821 = vpop.f32.mrf.mxu0
  %v1822 = vadd.f32 %v1434, %v1821
  %v1823 = vand.u32 %v314, 4294901760
  %v1824 = vsub.f32 %v314, %v1823
  %v1825 = vand.u32 %v1824, 4294901760
  %1826 = vmatmul.f32.gmra.mxu0 %v1825
  %v1827 = vpop.f32.mrf.mxu0
  %v1828 = vadd.f32 %v1439, %v1827
  %v1829 = vand.u32 %v317, 4294901760
  %v1830 = vsub.f32 %v317, %v1829
  %v1831 = vand.u32 %v1830, 4294901760
  %1832 = vmatmul.f32.gmra.mxu0 %v1831
  %v1833 = vpop.f32.mrf.mxu0
  %v1834 = vadd.f32 %v1444, %v1833
  %v1835 = vand.u32 %v320, 4294901760
  %v1836 = vsub.f32 %v320, %v1835
  %v1837 = vand.u32 %v1836, 4294901760
  %1838 = vmatmul.f32.gmra.mxu0 %v1837
  %v1839 = vpop.f32.mrf.mxu0
  %v1840 = vadd.f32 %v1449, %v1839
  %v1841 = vand.u32 %v323, 4294901760
  %v1842 = vsub.f32 %v323, %v1841
  %v1843 = vand.u32 %v1842, 4294901760
  %1844 = vmatmul.f32.gmra.mxu0 %v1843
  %v1845 = vpop.f32.mrf.mxu0
  %v1846 = vadd.f32 %v1454, %v1845
  %v1847 = vand.u32 %v326, 4294901760
  %v1848 = vsub.f32 %v326, %v1847
  %v1849 = vand.u32 %v1848, 4294901760
  %1850 = vmatmul.f32.gmra.mxu0 %v1849
  %v1851 = vpop.f32.mrf.mxu0
  %v1852 = vadd.f32 %v1459, %v1851
  %v1853 = vand.u32 %v329, 4294901760
  %v1854 = vsub.f32 %v329, %v1853
  %v1855 = vand.u32 %v1854, 4294901760
  %1856 = vmatmul.f32.gmra.mxu0 %v1855
  %v1857 = vpop.f32.mrf.mxu0
  %v1858 = vadd.f32 %v1464, %v1857
  %v1859 = vand.u32 %v332, 4294901760
  %v1860 = vsub.f32 %v332, %v1859
  %v1861 = vand.u32 %v1860, 4294901760
  %1862 = vmatmul.f32.gmra.mxu0 %v1861
  %v1863 = vpop.f32.mrf.mxu0
  %v1864 = vadd.f32 %v1469, %v1863
  %v1865 = vand.u32 %v335, 4294901760
  %v1866 = vsub.f32 %v335, %v1865
  %v1867 = vand.u32 %v1866, 4294901760
  %1868 = vmatmul.f32.gmra.mxu0 %v1867
  %v1869 = vpop.f32.mrf.mxu0
  %v1870 = vadd.f32 %v1474, %v1869
  %v1871 = vand.u32 %v338, 4294901760
  %v1872 = vsub.f32 %v338, %v1871
  %v1873 = vand.u32 %v1872, 4294901760
  %1874 = vmatmul.f32.gmra.mxu0 %v1873
  %v1875 = vpop.f32.mrf.mxu0
  %v1876 = vadd.f32 %v1479, %v1875
  %v1877 = vand.u32 %v341, 4294901760
  %v1878 = vsub.f32 %v341, %v1877
  %v1879 = vand.u32 %v1878, 4294901760
  %1880 = vmatmul.f32.gmra.mxu0 %v1879
  %v1881 = vpop.f32.mrf.mxu0
  %v1882 = vadd.f32 %v1484, %v1881
  %v1883 = vand.u32 %v344, 4294901760
  %v1884 = vsub.f32 %v344, %v1883
  %v1885 = vand.u32 %v1884, 4294901760
  %1886 = vmatmul.f32.gmra.mxu0 %v1885
  %v1887 = vpop.f32.mrf.mxu0
  %v1888 = vadd.f32 %v1489, %v1887
  %v1889 = vand.u32 %v347, 4294901760
  %v1890 = vsub.f32 %v347, %v1889
  %v1891 = vand.u32 %v1890, 4294901760
  %1892 = vmatmul.f32.gmra.mxu0 %v1891
  %v1893 = vpop.f32.mrf.mxu0
  %v1894 = vadd.f32 %v1494, %v1893
  %v1895 = vand.u32 %v350, 4294901760
  %v1896 = vsub.f32 %v350, %v1895
  %v1897 = vand.u32 %v1896, 4294901760
  %1898 = vmatmul.f32.gmra.mxu0 %v1897
  %v1899 = vpop.f32.mrf.mxu0
  %v1900 = vadd.f32 %v1499, %v1899
  %v1901 = vand.u32 %v353, 4294901760
  %v1902 = vsub.f32 %v353, %v1901
  %v1903 = vand.u32 %v1902, 4294901760
  %1904 = vmatmul.f32.gmra.mxu0 %v1903
  %v1905 = vpop.f32.mrf.mxu0
  %v1906 = vadd.f32 %v1504, %v1905
  %1907 = vdwg.mxu0
  %1908 = vmatpush.msra.mxu0 0.0
  %1909 = vmatpush.msra.mxu0 0.0
  %1910 = vmatpush.msra.mxu0 0.0
  %1911 = vmatpush.msra.mxu0 0.0
  %1912 = vmatpush.msra.mxu0 0.0
  %1913 = vmatpush.msra.mxu0 0.0
  %1914 = vmatpush.msra.mxu0 0.0
  %1915 = vmatpush.msra.mxu0 0.0
  %1916 = vmatpush.msra.mxu0 0.0
  %1917 = vmatpush.msra.mxu0 0.0
  %1918 = vmatpush.msra.mxu0 0.0
  %1919 = vmatpush.msra.mxu0 0.0
  %1920 = vmatpush.msra.mxu0 0.0
  %1921 = vmatpush.msra.mxu0 0.0
  %1922 = vmatpush.msra.mxu0 0.0
  %v1923 = vand.u32 %v357, 4294901760
  %v1924 = vsub.f32 %v357, %v1923
  %v1925 = vand.u32 %v1924, 4294901760
  %1926 = vmatpush.msra.mxu0 %v1925
  %v1927 = vand.u32 %v164, 4294901760
  %1928 = vmatmul.f32.gmra.mxu0 %v1927
  %v1929 = vpop.f32.mrf.mxu0
  %v1930 = vadd.f32 %v1528, %v1929
  %v1931 = vand.u32 %v167, 4294901760
  %1932 = vmatmul.f32.gmra.mxu0 %v1931
  %v1933 = vpop.f32.mrf.mxu0
  %v1934 = vadd.f32 %v1534, %v1933
  %v1935 = vand.u32 %v170, 4294901760
  %1936 = vmatmul.f32.gmra.mxu0 %v1935
  %v1937 = vpop.f32.mrf.mxu0
  %v1938 = vadd.f32 %v1540, %v1937
  %v1939 = vand.u32 %v173, 4294901760
  %1940 = vmatmul.f32.gmra.mxu0 %v1939
  %v1941 = vpop.f32.mrf.mxu0
  %v1942 = vadd.f32 %v1546, %v1941
  %v1943 = vand.u32 %v176, 4294901760
  %1944 = vmatmul.f32.gmra.mxu0 %v1943
  %v1945 = vpop.f32.mrf.mxu0
  %v1946 = vadd.f32 %v1552, %v1945
  %v1947 = vand.u32 %v179, 4294901760
  %1948 = vmatmul.f32.gmra.mxu0 %v1947
  %v1949 = vpop.f32.mrf.mxu0
  %v1950 = vadd.f32 %v1558, %v1949
  %v1951 = vand.u32 %v182, 4294901760
  %1952 = vmatmul.f32.gmra.mxu0 %v1951
  %v1953 = vpop.f32.mrf.mxu0
  %v1954 = vadd.f32 %v1564, %v1953
  %v1955 = vand.u32 %v185, 4294901760
  %1956 = vmatmul.f32.gmra.mxu0 %v1955
  %v1957 = vpop.f32.mrf.mxu0
  %v1958 = vadd.f32 %v1570, %v1957
  %v1959 = vand.u32 %v188, 4294901760
  %1960 = vmatmul.f32.gmra.mxu0 %v1959
  %v1961 = vpop.f32.mrf.mxu0
  %v1962 = vadd.f32 %v1576, %v1961
  %v1963 = vand.u32 %v191, 4294901760
  %1964 = vmatmul.f32.gmra.mxu0 %v1963
  %v1965 = vpop.f32.mrf.mxu0
  %v1966 = vadd.f32 %v1582, %v1965
  %v1967 = vand.u32 %v194, 4294901760
  %1968 = vmatmul.f32.gmra.mxu0 %v1967
  %v1969 = vpop.f32.mrf.mxu0
  %v1970 = vadd.f32 %v1588, %v1969
  %v1971 = vand.u32 %v197, 4294901760
  %1972 = vmatmul.f32.gmra.mxu0 %v1971
  %v1973 = vpop.f32.mrf.mxu0
  %v1974 = vadd.f32 %v1594, %v1973
  %v1975 = vand.u32 %v200, 4294901760
  %1976 = vmatmul.f32.gmra.mxu0 %v1975
  %v1977 = vpop.f32.mrf.mxu0
  %v1978 = vadd.f32 %v1600, %v1977
  %v1979 = vand.u32 %v203, 4294901760
  %1980 = vmatmul.f32.gmra.mxu0 %v1979
  %v1981 = vpop.f32.mrf.mxu0
  %v1982 = vadd.f32 %v1606, %v1981
  %v1983 = vand.u32 %v206, 4294901760
  %1984 = vmatmul.f32.gmra.mxu0 %v1983
  %v1985 = vpop.f32.mrf.mxu0
  %v1986 = vadd.f32 %v1612, %v1985
  %v1987 = vand.u32 %v209, 4294901760
  %1988 = vmatmul.f32.gmra.mxu0 %v1987
  %v1989 = vpop.f32.mrf.mxu0
  %v1990 = vadd.f32 %v1618, %v1989
  %v1991 = vand.u32 %v212, 4294901760
  %1992 = vmatmul.f32.gmra.mxu0 %v1991
  %v1993 = vpop.f32.mrf.mxu0
  %v1994 = vadd.f32 %v1624, %v1993
  %v1995 = vand.u32 %v215, 4294901760
  %1996 = vmatmul.f32.gmra.mxu0 %v1995
  %v1997 = vpop.f32.mrf.mxu0
  %v1998 = vadd.f32 %v1630, %v1997
  %v1999 = vand.u32 %v218, 4294901760
  %2000 = vmatmul.f32.gmra.mxu0 %v1999
  %v2001 = vpop.f32.mrf.mxu0
  %v2002 = vadd.f32 %v1636, %v2001
  %v2003 = vand.u32 %v221, 4294901760
  %2004 = vmatmul.f32.gmra.mxu0 %v2003
  %v2005 = vpop.f32.mrf.mxu0
  %v2006 = vadd.f32 %v1642, %v2005
  %v2007 = vand.u32 %v224, 4294901760
  %2008 = vmatmul.f32.gmra.mxu0 %v2007
  %v2009 = vpop.f32.mrf.mxu0
  %v2010 = vadd.f32 %v1648, %v2009
  %v2011 = vand.u32 %v227, 4294901760
  %2012 = vmatmul.f32.gmra.mxu0 %v2011
  %v2013 = vpop.f32.mrf.mxu0
  %v2014 = vadd.f32 %v1654, %v2013
  %v2015 = vand.u32 %v230, 4294901760
  %2016 = vmatmul.f32.gmra.mxu0 %v2015
  %v2017 = vpop.f32.mrf.mxu0
  %v2018 = vadd.f32 %v1660, %v2017
  %v2019 = vand.u32 %v233, 4294901760
  %2020 = vmatmul.f32.gmra.mxu0 %v2019
  %v2021 = vpop.f32.mrf.mxu0
  %v2022 = vadd.f32 %v1666, %v2021
  %v2023 = vand.u32 %v236, 4294901760
  %2024 = vmatmul.f32.gmra.mxu0 %v2023
  %v2025 = vpop.f32.mrf.mxu0
  %v2026 = vadd.f32 %v1672, %v2025
  %v2027 = vand.u32 %v239, 4294901760
  %2028 = vmatmul.f32.gmra.mxu0 %v2027
  %v2029 = vpop.f32.mrf.mxu0
  %v2030 = vadd.f32 %v1678, %v2029
  %v2031 = vand.u32 %v242, 4294901760
  %2032 = vmatmul.f32.gmra.mxu0 %v2031
  %v2033 = vpop.f32.mrf.mxu0
  %v2034 = vadd.f32 %v1684, %v2033
  %v2035 = vand.u32 %v245, 4294901760
  %2036 = vmatmul.f32.gmra.mxu0 %v2035
  %v2037 = vpop.f32.mrf.mxu0
  %v2038 = vadd.f32 %v1690, %v2037
  %v2039 = vand.u32 %v248, 4294901760
  %2040 = vmatmul.f32.gmra.mxu0 %v2039
  %v2041 = vpop.f32.mrf.mxu0
  %v2042 = vadd.f32 %v1696, %v2041
  %v2043 = vand.u32 %v251, 4294901760
  %2044 = vmatmul.f32.gmra.mxu0 %v2043
  %v2045 = vpop.f32.mrf.mxu0
  %v2046 = vadd.f32 %v1702, %v2045
  %v2047 = vand.u32 %v254, 4294901760
  %2048 = vmatmul.f32.gmra.mxu0 %v2047
  %v2049 = vpop.f32.mrf.mxu0
  %v2050 = vadd.f32 %v1708, %v2049
  %v2051 = vand.u32 %v257, 4294901760
  %2052 = vmatmul.f32.gmra.mxu0 %v2051
  %v2053 = vpop.f32.mrf.mxu0
  %v2054 = vadd.f32 %v1714, %v2053
  %v2055 = vand.u32 %v260, 4294901760
  %2056 = vmatmul.f32.gmra.mxu0 %v2055
  %v2057 = vpop.f32.mrf.mxu0
  %v2058 = vadd.f32 %v1720, %v2057
  %v2059 = vand.u32 %v263, 4294901760
  %2060 = vmatmul.f32.gmra.mxu0 %v2059
  %v2061 = vpop.f32.mrf.mxu0
  %v2062 = vadd.f32 %v1726, %v2061
  %v2063 = vand.u32 %v266, 4294901760
  %2064 = vmatmul.f32.gmra.mxu0 %v2063
  %v2065 = vpop.f32.mrf.mxu0
  %v2066 = vadd.f32 %v1732, %v2065
  %v2067 = vand.u32 %v269, 4294901760
  %2068 = vmatmul.f32.gmra.mxu0 %v2067
  %v2069 = vpop.f32.mrf.mxu0
  %v2070 = vadd.f32 %v1738, %v2069
  %v2071 = vand.u32 %v272, 4294901760
  %2072 = vmatmul.f32.gmra.mxu0 %v2071
  %v2073 = vpop.f32.mrf.mxu0
  %v2074 = vadd.f32 %v1744, %v2073
  %v2075 = vand.u32 %v275, 4294901760
  %2076 = vmatmul.f32.gmra.mxu0 %v2075
  %v2077 = vpop.f32.mrf.mxu0
  %v2078 = vadd.f32 %v1750, %v2077
  %v2079 = vand.u32 %v278, 4294901760
  %2080 = vmatmul.f32.gmra.mxu0 %v2079
  %v2081 = vpop.f32.mrf.mxu0
  %v2082 = vadd.f32 %v1756, %v2081
  %v2083 = vand.u32 %v281, 4294901760
  %2084 = vmatmul.f32.gmra.mxu0 %v2083
  %v2085 = vpop.f32.mrf.mxu0
  %v2086 = vadd.f32 %v1762, %v2085
  %v2087 = vand.u32 %v284, 4294901760
  %2088 = vmatmul.f32.gmra.mxu0 %v2087
  %v2089 = vpop.f32.mrf.mxu0
  %v2090 = vadd.f32 %v1768, %v2089
  %v2091 = vand.u32 %v287, 4294901760
  %2092 = vmatmul.f32.gmra.mxu0 %v2091
  %v2093 = vpop.f32.mrf.mxu0
  %v2094 = vadd.f32 %v1774, %v2093
  %v2095 = vand.u32 %v290, 4294901760
  %2096 = vmatmul.f32.gmra.mxu0 %v2095
  %v2097 = vpop.f32.mrf.mxu0
  %v2098 = vadd.f32 %v1780, %v2097
  %v2099 = vand.u32 %v293, 4294901760
  %2100 = vmatmul.f32.gmra.mxu0 %v2099
  %v2101 = vpop.f32.mrf.mxu0
  %v2102 = vadd.f32 %v1786, %v2101
  %v2103 = vand.u32 %v296, 4294901760
  %2104 = vmatmul.f32.gmra.mxu0 %v2103
  %v2105 = vpop.f32.mrf.mxu0
  %v2106 = vadd.f32 %v1792, %v2105
  %v2107 = vand.u32 %v299, 4294901760
  %2108 = vmatmul.f32.gmra.mxu0 %v2107
  %v2109 = vpop.f32.mrf.mxu0
  %v2110 = vadd.f32 %v1798, %v2109
  %v2111 = vand.u32 %v302, 4294901760
  %2112 = vmatmul.f32.gmra.mxu0 %v2111
  %v2113 = vpop.f32.mrf.mxu0
  %v2114 = vadd.f32 %v1804, %v2113
  %v2115 = vand.u32 %v305, 4294901760
  %2116 = vmatmul.f32.gmra.mxu0 %v2115
  %v2117 = vpop.f32.mrf.mxu0
  %v2118 = vadd.f32 %v1810, %v2117
  %v2119 = vand.u32 %v308, 4294901760
  %2120 = vmatmul.f32.gmra.mxu0 %v2119
  %v2121 = vpop.f32.mrf.mxu0
  %v2122 = vadd.f32 %v1816, %v2121
  %v2123 = vand.u32 %v311, 4294901760
  %2124 = vmatmul.f32.gmra.mxu0 %v2123
  %v2125 = vpop.f32.mrf.mxu0
  %v2126 = vadd.f32 %v1822, %v2125
  %v2127 = vand.u32 %v314, 4294901760
  %2128 = vmatmul.f32.gmra.mxu0 %v2127
  %v2129 = vpop.f32.mrf.mxu0
  %v2130 = vadd.f32 %v1828, %v2129
  %v2131 = vand.u32 %v317, 4294901760
  %2132 = vmatmul.f32.gmra.mxu0 %v2131
  %v2133 = vpop.f32.mrf.mxu0
  %v2134 = vadd.f32 %v1834, %v2133
  %v2135 = vand.u32 %v320, 4294901760
  %2136 = vmatmul.f32.gmra.mxu0 %v2135
  %v2137 = vpop.f32.mrf.mxu0
  %v2138 = vadd.f32 %v1840, %v2137
  %v2139 = vand.u32 %v323, 4294901760
  %2140 = vmatmul.f32.gmra.mxu0 %v2139
  %v2141 = vpop.f32.mrf.mxu0
  %v2142 = vadd.f32 %v1846, %v2141
  %v2143 = vand.u32 %v326, 4294901760
  %2144 = vmatmul.f32.gmra.mxu0 %v2143
  %v2145 = vpop.f32.mrf.mxu0
  %v2146 = vadd.f32 %v1852, %v2145
  %v2147 = vand.u32 %v329, 4294901760
  %2148 = vmatmul.f32.gmra.mxu0 %v2147
  %v2149 = vpop.f32.mrf.mxu0
  %v2150 = vadd.f32 %v1858, %v2149
  %v2151 = vand.u32 %v332, 4294901760
  %2152 = vmatmul.f32.gmra.mxu0 %v2151
  %v2153 = vpop.f32.mrf.mxu0
  %v2154 = vadd.f32 %v1864, %v2153
  %v2155 = vand.u32 %v335, 4294901760
  %2156 = vmatmul.f32.gmra.mxu0 %v2155
  %v2157 = vpop.f32.mrf.mxu0
  %v2158 = vadd.f32 %v1870, %v2157
  %v2159 = vand.u32 %v338, 4294901760
  %2160 = vmatmul.f32.gmra.mxu0 %v2159
  %v2161 = vpop.f32.mrf.mxu0
  %v2162 = vadd.f32 %v1876, %v2161
  %v2163 = vand.u32 %v341, 4294901760
  %2164 = vmatmul.f32.gmra.mxu0 %v2163
  %v2165 = vpop.f32.mrf.mxu0
  %v2166 = vadd.f32 %v1882, %v2165
  %v2167 = vand.u32 %v344, 4294901760
  %2168 = vmatmul.f32.gmra.mxu0 %v2167
  %v2169 = vpop.f32.mrf.mxu0
  %v2170 = vadd.f32 %v1888, %v2169
  %v2171 = vand.u32 %v347, 4294901760
  %2172 = vmatmul.f32.gmra.mxu0 %v2171
  %v2173 = vpop.f32.mrf.mxu0
  %v2174 = vadd.f32 %v1894, %v2173
  %v2175 = vand.u32 %v350, 4294901760
  %2176 = vmatmul.f32.gmra.mxu0 %v2175
  %v2177 = vpop.f32.mrf.mxu0
  %v2178 = vadd.f32 %v1900, %v2177
  %v2179 = vand.u32 %v353, 4294901760
  %2180 = vmatmul.f32.gmra.mxu0 %v2179
  %v2181 = vpop.f32.mrf.mxu0
  %v2182 = vadd.f32 %v1906, %v2181
  %2183 = vdwg.mxu0
  %2184 = vmatpush.msra.mxu0 0.0
  %2185 = vmatpush.msra.mxu0 0.0
  %2186 = vmatpush.msra.mxu0 0.0
  %2187 = vmatpush.msra.mxu0 0.0
  %2188 = vmatpush.msra.mxu0 0.0
  %2189 = vmatpush.msra.mxu0 0.0
  %2190 = vmatpush.msra.mxu0 0.0
  %2191 = vmatpush.msra.mxu0 0.0
  %2192 = vmatpush.msra.mxu0 0.0
  %2193 = vmatpush.msra.mxu0 0.0
  %2194 = vmatpush.msra.mxu0 0.0
  %2195 = vmatpush.msra.mxu0 0.0
  %2196 = vmatpush.msra.mxu0 0.0
  %2197 = vmatpush.msra.mxu0 0.0
  %2198 = vmatpush.msra.mxu0 0.0
  %v2199 = vand.u32 %v357, 4294901760
  %2200 = vmatpush.msra.mxu0 %v2199
  %v2201 = vand.u32 %v164, 4294901760
  %2202 = vmatmul.f32.gmra.mxu0 %v2201
  %v2203 = vpop.f32.mrf.mxu0
  %v2204 = vadd.f32 %v1930, %v2203
  %v2205 = vand.u32 %v167, 4294901760
  %2206 = vmatmul.f32.gmra.mxu0 %v2205
  %v2207 = vpop.f32.mrf.mxu0
  %v2208 = vadd.f32 %v1934, %v2207
  %v2209 = vand.u32 %v170, 4294901760
  %2210 = vmatmul.f32.gmra.mxu0 %v2209
  %v2211 = vpop.f32.mrf.mxu0
  %v2212 = vadd.f32 %v1938, %v2211
  %v2213 = vand.u32 %v173, 4294901760
  %2214 = vmatmul.f32.gmra.mxu0 %v2213
  %v2215 = vpop.f32.mrf.mxu0
  %v2216 = vadd.f32 %v1942, %v2215
  %v2217 = vand.u32 %v176, 4294901760
  %2218 = vmatmul.f32.gmra.mxu0 %v2217
  %v2219 = vpop.f32.mrf.mxu0
  %v2220 = vadd.f32 %v1946, %v2219
  %v2221 = vand.u32 %v179, 4294901760
  %2222 = vmatmul.f32.gmra.mxu0 %v2221
  %v2223 = vpop.f32.mrf.mxu0
  %v2224 = vadd.f32 %v1950, %v2223
  %v2225 = vand.u32 %v182, 4294901760
  %2226 = vmatmul.f32.gmra.mxu0 %v2225
  %v2227 = vpop.f32.mrf.mxu0
  %v2228 = vadd.f32 %v1954, %v2227
  %v2229 = vand.u32 %v185, 4294901760
  %2230 = vmatmul.f32.gmra.mxu0 %v2229
  %v2231 = vpop.f32.mrf.mxu0
  %v2232 = vadd.f32 %v1958, %v2231
  %v2233 = vand.u32 %v188, 4294901760
  %2234 = vmatmul.f32.gmra.mxu0 %v2233
  %v2235 = vpop.f32.mrf.mxu0
  %v2236 = vadd.f32 %v1962, %v2235
  %v2237 = vand.u32 %v191, 4294901760
  %2238 = vmatmul.f32.gmra.mxu0 %v2237
  %v2239 = vpop.f32.mrf.mxu0
  %v2240 = vadd.f32 %v1966, %v2239
  %v2241 = vand.u32 %v194, 4294901760
  %2242 = vmatmul.f32.gmra.mxu0 %v2241
  %v2243 = vpop.f32.mrf.mxu0
  %v2244 = vadd.f32 %v1970, %v2243
  %v2245 = vand.u32 %v197, 4294901760
  %2246 = vmatmul.f32.gmra.mxu0 %v2245
  %v2247 = vpop.f32.mrf.mxu0
  %v2248 = vadd.f32 %v1974, %v2247
  %v2249 = vand.u32 %v200, 4294901760
  %2250 = vmatmul.f32.gmra.mxu0 %v2249
  %v2251 = vpop.f32.mrf.mxu0
  %v2252 = vadd.f32 %v1978, %v2251
  %v2253 = vand.u32 %v203, 4294901760
  %2254 = vmatmul.f32.gmra.mxu0 %v2253
  %v2255 = vpop.f32.mrf.mxu0
  %v2256 = vadd.f32 %v1982, %v2255
  %v2257 = vand.u32 %v206, 4294901760
  %2258 = vmatmul.f32.gmra.mxu0 %v2257
  %v2259 = vpop.f32.mrf.mxu0
  %v2260 = vadd.f32 %v1986, %v2259
  %v2261 = vand.u32 %v209, 4294901760
  %2262 = vmatmul.f32.gmra.mxu0 %v2261
  %v2263 = vpop.f32.mrf.mxu0
  %v2264 = vadd.f32 %v1990, %v2263
  %v2265 = vand.u32 %v212, 4294901760
  %2266 = vmatmul.f32.gmra.mxu0 %v2265
  %v2267 = vpop.f32.mrf.mxu0
  %v2268 = vadd.f32 %v1994, %v2267
  %v2269 = vand.u32 %v215, 4294901760
  %2270 = vmatmul.f32.gmra.mxu0 %v2269
  %v2271 = vpop.f32.mrf.mxu0
  %v2272 = vadd.f32 %v1998, %v2271
  %v2273 = vand.u32 %v218, 4294901760
  %2274 = vmatmul.f32.gmra.mxu0 %v2273
  %v2275 = vpop.f32.mrf.mxu0
  %v2276 = vadd.f32 %v2002, %v2275
  %v2277 = vand.u32 %v221, 4294901760
  %2278 = vmatmul.f32.gmra.mxu0 %v2277
  %v2279 = vpop.f32.mrf.mxu0
  %v2280 = vadd.f32 %v2006, %v2279
  %v2281 = vand.u32 %v224, 4294901760
  %2282 = vmatmul.f32.gmra.mxu0 %v2281
  %v2283 = vpop.f32.mrf.mxu0
  %v2284 = vadd.f32 %v2010, %v2283
  %v2285 = vand.u32 %v227, 4294901760
  %2286 = vmatmul.f32.gmra.mxu0 %v2285
  %v2287 = vpop.f32.mrf.mxu0
  %v2288 = vadd.f32 %v2014, %v2287
  %v2289 = vand.u32 %v230, 4294901760
  %2290 = vmatmul.f32.gmra.mxu0 %v2289
  %v2291 = vpop.f32.mrf.mxu0
  %v2292 = vadd.f32 %v2018, %v2291
  %v2293 = vand.u32 %v233, 4294901760
  %2294 = vmatmul.f32.gmra.mxu0 %v2293
  %v2295 = vpop.f32.mrf.mxu0
  %v2296 = vadd.f32 %v2022, %v2295
  %v2297 = vand.u32 %v236, 4294901760
  %2298 = vmatmul.f32.gmra.mxu0 %v2297
  %v2299 = vpop.f32.mrf.mxu0
  %v2300 = vadd.f32 %v2026, %v2299
  %v2301 = vand.u32 %v239, 4294901760
  %2302 = vmatmul.f32.gmra.mxu0 %v2301
  %v2303 = vpop.f32.mrf.mxu0
  %v2304 = vadd.f32 %v2030, %v2303
  %v2305 = vand.u32 %v242, 4294901760
  %2306 = vmatmul.f32.gmra.mxu0 %v2305
  %v2307 = vpop.f32.mrf.mxu0
  %v2308 = vadd.f32 %v2034, %v2307
  %v2309 = vand.u32 %v245, 4294901760
  %2310 = vmatmul.f32.gmra.mxu0 %v2309
  %v2311 = vpop.f32.mrf.mxu0
  %v2312 = vadd.f32 %v2038, %v2311
  %v2313 = vand.u32 %v248, 4294901760
  %2314 = vmatmul.f32.gmra.mxu0 %v2313
  %v2315 = vpop.f32.mrf.mxu0
  %v2316 = vadd.f32 %v2042, %v2315
  %v2317 = vand.u32 %v251, 4294901760
  %2318 = vmatmul.f32.gmra.mxu0 %v2317
  %v2319 = vpop.f32.mrf.mxu0
  %v2320 = vadd.f32 %v2046, %v2319
  %v2321 = vand.u32 %v254, 4294901760
  %2322 = vmatmul.f32.gmra.mxu0 %v2321
  %v2323 = vpop.f32.mrf.mxu0
  %v2324 = vadd.f32 %v2050, %v2323
  %v2325 = vand.u32 %v257, 4294901760
  %2326 = vmatmul.f32.gmra.mxu0 %v2325
  %v2327 = vpop.f32.mrf.mxu0
  %v2328 = vadd.f32 %v2054, %v2327
  %v2329 = vand.u32 %v260, 4294901760
  %2330 = vmatmul.f32.gmra.mxu0 %v2329
  %v2331 = vpop.f32.mrf.mxu0
  %v2332 = vadd.f32 %v2058, %v2331
  %v2333 = vand.u32 %v263, 4294901760
  %2334 = vmatmul.f32.gmra.mxu0 %v2333
  %v2335 = vpop.f32.mrf.mxu0
  %v2336 = vadd.f32 %v2062, %v2335
  %v2337 = vand.u32 %v266, 4294901760
  %2338 = vmatmul.f32.gmra.mxu0 %v2337
  %v2339 = vpop.f32.mrf.mxu0
  %v2340 = vadd.f32 %v2066, %v2339
  %v2341 = vand.u32 %v269, 4294901760
  %2342 = vmatmul.f32.gmra.mxu0 %v2341
  %v2343 = vpop.f32.mrf.mxu0
  %v2344 = vadd.f32 %v2070, %v2343
  %v2345 = vand.u32 %v272, 4294901760
  %2346 = vmatmul.f32.gmra.mxu0 %v2345
  %v2347 = vpop.f32.mrf.mxu0
  %v2348 = vadd.f32 %v2074, %v2347
  %v2349 = vand.u32 %v275, 4294901760
  %2350 = vmatmul.f32.gmra.mxu0 %v2349
  %v2351 = vpop.f32.mrf.mxu0
  %v2352 = vadd.f32 %v2078, %v2351
  %v2353 = vand.u32 %v278, 4294901760
  %2354 = vmatmul.f32.gmra.mxu0 %v2353
  %v2355 = vpop.f32.mrf.mxu0
  %v2356 = vadd.f32 %v2082, %v2355
  %v2357 = vand.u32 %v281, 4294901760
  %2358 = vmatmul.f32.gmra.mxu0 %v2357
  %v2359 = vpop.f32.mrf.mxu0
  %v2360 = vadd.f32 %v2086, %v2359
  %v2361 = vand.u32 %v284, 4294901760
  %2362 = vmatmul.f32.gmra.mxu0 %v2361
  %v2363 = vpop.f32.mrf.mxu0
  %v2364 = vadd.f32 %v2090, %v2363
  %v2365 = vand.u32 %v287, 4294901760
  %2366 = vmatmul.f32.gmra.mxu0 %v2365
  %v2367 = vpop.f32.mrf.mxu0
  %v2368 = vadd.f32 %v2094, %v2367
  %v2369 = vand.u32 %v290, 4294901760
  %2370 = vmatmul.f32.gmra.mxu0 %v2369
  %v2371 = vpop.f32.mrf.mxu0
  %v2372 = vadd.f32 %v2098, %v2371
  %v2373 = vand.u32 %v293, 4294901760
  %2374 = vmatmul.f32.gmra.mxu0 %v2373
  %v2375 = vpop.f32.mrf.mxu0
  %v2376 = vadd.f32 %v2102, %v2375
  %v2377 = vand.u32 %v296, 4294901760
  %2378 = vmatmul.f32.gmra.mxu0 %v2377
  %v2379 = vpop.f32.mrf.mxu0
  %v2380 = vadd.f32 %v2106, %v2379
  %v2381 = vand.u32 %v299, 4294901760
  %2382 = vmatmul.f32.gmra.mxu0 %v2381
  %v2383 = vpop.f32.mrf.mxu0
  %v2384 = vadd.f32 %v2110, %v2383
  %v2385 = vand.u32 %v302, 4294901760
  %2386 = vmatmul.f32.gmra.mxu0 %v2385
  %v2387 = vpop.f32.mrf.mxu0
  %v2388 = vadd.f32 %v2114, %v2387
  %v2389 = vand.u32 %v305, 4294901760
  %2390 = vmatmul.f32.gmra.mxu0 %v2389
  %v2391 = vpop.f32.mrf.mxu0
  %v2392 = vadd.f32 %v2118, %v2391
  %v2393 = vand.u32 %v308, 4294901760
  %2394 = vmatmul.f32.gmra.mxu0 %v2393
  %v2395 = vpop.f32.mrf.mxu0
  %v2396 = vadd.f32 %v2122, %v2395
  %v2397 = vand.u32 %v311, 4294901760
  %2398 = vmatmul.f32.gmra.mxu0 %v2397
  %v2399 = vpop.f32.mrf.mxu0
  %v2400 = vadd.f32 %v2126, %v2399
  %v2401 = vand.u32 %v314, 4294901760
  %2402 = vmatmul.f32.gmra.mxu0 %v2401
  %v2403 = vpop.f32.mrf.mxu0
  %v2404 = vadd.f32 %v2130, %v2403
  %v2405 = vand.u32 %v317, 4294901760
  %2406 = vmatmul.f32.gmra.mxu0 %v2405
  %v2407 = vpop.f32.mrf.mxu0
  %v2408 = vadd.f32 %v2134, %v2407
  %v2409 = vand.u32 %v320, 4294901760
  %2410 = vmatmul.f32.gmra.mxu0 %v2409
  %v2411 = vpop.f32.mrf.mxu0
  %v2412 = vadd.f32 %v2138, %v2411
  %v2413 = vand.u32 %v323, 4294901760
  %2414 = vmatmul.f32.gmra.mxu0 %v2413
  %v2415 = vpop.f32.mrf.mxu0
  %v2416 = vadd.f32 %v2142, %v2415
  %v2417 = vand.u32 %v326, 4294901760
  %2418 = vmatmul.f32.gmra.mxu0 %v2417
  %v2419 = vpop.f32.mrf.mxu0
  %v2420 = vadd.f32 %v2146, %v2419
  %v2421 = vand.u32 %v329, 4294901760
  %2422 = vmatmul.f32.gmra.mxu0 %v2421
  %v2423 = vpop.f32.mrf.mxu0
  %v2424 = vadd.f32 %v2150, %v2423
  %v2425 = vand.u32 %v332, 4294901760
  %2426 = vmatmul.f32.gmra.mxu0 %v2425
  %v2427 = vpop.f32.mrf.mxu0
  %v2428 = vadd.f32 %v2154, %v2427
  %v2429 = vand.u32 %v335, 4294901760
  %2430 = vmatmul.f32.gmra.mxu0 %v2429
  %v2431 = vpop.f32.mrf.mxu0
  %v2432 = vadd.f32 %v2158, %v2431
  %v2433 = vand.u32 %v338, 4294901760
  %2434 = vmatmul.f32.gmra.mxu0 %v2433
  %v2435 = vpop.f32.mrf.mxu0
  %v2436 = vadd.f32 %v2162, %v2435
  %v2437 = vand.u32 %v341, 4294901760
  %2438 = vmatmul.f32.gmra.mxu0 %v2437
  %v2439 = vpop.f32.mrf.mxu0
  %v2440 = vadd.f32 %v2166, %v2439
  %v2441 = vand.u32 %v344, 4294901760
  %2442 = vmatmul.f32.gmra.mxu0 %v2441
  %v2443 = vpop.f32.mrf.mxu0
  %v2444 = vadd.f32 %v2170, %v2443
  %v2445 = vand.u32 %v347, 4294901760
  %2446 = vmatmul.f32.gmra.mxu0 %v2445
  %v2447 = vpop.f32.mrf.mxu0
  %v2448 = vadd.f32 %v2174, %v2447
  %v2449 = vand.u32 %v350, 4294901760
  %2450 = vmatmul.f32.gmra.mxu0 %v2449
  %v2451 = vpop.f32.mrf.mxu0
  %v2452 = vadd.f32 %v2178, %v2451
  %v2453 = vand.u32 %v353, 4294901760
  %2454 = vmatmul.f32.gmra.mxu0 %v2453
  %v2455 = vpop.f32.mrf.mxu0
  %v2456 = vadd.f32 %v2182, %v2455
  %2457 = vdwg.mxu0
  %v2458 = vadd.f32 %v2204, 3.0
  %v2459 = vadd.f32 %v2208, 3.0
  %v2460 = vadd.f32 %v2212, 3.0
  %v2461 = vadd.f32 %v2216, 3.0
  %v2462 = vadd.f32 %v2220, 3.0
  %v2463 = vadd.f32 %v2224, 3.0
  %v2464 = vadd.f32 %v2228, 3.0
  %v2465 = vadd.f32 %v2232, 3.0
  %v2466 = vadd.f32 %v2236, 3.0
  %v2467 = vadd.f32 %v2240, 3.0
  %v2468 = vadd.f32 %v2244, 3.0
  %v2469 = vadd.f32 %v2248, 3.0
  %v2470 = vadd.f32 %v2252, 3.0
  %v2471 = vadd.f32 %v2256, 3.0
  %v2472 = vadd.f32 %v2260, 3.0
  %v2473 = vadd.f32 %v2264, 3.0
  %v2474 = vadd.f32 %v2268, 3.0
  %v2475 = vadd.f32 %v2272, 3.0
  %v2476 = vadd.f32 %v2276, 3.0
  %v2477 = vadd.f32 %v2280, 3.0
  %v2478 = vadd.f32 %v2284, 3.0
  %v2479 = vadd.f32 %v2288, 3.0
  %v2480 = vadd.f32 %v2292, 3.0
  %v2481 = vadd.f32 %v2296, 3.0
  %v2482 = vadd.f32 %v2300, 3.0
  %v2483 = vadd.f32 %v2304, 3.0
  %v2484 = vadd.f32 %v2308, 3.0
  %v2485 = vadd.f32 %v2312, 3.0
  %v2486 = vadd.f32 %v2316, 3.0
  %v2487 = vadd.f32 %v2320, 3.0
  %v2488 = vadd.f32 %v2324, 3.0
  %v2489 = vadd.f32 %v2328, 3.0
  %v2490 = vadd.f32 %v2332, 3.0
  %v2491 = vadd.f32 %v2336, 3.0
  %v2492 = vadd.f32 %v2340, 3.0
  %v2493 = vadd.f32 %v2344, 3.0
  %v2494 = vadd.f32 %v2348, 3.0
  %v2495 = vadd.f32 %v2352, 3.0
  %v2496 = vadd.f32 %v2356, 3.0
  %v2497 = vadd.f32 %v2360, 3.0
  %v2498 = vadd.f32 %v2364, 3.0
  %v2499 = vadd.f32 %v2368, 3.0
  %v2500 = vadd.f32 %v2372, 3.0
  %v2501 = vadd.f32 %v2376, 3.0
  %v2502 = vadd.f32 %v2380, 3.0
  %v2503 = vadd.f32 %v2384, 3.0
  %v2504 = vadd.f32 %v2388, 3.0
  %v2505 = vadd.f32 %v2392, 3.0
  %v2506 = vadd.f32 %v2396, 3.0
  %v2507 = vadd.f32 %v2400, 3.0
  %v2508 = vadd.f32 %v2404, 3.0
  %v2509 = vadd.f32 %v2408, 3.0
  %v2510 = vadd.f32 %v2412, 3.0
  %v2511 = vadd.f32 %v2416, 3.0
  %v2512 = vadd.f32 %v2420, 3.0
  %v2513 = vadd.f32 %v2424, 3.0
  %v2514 = vadd.f32 %v2428, 3.0
  %v2515 = vadd.f32 %v2432, 3.0
  %v2516 = vadd.f32 %v2436, 3.0
  %v2517 = vadd.f32 %v2440, 3.0
  %v2518 = vadd.f32 %v2444, 3.0
  %v2519 = vadd.f32 %v2448, 3.0
  %v2520 = vadd.f32 %v2452, 3.0
  %v2521 = vadd.f32 %v2456, 3.0
  %v2522 = vmax.f32 %v2458, 0.0
  %v2523 = vmax.f32 %v2459, 0.0
  %v2524 = vmax.f32 %v2460, 0.0
  %v2525 = vmax.f32 %v2461, 0.0
  %v2526 = vmax.f32 %v2462, 0.0
  %v2527 = vmax.f32 %v2463, 0.0
  %v2528 = vmax.f32 %v2464, 0.0
  %v2529 = vmax.f32 %v2465, 0.0
  %v2530 = vmax.f32 %v2466, 0.0
  %v2531 = vmax.f32 %v2467, 0.0
  %v2532 = vmax.f32 %v2468, 0.0
  %v2533 = vmax.f32 %v2469, 0.0
  %v2534 = vmax.f32 %v2470, 0.0
  %v2535 = vmax.f32 %v2471, 0.0
  %v2536 = vmax.f32 %v2472, 0.0
  %v2537 = vmax.f32 %v2473, 0.0
  %v2538 = vmax.f32 %v2474, 0.0
  %v2539 = vmax.f32 %v2475, 0.0
  %v2540 = vmax.f32 %v2476, 0.0
  %v2541 = vmax.f32 %v2477, 0.0
  %v2542 = vmax.f32 %v2478, 0.0
  %v2543 = vmax.f32 %v2479, 0.0
  %v2544 = vmax.f32 %v2480, 0.0
  %v2545 = vmax.f32 %v2481, 0.0
  %v2546 = vmax.f32 %v2482, 0.0
  %v2547 = vmax.f32 %v2483, 0.0
  %v2548 = vmax.f32 %v2484, 0.0
  %v2549 = vmax.f32 %v2485, 0.0
  %v2550 = vmax.f32 %v2486, 0.0
  %v2551 = vmax.f32 %v2487, 0.0
  %v2552 = vmax.f32 %v2488, 0.0
  %v2553 = vmax.f32 %v2489, 0.0
  %v2554 = vmax.f32 %v2490, 0.0
  %v2555 = vmax.f32 %v2491, 0.0
  %v2556 = vmax.f32 %v2492, 0.0
  %v2557 = vmax.f32 %v2493, 0.0
  %v2558 = vmax.f32 %v2494, 0.0
  %v2559 = vmax.f32 %v2495, 0.0
  %v2560 = vmax.f32 %v2496, 0.0
  %v2561 = vmax.f32 %v2497, 0.0
  %v2562 = vmax.f32 %v2498, 0.0
  %v2563 = vmax.f32 %v2499, 0.0
  %v2564 = vmax.f32 %v2500, 0.0
  %v2565 = vmax.f32 %v2501, 0.0
  %v2566 = vmax.f32 %v2502, 0.0
  %v2567 = vmax.f32 %v2503, 0.0
  %v2568 = vmax.f32 %v2504, 0.0
  %v2569 = vmax.f32 %v2505, 0.0
  %v2570 = vmax.f32 %v2506, 0.0
  %v2571 = vmax.f32 %v2507, 0.0
  %v2572 = vmax.f32 %v2508, 0.0
  %v2573 = vmax.f32 %v2509, 0.0
  %v2574 = vmax.f32 %v2510, 0.0
  %v2575 = vmax.f32 %v2511, 0.0
  %v2576 = vmax.f32 %v2512, 0.0
  %v2577 = vmax.f32 %v2513, 0.0
  %v2578 = vmax.f32 %v2514, 0.0
  %v2579 = vmax.f32 %v2515, 0.0
  %v2580 = vmax.f32 %v2516, 0.0
  %v2581 = vmax.f32 %v2517, 0.0
  %v2582 = vmax.f32 %v2518, 0.0
  %v2583 = vmax.f32 %v2519, 0.0
  %v2584 = vmax.f32 %v2520, 0.0
  %v2585 = vmax.f32 %v2521, 0.0
  %v2586 = vmin.f32 %v2522, 6.0
  %v2587 = vmin.f32 %v2523, 6.0
  %v2588 = vmin.f32 %v2524, 6.0
  %v2589 = vmin.f32 %v2525, 6.0
  %v2590 = vmin.f32 %v2526, 6.0
  %v2591 = vmin.f32 %v2527, 6.0
  %v2592 = vmin.f32 %v2528, 6.0
  %v2593 = vmin.f32 %v2529, 6.0
  %v2594 = vmin.f32 %v2530, 6.0
  %v2595 = vmin.f32 %v2531, 6.0
  %v2596 = vmin.f32 %v2532, 6.0
  %v2597 = vmin.f32 %v2533, 6.0
  %v2598 = vmin.f32 %v2534, 6.0
  %v2599 = vmin.f32 %v2535, 6.0
  %v2600 = vmin.f32 %v2536, 6.0
  %v2601 = vmin.f32 %v2537, 6.0
  %v2602 = vmin.f32 %v2538, 6.0
  %v2603 = vmin.f32 %v2539, 6.0
  %v2604 = vmin.f32 %v2540, 6.0
  %v2605 = vmin.f32 %v2541, 6.0
  %v2606 = vmin.f32 %v2542, 6.0
  %v2607 = vmin.f32 %v2543, 6.0
  %v2608 = vmin.f32 %v2544, 6.0
  %v2609 = vmin.f32 %v2545, 6.0
  %v2610 = vmin.f32 %v2546, 6.0
  %v2611 = vmin.f32 %v2547, 6.0
  %v2612 = vmin.f32 %v2548, 6.0
  %v2613 = vmin.f32 %v2549, 6.0
  %v2614 = vmin.f32 %v2550, 6.0
  %v2615 = vmin.f32 %v2551, 6.0
  %v2616 = vmin.f32 %v2552, 6.0
  %v2617 = vmin.f32 %v2553, 6.0
  %v2618 = vmin.f32 %v2554, 6.0
  %v2619 = vmin.f32 %v2555, 6.0
  %v2620 = vmin.f32 %v2556, 6.0
  %v2621 = vmin.f32 %v2557, 6.0
  %v2622 = vmin.f32 %v2558, 6.0
  %v2623 = vmin.f32 %v2559, 6.0
  %v2624 = vmin.f32 %v2560, 6.0
  %v2625 = vmin.f32 %v2561, 6.0
  %v2626 = vmin.f32 %v2562, 6.0
  %v2627 = vmin.f32 %v2563, 6.0
  %v2628 = vmin.f32 %v2564, 6.0
  %v2629 = vmin.f32 %v2565, 6.0
  %v2630 = vmin.f32 %v2566, 6.0
  %v2631 = vmin.f32 %v2567, 6.0
  %v2632 = vmin.f32 %v2568, 6.0
  %v2633 = vmin.f32 %v2569, 6.0
  %v2634 = vmin.f32 %v2570, 6.0
  %v2635 = vmin.f32 %v2571, 6.0
  %v2636 = vmin.f32 %v2572, 6.0
  %v2637 = vmin.f32 %v2573, 6.0
  %v2638 = vmin.f32 %v2574, 6.0
  %v2639 = vmin.f32 %v2575, 6.0
  %v2640 = vmin.f32 %v2576, 6.0
  %v2641 = vmin.f32 %v2577, 6.0
  %v2642 = vmin.f32 %v2578, 6.0
  %v2643 = vmin.f32 %v2579, 6.0
  %v2644 = vmin.f32 %v2580, 6.0
  %v2645 = vmin.f32 %v2581, 6.0
  %v2646 = vmin.f32 %v2582, 6.0
  %v2647 = vmin.f32 %v2583, 6.0
  %v2648 = vmin.f32 %v2584, 6.0
  %v2649 = vmin.f32 %v2585, 6.0
  %v2650 = vmul.f32 %v2204, %v2586
  %v2651 = vmul.f32 %v2208, %v2587
  %v2652 = vmul.f32 %v2212, %v2588
  %v2653 = vmul.f32 %v2216, %v2589
  %v2654 = vmul.f32 %v2220, %v2590
  %v2655 = vmul.f32 %v2224, %v2591
  %v2656 = vmul.f32 %v2228, %v2592
  %v2657 = vmul.f32 %v2232, %v2593
  %v2658 = vmul.f32 %v2236, %v2594
  %v2659 = vmul.f32 %v2240, %v2595
  %v2660 = vmul.f32 %v2244, %v2596
  %v2661 = vmul.f32 %v2248, %v2597
  %v2662 = vmul.f32 %v2252, %v2598
  %v2663 = vmul.f32 %v2256, %v2599
  %v2664 = vmul.f32 %v2260, %v2600
  %v2665 = vmul.f32 %v2264, %v2601
  %v2666 = vmul.f32 %v2268, %v2602
  %v2667 = vmul.f32 %v2272, %v2603
  %v2668 = vmul.f32 %v2276, %v2604
  %v2669 = vmul.f32 %v2280, %v2605
  %v2670 = vmul.f32 %v2284, %v2606
  %v2671 = vmul.f32 %v2288, %v2607
  %v2672 = vmul.f32 %v2292, %v2608
  %v2673 = vmul.f32 %v2296, %v2609
  %v2674 = vmul.f32 %v2300, %v2610
  %v2675 = vmul.f32 %v2304, %v2611
  %v2676 = vmul.f32 %v2308, %v2612
  %v2677 = vmul.f32 %v2312, %v2613
  %v2678 = vmul.f32 %v2316, %v2614
  %v2679 = vmul.f32 %v2320, %v2615
  %v2680 = vmul.f32 %v2324, %v2616
  %v2681 = vmul.f32 %v2328, %v2617
  %v2682 = vmul.f32 %v2332, %v2618
  %v2683 = vmul.f32 %v2336, %v2619
  %v2684 = vmul.f32 %v2340, %v2620
  %v2685 = vmul.f32 %v2344, %v2621
  %v2686 = vmul.f32 %v2348, %v2622
  %v2687 = vmul.f32 %v2352, %v2623
  %v2688 = vmul.f32 %v2356, %v2624
  %v2689 = vmul.f32 %v2360, %v2625
  %v2690 = vmul.f32 %v2364, %v2626
  %v2691 = vmul.f32 %v2368, %v2627
  %v2692 = vmul.f32 %v2372, %v2628
  %v2693 = vmul.f32 %v2376, %v2629
  %v2694 = vmul.f32 %v2380, %v2630
  %v2695 = vmul.f32 %v2384, %v2631
  %v2696 = vmul.f32 %v2388, %v2632
  %v2697 = vmul.f32 %v2392, %v2633
  %v2698 = vmul.f32 %v2396, %v2634
  %v2699 = vmul.f32 %v2400, %v2635
  %v2700 = vmul.f32 %v2404, %v2636
  %v2701 = vmul.f32 %v2408, %v2637
  %v2702 = vmul.f32 %v2412, %v2638
  %v2703 = vmul.f32 %v2416, %v2639
  %v2704 = vmul.f32 %v2420, %v2640
  %v2705 = vmul.f32 %v2424, %v2641
  %v2706 = vmul.f32 %v2428, %v2642
  %v2707 = vmul.f32 %v2432, %v2643
  %v2708 = vmul.f32 %v2436, %v2644
  %v2709 = vmul.f32 %v2440, %v2645
  %v2710 = vmul.f32 %v2444, %v2646
  %v2711 = vmul.f32 %v2448, %v2647
  %v2712 = vmul.f32 %v2452, %v2648
  %v2713 = vmul.f32 %v2456, %v2649
  %v2714 = vmul.f32 %v2650, 0.16666667
  %v2715 = vmul.f32 %v2651, 0.16666667
  %v2716 = vmul.f32 %v2652, 0.16666667
  %v2717 = vmul.f32 %v2653, 0.16666667
  %v2718 = vmul.f32 %v2654, 0.16666667
  %v2719 = vmul.f32 %v2655, 0.16666667
  %v2720 = vmul.f32 %v2656, 0.16666667
  %v2721 = vmul.f32 %v2657, 0.16666667
  %v2722 = vmul.f32 %v2658, 0.16666667
  %v2723 = vmul.f32 %v2659, 0.16666667
  %v2724 = vmul.f32 %v2660, 0.16666667
  %v2725 = vmul.f32 %v2661, 0.16666667
  %v2726 = vmul.f32 %v2662, 0.16666667
  %v2727 = vmul.f32 %v2663, 0.16666667
  %v2728 = vmul.f32 %v2664, 0.16666667
  %v2729 = vmul.f32 %v2665, 0.16666667
  %v2730 = vmul.f32 %v2666, 0.16666667
  %v2731 = vmul.f32 %v2667, 0.16666667
  %v2732 = vmul.f32 %v2668, 0.16666667
  %v2733 = vmul.f32 %v2669, 0.16666667
  %v2734 = vmul.f32 %v2670, 0.16666667
  %v2735 = vmul.f32 %v2671, 0.16666667
  %v2736 = vmul.f32 %v2672, 0.16666667
  %v2737 = vmul.f32 %v2673, 0.16666667
  %v2738 = vmul.f32 %v2674, 0.16666667
  %v2739 = vmul.f32 %v2675, 0.16666667
  %v2740 = vmul.f32 %v2676, 0.16666667
  %v2741 = vmul.f32 %v2677, 0.16666667
  %v2742 = vmul.f32 %v2678, 0.16666667
  %v2743 = vmul.f32 %v2679, 0.16666667
  %v2744 = vmul.f32 %v2680, 0.16666667
  %v2745 = vmul.f32 %v2681, 0.16666667
  %v2746 = vmul.f32 %v2682, 0.16666667
  %v2747 = vmul.f32 %v2683, 0.16666667
  %v2748 = vmul.f32 %v2684, 0.16666667
  %v2749 = vmul.f32 %v2685, 0.16666667
  %v2750 = vmul.f32 %v2686, 0.16666667
  %v2751 = vmul.f32 %v2687, 0.16666667
  %v2752 = vmul.f32 %v2688, 0.16666667
  %v2753 = vmul.f32 %v2689, 0.16666667
  %v2754 = vmul.f32 %v2690, 0.16666667
  %v2755 = vmul.f32 %v2691, 0.16666667
  %v2756 = vmul.f32 %v2692, 0.16666667
  %v2757 = vmul.f32 %v2693, 0.16666667
  %v2758 = vmul.f32 %v2694, 0.16666667
  %v2759 = vmul.f32 %v2695, 0.16666667
  %v2760 = vmul.f32 %v2696, 0.16666667
  %v2761 = vmul.f32 %v2697, 0.16666667
  %v2762 = vmul.f32 %v2698, 0.16666667
  %v2763 = vmul.f32 %v2699, 0.16666667
  %v2764 = vmul.f32 %v2700, 0.16666667
  %v2765 = vmul.f32 %v2701, 0.16666667
  %v2766 = vmul.f32 %v2702, 0.16666667
  %v2767 = vmul.f32 %v2703, 0.16666667
  %v2768 = vmul.f32 %v2704, 0.16666667
  %v2769 = vmul.f32 %v2705, 0.16666667
  %v2770 = vmul.f32 %v2706, 0.16666667
  %v2771 = vmul.f32 %v2707, 0.16666667
  %v2772 = vmul.f32 %v2708, 0.16666667
  %v2773 = vmul.f32 %v2709, 0.16666667
  %v2774 = vmul.f32 %v2710, 0.16666667
  %v2775 = vmul.f32 %v2711, 0.16666667
  %v2776 = vmul.f32 %v2712, 0.16666667
  %v2777 = vmul.f32 %v2713, 0.16666667
  %v2778 = vld [vmem:[%s3] sm:$0xff]
  %v2779 = vld [vmem:[%s3 + $0x8] sm:$0x1]
  %vm2844 = vcmask 1040384
  %v2845 = vrot.slane %v2714, 7
  %v2846 = vrot.slane %v2715, 7
  %v2847 = vsel %vm2844, %v2845, %v2846
  %v2848 = vrot.slane %v2716, 7
  %v2849 = vsel %vm2844, %v2846, %v2848
  %v2850 = vrot.slane %v2717, 7
  %v2851 = vsel %vm2844, %v2848, %v2850
  %v2852 = vrot.slane %v2718, 7
  %v2853 = vsel %vm2844, %v2850, %v2852
  %v2854 = vrot.slane %v2719, 7
  %v2855 = vsel %vm2844, %v2852, %v2854
  %v2856 = vrot.slane %v2720, 7
  %v2857 = vsel %vm2844, %v2854, %v2856
  %v2858 = vrot.slane %v2721, 7
  %v2859 = vsel %vm2844, %v2856, %v2858
  %v2860 = vrot.slane %v2722, 7
  %v2861 = vsel %vm2844, %v2858, %v2860
  %v2862 = vrot.slane %v2723, 7
  %v2863 = vsel %vm2844, %v2860, %v2862
  %v2864 = vrot.slane %v2724, 7
  %v2865 = vsel %vm2844, %v2862, %v2864
  %v2866 = vrot.slane %v2725, 7
  %v2867 = vsel %vm2844, %v2864, %v2866
  %v2868 = vrot.slane %v2726, 7
  %v2869 = vsel %vm2844, %v2866, %v2868
  %v2870 = vrot.slane %v2727, 7
  %v2871 = vsel %vm2844, %v2868, %v2870
  %v2872 = vrot.slane %v2728, 7
  %v2873 = vsel %vm2844, %v2870, %v2872
  %v2874 = vrot.slane %v2729, 7
  %v2875 = vsel %vm2844, %v2872, %v2874
  %v2876 = vrot.slane %v2730, 7
  %v2877 = vsel %vm2844, %v2874, %v2876
  %v2878 = vrot.slane %v2731, 7
  %v2879 = vsel %vm2844, %v2876, %v2878
  %v2880 = vrot.slane %v2732, 7
  %v2881 = vsel %vm2844, %v2878, %v2880
  %v2882 = vrot.slane %v2733, 7
  %v2883 = vsel %vm2844, %v2880, %v2882
  %v2884 = vrot.slane %v2734, 7
  %v2885 = vsel %vm2844, %v2882, %v2884
  %v2886 = vrot.slane %v2735, 7
  %v2887 = vsel %vm2844, %v2884, %v2886
  %v2888 = vrot.slane %v2736, 7
  %v2889 = vsel %vm2844, %v2886, %v2888
  %v2890 = vrot.slane %v2737, 7
  %v2891 = vsel %vm2844, %v2888, %v2890
  %v2892 = vrot.slane %v2738, 7
  %v2893 = vsel %vm2844, %v2890, %v2892
  %v2894 = vrot.slane %v2739, 7
  %v2895 = vsel %vm2844, %v2892, %v2894
  %v2896 = vrot.slane %v2740, 7
  %v2897 = vsel %vm2844, %v2894, %v2896
  %v2898 = vrot.slane %v2741, 7
  %v2899 = vsel %vm2844, %v2896, %v2898
  %v2900 = vrot.slane %v2742, 7
  %v2901 = vsel %vm2844, %v2898, %v2900
  %v2902 = vrot.slane %v2743, 7
  %v2903 = vsel %vm2844, %v2900, %v2902
  %v2904 = vrot.slane %v2744, 7
  %v2905 = vsel %vm2844, %v2902, %v2904
  %v2906 = vrot.slane %v2745, 7
  %v2907 = vsel %vm2844, %v2904, %v2906
  %v2908 = vrot.slane %v2746, 7
  %v2909 = vsel %vm2844, %v2906, %v2908
  %v2910 = vrot.slane %v2747, 7
  %v2911 = vsel %vm2844, %v2908, %v2910
  %v2912 = vrot.slane %v2748, 7
  %v2913 = vsel %vm2844, %v2910, %v2912
  %v2914 = vrot.slane %v2749, 7
  %v2915 = vsel %vm2844, %v2912, %v2914
  %v2916 = vrot.slane %v2750, 7
  %v2917 = vsel %vm2844, %v2914, %v2916
  %v2918 = vrot.slane %v2751, 7
  %v2919 = vsel %vm2844, %v2916, %v2918
  %v2920 = vrot.slane %v2752, 7
  %v2921 = vsel %vm2844, %v2918, %v2920
  %v2922 = vrot.slane %v2753, 7
  %v2923 = vsel %vm2844, %v2920, %v2922
  %v2924 = vrot.slane %v2754, 7
  %v2925 = vsel %vm2844, %v2922, %v2924
  %v2926 = vrot.slane %v2755, 7
  %v2927 = vsel %vm2844, %v2924, %v2926
  %v2928 = vrot.slane %v2756, 7
  %v2929 = vsel %vm2844, %v2926, %v2928
  %v2930 = vrot.slane %v2757, 7
  %v2931 = vsel %vm2844, %v2928, %v2930
  %v2932 = vrot.slane %v2758, 7
  %v2933 = vsel %vm2844, %v2930, %v2932
  %v2934 = vrot.slane %v2759, 7
  %v2935 = vsel %vm2844, %v2932, %v2934
  %v2936 = vrot.slane %v2760, 7
  %v2937 = vsel %vm2844, %v2934, %v2936
  %v2938 = vrot.slane %v2761, 7
  %v2939 = vsel %vm2844, %v2936, %v2938
  %v2940 = vrot.slane %v2762, 7
  %v2941 = vsel %vm2844, %v2938, %v2940
  %v2942 = vrot.slane %v2763, 7
  %v2943 = vsel %vm2844, %v2940, %v2942
  %v2944 = vrot.slane %v2764, 7
  %v2945 = vsel %vm2844, %v2942, %v2944
  %v2946 = vrot.slane %v2765, 7
  %v2947 = vsel %vm2844, %v2944, %v2946
  %v2948 = vrot.slane %v2766, 7
  %v2949 = vsel %vm2844, %v2946, %v2948
  %v2950 = vrot.slane %v2767, 7
  %v2951 = vsel %vm2844, %v2948, %v2950
  %v2952 = vrot.slane %v2768, 7
  %v2953 = vsel %vm2844, %v2950, %v2952
  %v2954 = vrot.slane %v2769, 7
  %v2955 = vsel %vm2844, %v2952, %v2954
  %v2956 = vrot.slane %v2770, 7
  %v2957 = vsel %vm2844, %v2954, %v2956
  %v2958 = vrot.slane %v2771, 7
  %v2959 = vsel %vm2844, %v2956, %v2958
  %v2960 = vrot.slane %v2772, 7
  %v2961 = vsel %vm2844, %v2958, %v2960
  %v2962 = vrot.slane %v2773, 7
  %v2963 = vsel %vm2844, %v2960, %v2962
  %v2964 = vrot.slane %v2774, 7
  %v2965 = vsel %vm2844, %v2962, %v2964
  %v2966 = vrot.slane %v2775, 7
  %v2967 = vsel %vm2844, %v2964, %v2966
  %v2968 = vrot.slane %v2776, 7
  %v2969 = vsel %vm2844, %v2966, %v2968
  %v2970 = vrot.slane %v2777, 7
  %v2971 = vsel %vm2844, %v2968, %v2970
  %v3036 = vsel %vm2844, 0.0, %v2845
  %3038 = vset.pattern.permute.xlu0 0
  %3039 = vperm.xlu0 %3038, %v93
  %v3040 = vpop.permute.xlu0 %3039
  %3043 = vset.pattern.permute.xlu0 0
  %3044 = vperm.xlu0 %3043, %v94
  %v3045 = vpop.permute.xlu0 %3044
  %3048 = vset.pattern.permute.xlu0 0
  %3049 = vperm.xlu0 %3048, %v95
  %v3050 = vpop.permute.xlu0 %3049
  %3053 = vset.pattern.permute.xlu0 0
  %3054 = vperm.xlu0 %3053, %v96
  %v3055 = vpop.permute.xlu0 %3054
  %3058 = vset.pattern.permute.xlu0 0
  %3059 = vperm.xlu0 %3058, %v97
  %v3060 = vpop.permute.xlu0 %3059
  %3063 = vset.pattern.permute.xlu0 0
  %3064 = vperm.xlu0 %3063, %v98
  %v3065 = vpop.permute.xlu0 %3064
  %3068 = vset.pattern.permute.xlu0 0
  %3069 = vperm.xlu0 %3068, %v99
  %v3070 = vpop.permute.xlu0 %3069
  %3073 = vset.pattern.permute.xlu0 0
  %3074 = vperm.xlu0 %3073, %v100
  %v3075 = vpop.permute.xlu0 %3074
  %3078 = vset.pattern.permute.xlu0 0
  %3079 = vperm.xlu0 %3078, %v101
  %v3080 = vpop.permute.xlu0 %3079
  %3083 = vset.pattern.permute.xlu0 0
  %3084 = vperm.xlu0 %3083, %v102
  %v3085 = vpop.permute.xlu0 %3084
  %3088 = vset.pattern.permute.xlu0 0
  %3089 = vperm.xlu0 %3088, %v103
  %v3090 = vpop.permute.xlu0 %3089
  %3093 = vset.pattern.permute.xlu0 0
  %3094 = vperm.xlu0 %3093, %v104
  %v3095 = vpop.permute.xlu0 %3094
  %3098 = vset.pattern.permute.xlu0 0
  %3099 = vperm.xlu0 %3098, %v105
  %v3100 = vpop.permute.xlu0 %3099
  %3103 = vset.pattern.permute.xlu0 0
  %3104 = vperm.xlu0 %3103, %v106
  %v3105 = vpop.permute.xlu0 %3104
  %3108 = vset.pattern.permute.xlu0 0
  %3109 = vperm.xlu0 %3108, %v107
  %v3110 = vpop.permute.xlu0 %3109
  %3113 = vset.pattern.permute.xlu0 0
  %3114 = vperm.xlu0 %3113, %v108
  %v3115 = vpop.permute.xlu0 %3114
  %3118 = vset.pattern.permute.xlu0 0
  %3119 = vperm.xlu0 %3118, %v109
  %v3120 = vpop.permute.xlu0 %3119
  %3123 = vset.pattern.permute.xlu0 0
  %3124 = vperm.xlu0 %3123, %v110
  %v3125 = vpop.permute.xlu0 %3124
  %3128 = vset.pattern.permute.xlu0 0
  %3129 = vperm.xlu0 %3128, %v111
  %v3130 = vpop.permute.xlu0 %3129
  %3133 = vset.pattern.permute.xlu0 0
  %3134 = vperm.xlu0 %3133, %v112
  %v3135 = vpop.permute.xlu0 %3134
  %3138 = vset.pattern.permute.xlu0 0
  %3139 = vperm.xlu0 %3138, %v113
  %v3140 = vpop.permute.xlu0 %3139
  %3143 = vset.pattern.permute.xlu0 0
  %3144 = vperm.xlu0 %3143, %v114
  %v3145 = vpop.permute.xlu0 %3144
  %3148 = vset.pattern.permute.xlu0 0
  %3149 = vperm.xlu0 %3148, %v115
  %v3150 = vpop.permute.xlu0 %3149
  %3153 = vset.pattern.permute.xlu0 0
  %3154 = vperm.xlu0 %3153, %v116
  %v3155 = vpop.permute.xlu0 %3154
  %3158 = vset.pattern.permute.xlu0 0
  %3159 = vperm.xlu0 %3158, %v117
  %v3160 = vpop.permute.xlu0 %3159
  %3163 = vset.pattern.permute.xlu0 0
  %3164 = vperm.xlu0 %3163, %v118
  %v3165 = vpop.permute.xlu0 %3164
  %3168 = vset.pattern.permute.xlu0 0
  %3169 = vperm.xlu0 %3168, %v119
  %v3170 = vpop.permute.xlu0 %3169
  %3173 = vset.pattern.permute.xlu0 0
  %3174 = vperm.xlu0 %3173, %v120
  %v3175 = vpop.permute.xlu0 %3174
  %3178 = vset.pattern.permute.xlu0 0
  %3179 = vperm.xlu0 %3178, %v121
  %v3180 = vpop.permute.xlu0 %3179
  %3183 = vset.pattern.permute.xlu0 0
  %3184 = vperm.xlu0 %3183, %v122
  %v3185 = vpop.permute.xlu0 %3184
  %3188 = vset.pattern.permute.xlu0 0
  %3189 = vperm.xlu0 %3188, %v123
  %v3190 = vpop.permute.xlu0 %3189
  %3193 = vset.pattern.permute.xlu0 0
  %3194 = vperm.xlu0 %3193, %v124
  %v3195 = vpop.permute.xlu0 %3194
  %3198 = vset.pattern.permute.xlu0 0
  %3199 = vperm.xlu0 %3198, %v125
  %v3200 = vpop.permute.xlu0 %3199
  %3203 = vset.pattern.permute.xlu0 0
  %3204 = vperm.xlu0 %3203, %v126
  %v3205 = vpop.permute.xlu0 %3204
  %3208 = vset.pattern.permute.xlu0 0
  %3209 = vperm.xlu0 %3208, %v127
  %v3210 = vpop.permute.xlu0 %3209
  %3213 = vset.pattern.permute.xlu0 0
  %3214 = vperm.xlu0 %3213, %v128
  %v3215 = vpop.permute.xlu0 %3214
  %3218 = vset.pattern.permute.xlu0 0
  %3219 = vperm.xlu0 %3218, %v129
  %v3220 = vpop.permute.xlu0 %3219
  %3223 = vset.pattern.permute.xlu0 0
  %3224 = vperm.xlu0 %3223, %v130
  %v3225 = vpop.permute.xlu0 %3224
  %3228 = vset.pattern.permute.xlu0 0
  %3229 = vperm.xlu0 %3228, %v131
  %v3230 = vpop.permute.xlu0 %3229
  %3233 = vset.pattern.permute.xlu0 0
  %3234 = vperm.xlu0 %3233, %v132
  %v3235 = vpop.permute.xlu0 %3234
  %3238 = vset.pattern.permute.xlu0 0
  %3239 = vperm.xlu0 %3238, %v133
  %v3240 = vpop.permute.xlu0 %3239
  %3243 = vset.pattern.permute.xlu0 0
  %3244 = vperm.xlu0 %3243, %v134
  %v3245 = vpop.permute.xlu0 %3244
  %3248 = vset.pattern.permute.xlu0 0
  %3249 = vperm.xlu0 %3248, %v135
  %v3250 = vpop.permute.xlu0 %3249
  %3253 = vset.pattern.permute.xlu0 0
  %3254 = vperm.xlu0 %3253, %v136
  %v3255 = vpop.permute.xlu0 %3254
  %3258 = vset.pattern.permute.xlu0 0
  %3259 = vperm.xlu0 %3258, %v137
  %v3260 = vpop.permute.xlu0 %3259
  %3263 = vset.pattern.permute.xlu0 0
  %3264 = vperm.xlu0 %3263, %v138
  %v3265 = vpop.permute.xlu0 %3264
  %3268 = vset.pattern.permute.xlu0 0
  %3269 = vperm.xlu0 %3268, %v139
  %v3270 = vpop.permute.xlu0 %3269
  %3273 = vset.pattern.permute.xlu0 0
  %3274 = vperm.xlu0 %3273, %v140
  %v3275 = vpop.permute.xlu0 %3274
  %3278 = vset.pattern.permute.xlu0 0
  %3279 = vperm.xlu0 %3278, %v141
  %v3280 = vpop.permute.xlu0 %3279
  %3283 = vset.pattern.permute.xlu0 0
  %3284 = vperm.xlu0 %3283, %v142
  %v3285 = vpop.permute.xlu0 %3284
  %3288 = vset.pattern.permute.xlu0 0
  %3289 = vperm.xlu0 %3288, %v143
  %v3290 = vpop.permute.xlu0 %3289
  %3293 = vset.pattern.permute.xlu0 0
  %3294 = vperm.xlu0 %3293, %v144
  %v3295 = vpop.permute.xlu0 %3294
  %3298 = vset.pattern.permute.xlu0 0
  %3299 = vperm.xlu0 %3298, %v145
  %v3300 = vpop.permute.xlu0 %3299
  %3303 = vset.pattern.permute.xlu0 0
  %3304 = vperm.xlu0 %3303, %v146
  %v3305 = vpop.permute.xlu0 %3304
  %3308 = vset.pattern.permute.xlu0 0
  %3309 = vperm.xlu0 %3308, %v147
  %v3310 = vpop.permute.xlu0 %3309
  %3313 = vset.pattern.permute.xlu0 0
  %3314 = vperm.xlu0 %3313, %v148
  %v3315 = vpop.permute.xlu0 %3314
  %3318 = vset.pattern.permute.xlu0 0
  %3319 = vperm.xlu0 %3318, %v149
  %v3320 = vpop.permute.xlu0 %3319
  %3323 = vset.pattern.permute.xlu0 0
  %3324 = vperm.xlu0 %3323, %v150
  %v3325 = vpop.permute.xlu0 %3324
  %3328 = vset.pattern.permute.xlu0 0
  %3329 = vperm.xlu0 %3328, %v151
  %v3330 = vpop.permute.xlu0 %3329
  %3333 = vset.pattern.permute.xlu0 0
  %3334 = vperm.xlu0 %3333, %v152
  %v3335 = vpop.permute.xlu0 %3334
  %3338 = vset.pattern.permute.xlu0 0
  %3339 = vperm.xlu0 %3338, %v153
  %v3340 = vpop.permute.xlu0 %3339
  %3343 = vset.pattern.permute.xlu0 0
  %3344 = vperm.xlu0 %3343, %v154
  %v3345 = vpop.permute.xlu0 %3344
  %3348 = vset.pattern.permute.xlu0 0
  %3349 = vperm.xlu0 %3348, %v155
  %v3350 = vpop.permute.xlu0 %3349
  %3353 = vset.pattern.permute.xlu0 0
  %3354 = vperm.xlu0 %3353, %v156
  %v3355 = vpop.permute.xlu0 %3354
  %v3357 = vmul.f32 %v3036, %v3040
  %v3358 = vmul.f32 %v2847, %v3045
  %v3359 = vmul.f32 %v2849, %v3050
  %v3360 = vmul.f32 %v2851, %v3055
  %v3361 = vmul.f32 %v2853, %v3060
  %v3362 = vmul.f32 %v2855, %v3065
  %v3363 = vmul.f32 %v2857, %v3070
  %v3364 = vmul.f32 %v2859, %v3075
  %v3365 = vmul.f32 %v2861, %v3080
  %v3366 = vmul.f32 %v2863, %v3085
  %v3367 = vmul.f32 %v2865, %v3090
  %v3368 = vmul.f32 %v2867, %v3095
  %v3369 = vmul.f32 %v2869, %v3100
  %v3370 = vmul.f32 %v2871, %v3105
  %v3371 = vmul.f32 %v2873, %v3110
  %v3372 = vmul.f32 %v2875, %v3115
  %v3373 = vmul.f32 %v2877, %v3120
  %v3374 = vmul.f32 %v2879, %v3125
  %v3375 = vmul.f32 %v2881, %v3130
  %v3376 = vmul.f32 %v2883, %v3135
  %v3377 = vmul.f32 %v2885, %v3140
  %v3378 = vmul.f32 %v2887, %v3145
  %v3379 = vmul.f32 %v2889, %v3150
  %v3380 = vmul.f32 %v2891, %v3155
  %v3381 = vmul.f32 %v2893, %v3160
  %v3382 = vmul.f32 %v2895, %v3165
  %v3383 = vmul.f32 %v2897, %v3170
  %v3384 = vmul.f32 %v2899, %v3175
  %v3385 = vmul.f32 %v2901, %v3180
  %v3386 = vmul.f32 %v2903, %v3185
  %v3387 = vmul.f32 %v2905, %v3190
  %v3388 = vmul.f32 %v2907, %v3195
  %v3389 = vmul.f32 %v2909, %v3200
  %v3390 = vmul.f32 %v2911, %v3205
  %v3391 = vmul.f32 %v2913, %v3210
  %v3392 = vmul.f32 %v2915, %v3215
  %v3393 = vmul.f32 %v2917, %v3220
  %v3394 = vmul.f32 %v2919, %v3225
  %v3395 = vmul.f32 %v2921, %v3230
  %v3396 = vmul.f32 %v2923, %v3235
  %v3397 = vmul.f32 %v2925, %v3240
  %v3398 = vmul.f32 %v2927, %v3245
  %v3399 = vmul.f32 %v2929, %v3250
  %v3400 = vmul.f32 %v2931, %v3255
  %v3401 = vmul.f32 %v2933, %v3260
  %v3402 = vmul.f32 %v2935, %v3265
  %v3403 = vmul.f32 %v2937, %v3270
  %v3404 = vmul.f32 %v2939, %v3275
  %v3405 = vmul.f32 %v2941, %v3280
  %v3406 = vmul.f32 %v2943, %v3285
  %v3407 = vmul.f32 %v2945, %v3290
  %v3408 = vmul.f32 %v2947, %v3295
  %v3409 = vmul.f32 %v2949, %v3300
  %v3410 = vmul.f32 %v2951, %v3305
  %v3411 = vmul.f32 %v2953, %v3310
  %v3412 = vmul.f32 %v2955, %v3315
  %v3413 = vmul.f32 %v2957, %v3320
  %v3414 = vmul.f32 %v2959, %v3325
  %v3415 = vmul.f32 %v2961, %v3330
  %v3416 = vmul.f32 %v2963, %v3335
  %v3417 = vmul.f32 %v2965, %v3340
  %v3418 = vmul.f32 %v2967, %v3345
  %v3419 = vmul.f32 %v2969, %v3350
  %v3420 = vmul.f32 %v2971, %v3355
  %3421 = vset.pattern.permute.xlu0 3
  %3422 = vperm.xlu0 %3421, %v93
  %v3423 = vpop.permute.xlu0 %3422
  %3425 = vset.pattern.permute.xlu0 3
  %3426 = vperm.xlu0 %3425, %v94
  %v3427 = vpop.permute.xlu0 %3426
  %3429 = vset.pattern.permute.xlu0 3
  %3430 = vperm.xlu0 %3429, %v95
  %v3431 = vpop.permute.xlu0 %3430
  %3433 = vset.pattern.permute.xlu0 3
  %3434 = vperm.xlu0 %3433, %v96
  %v3435 = vpop.permute.xlu0 %3434
  %3437 = vset.pattern.permute.xlu0 3
  %3438 = vperm.xlu0 %3437, %v97
  %v3439 = vpop.permute.xlu0 %3438
  %3441 = vset.pattern.permute.xlu0 3
  %3442 = vperm.xlu0 %3441, %v98
  %v3443 = vpop.permute.xlu0 %3442
  %3445 = vset.pattern.permute.xlu0 3
  %3446 = vperm.xlu0 %3445, %v99
  %v3447 = vpop.permute.xlu0 %3446
  %3449 = vset.pattern.permute.xlu0 3
  %3450 = vperm.xlu0 %3449, %v100
  %v3451 = vpop.permute.xlu0 %3450
  %3453 = vset.pattern.permute.xlu0 3
  %3454 = vperm.xlu0 %3453, %v101
  %v3455 = vpop.permute.xlu0 %3454
  %3457 = vset.pattern.permute.xlu0 3
  %3458 = vperm.xlu0 %3457, %v102
  %v3459 = vpop.permute.xlu0 %3458
  %3461 = vset.pattern.permute.xlu0 3
  %3462 = vperm.xlu0 %3461, %v103
  %v3463 = vpop.permute.xlu0 %3462
  %3465 = vset.pattern.permute.xlu0 3
  %3466 = vperm.xlu0 %3465, %v104
  %v3467 = vpop.permute.xlu0 %3466
  %3469 = vset.pattern.permute.xlu0 3
  %3470 = vperm.xlu0 %3469, %v105
  %v3471 = vpop.permute.xlu0 %3470
  %3473 = vset.pattern.permute.xlu0 3
  %3474 = vperm.xlu0 %3473, %v106
  %v3475 = vpop.permute.xlu0 %3474
  %3477 = vset.pattern.permute.xlu0 3
  %3478 = vperm.xlu0 %3477, %v107
  %v3479 = vpop.permute.xlu0 %3478
  %3481 = vset.pattern.permute.xlu0 3
  %3482 = vperm.xlu0 %3481, %v108
  %v3483 = vpop.permute.xlu0 %3482
  %3485 = vset.pattern.permute.xlu0 3
  %3486 = vperm.xlu0 %3485, %v109
  %v3487 = vpop.permute.xlu0 %3486
  %3489 = vset.pattern.permute.xlu0 3
  %3490 = vperm.xlu0 %3489, %v110
  %v3491 = vpop.permute.xlu0 %3490
  %3493 = vset.pattern.permute.xlu0 3
  %3494 = vperm.xlu0 %3493, %v111
  %v3495 = vpop.permute.xlu0 %3494
  %3497 = vset.pattern.permute.xlu0 3
  %3498 = vperm.xlu0 %3497, %v112
  %v3499 = vpop.permute.xlu0 %3498
  %3501 = vset.pattern.permute.xlu0 3
  %3502 = vperm.xlu0 %3501, %v113
  %v3503 = vpop.permute.xlu0 %3502
  %3505 = vset.pattern.permute.xlu0 3
  %3506 = vperm.xlu0 %3505, %v114
  %v3507 = vpop.permute.xlu0 %3506
  %3509 = vset.pattern.permute.xlu0 3
  %3510 = vperm.xlu0 %3509, %v115
  %v3511 = vpop.permute.xlu0 %3510
  %3513 = vset.pattern.permute.xlu0 3
  %3514 = vperm.xlu0 %3513, %v116
  %v3515 = vpop.permute.xlu0 %3514
  %3517 = vset.pattern.permute.xlu0 3
  %3518 = vperm.xlu0 %3517, %v117
  %v3519 = vpop.permute.xlu0 %3518
  %3521 = vset.pattern.permute.xlu0 3
  %3522 = vperm.xlu0 %3521, %v118
  %v3523 = vpop.permute.xlu0 %3522
  %3525 = vset.pattern.permute.xlu0 3
  %3526 = vperm.xlu0 %3525, %v119
  %v3527 = vpop.permute.xlu0 %3526
  %3529 = vset.pattern.permute.xlu0 3
  %3530 = vperm.xlu0 %3529, %v120
  %v3531 = vpop.permute.xlu0 %3530
  %3533 = vset.pattern.permute.xlu0 3
  %3534 = vperm.xlu0 %3533, %v121
  %v3535 = vpop.permute.xlu0 %3534
  %3537 = vset.pattern.permute.xlu0 3
  %3538 = vperm.xlu0 %3537, %v122
  %v3539 = vpop.permute.xlu0 %3538
  %3541 = vset.pattern.permute.xlu0 3
  %3542 = vperm.xlu0 %3541, %v123
  %v3543 = vpop.permute.xlu0 %3542
  %3545 = vset.pattern.permute.xlu0 3
  %3546 = vperm.xlu0 %3545, %v124
  %v3547 = vpop.permute.xlu0 %3546
  %3549 = vset.pattern.permute.xlu0 3
  %3550 = vperm.xlu0 %3549, %v125
  %v3551 = vpop.permute.xlu0 %3550
  %3553 = vset.pattern.permute.xlu0 3
  %3554 = vperm.xlu0 %3553, %v126
  %v3555 = vpop.permute.xlu0 %3554
  %3557 = vset.pattern.permute.xlu0 3
  %3558 = vperm.xlu0 %3557, %v127
  %v3559 = vpop.permute.xlu0 %3558
  %3561 = vset.pattern.permute.xlu0 3
  %3562 = vperm.xlu0 %3561, %v128
  %v3563 = vpop.permute.xlu0 %3562
  %3565 = vset.pattern.permute.xlu0 3
  %3566 = vperm.xlu0 %3565, %v129
  %v3567 = vpop.permute.xlu0 %3566
  %3569 = vset.pattern.permute.xlu0 3
  %3570 = vperm.xlu0 %3569, %v130
  %v3571 = vpop.permute.xlu0 %3570
  %3573 = vset.pattern.permute.xlu0 3
  %3574 = vperm.xlu0 %3573, %v131
  %v3575 = vpop.permute.xlu0 %3574
  %3577 = vset.pattern.permute.xlu0 3
  %3578 = vperm.xlu0 %3577, %v132
  %v3579 = vpop.permute.xlu0 %3578
  %3581 = vset.pattern.permute.xlu0 3
  %3582 = vperm.xlu0 %3581, %v133
  %v3583 = vpop.permute.xlu0 %3582
  %3585 = vset.pattern.permute.xlu0 3
  %3586 = vperm.xlu0 %3585, %v134
  %v3587 = vpop.permute.xlu0 %3586
  %3589 = vset.pattern.permute.xlu0 3
  %3590 = vperm.xlu0 %3589, %v135
  %v3591 = vpop.permute.xlu0 %3590
  %3593 = vset.pattern.permute.xlu0 3
  %3594 = vperm.xlu0 %3593, %v136
  %v3595 = vpop.permute.xlu0 %3594
  %3597 = vset.pattern.permute.xlu0 3
  %3598 = vperm.xlu0 %3597, %v137
  %v3599 = vpop.permute.xlu0 %3598
  %3601 = vset.pattern.permute.xlu0 3
  %3602 = vperm.xlu0 %3601, %v138
  %v3603 = vpop.permute.xlu0 %3602
  %3605 = vset.pattern.permute.xlu0 3
  %3606 = vperm.xlu0 %3605, %v139
  %v3607 = vpop.permute.xlu0 %3606
  %3609 = vset.pattern.permute.xlu0 3
  %3610 = vperm.xlu0 %3609, %v140
  %v3611 = vpop.permute.xlu0 %3610
  %3613 = vset.pattern.permute.xlu0 3
  %3614 = vperm.xlu0 %3613, %v141
  %v3615 = vpop.permute.xlu0 %3614
  %3617 = vset.pattern.permute.xlu0 3
  %3618 = vperm.xlu0 %3617, %v142
  %v3619 = vpop.permute.xlu0 %3618
  %3621 = vset.pattern.permute.xlu0 3
  %3622 = vperm.xlu0 %3621, %v143
  %v3623 = vpop.permute.xlu0 %3622
  %3625 = vset.pattern.permute.xlu0 3
  %3626 = vperm.xlu0 %3625, %v144
  %v3627 = vpop.permute.xlu0 %3626
  %3629 = vset.pattern.permute.xlu0 3
  %3630 = vperm.xlu0 %3629, %v145
  %v3631 = vpop.permute.xlu0 %3630
  %3633 = vset.pattern.permute.xlu0 3
  %3634 = vperm.xlu0 %3633, %v146
  %v3635 = vpop.permute.xlu0 %3634
  %3637 = vset.pattern.permute.xlu0 3
  %3638 = vperm.xlu0 %3637, %v147
  %v3639 = vpop.permute.xlu0 %3638
  %3641 = vset.pattern.permute.xlu0 3
  %3642 = vperm.xlu0 %3641, %v148
  %v3643 = vpop.permute.xlu0 %3642
  %3645 = vset.pattern.permute.xlu0 3
  %3646 = vperm.xlu0 %3645, %v149
  %v3647 = vpop.permute.xlu0 %3646
  %3649 = vset.pattern.permute.xlu0 3
  %3650 = vperm.xlu0 %3649, %v150
  %v3651 = vpop.permute.xlu0 %3650
  %3653 = vset.pattern.permute.xlu0 3
  %3654 = vperm.xlu0 %3653, %v151
  %v3655 = vpop.permute.xlu0 %3654
  %3657 = vset.pattern.permute.xlu0 3
  %3658 = vperm.xlu0 %3657, %v152
  %v3659 = vpop.permute.xlu0 %3658
  %3661 = vset.pattern.permute.xlu0 3
  %3662 = vperm.xlu0 %3661, %v153
  %v3663 = vpop.permute.xlu0 %3662
  %3665 = vset.pattern.permute.xlu0 3
  %3666 = vperm.xlu0 %3665, %v154
  %v3667 = vpop.permute.xlu0 %3666
  %3669 = vset.pattern.permute.xlu0 3
  %3670 = vperm.xlu0 %3669, %v155
  %v3671 = vpop.permute.xlu0 %3670
  %3673 = vset.pattern.permute.xlu0 3
  %3674 = vperm.xlu0 %3673, %v156
  %v3675 = vpop.permute.xlu0 %3674
  %v3677 = vmul.f32 %v3423, 0.0
  %v3678 = vmul.f32 %v3427, 0.0
  %v3679 = vmul.f32 %v3357, %v3431
  %v3680 = vmul.f32 %v3358, %v3435
  %v3681 = vmul.f32 %v3359, %v3439
  %v3682 = vmul.f32 %v3360, %v3443
  %v3683 = vmul.f32 %v3361, %v3447
  %v3684 = vmul.f32 %v3362, %v3451
  %v3685 = vmul.f32 %v3363, %v3455
  %v3686 = vmul.f32 %v3364, %v3459
  %v3687 = vmul.f32 %v3365, %v3463
  %v3688 = vmul.f32 %v3366, %v3467
  %v3689 = vmul.f32 %v3367, %v3471
  %v3690 = vmul.f32 %v3368, %v3475
  %v3691 = vmul.f32 %v3369, %v3479
  %v3692 = vmul.f32 %v3370, %v3483
  %v3693 = vmul.f32 %v3371, %v3487
  %v3694 = vmul.f32 %v3372, %v3491
  %v3695 = vmul.f32 %v3373, %v3495
  %v3696 = vmul.f32 %v3374, %v3499
  %v3697 = vmul.f32 %v3375, %v3503
  %v3698 = vmul.f32 %v3376, %v3507
  %v3699 = vmul.f32 %v3377, %v3511
  %v3700 = vmul.f32 %v3378, %v3515
  %v3701 = vmul.f32 %v3379, %v3519
  %v3702 = vmul.f32 %v3380, %v3523
  %v3703 = vmul.f32 %v3381, %v3527
  %v3704 = vmul.f32 %v3382, %v3531
  %v3705 = vmul.f32 %v3383, %v3535
  %v3706 = vmul.f32 %v3384, %v3539
  %v3707 = vmul.f32 %v3385, %v3543
  %v3708 = vmul.f32 %v3386, %v3547
  %v3709 = vmul.f32 %v3387, %v3551
  %v3710 = vmul.f32 %v3388, %v3555
  %v3711 = vmul.f32 %v3389, %v3559
  %v3712 = vmul.f32 %v3390, %v3563
  %v3713 = vmul.f32 %v3391, %v3567
  %v3714 = vmul.f32 %v3392, %v3571
  %v3715 = vmul.f32 %v3393, %v3575
  %v3716 = vmul.f32 %v3394, %v3579
  %v3717 = vmul.f32 %v3395, %v3583
  %v3718 = vmul.f32 %v3396, %v3587
  %v3719 = vmul.f32 %v3397, %v3591
  %v3720 = vmul.f32 %v3398, %v3595
  %v3721 = vmul.f32 %v3399, %v3599
  %v3722 = vmul.f32 %v3400, %v3603
  %v3723 = vmul.f32 %v3401, %v3607
  %v3724 = vmul.f32 %v3402, %v3611
  %v3725 = vmul.f32 %v3403, %v3615
  %v3726 = vmul.f32 %v3404, %v3619
  %v3727 = vmul.f32 %v3405, %v3623
  %v3728 = vmul.f32 %v3406, %v3627
  %v3729 = vmul.f32 %v3407, %v3631
  %v3730 = vmul.f32 %v3408, %v3635
  %v3731 = vmul.f32 %v3409, %v3639
  %v3732 = vmul.f32 %v3410, %v3643
  %v3733 = vmul.f32 %v3411, %v3647
  %v3734 = vmul.f32 %v3412, %v3651
  %v3735 = vmul.f32 %v3413, %v3655
  %v3736 = vmul.f32 %v3414, %v3659
  %v3737 = vmul.f32 %v3415, %v3663
  %v3738 = vmul.f32 %v3416, %v3667
  %v3739 = vmul.f32 %v3417, %v3671
  %v3740 = vmul.f32 %v3418, %v3675
  %v3741 = vperm.slane %v2778, 0
  %v3742 = vmul.f32 %v3677, %v3741
  %v3743 = vmul.f32 %v3678, %v3741
  %v3744 = vmul.f32 %v3679, %v3741
  %v3745 = vmul.f32 %v3680, %v3741
  %v3746 = vmul.f32 %v3681, %v3741
  %v3747 = vmul.f32 %v3682, %v3741
  %v3748 = vmul.f32 %v3683, %v3741
  %v3749 = vmul.f32 %v3684, %v3741
  %v3750 = vmul.f32 %v3685, %v3741
  %v3751 = vmul.f32 %v3686, %v3741
  %v3752 = vmul.f32 %v3687, %v3741
  %v3753 = vmul.f32 %v3688, %v3741
  %v3754 = vmul.f32 %v3689, %v3741
  %v3755 = vmul.f32 %v3690, %v3741
  %v3756 = vmul.f32 %v3691, %v3741
  %v3757 = vmul.f32 %v3692, %v3741
  %v3758 = vmul.f32 %v3693, %v3741
  %v3759 = vmul.f32 %v3694, %v3741
  %v3760 = vmul.f32 %v3695, %v3741
  %v3761 = vmul.f32 %v3696, %v3741
  %v3762 = vmul.f32 %v3697, %v3741
  %v3763 = vmul.f32 %v3698, %v3741
  %v3764 = vmul.f32 %v3699, %v3741
  %v3765 = vmul.f32 %v3700, %v3741
  %v3766 = vmul.f32 %v3701, %v3741
  %v3767 = vmul.f32 %v3702, %v3741
  %v3768 = vmul.f32 %v3703, %v3741
  %v3769 = vmul.f32 %v3704, %v3741
  %v3770 = vmul.f32 %v3705, %v3741
  %v3771 = vmul.f32 %v3706, %v3741
  %v3772 = vmul.f32 %v3707, %v3741
  %v3773 = vmul.f32 %v3708, %v3741
  %v3774 = vmul.f32 %v3709, %v3741
  %v3775 = vmul.f32 %v3710, %v3741
  %v3776 = vmul.f32 %v3711, %v3741
  %v3777 = vmul.f32 %v3712, %v3741
  %v3778 = vmul.f32 %v3713, %v3741
  %v3779 = vmul.f32 %v3714, %v3741
  %v3780 = vmul.f32 %v3715, %v3741
  %v3781 = vmul.f32 %v3716, %v3741
  %v3782 = vmul.f32 %v3717, %v3741
  %v3783 = vmul.f32 %v3718, %v3741
  %v3784 = vmul.f32 %v3719, %v3741
  %v3785 = vmul.f32 %v3720, %v3741
  %v3786 = vmul.f32 %v3721, %v3741
  %v3787 = vmul.f32 %v3722, %v3741
  %v3788 = vmul.f32 %v3723, %v3741
  %v3789 = vmul.f32 %v3724, %v3741
  %v3790 = vmul.f32 %v3725, %v3741
  %v3791 = vmul.f32 %v3726, %v3741
  %v3792 = vmul.f32 %v3727, %v3741
  %v3793 = vmul.f32 %v3728, %v3741
  %v3794 = vmul.f32 %v3729, %v3741
  %v3795 = vmul.f32 %v3730, %v3741
  %v3796 = vmul.f32 %v3731, %v3741
  %v3797 = vmul.f32 %v3732, %v3741
  %v3798 = vmul.f32 %v3733, %v3741
  %v3799 = vmul.f32 %v3734, %v3741
  %v3800 = vmul.f32 %v3735, %v3741
  %v3801 = vmul.f32 %v3736, %v3741
  %v3802 = vmul.f32 %v3737, %v3741
  %v3803 = vmul.f32 %v3738, %v3741
  %v3804 = vmul.f32 %v3739, %v3741
  %v3805 = vmul.f32 %v3740, %v3741
  %v3806 = vadd.f32 %v3742, 0.0
  %v3807 = vadd.f32 %v3743, 0.0
  %v3808 = vadd.f32 %v3744, 0.0
  %v3809 = vadd.f32 %v3745, 0.0
  %v3810 = vadd.f32 %v3746, 0.0
  %v3811 = vadd.f32 %v3747, 0.0
  %v3812 = vadd.f32 %v3748, 0.0
  %v3813 = vadd.f32 %v3749, 0.0
  %v3814 = vadd.f32 %v3750, 0.0
  %v3815 = vadd.f32 %v3751, 0.0
  %v3816 = vadd.f32 %v3752, 0.0
  %v3817 = vadd.f32 %v3753, 0.0
  %v3818 = vadd.f32 %v3754, 0.0
  %v3819 = vadd.f32 %v3755, 0.0
  %v3820 = vadd.f32 %v3756, 0.0
  %v3821 = vadd.f32 %v3757, 0.0
  %v3822 = vadd.f32 %v3758, 0.0
  %v3823 = vadd.f32 %v3759, 0.0
  %v3824 = vadd.f32 %v3760, 0.0
  %v3825 = vadd.f32 %v3761, 0.0
  %v3826 = vadd.f32 %v3762, 0.0
  %v3827 = vadd.f32 %v3763, 0.0
  %v3828 = vadd.f32 %v3764, 0.0
  %v3829 = vadd.f32 %v3765, 0.0
  %v3830 = vadd.f32 %v3766, 0.0
  %v3831 = vadd.f32 %v3767, 0.0
  %v3832 = vadd.f32 %v3768, 0.0
  %v3833 = vadd.f32 %v3769, 0.0
  %v3834 = vadd.f32 %v3770, 0.0
  %v3835 = vadd.f32 %v3771, 0.0
  %v3836 = vadd.f32 %v3772, 0.0
  %v3837 = vadd.f32 %v3773, 0.0
  %v3838 = vadd.f32 %v3774, 0.0
  %v3839 = vadd.f32 %v3775, 0.0
  %v3840 = vadd.f32 %v3776, 0.0
  %v3841 = vadd.f32 %v3777, 0.0
  %v3842 = vadd.f32 %v3778, 0.0
  %v3843 = vadd.f32 %v3779, 0.0
  %v3844 = vadd.f32 %v3780, 0.0
  %v3845 = vadd.f32 %v3781, 0.0
  %v3846 = vadd.f32 %v3782, 0.0
  %v3847 = vadd.f32 %v3783, 0.0
  %v3848 = vadd.f32 %v3784, 0.0
  %v3849 = vadd.f32 %v3785, 0.0
  %v3850 = vadd.f32 %v3786, 0.0
  %v3851 = vadd.f32 %v3787, 0.0
  %v3852 = vadd.f32 %v3788, 0.0
  %v3853 = vadd.f32 %v3789, 0.0
  %v3854 = vadd.f32 %v3790, 0.0
  %v3855 = vadd.f32 %v3791, 0.0
  %v3856 = vadd.f32 %v3792, 0.0
  %v3857 = vadd.f32 %v3793, 0.0
  %v3858 = vadd.f32 %v3794, 0.0
  %v3859 = vadd.f32 %v3795, 0.0
  %v3860 = vadd.f32 %v3796, 0.0
  %v3861 = vadd.f32 %v3797, 0.0
  %v3862 = vadd.f32 %v3798, 0.0
  %v3863 = vadd.f32 %v3799, 0.0
  %v3864 = vadd.f32 %v3800, 0.0
  %v3865 = vadd.f32 %v3801, 0.0
  %v3866 = vadd.f32 %v3802, 0.0
  %v3867 = vadd.f32 %v3803, 0.0
  %v3868 = vadd.f32 %v3804, 0.0
  %v3869 = vadd.f32 %v3805, 0.0
  %3870 = vset.pattern.permute.xlu0 4
  %3871 = vperm.xlu0 %3870, %v93
  %v3872 = vpop.permute.xlu0 %3871
  %3874 = vset.pattern.permute.xlu0 4
  %3875 = vperm.xlu0 %3874, %v94
  %v3876 = vpop.permute.xlu0 %3875
  %3878 = vset.pattern.permute.xlu0 4
  %3879 = vperm.xlu0 %3878, %v95
  %v3880 = vpop.permute.xlu0 %3879
  %3882 = vset.pattern.permute.xlu0 4
  %3883 = vperm.xlu0 %3882, %v96
  %v3884 = vpop.permute.xlu0 %3883
  %3886 = vset.pattern.permute.xlu0 4
  %3887 = vperm.xlu0 %3886, %v97
  %v3888 = vpop.permute.xlu0 %3887
  %3890 = vset.pattern.permute.xlu0 4
  %3891 = vperm.xlu0 %3890, %v98
  %v3892 = vpop.permute.xlu0 %3891
  %3894 = vset.pattern.permute.xlu0 4
  %3895 = vperm.xlu0 %3894, %v99
  %v3896 = vpop.permute.xlu0 %3895
  %3898 = vset.pattern.permute.xlu0 4
  %3899 = vperm.xlu0 %3898, %v100
  %v3900 = vpop.permute.xlu0 %3899
  %3902 = vset.pattern.permute.xlu0 4
  %3903 = vperm.xlu0 %3902, %v101
  %v3904 = vpop.permute.xlu0 %3903
  %3906 = vset.pattern.permute.xlu0 4
  %3907 = vperm.xlu0 %3906, %v102
  %v3908 = vpop.permute.xlu0 %3907
  %3910 = vset.pattern.permute.xlu0 4
  %3911 = vperm.xlu0 %3910, %v103
  %v3912 = vpop.permute.xlu0 %3911
  %3914 = vset.pattern.permute.xlu0 4
  %3915 = vperm.xlu0 %3914, %v104
  %v3916 = vpop.permute.xlu0 %3915
  %3918 = vset.pattern.permute.xlu0 4
  %3919 = vperm.xlu0 %3918, %v105
  %v3920 = vpop.permute.xlu0 %3919
  %3922 = vset.pattern.permute.xlu0 4
  %3923 = vperm.xlu0 %3922, %v106
  %v3924 = vpop.permute.xlu0 %3923
  %3926 = vset.pattern.permute.xlu0 4
  %3927 = vperm.xlu0 %3926, %v107
  %v3928 = vpop.permute.xlu0 %3927
  %3930 = vset.pattern.permute.xlu0 4
  %3931 = vperm.xlu0 %3930, %v108
  %v3932 = vpop.permute.xlu0 %3931
  %3934 = vset.pattern.permute.xlu0 4
  %3935 = vperm.xlu0 %3934, %v109
  %v3936 = vpop.permute.xlu0 %3935
  %3938 = vset.pattern.permute.xlu0 4
  %3939 = vperm.xlu0 %3938, %v110
  %v3940 = vpop.permute.xlu0 %3939
  %3942 = vset.pattern.permute.xlu0 4
  %3943 = vperm.xlu0 %3942, %v111
  %v3944 = vpop.permute.xlu0 %3943
  %3946 = vset.pattern.permute.xlu0 4
  %3947 = vperm.xlu0 %3946, %v112
  %v3948 = vpop.permute.xlu0 %3947
  %3950 = vset.pattern.permute.xlu0 4
  %3951 = vperm.xlu0 %3950, %v113
  %v3952 = vpop.permute.xlu0 %3951
  %3954 = vset.pattern.permute.xlu0 4
  %3955 = vperm.xlu0 %3954, %v114
  %v3956 = vpop.permute.xlu0 %3955
  %3958 = vset.pattern.permute.xlu0 4
  %3959 = vperm.xlu0 %3958, %v115
  %v3960 = vpop.permute.xlu0 %3959
  %3962 = vset.pattern.permute.xlu0 4
  %3963 = vperm.xlu0 %3962, %v116
  %v3964 = vpop.permute.xlu0 %3963
  %3966 = vset.pattern.permute.xlu0 4
  %3967 = vperm.xlu0 %3966, %v117
  %v3968 = vpop.permute.xlu0 %3967
  %3970 = vset.pattern.permute.xlu0 4
  %3971 = vperm.xlu0 %3970, %v118
  %v3972 = vpop.permute.xlu0 %3971
  %3974 = vset.pattern.permute.xlu0 4
  %3975 = vperm.xlu0 %3974, %v119
  %v3976 = vpop.permute.xlu0 %3975
  %3978 = vset.pattern.permute.xlu0 4
  %3979 = vperm.xlu0 %3978, %v120
  %v3980 = vpop.permute.xlu0 %3979
  %3982 = vset.pattern.permute.xlu0 4
  %3983 = vperm.xlu0 %3982, %v121
  %v3984 = vpop.permute.xlu0 %3983
  %3986 = vset.pattern.permute.xlu0 4
  %3987 = vperm.xlu0 %3986, %v122
  %v3988 = vpop.permute.xlu0 %3987
  %3990 = vset.pattern.permute.xlu0 4
  %3991 = vperm.xlu0 %3990, %v123
  %v3992 = vpop.permute.xlu0 %3991
  %3994 = vset.pattern.permute.xlu0 4
  %3995 = vperm.xlu0 %3994, %v124
  %v3996 = vpop.permute.xlu0 %3995
  %3998 = vset.pattern.permute.xlu0 4
  %3999 = vperm.xlu0 %3998, %v125
  %v4000 = vpop.permute.xlu0 %3999
  %4002 = vset.pattern.permute.xlu0 4
  %4003 = vperm.xlu0 %4002, %v126
  %v4004 = vpop.permute.xlu0 %4003
  %4006 = vset.pattern.permute.xlu0 4
  %4007 = vperm.xlu0 %4006, %v127
  %v4008 = vpop.permute.xlu0 %4007
  %4010 = vset.pattern.permute.xlu0 4
  %4011 = vperm.xlu0 %4010, %v128
  %v4012 = vpop.permute.xlu0 %4011
  %4014 = vset.pattern.permute.xlu0 4
  %4015 = vperm.xlu0 %4014, %v129
  %v4016 = vpop.permute.xlu0 %4015
  %4018 = vset.pattern.permute.xlu0 4
  %4019 = vperm.xlu0 %4018, %v130
  %v4020 = vpop.permute.xlu0 %4019
  %4022 = vset.pattern.permute.xlu0 4
  %4023 = vperm.xlu0 %4022, %v131
  %v4024 = vpop.permute.xlu0 %4023
  %4026 = vset.pattern.permute.xlu0 4
  %4027 = vperm.xlu0 %4026, %v132
  %v4028 = vpop.permute.xlu0 %4027
  %4030 = vset.pattern.permute.xlu0 4
  %4031 = vperm.xlu0 %4030, %v133
  %v4032 = vpop.permute.xlu0 %4031
  %4034 = vset.pattern.permute.xlu0 4
  %4035 = vperm.xlu0 %4034, %v134
  %v4036 = vpop.permute.xlu0 %4035
  %4038 = vset.pattern.permute.xlu0 4
  %4039 = vperm.xlu0 %4038, %v135
  %v4040 = vpop.permute.xlu0 %4039
  %4042 = vset.pattern.permute.xlu0 4
  %4043 = vperm.xlu0 %4042, %v136
  %v4044 = vpop.permute.xlu0 %4043
  %4046 = vset.pattern.permute.xlu0 4
  %4047 = vperm.xlu0 %4046, %v137
  %v4048 = vpop.permute.xlu0 %4047
  %4050 = vset.pattern.permute.xlu0 4
  %4051 = vperm.xlu0 %4050, %v138
  %v4052 = vpop.permute.xlu0 %4051
  %4054 = vset.pattern.permute.xlu0 4
  %4055 = vperm.xlu0 %4054, %v139
  %v4056 = vpop.permute.xlu0 %4055
  %4058 = vset.pattern.permute.xlu0 4
  %4059 = vperm.xlu0 %4058, %v140
  %v4060 = vpop.permute.xlu0 %4059
  %4062 = vset.pattern.permute.xlu0 4
  %4063 = vperm.xlu0 %4062, %v141
  %v4064 = vpop.permute.xlu0 %4063
  %4066 = vset.pattern.permute.xlu0 4
  %4067 = vperm.xlu0 %4066, %v142
  %v4068 = vpop.permute.xlu0 %4067
  %4070 = vset.pattern.permute.xlu0 4
  %4071 = vperm.xlu0 %4070, %v143
  %v4072 = vpop.permute.xlu0 %4071
  %4074 = vset.pattern.permute.xlu0 4
  %4075 = vperm.xlu0 %4074, %v144
  %v4076 = vpop.permute.xlu0 %4075
  %4078 = vset.pattern.permute.xlu0 4
  %4079 = vperm.xlu0 %4078, %v145
  %v4080 = vpop.permute.xlu0 %4079
  %4082 = vset.pattern.permute.xlu0 4
  %4083 = vperm.xlu0 %4082, %v146
  %v4084 = vpop.permute.xlu0 %4083
  %4086 = vset.pattern.permute.xlu0 4
  %4087 = vperm.xlu0 %4086, %v147
  %v4088 = vpop.permute.xlu0 %4087
  %4090 = vset.pattern.permute.xlu0 4
  %4091 = vperm.xlu0 %4090, %v148
  %v4092 = vpop.permute.xlu0 %4091
  %4094 = vset.pattern.permute.xlu0 4
  %4095 = vperm.xlu0 %4094, %v149
  %v4096 = vpop.permute.xlu0 %4095
  %4098 = vset.pattern.permute.xlu0 4
  %4099 = vperm.xlu0 %4098, %v150
  %v4100 = vpop.permute.xlu0 %4099
  %4102 = vset.pattern.permute.xlu0 4
  %4103 = vperm.xlu0 %4102, %v151
  %v4104 = vpop.permute.xlu0 %4103
  %4106 = vset.pattern.permute.xlu0 4
  %4107 = vperm.xlu0 %4106, %v152
  %v4108 = vpop.permute.xlu0 %4107
  %4110 = vset.pattern.permute.xlu0 4
  %4111 = vperm.xlu0 %4110, %v153
  %v4112 = vpop.permute.xlu0 %4111
  %4114 = vset.pattern.permute.xlu0 4
  %4115 = vperm.xlu0 %4114, %v154
  %v4116 = vpop.permute.xlu0 %4115
  %4118 = vset.pattern.permute.xlu0 4
  %4119 = vperm.xlu0 %4118, %v155
  %v4120 = vpop.permute.xlu0 %4119
  %4122 = vset.pattern.permute.xlu0 4
  %4123 = vperm.xlu0 %4122, %v156
  %v4124 = vpop.permute.xlu0 %4123
  %v4126 = vmul.f32 %v3357, %v3872
  %v4127 = vmul.f32 %v3358, %v3876
  %v4128 = vmul.f32 %v3359, %v3880
  %v4129 = vmul.f32 %v3360, %v3884
  %v4130 = vmul.f32 %v3361, %v3888
  %v4131 = vmul.f32 %v3362, %v3892
  %v4132 = vmul.f32 %v3363, %v3896
  %v4133 = vmul.f32 %v3364, %v3900
  %v4134 = vmul.f32 %v3365, %v3904
  %v4135 = vmul.f32 %v3366, %v3908
  %v4136 = vmul.f32 %v3367, %v3912
  %v4137 = vmul.f32 %v3368, %v3916
  %v4138 = vmul.f32 %v3369, %v3920
  %v4139 = vmul.f32 %v3370, %v3924
  %v4140 = vmul.f32 %v3371, %v3928
  %v4141 = vmul.f32 %v3372, %v3932
  %v4142 = vmul.f32 %v3373, %v3936
  %v4143 = vmul.f32 %v3374, %v3940
  %v4144 = vmul.f32 %v3375, %v3944
  %v4145 = vmul.f32 %v3376, %v3948
  %v4146 = vmul.f32 %v3377, %v3952
  %v4147 = vmul.f32 %v3378, %v3956
  %v4148 = vmul.f32 %v3379, %v3960
  %v4149 = vmul.f32 %v3380, %v3964
  %v4150 = vmul.f32 %v3381, %v3968
  %v4151 = vmul.f32 %v3382, %v3972
  %v4152 = vmul.f32 %v3383, %v3976
  %v4153 = vmul.f32 %v3384, %v3980
  %v4154 = vmul.f32 %v3385, %v3984
  %v4155 = vmul.f32 %v3386, %v3988
  %v4156 = vmul.f32 %v3387, %v3992
  %v4157 = vmul.f32 %v3388, %v3996
  %v4158 = vmul.f32 %v3389, %v4000
  %v4159 = vmul.f32 %v3390, %v4004
  %v4160 = vmul.f32 %v3391, %v4008
  %v4161 = vmul.f32 %v3392, %v4012
  %v4162 = vmul.f32 %v3393, %v4016
  %v4163 = vmul.f32 %v3394, %v4020
  %v4164 = vmul.f32 %v3395, %v4024
  %v4165 = vmul.f32 %v3396, %v4028
  %v4166 = vmul.f32 %v3397, %v4032
  %v4167 = vmul.f32 %v3398, %v4036
  %v4168 = vmul.f32 %v3399, %v4040
  %v4169 = vmul.f32 %v3400, %v4044
  %v4170 = vmul.f32 %v3401, %v4048
  %v4171 = vmul.f32 %v3402, %v4052
  %v4172 = vmul.f32 %v3403, %v4056
  %v4173 = vmul.f32 %v3404, %v4060
  %v4174 = vmul.f32 %v3405, %v4064
  %v4175 = vmul.f32 %v3406, %v4068
  %v4176 = vmul.f32 %v3407, %v4072
  %v4177 = vmul.f32 %v3408, %v4076
  %v4178 = vmul.f32 %v3409, %v4080
  %v4179 = vmul.f32 %v3410, %v4084
  %v4180 = vmul.f32 %v3411, %v4088
  %v4181 = vmul.f32 %v3412, %v4092
  %v4182 = vmul.f32 %v3413, %v4096
  %v4183 = vmul.f32 %v3414, %v4100
  %v4184 = vmul.f32 %v3415, %v4104
  %v4185 = vmul.f32 %v3416, %v4108
  %v4186 = vmul.f32 %v3417, %v4112
  %v4187 = vmul.f32 %v3418, %v4116
  %v4188 = vmul.f32 %v3419, %v4120
  %v4189 = vmul.f32 %v3420, %v4124
  %v4190 = vperm.slane %v2778, 3
  %v4191 = vmul.f32 %v4126, %v4190
  %v4192 = vmul.f32 %v4127, %v4190
  %v4193 = vmul.f32 %v4128, %v4190
  %v4194 = vmul.f32 %v4129, %v4190
  %v4195 = vmul.f32 %v4130, %v4190
  %v4196 = vmul.f32 %v4131, %v4190
  %v4197 = vmul.f32 %v4132, %v4190
  %v4198 = vmul.f32 %v4133, %v4190
  %v4199 = vmul.f32 %v4134, %v4190
  %v4200 = vmul.f32 %v4135, %v4190
  %v4201 = vmul.f32 %v4136, %v4190
  %v4202 = vmul.f32 %v4137, %v4190
  %v4203 = vmul.f32 %v4138, %v4190
  %v4204 = vmul.f32 %v4139, %v4190
  %v4205 = vmul.f32 %v4140, %v4190
  %v4206 = vmul.f32 %v4141, %v4190
  %v4207 = vmul.f32 %v4142, %v4190
  %v4208 = vmul.f32 %v4143, %v4190
  %v4209 = vmul.f32 %v4144, %v4190
  %v4210 = vmul.f32 %v4145, %v4190
  %v4211 = vmul.f32 %v4146, %v4190
  %v4212 = vmul.f32 %v4147, %v4190
  %v4213 = vmul.f32 %v4148, %v4190
  %v4214 = vmul.f32 %v4149, %v4190
  %v4215 = vmul.f32 %v4150, %v4190
  %v4216 = vmul.f32 %v4151, %v4190
  %v4217 = vmul.f32 %v4152, %v4190
  %v4218 = vmul.f32 %v4153, %v4190
  %v4219 = vmul.f32 %v4154, %v4190
  %v4220 = vmul.f32 %v4155, %v4190
  %v4221 = vmul.f32 %v4156, %v4190
  %v4222 = vmul.f32 %v4157, %v4190
  %v4223 = vmul.f32 %v4158, %v4190
  %v4224 = vmul.f32 %v4159, %v4190
  %v4225 = vmul.f32 %v4160, %v4190
  %v4226 = vmul.f32 %v4161, %v4190
  %v4227 = vmul.f32 %v4162, %v4190
  %v4228 = vmul.f32 %v4163, %v4190
  %v4229 = vmul.f32 %v4164, %v4190
  %v4230 = vmul.f32 %v4165, %v4190
  %v4231 = vmul.f32 %v4166, %v4190
  %v4232 = vmul.f32 %v4167, %v4190
  %v4233 = vmul.f32 %v4168, %v4190
  %v4234 = vmul.f32 %v4169, %v4190
  %v4235 = vmul.f32 %v4170, %v4190
  %v4236 = vmul.f32 %v4171, %v4190
  %v4237 = vmul.f32 %v4172, %v4190
  %v4238 = vmul.f32 %v4173, %v4190
  %v4239 = vmul.f32 %v4174, %v4190
  %v4240 = vmul.f32 %v4175, %v4190
  %v4241 = vmul.f32 %v4176, %v4190
  %v4242 = vmul.f32 %v4177, %v4190
  %v4243 = vmul.f32 %v4178, %v4190
  %v4244 = vmul.f32 %v4179, %v4190
  %v4245 = vmul.f32 %v4180, %v4190
  %v4246 = vmul.f32 %v4181, %v4190
  %v4247 = vmul.f32 %v4182, %v4190
  %v4248 = vmul.f32 %v4183, %v4190
  %v4249 = vmul.f32 %v4184, %v4190
  %v4250 = vmul.f32 %v4185, %v4190
  %v4251 = vmul.f32 %v4186, %v4190
  %v4252 = vmul.f32 %v4187, %v4190
  %v4253 = vmul.f32 %v4188, %v4190
  %v4254 = vmul.f32 %v4189, %v4190
  %v4255 = vadd.f32 %v3806, %v4191
  %v4256 = vadd.f32 %v3807, %v4192
  %v4257 = vadd.f32 %v3808, %v4193
  %v4258 = vadd.f32 %v3809, %v4194
  %v4259 = vadd.f32 %v3810, %v4195
  %v4260 = vadd.f32 %v3811, %v4196
  %v4261 = vadd.f32 %v3812, %v4197
  %v4262 = vadd.f32 %v3813, %v4198
  %v4263 = vadd.f32 %v3814, %v4199
  %v4264 = vadd.f32 %v3815, %v4200
  %v4265 = vadd.f32 %v3816, %v4201
  %v4266 = vadd.f32 %v3817, %v4202
  %v4267 = vadd.f32 %v3818, %v4203
  %v4268 = vadd.f32 %v3819, %v4204
  %v4269 = vadd.f32 %v3820, %v4205
  %v4270 = vadd.f32 %v3821, %v4206
  %v4271 = vadd.f32 %v3822, %v4207
  %v4272 = vadd.f32 %v3823, %v4208
  %v4273 = vadd.f32 %v3824, %v4209
  %v4274 = vadd.f32 %v3825, %v4210
  %v4275 = vadd.f32 %v3826, %v4211
  %v4276 = vadd.f32 %v3827, %v4212
  %v4277 = vadd.f32 %v3828, %v4213
  %v4278 = vadd.f32 %v3829, %v4214
  %v4279 = vadd.f32 %v3830, %v4215
  %v4280 = vadd.f32 %v3831, %v4216
  %v4281 = vadd.f32 %v3832, %v4217
  %v4282 = vadd.f32 %v3833, %v4218
  %v4283 = vadd.f32 %v3834, %v4219
  %v4284 = vadd.f32 %v3835, %v4220
  %v4285 = vadd.f32 %v3836, %v4221
  %v4286 = vadd.f32 %v3837, %v4222
  %v4287 = vadd.f32 %v3838, %v4223
  %v4288 = vadd.f32 %v3839, %v4224
  %v4289 = vadd.f32 %v3840, %v4225
  %v4290 = vadd.f32 %v3841, %v4226
  %v4291 = vadd.f32 %v3842, %v4227
  %v4292 = vadd.f32 %v3843, %v4228
  %v4293 = vadd.f32 %v3844, %v4229
  %v4294 = vadd.f32 %v3845, %v4230
  %v4295 = vadd.f32 %v3846, %v4231
  %v4296 = vadd.f32 %v3847, %v4232
  %v4297 = vadd.f32 %v3848, %v4233
  %v4298 = vadd.f32 %v3849, %v4234
  %v4299 = vadd.f32 %v3850, %v4235
  %v4300 = vadd.f32 %v3851, %v4236
  %v4301 = vadd.f32 %v3852, %v4237
  %v4302 = vadd.f32 %v3853, %v4238
  %v4303 = vadd.f32 %v3854, %v4239
  %v4304 = vadd.f32 %v3855, %v4240
  %v4305 = vadd.f32 %v3856, %v4241
  %v4306 = vadd.f32 %v3857, %v4242
  %v4307 = vadd.f32 %v3858, %v4243
  %v4308 = vadd.f32 %v3859, %v4244
  %v4309 = vadd.f32 %v3860, %v4245
  %v4310 = vadd.f32 %v3861, %v4246
  %v4311 = vadd.f32 %v3862, %v4247
  %v4312 = vadd.f32 %v3863, %v4248
  %v4313 = vadd.f32 %v3864, %v4249
  %v4314 = vadd.f32 %v3865, %v4250
  %v4315 = vadd.f32 %v3866, %v4251
  %v4316 = vadd.f32 %v3867, %v4252
  %v4317 = vadd.f32 %v3868, %v4253
  %v4318 = vadd.f32 %v3869, %v4254
  %4319 = vset.pattern.permute.xlu0 5
  %4320 = vperm.xlu0 %4319, %v93
  %v4321 = vpop.permute.xlu0 %4320
  %4323 = vset.pattern.permute.xlu0 5
  %4324 = vperm.xlu0 %4323, %v94
  %v4325 = vpop.permute.xlu0 %4324
  %4327 = vset.pattern.permute.xlu0 5
  %4328 = vperm.xlu0 %4327, %v95
  %v4329 = vpop.permute.xlu0 %4328
  %4331 = vset.pattern.permute.xlu0 5
  %4332 = vperm.xlu0 %4331, %v96
  %v4333 = vpop.permute.xlu0 %4332
  %4335 = vset.pattern.permute.xlu0 5
  %4336 = vperm.xlu0 %4335, %v97
  %v4337 = vpop.permute.xlu0 %4336
  %4339 = vset.pattern.permute.xlu0 5
  %4340 = vperm.xlu0 %4339, %v98
  %v4341 = vpop.permute.xlu0 %4340
  %4343 = vset.pattern.permute.xlu0 5
  %4344 = vperm.xlu0 %4343, %v99
  %v4345 = vpop.permute.xlu0 %4344
  %4347 = vset.pattern.permute.xlu0 5
  %4348 = vperm.xlu0 %4347, %v100
  %v4349 = vpop.permute.xlu0 %4348
  %4351 = vset.pattern.permute.xlu0 5
  %4352 = vperm.xlu0 %4351, %v101
  %v4353 = vpop.permute.xlu0 %4352
  %4355 = vset.pattern.permute.xlu0 5
  %4356 = vperm.xlu0 %4355, %v102
  %v4357 = vpop.permute.xlu0 %4356
  %4359 = vset.pattern.permute.xlu0 5
  %4360 = vperm.xlu0 %4359, %v103
  %v4361 = vpop.permute.xlu0 %4360
  %4363 = vset.pattern.permute.xlu0 5
  %4364 = vperm.xlu0 %4363, %v104
  %v4365 = vpop.permute.xlu0 %4364
  %4367 = vset.pattern.permute.xlu0 5
  %4368 = vperm.xlu0 %4367, %v105
  %v4369 = vpop.permute.xlu0 %4368
  %4371 = vset.pattern.permute.xlu0 5
  %4372 = vperm.xlu0 %4371, %v106
  %v4373 = vpop.permute.xlu0 %4372
  %4375 = vset.pattern.permute.xlu0 5
  %4376 = vperm.xlu0 %4375, %v107
  %v4377 = vpop.permute.xlu0 %4376
  %4379 = vset.pattern.permute.xlu0 5
  %4380 = vperm.xlu0 %4379, %v108
  %v4381 = vpop.permute.xlu0 %4380
  %4383 = vset.pattern.permute.xlu0 5
  %4384 = vperm.xlu0 %4383, %v109
  %v4385 = vpop.permute.xlu0 %4384
  %4387 = vset.pattern.permute.xlu0 5
  %4388 = vperm.xlu0 %4387, %v110
  %v4389 = vpop.permute.xlu0 %4388
  %4391 = vset.pattern.permute.xlu0 5
  %4392 = vperm.xlu0 %4391, %v111
  %v4393 = vpop.permute.xlu0 %4392
  %4395 = vset.pattern.permute.xlu0 5
  %4396 = vperm.xlu0 %4395, %v112
  %v4397 = vpop.permute.xlu0 %4396
  %4399 = vset.pattern.permute.xlu0 5
  %4400 = vperm.xlu0 %4399, %v113
  %v4401 = vpop.permute.xlu0 %4400
  %4403 = vset.pattern.permute.xlu0 5
  %4404 = vperm.xlu0 %4403, %v114
  %v4405 = vpop.permute.xlu0 %4404
  %4407 = vset.pattern.permute.xlu0 5
  %4408 = vperm.xlu0 %4407, %v115
  %v4409 = vpop.permute.xlu0 %4408
  %4411 = vset.pattern.permute.xlu0 5
  %4412 = vperm.xlu0 %4411, %v116
  %v4413 = vpop.permute.xlu0 %4412
  %4415 = vset.pattern.permute.xlu0 5
  %4416 = vperm.xlu0 %4415, %v117
  %v4417 = vpop.permute.xlu0 %4416
  %4419 = vset.pattern.permute.xlu0 5
  %4420 = vperm.xlu0 %4419, %v118
  %v4421 = vpop.permute.xlu0 %4420
  %4423 = vset.pattern.permute.xlu0 5
  %4424 = vperm.xlu0 %4423, %v119
  %v4425 = vpop.permute.xlu0 %4424
  %4427 = vset.pattern.permute.xlu0 5
  %4428 = vperm.xlu0 %4427, %v120
  %v4429 = vpop.permute.xlu0 %4428
  %4431 = vset.pattern.permute.xlu0 5
  %4432 = vperm.xlu0 %4431, %v121
  %v4433 = vpop.permute.xlu0 %4432
  %4435 = vset.pattern.permute.xlu0 5
  %4436 = vperm.xlu0 %4435, %v122
  %v4437 = vpop.permute.xlu0 %4436
  %4439 = vset.pattern.permute.xlu0 5
  %4440 = vperm.xlu0 %4439, %v123
  %v4441 = vpop.permute.xlu0 %4440
  %4443 = vset.pattern.permute.xlu0 5
  %4444 = vperm.xlu0 %4443, %v124
  %v4445 = vpop.permute.xlu0 %4444
  %4447 = vset.pattern.permute.xlu0 5
  %4448 = vperm.xlu0 %4447, %v125
  %v4449 = vpop.permute.xlu0 %4448
  %4451 = vset.pattern.permute.xlu0 5
  %4452 = vperm.xlu0 %4451, %v126
  %v4453 = vpop.permute.xlu0 %4452
  %4455 = vset.pattern.permute.xlu0 5
  %4456 = vperm.xlu0 %4455, %v127
  %v4457 = vpop.permute.xlu0 %4456
  %4459 = vset.pattern.permute.xlu0 5
  %4460 = vperm.xlu0 %4459, %v128
  %v4461 = vpop.permute.xlu0 %4460
  %4463 = vset.pattern.permute.xlu0 5
  %4464 = vperm.xlu0 %4463, %v129
  %v4465 = vpop.permute.xlu0 %4464
  %4467 = vset.pattern.permute.xlu0 5
  %4468 = vperm.xlu0 %4467, %v130
  %v4469 = vpop.permute.xlu0 %4468
  %4471 = vset.pattern.permute.xlu0 5
  %4472 = vperm.xlu0 %4471, %v131
  %v4473 = vpop.permute.xlu0 %4472
  %4475 = vset.pattern.permute.xlu0 5
  %4476 = vperm.xlu0 %4475, %v132
  %v4477 = vpop.permute.xlu0 %4476
  %4479 = vset.pattern.permute.xlu0 5
  %4480 = vperm.xlu0 %4479, %v133
  %v4481 = vpop.permute.xlu0 %4480
  %4483 = vset.pattern.permute.xlu0 5
  %4484 = vperm.xlu0 %4483, %v134
  %v4485 = vpop.permute.xlu0 %4484
  %4487 = vset.pattern.permute.xlu0 5
  %4488 = vperm.xlu0 %4487, %v135
  %v4489 = vpop.permute.xlu0 %4488
  %4491 = vset.pattern.permute.xlu0 5
  %4492 = vperm.xlu0 %4491, %v136
  %v4493 = vpop.permute.xlu0 %4492
  %4495 = vset.pattern.permute.xlu0 5
  %4496 = vperm.xlu0 %4495, %v137
  %v4497 = vpop.permute.xlu0 %4496
  %4499 = vset.pattern.permute.xlu0 5
  %4500 = vperm.xlu0 %4499, %v138
  %v4501 = vpop.permute.xlu0 %4500
  %4503 = vset.pattern.permute.xlu0 5
  %4504 = vperm.xlu0 %4503, %v139
  %v4505 = vpop.permute.xlu0 %4504
  %4507 = vset.pattern.permute.xlu0 5
  %4508 = vperm.xlu0 %4507, %v140
  %v4509 = vpop.permute.xlu0 %4508
  %4511 = vset.pattern.permute.xlu0 5
  %4512 = vperm.xlu0 %4511, %v141
  %v4513 = vpop.permute.xlu0 %4512
  %4515 = vset.pattern.permute.xlu0 5
  %4516 = vperm.xlu0 %4515, %v142
  %v4517 = vpop.permute.xlu0 %4516
  %4519 = vset.pattern.permute.xlu0 5
  %4520 = vperm.xlu0 %4519, %v143
  %v4521 = vpop.permute.xlu0 %4520
  %4523 = vset.pattern.permute.xlu0 5
  %4524 = vperm.xlu0 %4523, %v144
  %v4525 = vpop.permute.xlu0 %4524
  %4527 = vset.pattern.permute.xlu0 5
  %4528 = vperm.xlu0 %4527, %v145
  %v4529 = vpop.permute.xlu0 %4528
  %4531 = vset.pattern.permute.xlu0 5
  %4532 = vperm.xlu0 %4531, %v146
  %v4533 = vpop.permute.xlu0 %4532
  %4535 = vset.pattern.permute.xlu0 5
  %4536 = vperm.xlu0 %4535, %v147
  %v4537 = vpop.permute.xlu0 %4536
  %4539 = vset.pattern.permute.xlu0 5
  %4540 = vperm.xlu0 %4539, %v148
  %v4541 = vpop.permute.xlu0 %4540
  %4543 = vset.pattern.permute.xlu0 5
  %4544 = vperm.xlu0 %4543, %v149
  %v4545 = vpop.permute.xlu0 %4544
  %4547 = vset.pattern.permute.xlu0 5
  %4548 = vperm.xlu0 %4547, %v150
  %v4549 = vpop.permute.xlu0 %4548
  %4551 = vset.pattern.permute.xlu0 5
  %4552 = vperm.xlu0 %4551, %v151
  %v4553 = vpop.permute.xlu0 %4552
  %4555 = vset.pattern.permute.xlu0 5
  %4556 = vperm.xlu0 %4555, %v152
  %v4557 = vpop.permute.xlu0 %4556
  %4559 = vset.pattern.permute.xlu0 5
  %4560 = vperm.xlu0 %4559, %v153
  %v4561 = vpop.permute.xlu0 %4560
  %4563 = vset.pattern.permute.xlu0 5
  %4564 = vperm.xlu0 %4563, %v154
  %v4565 = vpop.permute.xlu0 %4564
  %4567 = vset.pattern.permute.xlu0 5
  %4568 = vperm.xlu0 %4567, %v155
  %v4569 = vpop.permute.xlu0 %4568
  %4571 = vset.pattern.permute.xlu0 5
  %4572 = vperm.xlu0 %4571, %v156
  %v4573 = vpop.permute.xlu0 %4572
  %v4575 = vmul.f32 %v3359, %v4321
  %v4576 = vmul.f32 %v3360, %v4325
  %v4577 = vmul.f32 %v3361, %v4329
  %v4578 = vmul.f32 %v3362, %v4333
  %v4579 = vmul.f32 %v3363, %v4337
  %v4580 = vmul.f32 %v3364, %v4341
  %v4581 = vmul.f32 %v3365, %v4345
  %v4582 = vmul.f32 %v3366, %v4349
  %v4583 = vmul.f32 %v3367, %v4353
  %v4584 = vmul.f32 %v3368, %v4357
  %v4585 = vmul.f32 %v3369, %v4361
  %v4586 = vmul.f32 %v3370, %v4365
  %v4587 = vmul.f32 %v3371, %v4369
  %v4588 = vmul.f32 %v3372, %v4373
  %v4589 = vmul.f32 %v3373, %v4377
  %v4590 = vmul.f32 %v3374, %v4381
  %v4591 = vmul.f32 %v3375, %v4385
  %v4592 = vmul.f32 %v3376, %v4389
  %v4593 = vmul.f32 %v3377, %v4393
  %v4594 = vmul.f32 %v3378, %v4397
  %v4595 = vmul.f32 %v3379, %v4401
  %v4596 = vmul.f32 %v3380, %v4405
  %v4597 = vmul.f32 %v3381, %v4409
  %v4598 = vmul.f32 %v3382, %v4413
  %v4599 = vmul.f32 %v3383, %v4417
  %v4600 = vmul.f32 %v3384, %v4421
  %v4601 = vmul.f32 %v3385, %v4425
  %v4602 = vmul.f32 %v3386, %v4429
  %v4603 = vmul.f32 %v3387, %v4433
  %v4604 = vmul.f32 %v3388, %v4437
  %v4605 = vmul.f32 %v3389, %v4441
  %v4606 = vmul.f32 %v3390, %v4445
  %v4607 = vmul.f32 %v3391, %v4449
  %v4608 = vmul.f32 %v3392, %v4453
  %v4609 = vmul.f32 %v3393, %v4457
  %v4610 = vmul.f32 %v3394, %v4461
  %v4611 = vmul.f32 %v3395, %v4465
  %v4612 = vmul.f32 %v3396, %v4469
  %v4613 = vmul.f32 %v3397, %v4473
  %v4614 = vmul.f32 %v3398, %v4477
  %v4615 = vmul.f32 %v3399, %v4481
  %v4616 = vmul.f32 %v3400, %v4485
  %v4617 = vmul.f32 %v3401, %v4489
  %v4618 = vmul.f32 %v3402, %v4493
  %v4619 = vmul.f32 %v3403, %v4497
  %v4620 = vmul.f32 %v3404, %v4501
  %v4621 = vmul.f32 %v3405, %v4505
  %v4622 = vmul.f32 %v3406, %v4509
  %v4623 = vmul.f32 %v3407, %v4513
  %v4624 = vmul.f32 %v3408, %v4517
  %v4625 = vmul.f32 %v3409, %v4521
  %v4626 = vmul.f32 %v3410, %v4525
  %v4627 = vmul.f32 %v3411, %v4529
  %v4628 = vmul.f32 %v3412, %v4533
  %v4629 = vmul.f32 %v3413, %v4537
  %v4630 = vmul.f32 %v3414, %v4541
  %v4631 = vmul.f32 %v3415, %v4545
  %v4632 = vmul.f32 %v3416, %v4549
  %v4633 = vmul.f32 %v3417, %v4553
  %v4634 = vmul.f32 %v3418, %v4557
  %v4635 = vmul.f32 %v3419, %v4561
  %v4636 = vmul.f32 %v3420, %v4565
  %v4637 = vmul.f32 %v4569, 0.0
  %v4638 = vmul.f32 %v4573, 0.0
  %v4639 = vperm.slane %v2778, 6
  %v4640 = vmul.f32 %v4575, %v4639
  %v4641 = vmul.f32 %v4576, %v4639
  %v4642 = vmul.f32 %v4577, %v4639
  %v4643 = vmul.f32 %v4578, %v4639
  %v4644 = vmul.f32 %v4579, %v4639
  %v4645 = vmul.f32 %v4580, %v4639
  %v4646 = vmul.f32 %v4581, %v4639
  %v4647 = vmul.f32 %v4582, %v4639
  %v4648 = vmul.f32 %v4583, %v4639
  %v4649 = vmul.f32 %v4584, %v4639
  %v4650 = vmul.f32 %v4585, %v4639
  %v4651 = vmul.f32 %v4586, %v4639
  %v4652 = vmul.f32 %v4587, %v4639
  %v4653 = vmul.f32 %v4588, %v4639
  %v4654 = vmul.f32 %v4589, %v4639
  %v4655 = vmul.f32 %v4590, %v4639
  %v4656 = vmul.f32 %v4591, %v4639
  %v4657 = vmul.f32 %v4592, %v4639
  %v4658 = vmul.f32 %v4593, %v4639
  %v4659 = vmul.f32 %v4594, %v4639
  %v4660 = vmul.f32 %v4595, %v4639
  %v4661 = vmul.f32 %v4596, %v4639
  %v4662 = vmul.f32 %v4597, %v4639
  %v4663 = vmul.f32 %v4598, %v4639
  %v4664 = vmul.f32 %v4599, %v4639
  %v4665 = vmul.f32 %v4600, %v4639
  %v4666 = vmul.f32 %v4601, %v4639
  %v4667 = vmul.f32 %v4602, %v4639
  %v4668 = vmul.f32 %v4603, %v4639
  %v4669 = vmul.f32 %v4604, %v4639
  %v4670 = vmul.f32 %v4605, %v4639
  %v4671 = vmul.f32 %v4606, %v4639
  %v4672 = vmul.f32 %v4607, %v4639
  %v4673 = vmul.f32 %v4608, %v4639
  %v4674 = vmul.f32 %v4609, %v4639
  %v4675 = vmul.f32 %v4610, %v4639
  %v4676 = vmul.f32 %v4611, %v4639
  %v4677 = vmul.f32 %v4612, %v4639
  %v4678 = vmul.f32 %v4613, %v4639
  %v4679 = vmul.f32 %v4614, %v4639
  %v4680 = vmul.f32 %v4615, %v4639
  %v4681 = vmul.f32 %v4616, %v4639
  %v4682 = vmul.f32 %v4617, %v4639
  %v4683 = vmul.f32 %v4618, %v4639
  %v4684 = vmul.f32 %v4619, %v4639
  %v4685 = vmul.f32 %v4620, %v4639
  %v4686 = vmul.f32 %v4621, %v4639
  %v4687 = vmul.f32 %v4622, %v4639
  %v4688 = vmul.f32 %v4623, %v4639
  %v4689 = vmul.f32 %v4624, %v4639
  %v4690 = vmul.f32 %v4625, %v4639
  %v4691 = vmul.f32 %v4626, %v4639
  %v4692 = vmul.f32 %v4627, %v4639
  %v4693 = vmul.f32 %v4628, %v4639
  %v4694 = vmul.f32 %v4629, %v4639
  %v4695 = vmul.f32 %v4630, %v4639
  %v4696 = vmul.f32 %v4631, %v4639
  %v4697 = vmul.f32 %v4632, %v4639
  %v4698 = vmul.f32 %v4633, %v4639
  %v4699 = vmul.f32 %v4634, %v4639
  %v4700 = vmul.f32 %v4635, %v4639
  %v4701 = vmul.f32 %v4636, %v4639
  %v4702 = vmul.f32 %v4637, %v4639
  %v4703 = vmul.f32 %v4638, %v4639
  %v4704 = vadd.f32 %v4255, %v4640
  %v4705 = vadd.f32 %v4256, %v4641
  %v4706 = vadd.f32 %v4257, %v4642
  %v4707 = vadd.f32 %v4258, %v4643
  %v4708 = vadd.f32 %v4259, %v4644
  %v4709 = vadd.f32 %v4260, %v4645
  %v4710 = vadd.f32 %v4261, %v4646
  %v4711 = vadd.f32 %v4262, %v4647
  %v4712 = vadd.f32 %v4263, %v4648
  %v4713 = vadd.f32 %v4264, %v4649
  %v4714 = vadd.f32 %v4265, %v4650
  %v4715 = vadd.f32 %v4266, %v4651
  %v4716 = vadd.f32 %v4267, %v4652
  %v4717 = vadd.f32 %v4268, %v4653
  %v4718 = vadd.f32 %v4269, %v4654
  %v4719 = vadd.f32 %v4270, %v4655
  %v4720 = vadd.f32 %v4271, %v4656
  %v4721 = vadd.f32 %v4272, %v4657
  %v4722 = vadd.f32 %v4273, %v4658
  %v4723 = vadd.f32 %v4274, %v4659
  %v4724 = vadd.f32 %v4275, %v4660
  %v4725 = vadd.f32 %v4276, %v4661
  %v4726 = vadd.f32 %v4277, %v4662
  %v4727 = vadd.f32 %v4278, %v4663
  %v4728 = vadd.f32 %v4279, %v4664
  %v4729 = vadd.f32 %v4280, %v4665
  %v4730 = vadd.f32 %v4281, %v4666
  %v4731 = vadd.f32 %v4282, %v4667
  %v4732 = vadd.f32 %v4283, %v4668
  %v4733 = vadd.f32 %v4284, %v4669
  %v4734 = vadd.f32 %v4285, %v4670
  %v4735 = vadd.f32 %v4286, %v4671
  %v4736 = vadd.f32 %v4287, %v4672
  %v4737 = vadd.f32 %v4288, %v4673
  %v4738 = vadd.f32 %v4289, %v4674
  %v4739 = vadd.f32 %v4290, %v4675
  %v4740 = vadd.f32 %v4291, %v4676
  %v4741 = vadd.f32 %v4292, %v4677
  %v4742 = vadd.f32 %v4293, %v4678
  %v4743 = vadd.f32 %v4294, %v4679
  %v4744 = vadd.f32 %v4295, %v4680
  %v4745 = vadd.f32 %v4296, %v4681
  %v4746 = vadd.f32 %v4297, %v4682
  %v4747 = vadd.f32 %v4298, %v4683
  %v4748 = vadd.f32 %v4299, %v4684
  %v4749 = vadd.f32 %v4300, %v4685
  %v4750 = vadd.f32 %v4301, %v4686
  %v4751 = vadd.f32 %v4302, %v4687
  %v4752 = vadd.f32 %v4303, %v4688
  %v4753 = vadd.f32 %v4304, %v4689
  %v4754 = vadd.f32 %v4305, %v4690
  %v4755 = vadd.f32 %v4306, %v4691
  %v4756 = vadd.f32 %v4307, %v4692
  %v4757 = vadd.f32 %v4308, %v4693
  %v4758 = vadd.f32 %v4309, %v4694
  %v4759 = vadd.f32 %v4310, %v4695
  %v4760 = vadd.f32 %v4311, %v4696
  %v4761 = vadd.f32 %v4312, %v4697
  %v4762 = vadd.f32 %v4313, %v4698
  %v4763 = vadd.f32 %v4314, %v4699
  %v4764 = vadd.f32 %v4315, %v4700
  %v4765 = vadd.f32 %v4316, %v4701
  %v4766 = vadd.f32 %v4317, %v4702
  %v4767 = vadd.f32 %v4318, %v4703
  %4768 = vset.pattern.permute.xlu0 1
  %4769 = vperm.xlu0 %4768, %v93
  %v4770 = vpop.permute.xlu0 %4769
  %4772 = vset.pattern.permute.xlu0 1
  %4773 = vperm.xlu0 %4772, %v94
  %v4774 = vpop.permute.xlu0 %4773
  %4776 = vset.pattern.permute.xlu0 1
  %4777 = vperm.xlu0 %4776, %v95
  %v4778 = vpop.permute.xlu0 %4777
  %4780 = vset.pattern.permute.xlu0 1
  %4781 = vperm.xlu0 %4780, %v96
  %v4782 = vpop.permute.xlu0 %4781
  %4784 = vset.pattern.permute.xlu0 1
  %4785 = vperm.xlu0 %4784, %v97
  %v4786 = vpop.permute.xlu0 %4785
  %4788 = vset.pattern.permute.xlu0 1
  %4789 = vperm.xlu0 %4788, %v98
  %v4790 = vpop.permute.xlu0 %4789
  %4792 = vset.pattern.permute.xlu0 1
  %4793 = vperm.xlu0 %4792, %v99
  %v4794 = vpop.permute.xlu0 %4793
  %4796 = vset.pattern.permute.xlu0 1
  %4797 = vperm.xlu0 %4796, %v100
  %v4798 = vpop.permute.xlu0 %4797
  %4800 = vset.pattern.permute.xlu0 1
  %4801 = vperm.xlu0 %4800, %v101
  %v4802 = vpop.permute.xlu0 %4801
  %4804 = vset.pattern.permute.xlu0 1
  %4805 = vperm.xlu0 %4804, %v102
  %v4806 = vpop.permute.xlu0 %4805
  %4808 = vset.pattern.permute.xlu0 1
  %4809 = vperm.xlu0 %4808, %v103
  %v4810 = vpop.permute.xlu0 %4809
  %4812 = vset.pattern.permute.xlu0 1
  %4813 = vperm.xlu0 %4812, %v104
  %v4814 = vpop.permute.xlu0 %4813
  %4816 = vset.pattern.permute.xlu0 1
  %4817 = vperm.xlu0 %4816, %v105
  %v4818 = vpop.permute.xlu0 %4817
  %4820 = vset.pattern.permute.xlu0 1
  %4821 = vperm.xlu0 %4820, %v106
  %v4822 = vpop.permute.xlu0 %4821
  %4824 = vset.pattern.permute.xlu0 1
  %4825 = vperm.xlu0 %4824, %v107
  %v4826 = vpop.permute.xlu0 %4825
  %4828 = vset.pattern.permute.xlu0 1
  %4829 = vperm.xlu0 %4828, %v108
  %v4830 = vpop.permute.xlu0 %4829
  %4832 = vset.pattern.permute.xlu0 1
  %4833 = vperm.xlu0 %4832, %v109
  %v4834 = vpop.permute.xlu0 %4833
  %4836 = vset.pattern.permute.xlu0 1
  %4837 = vperm.xlu0 %4836, %v110
  %v4838 = vpop.permute.xlu0 %4837
  %4840 = vset.pattern.permute.xlu0 1
  %4841 = vperm.xlu0 %4840, %v111
  %v4842 = vpop.permute.xlu0 %4841
  %4844 = vset.pattern.permute.xlu0 1
  %4845 = vperm.xlu0 %4844, %v112
  %v4846 = vpop.permute.xlu0 %4845
  %4848 = vset.pattern.permute.xlu0 1
  %4849 = vperm.xlu0 %4848, %v113
  %v4850 = vpop.permute.xlu0 %4849
  %4852 = vset.pattern.permute.xlu0 1
  %4853 = vperm.xlu0 %4852, %v114
  %v4854 = vpop.permute.xlu0 %4853
  %4856 = vset.pattern.permute.xlu0 1
  %4857 = vperm.xlu0 %4856, %v115
  %v4858 = vpop.permute.xlu0 %4857
  %4860 = vset.pattern.permute.xlu0 1
  %4861 = vperm.xlu0 %4860, %v116
  %v4862 = vpop.permute.xlu0 %4861
  %4864 = vset.pattern.permute.xlu0 1
  %4865 = vperm.xlu0 %4864, %v117
  %v4866 = vpop.permute.xlu0 %4865
  %4868 = vset.pattern.permute.xlu0 1
  %4869 = vperm.xlu0 %4868, %v118
  %v4870 = vpop.permute.xlu0 %4869
  %4872 = vset.pattern.permute.xlu0 1
  %4873 = vperm.xlu0 %4872, %v119
  %v4874 = vpop.permute.xlu0 %4873
  %4876 = vset.pattern.permute.xlu0 1
  %4877 = vperm.xlu0 %4876, %v120
  %v4878 = vpop.permute.xlu0 %4877
  %4880 = vset.pattern.permute.xlu0 1
  %4881 = vperm.xlu0 %4880, %v121
  %v4882 = vpop.permute.xlu0 %4881
  %4884 = vset.pattern.permute.xlu0 1
  %4885 = vperm.xlu0 %4884, %v122
  %v4886 = vpop.permute.xlu0 %4885
  %4888 = vset.pattern.permute.xlu0 1
  %4889 = vperm.xlu0 %4888, %v123
  %v4890 = vpop.permute.xlu0 %4889
  %4892 = vset.pattern.permute.xlu0 1
  %4893 = vperm.xlu0 %4892, %v124
  %v4894 = vpop.permute.xlu0 %4893
  %4896 = vset.pattern.permute.xlu0 1
  %4897 = vperm.xlu0 %4896, %v125
  %v4898 = vpop.permute.xlu0 %4897
  %4900 = vset.pattern.permute.xlu0 1
  %4901 = vperm.xlu0 %4900, %v126
  %v4902 = vpop.permute.xlu0 %4901
  %4904 = vset.pattern.permute.xlu0 1
  %4905 = vperm.xlu0 %4904, %v127
  %v4906 = vpop.permute.xlu0 %4905
  %4908 = vset.pattern.permute.xlu0 1
  %4909 = vperm.xlu0 %4908, %v128
  %v4910 = vpop.permute.xlu0 %4909
  %4912 = vset.pattern.permute.xlu0 1
  %4913 = vperm.xlu0 %4912, %v129
  %v4914 = vpop.permute.xlu0 %4913
  %4916 = vset.pattern.permute.xlu0 1
  %4917 = vperm.xlu0 %4916, %v130
  %v4918 = vpop.permute.xlu0 %4917
  %4920 = vset.pattern.permute.xlu0 1
  %4921 = vperm.xlu0 %4920, %v131
  %v4922 = vpop.permute.xlu0 %4921
  %4924 = vset.pattern.permute.xlu0 1
  %4925 = vperm.xlu0 %4924, %v132
  %v4926 = vpop.permute.xlu0 %4925
  %4928 = vset.pattern.permute.xlu0 1
  %4929 = vperm.xlu0 %4928, %v133
  %v4930 = vpop.permute.xlu0 %4929
  %4932 = vset.pattern.permute.xlu0 1
  %4933 = vperm.xlu0 %4932, %v134
  %v4934 = vpop.permute.xlu0 %4933
  %4936 = vset.pattern.permute.xlu0 1
  %4937 = vperm.xlu0 %4936, %v135
  %v4938 = vpop.permute.xlu0 %4937
  %4940 = vset.pattern.permute.xlu0 1
  %4941 = vperm.xlu0 %4940, %v136
  %v4942 = vpop.permute.xlu0 %4941
  %4944 = vset.pattern.permute.xlu0 1
  %4945 = vperm.xlu0 %4944, %v137
  %v4946 = vpop.permute.xlu0 %4945
  %4948 = vset.pattern.permute.xlu0 1
  %4949 = vperm.xlu0 %4948, %v138
  %v4950 = vpop.permute.xlu0 %4949
  %4952 = vset.pattern.permute.xlu0 1
  %4953 = vperm.xlu0 %4952, %v139
  %v4954 = vpop.permute.xlu0 %4953
  %4956 = vset.pattern.permute.xlu0 1
  %4957 = vperm.xlu0 %4956, %v140
  %v4958 = vpop.permute.xlu0 %4957
  %4960 = vset.pattern.permute.xlu0 1
  %4961 = vperm.xlu0 %4960, %v141
  %v4962 = vpop.permute.xlu0 %4961
  %4964 = vset.pattern.permute.xlu0 1
  %4965 = vperm.xlu0 %4964, %v142
  %v4966 = vpop.permute.xlu0 %4965
  %4968 = vset.pattern.permute.xlu0 1
  %4969 = vperm.xlu0 %4968, %v143
  %v4970 = vpop.permute.xlu0 %4969
  %4972 = vset.pattern.permute.xlu0 1
  %4973 = vperm.xlu0 %4972, %v144
  %v4974 = vpop.permute.xlu0 %4973
  %4976 = vset.pattern.permute.xlu0 1
  %4977 = vperm.xlu0 %4976, %v145
  %v4978 = vpop.permute.xlu0 %4977
  %4980 = vset.pattern.permute.xlu0 1
  %4981 = vperm.xlu0 %4980, %v146
  %v4982 = vpop.permute.xlu0 %4981
  %4984 = vset.pattern.permute.xlu0 1
  %4985 = vperm.xlu0 %4984, %v147
  %v4986 = vpop.permute.xlu0 %4985
  %4988 = vset.pattern.permute.xlu0 1
  %4989 = vperm.xlu0 %4988, %v148
  %v4990 = vpop.permute.xlu0 %4989
  %4992 = vset.pattern.permute.xlu0 1
  %4993 = vperm.xlu0 %4992, %v149
  %v4994 = vpop.permute.xlu0 %4993
  %4996 = vset.pattern.permute.xlu0 1
  %4997 = vperm.xlu0 %4996, %v150
  %v4998 = vpop.permute.xlu0 %4997
  %5000 = vset.pattern.permute.xlu0 1
  %5001 = vperm.xlu0 %5000, %v151
  %v5002 = vpop.permute.xlu0 %5001
  %5004 = vset.pattern.permute.xlu0 1
  %5005 = vperm.xlu0 %5004, %v152
  %v5006 = vpop.permute.xlu0 %5005
  %5008 = vset.pattern.permute.xlu0 1
  %5009 = vperm.xlu0 %5008, %v153
  %v5010 = vpop.permute.xlu0 %5009
  %5012 = vset.pattern.permute.xlu0 1
  %5013 = vperm.xlu0 %5012, %v154
  %v5014 = vpop.permute.xlu0 %5013
  %5016 = vset.pattern.permute.xlu0 1
  %5017 = vperm.xlu0 %5016, %v155
  %v5018 = vpop.permute.xlu0 %5017
  %5020 = vset.pattern.permute.xlu0 1
  %5021 = vperm.xlu0 %5020, %v156
  %v5022 = vpop.permute.xlu0 %5021
  %v5024 = vmul.f32 %v2714, %v4770
  %v5025 = vmul.f32 %v2715, %v4774
  %v5026 = vmul.f32 %v2716, %v4778
  %v5027 = vmul.f32 %v2717, %v4782
  %v5028 = vmul.f32 %v2718, %v4786
  %v5029 = vmul.f32 %v2719, %v4790
  %v5030 = vmul.f32 %v2720, %v4794
  %v5031 = vmul.f32 %v2721, %v4798
  %v5032 = vmul.f32 %v2722, %v4802
  %v5033 = vmul.f32 %v2723, %v4806
  %v5034 = vmul.f32 %v2724, %v4810
  %v5035 = vmul.f32 %v2725, %v4814
  %v5036 = vmul.f32 %v2726, %v4818
  %v5037 = vmul.f32 %v2727, %v4822
  %v5038 = vmul.f32 %v2728, %v4826
  %v5039 = vmul.f32 %v2729, %v4830
  %v5040 = vmul.f32 %v2730, %v4834
  %v5041 = vmul.f32 %v2731, %v4838
  %v5042 = vmul.f32 %v2732, %v4842
  %v5043 = vmul.f32 %v2733, %v4846
  %v5044 = vmul.f32 %v2734, %v4850
  %v5045 = vmul.f32 %v2735, %v4854
  %v5046 = vmul.f32 %v2736, %v4858
  %v5047 = vmul.f32 %v2737, %v4862
  %v5048 = vmul.f32 %v2738, %v4866
  %v5049 = vmul.f32 %v2739, %v4870
  %v5050 = vmul.f32 %v2740, %v4874
  %v5051 = vmul.f32 %v2741, %v4878
  %v5052 = vmul.f32 %v2742, %v4882
  %v5053 = vmul.f32 %v2743, %v4886
  %v5054 = vmul.f32 %v2744, %v4890
  %v5055 = vmul.f32 %v2745, %v4894
  %v5056 = vmul.f32 %v2746, %v4898
  %v5057 = vmul.f32 %v2747, %v4902
  %v5058 = vmul.f32 %v2748, %v4906
  %v5059 = vmul.f32 %v2749, %v4910
  %v5060 = vmul.f32 %v2750, %v4914
  %v5061 = vmul.f32 %v2751, %v4918
  %v5062 = vmul.f32 %v2752, %v4922
  %v5063 = vmul.f32 %v2753, %v4926
  %v5064 = vmul.f32 %v2754, %v4930
  %v5065 = vmul.f32 %v2755, %v4934
  %v5066 = vmul.f32 %v2756, %v4938
  %v5067 = vmul.f32 %v2757, %v4942
  %v5068 = vmul.f32 %v2758, %v4946
  %v5069 = vmul.f32 %v2759, %v4950
  %v5070 = vmul.f32 %v2760, %v4954
  %v5071 = vmul.f32 %v2761, %v4958
  %v5072 = vmul.f32 %v2762, %v4962
  %v5073 = vmul.f32 %v2763, %v4966
  %v5074 = vmul.f32 %v2764, %v4970
  %v5075 = vmul.f32 %v2765, %v4974
  %v5076 = vmul.f32 %v2766, %v4978
  %v5077 = vmul.f32 %v2767, %v4982
  %v5078 = vmul.f32 %v2768, %v4986
  %v5079 = vmul.f32 %v2769, %v4990
  %v5080 = vmul.f32 %v2770, %v4994
  %v5081 = vmul.f32 %v2771, %v4998
  %v5082 = vmul.f32 %v2772, %v5002
  %v5083 = vmul.f32 %v2773, %v5006
  %v5084 = vmul.f32 %v2774, %v5010
  %v5085 = vmul.f32 %v2775, %v5014
  %v5086 = vmul.f32 %v2776, %v5018
  %v5087 = vmul.f32 %v2777, %v5022
  %v5088 = vmul.f32 %v5024, %v3431
  %v5089 = vmul.f32 %v5025, %v3435
  %v5090 = vmul.f32 %v5026, %v3439
  %v5091 = vmul.f32 %v5027, %v3443
  %v5092 = vmul.f32 %v5028, %v3447
  %v5093 = vmul.f32 %v5029, %v3451
  %v5094 = vmul.f32 %v5030, %v3455
  %v5095 = vmul.f32 %v5031, %v3459
  %v5096 = vmul.f32 %v5032, %v3463
  %v5097 = vmul.f32 %v5033, %v3467
  %v5098 = vmul.f32 %v5034, %v3471
  %v5099 = vmul.f32 %v5035, %v3475
  %v5100 = vmul.f32 %v5036, %v3479
  %v5101 = vmul.f32 %v5037, %v3483
  %v5102 = vmul.f32 %v5038, %v3487
  %v5103 = vmul.f32 %v5039, %v3491
  %v5104 = vmul.f32 %v5040, %v3495
  %v5105 = vmul.f32 %v5041, %v3499
  %v5106 = vmul.f32 %v5042, %v3503
  %v5107 = vmul.f32 %v5043, %v3507
  %v5108 = vmul.f32 %v5044, %v3511
  %v5109 = vmul.f32 %v5045, %v3515
  %v5110 = vmul.f32 %v5046, %v3519
  %v5111 = vmul.f32 %v5047, %v3523
  %v5112 = vmul.f32 %v5048, %v3527
  %v5113 = vmul.f32 %v5049, %v3531
  %v5114 = vmul.f32 %v5050, %v3535
  %v5115 = vmul.f32 %v5051, %v3539
  %v5116 = vmul.f32 %v5052, %v3543
  %v5117 = vmul.f32 %v5053, %v3547
  %v5118 = vmul.f32 %v5054, %v3551
  %v5119 = vmul.f32 %v5055, %v3555
  %v5120 = vmul.f32 %v5056, %v3559
  %v5121 = vmul.f32 %v5057, %v3563
  %v5122 = vmul.f32 %v5058, %v3567
  %v5123 = vmul.f32 %v5059, %v3571
  %v5124 = vmul.f32 %v5060, %v3575
  %v5125 = vmul.f32 %v5061, %v3579
  %v5126 = vmul.f32 %v5062, %v3583
  %v5127 = vmul.f32 %v5063, %v3587
  %v5128 = vmul.f32 %v5064, %v3591
  %v5129 = vmul.f32 %v5065, %v3595
  %v5130 = vmul.f32 %v5066, %v3599
  %v5131 = vmul.f32 %v5067, %v3603
  %v5132 = vmul.f32 %v5068, %v3607
  %v5133 = vmul.f32 %v5069, %v3611
  %v5134 = vmul.f32 %v5070, %v3615
  %v5135 = vmul.f32 %v5071, %v3619
  %v5136 = vmul.f32 %v5072, %v3623
  %v5137 = vmul.f32 %v5073, %v3627
  %v5138 = vmul.f32 %v5074, %v3631
  %v5139 = vmul.f32 %v5075, %v3635
  %v5140 = vmul.f32 %v5076, %v3639
  %v5141 = vmul.f32 %v5077, %v3643
  %v5142 = vmul.f32 %v5078, %v3647
  %v5143 = vmul.f32 %v5079, %v3651
  %v5144 = vmul.f32 %v5080, %v3655
  %v5145 = vmul.f32 %v5081, %v3659
  %v5146 = vmul.f32 %v5082, %v3663
  %v5147 = vmul.f32 %v5083, %v3667
  %v5148 = vmul.f32 %v5084, %v3671
  %v5149 = vmul.f32 %v5085, %v3675
  %v5150 = vperm.slane %v2778, 1
  %v5151 = vmul.f32 %v3677, %v5150
  %v5152 = vmul.f32 %v3678, %v5150
  %v5153 = vmul.f32 %v5088, %v5150
  %v5154 = vmul.f32 %v5089, %v5150
  %v5155 = vmul.f32 %v5090, %v5150
  %v5156 = vmul.f32 %v5091, %v5150
  %v5157 = vmul.f32 %v5092, %v5150
  %v5158 = vmul.f32 %v5093, %v5150
  %v5159 = vmul.f32 %v5094, %v5150
  %v5160 = vmul.f32 %v5095, %v5150
  %v5161 = vmul.f32 %v5096, %v5150
  %v5162 = vmul.f32 %v5097, %v5150
  %v5163 = vmul.f32 %v5098, %v5150
  %v5164 = vmul.f32 %v5099, %v5150
  %v5165 = vmul.f32 %v5100, %v5150
  %v5166 = vmul.f32 %v5101, %v5150
  %v5167 = vmul.f32 %v5102, %v5150
  %v5168 = vmul.f32 %v5103, %v5150
  %v5169 = vmul.f32 %v5104, %v5150
  %v5170 = vmul.f32 %v5105, %v5150
  %v5171 = vmul.f32 %v5106, %v5150
  %v5172 = vmul.f32 %v5107, %v5150
  %v5173 = vmul.f32 %v5108, %v5150
  %v5174 = vmul.f32 %v5109, %v5150
  %v5175 = vmul.f32 %v5110, %v5150
  %v5176 = vmul.f32 %v5111, %v5150
  %v5177 = vmul.f32 %v5112, %v5150
  %v5178 = vmul.f32 %v5113, %v5150
  %v5179 = vmul.f32 %v5114, %v5150
  %v5180 = vmul.f32 %v5115, %v5150
  %v5181 = vmul.f32 %v5116, %v5150
  %v5182 = vmul.f32 %v5117, %v5150
  %v5183 = vmul.f32 %v5118, %v5150
  %v5184 = vmul.f32 %v5119, %v5150
  %v5185 = vmul.f32 %v5120, %v5150
  %v5186 = vmul.f32 %v5121, %v5150
  %v5187 = vmul.f32 %v5122, %v5150
  %v5188 = vmul.f32 %v5123, %v5150
  %v5189 = vmul.f32 %v5124, %v5150
  %v5190 = vmul.f32 %v5125, %v5150
  %v5191 = vmul.f32 %v5126, %v5150
  %v5192 = vmul.f32 %v5127, %v5150
  %v5193 = vmul.f32 %v5128, %v5150
  %v5194 = vmul.f32 %v5129, %v5150
  %v5195 = vmul.f32 %v5130, %v5150
  %v5196 = vmul.f32 %v5131, %v5150
  %v5197 = vmul.f32 %v5132, %v5150
  %v5198 = vmul.f32 %v5133, %v5150
  %v5199 = vmul.f32 %v5134, %v5150
  %v5200 = vmul.f32 %v5135, %v5150
  %v5201 = vmul.f32 %v5136, %v5150
  %v5202 = vmul.f32 %v5137, %v5150
  %v5203 = vmul.f32 %v5138, %v5150
  %v5204 = vmul.f32 %v5139, %v5150
  %v5205 = vmul.f32 %v5140, %v5150
  %v5206 = vmul.f32 %v5141, %v5150
  %v5207 = vmul.f32 %v5142, %v5150
  %v5208 = vmul.f32 %v5143, %v5150
  %v5209 = vmul.f32 %v5144, %v5150
  %v5210 = vmul.f32 %v5145, %v5150
  %v5211 = vmul.f32 %v5146, %v5150
  %v5212 = vmul.f32 %v5147, %v5150
  %v5213 = vmul.f32 %v5148, %v5150
  %v5214 = vmul.f32 %v5149, %v5150
  %v5215 = vadd.f32 %v4704, %v5151
  %v5216 = vadd.f32 %v4705, %v5152
  %v5217 = vadd.f32 %v4706, %v5153
  %v5218 = vadd.f32 %v4707, %v5154
  %v5219 = vadd.f32 %v4708, %v5155
  %v5220 = vadd.f32 %v4709, %v5156
  %v5221 = vadd.f32 %v4710, %v5157
  %v5222 = vadd.f32 %v4711, %v5158
  %v5223 = vadd.f32 %v4712, %v5159
  %v5224 = vadd.f32 %v4713, %v5160
  %v5225 = vadd.f32 %v4714, %v5161
  %v5226 = vadd.f32 %v4715, %v5162
  %v5227 = vadd.f32 %v4716, %v5163
  %v5228 = vadd.f32 %v4717, %v5164
  %v5229 = vadd.f32 %v4718, %v5165
  %v5230 = vadd.f32 %v4719, %v5166
  %v5231 = vadd.f32 %v4720, %v5167
  %v5232 = vadd.f32 %v4721, %v5168
  %v5233 = vadd.f32 %v4722, %v5169
  %v5234 = vadd.f32 %v4723, %v5170
  %v5235 = vadd.f32 %v4724, %v5171
  %v5236 = vadd.f32 %v4725, %v5172
  %v5237 = vadd.f32 %v4726, %v5173
  %v5238 = vadd.f32 %v4727, %v5174
  %v5239 = vadd.f32 %v4728, %v5175
  %v5240 = vadd.f32 %v4729, %v5176
  %v5241 = vadd.f32 %v4730, %v5177
  %v5242 = vadd.f32 %v4731, %v5178
  %v5243 = vadd.f32 %v4732, %v5179
  %v5244 = vadd.f32 %v4733, %v5180
  %v5245 = vadd.f32 %v4734, %v5181
  %v5246 = vadd.f32 %v4735, %v5182
  %v5247 = vadd.f32 %v4736, %v5183
  %v5248 = vadd.f32 %v4737, %v5184
  %v5249 = vadd.f32 %v4738, %v5185
  %v5250 = vadd.f32 %v4739, %v5186
  %v5251 = vadd.f32 %v4740, %v5187
  %v5252 = vadd.f32 %v4741, %v5188
  %v5253 = vadd.f32 %v4742, %v5189
  %v5254 = vadd.f32 %v4743, %v5190
  %v5255 = vadd.f32 %v4744, %v5191
  %v5256 = vadd.f32 %v4745, %v5192
  %v5257 = vadd.f32 %v4746, %v5193
  %v5258 = vadd.f32 %v4747, %v5194
  %v5259 = vadd.f32 %v4748, %v5195
  %v5260 = vadd.f32 %v4749, %v5196
  %v5261 = vadd.f32 %v4750, %v5197
  %v5262 = vadd.f32 %v4751, %v5198
  %v5263 = vadd.f32 %v4752, %v5199
  %v5264 = vadd.f32 %v4753, %v5200
  %v5265 = vadd.f32 %v4754, %v5201
  %v5266 = vadd.f32 %v4755, %v5202
  %v5267 = vadd.f32 %v4756, %v5203
  %v5268 = vadd.f32 %v4757, %v5204
  %v5269 = vadd.f32 %v4758, %v5205
  %v5270 = vadd.f32 %v4759, %v5206
  %v5271 = vadd.f32 %v4760, %v5207
  %v5272 = vadd.f32 %v4761, %v5208
  %v5273 = vadd.f32 %v4762, %v5209
  %v5274 = vadd.f32 %v4763, %v5210
  %v5275 = vadd.f32 %v4764, %v5211
  %v5276 = vadd.f32 %v4765, %v5212
  %v5277 = vadd.f32 %v4766, %v5213
  %v5278 = vadd.f32 %v4767, %v5214
  %v5279 = vmul.f32 %v5024, %v3872
  %v5280 = vmul.f32 %v5025, %v3876
  %v5281 = vmul.f32 %v5026, %v3880
  %v5282 = vmul.f32 %v5027, %v3884
  %v5283 = vmul.f32 %v5028, %v3888
  %v5284 = vmul.f32 %v5029, %v3892
  %v5285 = vmul.f32 %v5030, %v3896
  %v5286 = vmul.f32 %v5031, %v3900
  %v5287 = vmul.f32 %v5032, %v3904
  %v5288 = vmul.f32 %v5033, %v3908
  %v5289 = vmul.f32 %v5034, %v3912
  %v5290 = vmul.f32 %v5035, %v3916
  %v5291 = vmul.f32 %v5036, %v3920
  %v5292 = vmul.f32 %v5037, %v3924
  %v5293 = vmul.f32 %v5038, %v3928
  %v5294 = vmul.f32 %v5039, %v3932
  %v5295 = vmul.f32 %v5040, %v3936
  %v5296 = vmul.f32 %v5041, %v3940
  %v5297 = vmul.f32 %v5042, %v3944
  %v5298 = vmul.f32 %v5043, %v3948
  %v5299 = vmul.f32 %v5044, %v3952
  %v5300 = vmul.f32 %v5045, %v3956
  %v5301 = vmul.f32 %v5046, %v3960
  %v5302 = vmul.f32 %v5047, %v3964
  %v5303 = vmul.f32 %v5048, %v3968
  %v5304 = vmul.f32 %v5049, %v3972
  %v5305 = vmul.f32 %v5050, %v3976
  %v5306 = vmul.f32 %v5051, %v3980
  %v5307 = vmul.f32 %v5052, %v3984
  %v5308 = vmul.f32 %v5053, %v3988
  %v5309 = vmul.f32 %v5054, %v3992
  %v5310 = vmul.f32 %v5055, %v3996
  %v5311 = vmul.f32 %v5056, %v4000
  %v5312 = vmul.f32 %v5057, %v4004
  %v5313 = vmul.f32 %v5058, %v4008
  %v5314 = vmul.f32 %v5059, %v4012
  %v5315 = vmul.f32 %v5060, %v4016
  %v5316 = vmul.f32 %v5061, %v4020
  %v5317 = vmul.f32 %v5062, %v4024
  %v5318 = vmul.f32 %v5063, %v4028
  %v5319 = vmul.f32 %v5064, %v4032
  %v5320 = vmul.f32 %v5065, %v4036
  %v5321 = vmul.f32 %v5066, %v4040
  %v5322 = vmul.f32 %v5067, %v4044
  %v5323 = vmul.f32 %v5068, %v4048
  %v5324 = vmul.f32 %v5069, %v4052
  %v5325 = vmul.f32 %v5070, %v4056
  %v5326 = vmul.f32 %v5071, %v4060
  %v5327 = vmul.f32 %v5072, %v4064
  %v5328 = vmul.f32 %v5073, %v4068
  %v5329 = vmul.f32 %v5074, %v4072
  %v5330 = vmul.f32 %v5075, %v4076
  %v5331 = vmul.f32 %v5076, %v4080
  %v5332 = vmul.f32 %v5077, %v4084
  %v5333 = vmul.f32 %v5078, %v4088
  %v5334 = vmul.f32 %v5079, %v4092
  %v5335 = vmul.f32 %v5080, %v4096
  %v5336 = vmul.f32 %v5081, %v4100
  %v5337 = vmul.f32 %v5082, %v4104
  %v5338 = vmul.f32 %v5083, %v4108
  %v5339 = vmul.f32 %v5084, %v4112
  %v5340 = vmul.f32 %v5085, %v4116
  %v5341 = vmul.f32 %v5086, %v4120
  %v5342 = vmul.f32 %v5087, %v4124
  %v5343 = vperm.slane %v2778, 4
  %v5344 = vmul.f32 %v5279, %v5343
  %v5345 = vmul.f32 %v5280, %v5343
  %v5346 = vmul.f32 %v5281, %v5343
  %v5347 = vmul.f32 %v5282, %v5343
  %v5348 = vmul.f32 %v5283, %v5343
  %v5349 = vmul.f32 %v5284, %v5343
  %v5350 = vmul.f32 %v5285, %v5343
  %v5351 = vmul.f32 %v5286, %v5343
  %v5352 = vmul.f32 %v5287, %v5343
  %v5353 = vmul.f32 %v5288, %v5343
  %v5354 = vmul.f32 %v5289, %v5343
  %v5355 = vmul.f32 %v5290, %v5343
  %v5356 = vmul.f32 %v5291, %v5343
  %v5357 = vmul.f32 %v5292, %v5343
  %v5358 = vmul.f32 %v5293, %v5343
  %v5359 = vmul.f32 %v5294, %v5343
  %v5360 = vmul.f32 %v5295, %v5343
  %v5361 = vmul.f32 %v5296, %v5343
  %v5362 = vmul.f32 %v5297, %v5343
  %v5363 = vmul.f32 %v5298, %v5343
  %v5364 = vmul.f32 %v5299, %v5343
  %v5365 = vmul.f32 %v5300, %v5343
  %v5366 = vmul.f32 %v5301, %v5343
  %v5367 = vmul.f32 %v5302, %v5343
  %v5368 = vmul.f32 %v5303, %v5343
  %v5369 = vmul.f32 %v5304, %v5343
  %v5370 = vmul.f32 %v5305, %v5343
  %v5371 = vmul.f32 %v5306, %v5343
  %v5372 = vmul.f32 %v5307, %v5343
  %v5373 = vmul.f32 %v5308, %v5343
  %v5374 = vmul.f32 %v5309, %v5343
  %v5375 = vmul.f32 %v5310, %v5343
  %v5376 = vmul.f32 %v5311, %v5343
  %v5377 = vmul.f32 %v5312, %v5343
  %v5378 = vmul.f32 %v5313, %v5343
  %v5379 = vmul.f32 %v5314, %v5343
  %v5380 = vmul.f32 %v5315, %v5343
  %v5381 = vmul.f32 %v5316, %v5343
  %v5382 = vmul.f32 %v5317, %v5343
  %v5383 = vmul.f32 %v5318, %v5343
  %v5384 = vmul.f32 %v5319, %v5343
  %v5385 = vmul.f32 %v5320, %v5343
  %v5386 = vmul.f32 %v5321, %v5343
  %v5387 = vmul.f32 %v5322, %v5343
  %v5388 = vmul.f32 %v5323, %v5343
  %v5389 = vmul.f32 %v5324, %v5343
  %v5390 = vmul.f32 %v5325, %v5343
  %v5391 = vmul.f32 %v5326, %v5343
  %v5392 = vmul.f32 %v5327, %v5343
  %v5393 = vmul.f32 %v5328, %v5343
  %v5394 = vmul.f32 %v5329, %v5343
  %v5395 = vmul.f32 %v5330, %v5343
  %v5396 = vmul.f32 %v5331, %v5343
  %v5397 = vmul.f32 %v5332, %v5343
  %v5398 = vmul.f32 %v5333, %v5343
  %v5399 = vmul.f32 %v5334, %v5343
  %v5400 = vmul.f32 %v5335, %v5343
  %v5401 = vmul.f32 %v5336, %v5343
  %v5402 = vmul.f32 %v5337, %v5343
  %v5403 = vmul.f32 %v5338, %v5343
  %v5404 = vmul.f32 %v5339, %v5343
  %v5405 = vmul.f32 %v5340, %v5343
  %v5406 = vmul.f32 %v5341, %v5343
  %v5407 = vmul.f32 %v5342, %v5343
  %v5408 = vadd.f32 %v5215, %v5344
  %v5409 = vadd.f32 %v5216, %v5345
  %v5410 = vadd.f32 %v5217, %v5346
  %v5411 = vadd.f32 %v5218, %v5347
  %v5412 = vadd.f32 %v5219, %v5348
  %v5413 = vadd.f32 %v5220, %v5349
  %v5414 = vadd.f32 %v5221, %v5350
  %v5415 = vadd.f32 %v5222, %v5351
  %v5416 = vadd.f32 %v5223, %v5352
  %v5417 = vadd.f32 %v5224, %v5353
  %v5418 = vadd.f32 %v5225, %v5354
  %v5419 = vadd.f32 %v5226, %v5355
  %v5420 = vadd.f32 %v5227, %v5356
  %v5421 = vadd.f32 %v5228, %v5357
  %v5422 = vadd.f32 %v5229, %v5358
  %v5423 = vadd.f32 %v5230, %v5359
  %v5424 = vadd.f32 %v5231, %v5360
  %v5425 = vadd.f32 %v5232, %v5361
  %v5426 = vadd.f32 %v5233, %v5362
  %v5427 = vadd.f32 %v5234, %v5363
  %v5428 = vadd.f32 %v5235, %v5364
  %v5429 = vadd.f32 %v5236, %v5365
  %v5430 = vadd.f32 %v5237, %v5366
  %v5431 = vadd.f32 %v5238, %v5367
  %v5432 = vadd.f32 %v5239, %v5368
  %v5433 = vadd.f32 %v5240, %v5369
  %v5434 = vadd.f32 %v5241, %v5370
  %v5435 = vadd.f32 %v5242, %v5371
  %v5436 = vadd.f32 %v5243, %v5372
  %v5437 = vadd.f32 %v5244, %v5373
  %v5438 = vadd.f32 %v5245, %v5374
  %v5439 = vadd.f32 %v5246, %v5375
  %v5440 = vadd.f32 %v5247, %v5376
  %v5441 = vadd.f32 %v5248, %v5377
  %v5442 = vadd.f32 %v5249, %v5378
  %v5443 = vadd.f32 %v5250, %v5379
  %v5444 = vadd.f32 %v5251, %v5380
  %v5445 = vadd.f32 %v5252, %v5381
  %v5446 = vadd.f32 %v5253, %v5382
  %v5447 = vadd.f32 %v5254, %v5383
  %v5448 = vadd.f32 %v5255, %v5384
  %v5449 = vadd.f32 %v5256, %v5385
  %v5450 = vadd.f32 %v5257, %v5386
  %v5451 = vadd.f32 %v5258, %v5387
  %v5452 = vadd.f32 %v5259, %v5388
  %v5453 = vadd.f32 %v5260, %v5389
  %v5454 = vadd.f32 %v5261, %v5390
  %v5455 = vadd.f32 %v5262, %v5391
  %v5456 = vadd.f32 %v5263, %v5392
  %v5457 = vadd.f32 %v5264, %v5393
  %v5458 = vadd.f32 %v5265, %v5394
  %v5459 = vadd.f32 %v5266, %v5395
  %v5460 = vadd.f32 %v5267, %v5396
  %v5461 = vadd.f32 %v5268, %v5397
  %v5462 = vadd.f32 %v5269, %v5398
  %v5463 = vadd.f32 %v5270, %v5399
  %v5464 = vadd.f32 %v5271, %v5400
  %v5465 = vadd.f32 %v5272, %v5401
  %v5466 = vadd.f32 %v5273, %v5402
  %v5467 = vadd.f32 %v5274, %v5403
  %v5468 = vadd.f32 %v5275, %v5404
  %v5469 = vadd.f32 %v5276, %v5405
  %v5470 = vadd.f32 %v5277, %v5406
  %v5471 = vadd.f32 %v5278, %v5407
  %v5472 = vmul.f32 %v5026, %v4321
  %v5473 = vmul.f32 %v5027, %v4325
  %v5474 = vmul.f32 %v5028, %v4329
  %v5475 = vmul.f32 %v5029, %v4333
  %v5476 = vmul.f32 %v5030, %v4337
  %v5477 = vmul.f32 %v5031, %v4341
  %v5478 = vmul.f32 %v5032, %v4345
  %v5479 = vmul.f32 %v5033, %v4349
  %v5480 = vmul.f32 %v5034, %v4353
  %v5481 = vmul.f32 %v5035, %v4357
  %v5482 = vmul.f32 %v5036, %v4361
  %v5483 = vmul.f32 %v5037, %v4365
  %v5484 = vmul.f32 %v5038, %v4369
  %v5485 = vmul.f32 %v5039, %v4373
  %v5486 = vmul.f32 %v5040, %v4377
  %v5487 = vmul.f32 %v5041, %v4381
  %v5488 = vmul.f32 %v5042, %v4385
  %v5489 = vmul.f32 %v5043, %v4389
  %v5490 = vmul.f32 %v5044, %v4393
  %v5491 = vmul.f32 %v5045, %v4397
  %v5492 = vmul.f32 %v5046, %v4401
  %v5493 = vmul.f32 %v5047, %v4405
  %v5494 = vmul.f32 %v5048, %v4409
  %v5495 = vmul.f32 %v5049, %v4413
  %v5496 = vmul.f32 %v5050, %v4417
  %v5497 = vmul.f32 %v5051, %v4421
  %v5498 = vmul.f32 %v5052, %v4425
  %v5499 = vmul.f32 %v5053, %v4429
  %v5500 = vmul.f32 %v5054, %v4433
  %v5501 = vmul.f32 %v5055, %v4437
  %v5502 = vmul.f32 %v5056, %v4441
  %v5503 = vmul.f32 %v5057, %v4445
  %v5504 = vmul.f32 %v5058, %v4449
  %v5505 = vmul.f32 %v5059, %v4453
  %v5506 = vmul.f32 %v5060, %v4457
  %v5507 = vmul.f32 %v5061, %v4461
  %v5508 = vmul.f32 %v5062, %v4465
  %v5509 = vmul.f32 %v5063, %v4469
  %v5510 = vmul.f32 %v5064, %v4473
  %v5511 = vmul.f32 %v5065, %v4477
  %v5512 = vmul.f32 %v5066, %v4481
  %v5513 = vmul.f32 %v5067, %v4485
  %v5514 = vmul.f32 %v5068, %v4489
  %v5515 = vmul.f32 %v5069, %v4493
  %v5516 = vmul.f32 %v5070, %v4497
  %v5517 = vmul.f32 %v5071, %v4501
  %v5518 = vmul.f32 %v5072, %v4505
  %v5519 = vmul.f32 %v5073, %v4509
  %v5520 = vmul.f32 %v5074, %v4513
  %v5521 = vmul.f32 %v5075, %v4517
  %v5522 = vmul.f32 %v5076, %v4521
  %v5523 = vmul.f32 %v5077, %v4525
  %v5524 = vmul.f32 %v5078, %v4529
  %v5525 = vmul.f32 %v5079, %v4533
  %v5526 = vmul.f32 %v5080, %v4537
  %v5527 = vmul.f32 %v5081, %v4541
  %v5528 = vmul.f32 %v5082, %v4545
  %v5529 = vmul.f32 %v5083, %v4549
  %v5530 = vmul.f32 %v5084, %v4553
  %v5531 = vmul.f32 %v5085, %v4557
  %v5532 = vmul.f32 %v5086, %v4561
  %v5533 = vmul.f32 %v5087, %v4565
  %v5534 = vperm.slane %v2778, 7
  %v5535 = vmul.f32 %v5472, %v5534
  %v5536 = vmul.f32 %v5473, %v5534
  %v5537 = vmul.f32 %v5474, %v5534
  %v5538 = vmul.f32 %v5475, %v5534
  %v5539 = vmul.f32 %v5476, %v5534
  %v5540 = vmul.f32 %v5477, %v5534
  %v5541 = vmul.f32 %v5478, %v5534
  %v5542 = vmul.f32 %v5479, %v5534
  %v5543 = vmul.f32 %v5480, %v5534
  %v5544 = vmul.f32 %v5481, %v5534
  %v5545 = vmul.f32 %v5482, %v5534
  %v5546 = vmul.f32 %v5483, %v5534
  %v5547 = vmul.f32 %v5484, %v5534
  %v5548 = vmul.f32 %v5485, %v5534
  %v5549 = vmul.f32 %v5486, %v5534
  %v5550 = vmul.f32 %v5487, %v5534
  %v5551 = vmul.f32 %v5488, %v5534
  %v5552 = vmul.f32 %v5489, %v5534
  %v5553 = vmul.f32 %v5490, %v5534
  %v5554 = vmul.f32 %v5491, %v5534
  %v5555 = vmul.f32 %v5492, %v5534
  %v5556 = vmul.f32 %v5493, %v5534
  %v5557 = vmul.f32 %v5494, %v5534
  %v5558 = vmul.f32 %v5495, %v5534
  %v5559 = vmul.f32 %v5496, %v5534
  %v5560 = vmul.f32 %v5497, %v5534
  %v5561 = vmul.f32 %v5498, %v5534
  %v5562 = vmul.f32 %v5499, %v5534
  %v5563 = vmul.f32 %v5500, %v5534
  %v5564 = vmul.f32 %v5501, %v5534
  %v5565 = vmul.f32 %v5502, %v5534
  %v5566 = vmul.f32 %v5503, %v5534
  %v5567 = vmul.f32 %v5504, %v5534
  %v5568 = vmul.f32 %v5505, %v5534
  %v5569 = vmul.f32 %v5506, %v5534
  %v5570 = vmul.f32 %v5507, %v5534
  %v5571 = vmul.f32 %v5508, %v5534
  %v5572 = vmul.f32 %v5509, %v5534
  %v5573 = vmul.f32 %v5510, %v5534
  %v5574 = vmul.f32 %v5511, %v5534
  %v5575 = vmul.f32 %v5512, %v5534
  %v5576 = vmul.f32 %v5513, %v5534
  %v5577 = vmul.f32 %v5514, %v5534
  %v5578 = vmul.f32 %v5515, %v5534
  %v5579 = vmul.f32 %v5516, %v5534
  %v5580 = vmul.f32 %v5517, %v5534
  %v5581 = vmul.f32 %v5518, %v5534
  %v5582 = vmul.f32 %v5519, %v5534
  %v5583 = vmul.f32 %v5520, %v5534
  %v5584 = vmul.f32 %v5521, %v5534
  %v5585 = vmul.f32 %v5522, %v5534
  %v5586 = vmul.f32 %v5523, %v5534
  %v5587 = vmul.f32 %v5524, %v5534
  %v5588 = vmul.f32 %v5525, %v5534
  %v5589 = vmul.f32 %v5526, %v5534
  %v5590 = vmul.f32 %v5527, %v5534
  %v5591 = vmul.f32 %v5528, %v5534
  %v5592 = vmul.f32 %v5529, %v5534
  %v5593 = vmul.f32 %v5530, %v5534
  %v5594 = vmul.f32 %v5531, %v5534
  %v5595 = vmul.f32 %v5532, %v5534
  %v5596 = vmul.f32 %v5533, %v5534
  %v5597 = vmul.f32 %v4637, %v5534
  %v5598 = vmul.f32 %v4638, %v5534
  %v5599 = vadd.f32 %v5408, %v5535
  %v5600 = vadd.f32 %v5409, %v5536
  %v5601 = vadd.f32 %v5410, %v5537
  %v5602 = vadd.f32 %v5411, %v5538
  %v5603 = vadd.f32 %v5412, %v5539
  %v5604 = vadd.f32 %v5413, %v5540
  %v5605 = vadd.f32 %v5414, %v5541
  %v5606 = vadd.f32 %v5415, %v5542
  %v5607 = vadd.f32 %v5416, %v5543
  %v5608 = vadd.f32 %v5417, %v5544
  %v5609 = vadd.f32 %v5418, %v5545
  %v5610 = vadd.f32 %v5419, %v5546
  %v5611 = vadd.f32 %v5420, %v5547
  %v5612 = vadd.f32 %v5421, %v5548
  %v5613 = vadd.f32 %v5422, %v5549
  %v5614 = vadd.f32 %v5423, %v5550
  %v5615 = vadd.f32 %v5424, %v5551
  %v5616 = vadd.f32 %v5425, %v5552
  %v5617 = vadd.f32 %v5426, %v5553
  %v5618 = vadd.f32 %v5427, %v5554
  %v5619 = vadd.f32 %v5428, %v5555
  %v5620 = vadd.f32 %v5429, %v5556
  %v5621 = vadd.f32 %v5430, %v5557
  %v5622 = vadd.f32 %v5431, %v5558
  %v5623 = vadd.f32 %v5432, %v5559
  %v5624 = vadd.f32 %v5433, %v5560
  %v5625 = vadd.f32 %v5434, %v5561
  %v5626 = vadd.f32 %v5435, %v5562
  %v5627 = vadd.f32 %v5436, %v5563
  %v5628 = vadd.f32 %v5437, %v5564
  %v5629 = vadd.f32 %v5438, %v5565
  %v5630 = vadd.f32 %v5439, %v5566
  %v5631 = vadd.f32 %v5440, %v5567
  %v5632 = vadd.f32 %v5441, %v5568
  %v5633 = vadd.f32 %v5442, %v5569
  %v5634 = vadd.f32 %v5443, %v5570
  %v5635 = vadd.f32 %v5444, %v5571
  %v5636 = vadd.f32 %v5445, %v5572
  %v5637 = vadd.f32 %v5446, %v5573
  %v5638 = vadd.f32 %v5447, %v5574
  %v5639 = vadd.f32 %v5448, %v5575
  %v5640 = vadd.f32 %v5449, %v5576
  %v5641 = vadd.f32 %v5450, %v5577
  %v5642 = vadd.f32 %v5451, %v5578
  %v5643 = vadd.f32 %v5452, %v5579
  %v5644 = vadd.f32 %v5453, %v5580
  %v5645 = vadd.f32 %v5454, %v5581
  %v5646 = vadd.f32 %v5455, %v5582
  %v5647 = vadd.f32 %v5456, %v5583
  %v5648 = vadd.f32 %v5457, %v5584
  %v5649 = vadd.f32 %v5458, %v5585
  %v5650 = vadd.f32 %v5459, %v5586
  %v5651 = vadd.f32 %v5460, %v5587
  %v5652 = vadd.f32 %v5461, %v5588
  %v5653 = vadd.f32 %v5462, %v5589
  %v5654 = vadd.f32 %v5463, %v5590
  %v5655 = vadd.f32 %v5464, %v5591
  %v5656 = vadd.f32 %v5465, %v5592
  %v5657 = vadd.f32 %v5466, %v5593
  %v5658 = vadd.f32 %v5467, %v5594
  %v5659 = vadd.f32 %v5468, %v5595
  %v5660 = vadd.f32 %v5469, %v5596
  %v5661 = vadd.f32 %v5470, %v5597
  %v5662 = vadd.f32 %v5471, %v5598
  %vm5663 = vcmask 1046528
  %v5664 = vrot.slane %v2714, 1
  %v5665 = vrot.slane %v2715, 1
  %v5666 = vsel %vm5663, %v5664, %v5665
  %v5667 = vrot.slane %v2716, 1
  %v5668 = vsel %vm5663, %v5665, %v5667
  %v5669 = vrot.slane %v2717, 1
  %v5670 = vsel %vm5663, %v5667, %v5669
  %v5671 = vrot.slane %v2718, 1
  %v5672 = vsel %vm5663, %v5669, %v5671
  %v5673 = vrot.slane %v2719, 1
  %v5674 = vsel %vm5663, %v5671, %v5673
  %v5675 = vrot.slane %v2720, 1
  %v5676 = vsel %vm5663, %v5673, %v5675
  %v5677 = vrot.slane %v2721, 1
  %v5678 = vsel %vm5663, %v5675, %v5677
  %v5679 = vrot.slane %v2722, 1
  %v5680 = vsel %vm5663, %v5677, %v5679
  %v5681 = vrot.slane %v2723, 1
  %v5682 = vsel %vm5663, %v5679, %v5681
  %v5683 = vrot.slane %v2724, 1
  %v5684 = vsel %vm5663, %v5681, %v5683
  %v5685 = vrot.slane %v2725, 1
  %v5686 = vsel %vm5663, %v5683, %v5685
  %v5687 = vrot.slane %v2726, 1
  %v5688 = vsel %vm5663, %v5685, %v5687
  %v5689 = vrot.slane %v2727, 1
  %v5690 = vsel %vm5663, %v5687, %v5689
  %v5691 = vrot.slane %v2728, 1
  %v5692 = vsel %vm5663, %v5689, %v5691
  %v5693 = vrot.slane %v2729, 1
  %v5694 = vsel %vm5663, %v5691, %v5693
  %v5695 = vrot.slane %v2730, 1
  %v5696 = vsel %vm5663, %v5693, %v5695
  %v5697 = vrot.slane %v2731, 1
  %v5698 = vsel %vm5663, %v5695, %v5697
  %v5699 = vrot.slane %v2732, 1
  %v5700 = vsel %vm5663, %v5697, %v5699
  %v5701 = vrot.slane %v2733, 1
  %v5702 = vsel %vm5663, %v5699, %v5701
  %v5703 = vrot.slane %v2734, 1
  %v5704 = vsel %vm5663, %v5701, %v5703
  %v5705 = vrot.slane %v2735, 1
  %v5706 = vsel %vm5663, %v5703, %v5705
  %v5707 = vrot.slane %v2736, 1
  %v5708 = vsel %vm5663, %v5705, %v5707
  %v5709 = vrot.slane %v2737, 1
  %v5710 = vsel %vm5663, %v5707, %v5709
  %v5711 = vrot.slane %v2738, 1
  %v5712 = vsel %vm5663, %v5709, %v5711
  %v5713 = vrot.slane %v2739, 1
  %v5714 = vsel %vm5663, %v5711, %v5713
  %v5715 = vrot.slane %v2740, 1
  %v5716 = vsel %vm5663, %v5713, %v5715
  %v5717 = vrot.slane %v2741, 1
  %v5718 = vsel %vm5663, %v5715, %v5717
  %v5719 = vrot.slane %v2742, 1
  %v5720 = vsel %vm5663, %v5717, %v5719
  %v5721 = vrot.slane %v2743, 1
  %v5722 = vsel %vm5663, %v5719, %v5721
  %v5723 = vrot.slane %v2744, 1
  %v5724 = vsel %vm5663, %v5721, %v5723
  %v5725 = vrot.slane %v2745, 1
  %v5726 = vsel %vm5663, %v5723, %v5725
  %v5727 = vrot.slane %v2746, 1
  %v5728 = vsel %vm5663, %v5725, %v5727
  %v5729 = vrot.slane %v2747, 1
  %v5730 = vsel %vm5663, %v5727, %v5729
  %v5731 = vrot.slane %v2748, 1
  %v5732 = vsel %vm5663, %v5729, %v5731
  %v5733 = vrot.slane %v2749, 1
  %v5734 = vsel %vm5663, %v5731, %v5733
  %v5735 = vrot.slane %v2750, 1
  %v5736 = vsel %vm5663, %v5733, %v5735
  %v5737 = vrot.slane %v2751, 1
  %v5738 = vsel %vm5663, %v5735, %v5737
  %v5739 = vrot.slane %v2752, 1
  %v5740 = vsel %vm5663, %v5737, %v5739
  %v5741 = vrot.slane %v2753, 1
  %v5742 = vsel %vm5663, %v5739, %v5741
  %v5743 = vrot.slane %v2754, 1
  %v5744 = vsel %vm5663, %v5741, %v5743
  %v5745 = vrot.slane %v2755, 1
  %v5746 = vsel %vm5663, %v5743, %v5745
  %v5747 = vrot.slane %v2756, 1
  %v5748 = vsel %vm5663, %v5745, %v5747
  %v5749 = vrot.slane %v2757, 1
  %v5750 = vsel %vm5663, %v5747, %v5749
  %v5751 = vrot.slane %v2758, 1
  %v5752 = vsel %vm5663, %v5749, %v5751
  %v5753 = vrot.slane %v2759, 1
  %v5754 = vsel %vm5663, %v5751, %v5753
  %v5755 = vrot.slane %v2760, 1
  %v5756 = vsel %vm5663, %v5753, %v5755
  %v5757 = vrot.slane %v2761, 1
  %v5758 = vsel %vm5663, %v5755, %v5757
  %v5759 = vrot.slane %v2762, 1
  %v5760 = vsel %vm5663, %v5757, %v5759
  %v5761 = vrot.slane %v2763, 1
  %v5762 = vsel %vm5663, %v5759, %v5761
  %v5763 = vrot.slane %v2764, 1
  %v5764 = vsel %vm5663, %v5761, %v5763
  %v5765 = vrot.slane %v2765, 1
  %v5766 = vsel %vm5663, %v5763, %v5765
  %v5767 = vrot.slane %v2766, 1
  %v5768 = vsel %vm5663, %v5765, %v5767
  %v5769 = vrot.slane %v2767, 1
  %v5770 = vsel %vm5663, %v5767, %v5769
  %v5771 = vrot.slane %v2768, 1
  %v5772 = vsel %vm5663, %v5769, %v5771
  %v5773 = vrot.slane %v2769, 1
  %v5774 = vsel %vm5663, %v5771, %v5773
  %v5775 = vrot.slane %v2770, 1
  %v5776 = vsel %vm5663, %v5773, %v5775
  %v5777 = vrot.slane %v2771, 1
  %v5778 = vsel %vm5663, %v5775, %v5777
  %v5779 = vrot.slane %v2772, 1
  %v5780 = vsel %vm5663, %v5777, %v5779
  %v5781 = vrot.slane %v2773, 1
  %v5782 = vsel %vm5663, %v5779, %v5781
  %v5783 = vrot.slane %v2774, 1
  %v5784 = vsel %vm5663, %v5781, %v5783
  %v5785 = vrot.slane %v2775, 1
  %v5786 = vsel %vm5663, %v5783, %v5785
  %v5787 = vrot.slane %v2776, 1
  %v5788 = vsel %vm5663, %v5785, %v5787
  %v5789 = vrot.slane %v2777, 1
  %v5790 = vsel %vm5663, %v5787, %v5789
  %v5855 = vsel %vm5663, %v5789, 0.0
  %5856 = vset.pattern.permute.xlu0 2
  %5857 = vperm.xlu0 %5856, %v93
  %v5858 = vpop.permute.xlu0 %5857
  %5860 = vset.pattern.permute.xlu0 2
  %5861 = vperm.xlu0 %5860, %v94
  %v5862 = vpop.permute.xlu0 %5861
  %5864 = vset.pattern.permute.xlu0 2
  %5865 = vperm.xlu0 %5864, %v95
  %v5866 = vpop.permute.xlu0 %5865
  %5868 = vset.pattern.permute.xlu0 2
  %5869 = vperm.xlu0 %5868, %v96
  %v5870 = vpop.permute.xlu0 %5869
  %5872 = vset.pattern.permute.xlu0 2
  %5873 = vperm.xlu0 %5872, %v97
  %v5874 = vpop.permute.xlu0 %5873
  %5876 = vset.pattern.permute.xlu0 2
  %5877 = vperm.xlu0 %5876, %v98
  %v5878 = vpop.permute.xlu0 %5877
  %5880 = vset.pattern.permute.xlu0 2
  %5881 = vperm.xlu0 %5880, %v99
  %v5882 = vpop.permute.xlu0 %5881
  %5884 = vset.pattern.permute.xlu0 2
  %5885 = vperm.xlu0 %5884, %v100
  %v5886 = vpop.permute.xlu0 %5885
  %5888 = vset.pattern.permute.xlu0 2
  %5889 = vperm.xlu0 %5888, %v101
  %v5890 = vpop.permute.xlu0 %5889
  %5892 = vset.pattern.permute.xlu0 2
  %5893 = vperm.xlu0 %5892, %v102
  %v5894 = vpop.permute.xlu0 %5893
  %5896 = vset.pattern.permute.xlu0 2
  %5897 = vperm.xlu0 %5896, %v103
  %v5898 = vpop.permute.xlu0 %5897
  %5900 = vset.pattern.permute.xlu0 2
  %5901 = vperm.xlu0 %5900, %v104
  %v5902 = vpop.permute.xlu0 %5901
  %5904 = vset.pattern.permute.xlu0 2
  %5905 = vperm.xlu0 %5904, %v105
  %v5906 = vpop.permute.xlu0 %5905
  %5908 = vset.pattern.permute.xlu0 2
  %5909 = vperm.xlu0 %5908, %v106
  %v5910 = vpop.permute.xlu0 %5909
  %5912 = vset.pattern.permute.xlu0 2
  %5913 = vperm.xlu0 %5912, %v107
  %v5914 = vpop.permute.xlu0 %5913
  %5916 = vset.pattern.permute.xlu0 2
  %5917 = vperm.xlu0 %5916, %v108
  %v5918 = vpop.permute.xlu0 %5917
  %5920 = vset.pattern.permute.xlu0 2
  %5921 = vperm.xlu0 %5920, %v109
  %v5922 = vpop.permute.xlu0 %5921
  %5924 = vset.pattern.permute.xlu0 2
  %5925 = vperm.xlu0 %5924, %v110
  %v5926 = vpop.permute.xlu0 %5925
  %5928 = vset.pattern.permute.xlu0 2
  %5929 = vperm.xlu0 %5928, %v111
  %v5930 = vpop.permute.xlu0 %5929
  %5932 = vset.pattern.permute.xlu0 2
  %5933 = vperm.xlu0 %5932, %v112
  %v5934 = vpop.permute.xlu0 %5933
  %5936 = vset.pattern.permute.xlu0 2
  %5937 = vperm.xlu0 %5936, %v113
  %v5938 = vpop.permute.xlu0 %5937
  %5940 = vset.pattern.permute.xlu0 2
  %5941 = vperm.xlu0 %5940, %v114
  %v5942 = vpop.permute.xlu0 %5941
  %5944 = vset.pattern.permute.xlu0 2
  %5945 = vperm.xlu0 %5944, %v115
  %v5946 = vpop.permute.xlu0 %5945
  %5948 = vset.pattern.permute.xlu0 2
  %5949 = vperm.xlu0 %5948, %v116
  %v5950 = vpop.permute.xlu0 %5949
  %5952 = vset.pattern.permute.xlu0 2
  %5953 = vperm.xlu0 %5952, %v117
  %v5954 = vpop.permute.xlu0 %5953
  %5956 = vset.pattern.permute.xlu0 2
  %5957 = vperm.xlu0 %5956, %v118
  %v5958 = vpop.permute.xlu0 %5957
  %5960 = vset.pattern.permute.xlu0 2
  %5961 = vperm.xlu0 %5960, %v119
  %v5962 = vpop.permute.xlu0 %5961
  %5964 = vset.pattern.permute.xlu0 2
  %5965 = vperm.xlu0 %5964, %v120
  %v5966 = vpop.permute.xlu0 %5965
  %5968 = vset.pattern.permute.xlu0 2
  %5969 = vperm.xlu0 %5968, %v121
  %v5970 = vpop.permute.xlu0 %5969
  %5972 = vset.pattern.permute.xlu0 2
  %5973 = vperm.xlu0 %5972, %v122
  %v5974 = vpop.permute.xlu0 %5973
  %5976 = vset.pattern.permute.xlu0 2
  %5977 = vperm.xlu0 %5976, %v123
  %v5978 = vpop.permute.xlu0 %5977
  %5980 = vset.pattern.permute.xlu0 2
  %5981 = vperm.xlu0 %5980, %v124
  %v5982 = vpop.permute.xlu0 %5981
  %5984 = vset.pattern.permute.xlu0 2
  %5985 = vperm.xlu0 %5984, %v125
  %v5986 = vpop.permute.xlu0 %5985
  %5988 = vset.pattern.permute.xlu0 2
  %5989 = vperm.xlu0 %5988, %v126
  %v5990 = vpop.permute.xlu0 %5989
  %5992 = vset.pattern.permute.xlu0 2
  %5993 = vperm.xlu0 %5992, %v127
  %v5994 = vpop.permute.xlu0 %5993
  %5996 = vset.pattern.permute.xlu0 2
  %5997 = vperm.xlu0 %5996, %v128
  %v5998 = vpop.permute.xlu0 %5997
  %6000 = vset.pattern.permute.xlu0 2
  %6001 = vperm.xlu0 %6000, %v129
  %v6002 = vpop.permute.xlu0 %6001
  %6004 = vset.pattern.permute.xlu0 2
  %6005 = vperm.xlu0 %6004, %v130
  %v6006 = vpop.permute.xlu0 %6005
  %6008 = vset.pattern.permute.xlu0 2
  %6009 = vperm.xlu0 %6008, %v131
  %v6010 = vpop.permute.xlu0 %6009
  %6012 = vset.pattern.permute.xlu0 2
  %6013 = vperm.xlu0 %6012, %v132
  %v6014 = vpop.permute.xlu0 %6013
  %6016 = vset.pattern.permute.xlu0 2
  %6017 = vperm.xlu0 %6016, %v133
  %v6018 = vpop.permute.xlu0 %6017
  %6020 = vset.pattern.permute.xlu0 2
  %6021 = vperm.xlu0 %6020, %v134
  %v6022 = vpop.permute.xlu0 %6021
  %6024 = vset.pattern.permute.xlu0 2
  %6025 = vperm.xlu0 %6024, %v135
  %v6026 = vpop.permute.xlu0 %6025
  %6028 = vset.pattern.permute.xlu0 2
  %6029 = vperm.xlu0 %6028, %v136
  %v6030 = vpop.permute.xlu0 %6029
  %6032 = vset.pattern.permute.xlu0 2
  %6033 = vperm.xlu0 %6032, %v137
  %v6034 = vpop.permute.xlu0 %6033
  %6036 = vset.pattern.permute.xlu0 2
  %6037 = vperm.xlu0 %6036, %v138
  %v6038 = vpop.permute.xlu0 %6037
  %6040 = vset.pattern.permute.xlu0 2
  %6041 = vperm.xlu0 %6040, %v139
  %v6042 = vpop.permute.xlu0 %6041
  %6044 = vset.pattern.permute.xlu0 2
  %6045 = vperm.xlu0 %6044, %v140
  %v6046 = vpop.permute.xlu0 %6045
  %6048 = vset.pattern.permute.xlu0 2
  %6049 = vperm.xlu0 %6048, %v141
  %v6050 = vpop.permute.xlu0 %6049
  %6052 = vset.pattern.permute.xlu0 2
  %6053 = vperm.xlu0 %6052, %v142
  %v6054 = vpop.permute.xlu0 %6053
  %6056 = vset.pattern.permute.xlu0 2
  %6057 = vperm.xlu0 %6056, %v143
  %v6058 = vpop.permute.xlu0 %6057
  %6060 = vset.pattern.permute.xlu0 2
  %6061 = vperm.xlu0 %6060, %v144
  %v6062 = vpop.permute.xlu0 %6061
  %6064 = vset.pattern.permute.xlu0 2
  %6065 = vperm.xlu0 %6064, %v145
  %v6066 = vpop.permute.xlu0 %6065
  %6068 = vset.pattern.permute.xlu0 2
  %6069 = vperm.xlu0 %6068, %v146
  %v6070 = vpop.permute.xlu0 %6069
  %6072 = vset.pattern.permute.xlu0 2
  %6073 = vperm.xlu0 %6072, %v147
  %v6074 = vpop.permute.xlu0 %6073
  %6076 = vset.pattern.permute.xlu0 2
  %6077 = vperm.xlu0 %6076, %v148
  %v6078 = vpop.permute.xlu0 %6077
  %6080 = vset.pattern.permute.xlu0 2
  %6081 = vperm.xlu0 %6080, %v149
  %v6082 = vpop.permute.xlu0 %6081
  %6084 = vset.pattern.permute.xlu0 2
  %6085 = vperm.xlu0 %6084, %v150
  %v6086 = vpop.permute.xlu0 %6085
  %6088 = vset.pattern.permute.xlu0 2
  %6089 = vperm.xlu0 %6088, %v151
  %v6090 = vpop.permute.xlu0 %6089
  %6092 = vset.pattern.permute.xlu0 2
  %6093 = vperm.xlu0 %6092, %v152
  %v6094 = vpop.permute.xlu0 %6093
  %6096 = vset.pattern.permute.xlu0 2
  %6097 = vperm.xlu0 %6096, %v153
  %v6098 = vpop.permute.xlu0 %6097
  %6100 = vset.pattern.permute.xlu0 2
  %6101 = vperm.xlu0 %6100, %v154
  %v6102 = vpop.permute.xlu0 %6101
  %6104 = vset.pattern.permute.xlu0 2
  %6105 = vperm.xlu0 %6104, %v155
  %v6106 = vpop.permute.xlu0 %6105
  %6108 = vset.pattern.permute.xlu0 2
  %6109 = vperm.xlu0 %6108, %v156
  %v6110 = vpop.permute.xlu0 %6109
  %v6112 = vmul.f32 %v5666, %v5858
  %v6113 = vmul.f32 %v5668, %v5862
  %v6114 = vmul.f32 %v5670, %v5866
  %v6115 = vmul.f32 %v5672, %v5870
  %v6116 = vmul.f32 %v5674, %v5874
  %v6117 = vmul.f32 %v5676, %v5878
  %v6118 = vmul.f32 %v5678, %v5882
  %v6119 = vmul.f32 %v5680, %v5886
  %v6120 = vmul.f32 %v5682, %v5890
  %v6121 = vmul.f32 %v5684, %v5894
  %v6122 = vmul.f32 %v5686, %v5898
  %v6123 = vmul.f32 %v5688, %v5902
  %v6124 = vmul.f32 %v5690, %v5906
  %v6125 = vmul.f32 %v5692, %v5910
  %v6126 = vmul.f32 %v5694, %v5914
  %v6127 = vmul.f32 %v5696, %v5918
  %v6128 = vmul.f32 %v5698, %v5922
  %v6129 = vmul.f32 %v5700, %v5926
  %v6130 = vmul.f32 %v5702, %v5930
  %v6131 = vmul.f32 %v5704, %v5934
  %v6132 = vmul.f32 %v5706, %v5938
  %v6133 = vmul.f32 %v5708, %v5942
  %v6134 = vmul.f32 %v5710, %v5946
  %v6135 = vmul.f32 %v5712, %v5950
  %v6136 = vmul.f32 %v5714, %v5954
  %v6137 = vmul.f32 %v5716, %v5958
  %v6138 = vmul.f32 %v5718, %v5962
  %v6139 = vmul.f32 %v5720, %v5966
  %v6140 = vmul.f32 %v5722, %v5970
  %v6141 = vmul.f32 %v5724, %v5974
  %v6142 = vmul.f32 %v5726, %v5978
  %v6143 = vmul.f32 %v5728, %v5982
  %v6144 = vmul.f32 %v5730, %v5986
  %v6145 = vmul.f32 %v5732, %v5990
  %v6146 = vmul.f32 %v5734, %v5994
  %v6147 = vmul.f32 %v5736, %v5998
  %v6148 = vmul.f32 %v5738, %v6002
  %v6149 = vmul.f32 %v5740, %v6006
  %v6150 = vmul.f32 %v5742, %v6010
  %v6151 = vmul.f32 %v5744, %v6014
  %v6152 = vmul.f32 %v5746, %v6018
  %v6153 = vmul.f32 %v5748, %v6022
  %v6154 = vmul.f32 %v5750, %v6026
  %v6155 = vmul.f32 %v5752, %v6030
  %v6156 = vmul.f32 %v5754, %v6034
  %v6157 = vmul.f32 %v5756, %v6038
  %v6158 = vmul.f32 %v5758, %v6042
  %v6159 = vmul.f32 %v5760, %v6046
  %v6160 = vmul.f32 %v5762, %v6050
  %v6161 = vmul.f32 %v5764, %v6054
  %v6162 = vmul.f32 %v5766, %v6058
  %v6163 = vmul.f32 %v5768, %v6062
  %v6164 = vmul.f32 %v5770, %v6066
  %v6165 = vmul.f32 %v5772, %v6070
  %v6166 = vmul.f32 %v5774, %v6074
  %v6167 = vmul.f32 %v5776, %v6078
  %v6168 = vmul.f32 %v5778, %v6082
  %v6169 = vmul.f32 %v5780, %v6086
  %v6170 = vmul.f32 %v5782, %v6090
  %v6171 = vmul.f32 %v5784, %v6094
  %v6172 = vmul.f32 %v5786, %v6098
  %v6173 = vmul.f32 %v5788, %v6102
  %v6174 = vmul.f32 %v5790, %v6106
  %v6175 = vmul.f32 %v5855, %v6110
  %v6176 = vmul.f32 %v6112, %v3431
  %v6177 = vmul.f32 %v6113, %v3435
  %v6178 = vmul.f32 %v6114, %v3439
  %v6179 = vmul.f32 %v6115, %v3443
  %v6180 = vmul.f32 %v6116, %v3447
  %v6181 = vmul.f32 %v6117, %v3451
  %v6182 = vmul.f32 %v6118, %v3455
  %v6183 = vmul.f32 %v6119, %v3459
  %v6184 = vmul.f32 %v6120, %v3463
  %v6185 = vmul.f32 %v6121, %v3467
  %v6186 = vmul.f32 %v6122, %v3471
  %v6187 = vmul.f32 %v6123, %v3475
  %v6188 = vmul.f32 %v6124, %v3479
  %v6189 = vmul.f32 %v6125, %v3483
  %v6190 = vmul.f32 %v6126, %v3487
  %v6191 = vmul.f32 %v6127, %v3491
  %v6192 = vmul.f32 %v6128, %v3495
  %v6193 = vmul.f32 %v6129, %v3499
  %v6194 = vmul.f32 %v6130, %v3503
  %v6195 = vmul.f32 %v6131, %v3507
  %v6196 = vmul.f32 %v6132, %v3511
  %v6197 = vmul.f32 %v6133, %v3515
  %v6198 = vmul.f32 %v6134, %v3519
  %v6199 = vmul.f32 %v6135, %v3523
  %v6200 = vmul.f32 %v6136, %v3527
  %v6201 = vmul.f32 %v6137, %v3531
  %v6202 = vmul.f32 %v6138, %v3535
  %v6203 = vmul.f32 %v6139, %v3539
  %v6204 = vmul.f32 %v6140, %v3543
  %v6205 = vmul.f32 %v6141, %v3547
  %v6206 = vmul.f32 %v6142, %v3551
  %v6207 = vmul.f32 %v6143, %v3555
  %v6208 = vmul.f32 %v6144, %v3559
  %v6209 = vmul.f32 %v6145, %v3563
  %v6210 = vmul.f32 %v6146, %v3567
  %v6211 = vmul.f32 %v6147, %v3571
  %v6212 = vmul.f32 %v6148, %v3575
  %v6213 = vmul.f32 %v6149, %v3579
  %v6214 = vmul.f32 %v6150, %v3583
  %v6215 = vmul.f32 %v6151, %v3587
  %v6216 = vmul.f32 %v6152, %v3591
  %v6217 = vmul.f32 %v6153, %v3595
  %v6218 = vmul.f32 %v6154, %v3599
  %v6219 = vmul.f32 %v6155, %v3603
  %v6220 = vmul.f32 %v6156, %v3607
  %v6221 = vmul.f32 %v6157, %v3611
  %v6222 = vmul.f32 %v6158, %v3615
  %v6223 = vmul.f32 %v6159, %v3619
  %v6224 = vmul.f32 %v6160, %v3623
  %v6225 = vmul.f32 %v6161, %v3627
  %v6226 = vmul.f32 %v6162, %v3631
  %v6227 = vmul.f32 %v6163, %v3635
  %v6228 = vmul.f32 %v6164, %v3639
  %v6229 = vmul.f32 %v6165, %v3643
  %v6230 = vmul.f32 %v6166, %v3647
  %v6231 = vmul.f32 %v6167, %v3651
  %v6232 = vmul.f32 %v6168, %v3655
  %v6233 = vmul.f32 %v6169, %v3659
  %v6234 = vmul.f32 %v6170, %v3663
  %v6235 = vmul.f32 %v6171, %v3667
  %v6236 = vmul.f32 %v6172, %v3671
  %v6237 = vmul.f32 %v6173, %v3675
  %v6238 = vperm.slane %v2778, 2
  %v6239 = vmul.f32 %v3677, %v6238
  %v6240 = vmul.f32 %v3678, %v6238
  %v6241 = vmul.f32 %v6176, %v6238
  %v6242 = vmul.f32 %v6177, %v6238
  %v6243 = vmul.f32 %v6178, %v6238
  %v6244 = vmul.f32 %v6179, %v6238
  %v6245 = vmul.f32 %v6180, %v6238
  %v6246 = vmul.f32 %v6181, %v6238
  %v6247 = vmul.f32 %v6182, %v6238
  %v6248 = vmul.f32 %v6183, %v6238
  %v6249 = vmul.f32 %v6184, %v6238
  %v6250 = vmul.f32 %v6185, %v6238
  %v6251 = vmul.f32 %v6186, %v6238
  %v6252 = vmul.f32 %v6187, %v6238
  %v6253 = vmul.f32 %v6188, %v6238
  %v6254 = vmul.f32 %v6189, %v6238
  %v6255 = vmul.f32 %v6190, %v6238
  %v6256 = vmul.f32 %v6191, %v6238
  %v6257 = vmul.f32 %v6192, %v6238
  %v6258 = vmul.f32 %v6193, %v6238
  %v6259 = vmul.f32 %v6194, %v6238
  %v6260 = vmul.f32 %v6195, %v6238
  %v6261 = vmul.f32 %v6196, %v6238
  %v6262 = vmul.f32 %v6197, %v6238
  %v6263 = vmul.f32 %v6198, %v6238
  %v6264 = vmul.f32 %v6199, %v6238
  %v6265 = vmul.f32 %v6200, %v6238
  %v6266 = vmul.f32 %v6201, %v6238
  %v6267 = vmul.f32 %v6202, %v6238
  %v6268 = vmul.f32 %v6203, %v6238
  %v6269 = vmul.f32 %v6204, %v6238
  %v6270 = vmul.f32 %v6205, %v6238
  %v6271 = vmul.f32 %v6206, %v6238
  %v6272 = vmul.f32 %v6207, %v6238
  %v6273 = vmul.f32 %v6208, %v6238
  %v6274 = vmul.f32 %v6209, %v6238
  %v6275 = vmul.f32 %v6210, %v6238
  %v6276 = vmul.f32 %v6211, %v6238
  %v6277 = vmul.f32 %v6212, %v6238
  %v6278 = vmul.f32 %v6213, %v6238
  %v6279 = vmul.f32 %v6214, %v6238
  %v6280 = vmul.f32 %v6215, %v6238
  %v6281 = vmul.f32 %v6216, %v6238
  %v6282 = vmul.f32 %v6217, %v6238
  %v6283 = vmul.f32 %v6218, %v6238
  %v6284 = vmul.f32 %v6219, %v6238
  %v6285 = vmul.f32 %v6220, %v6238
  %v6286 = vmul.f32 %v6221, %v6238
  %v6287 = vmul.f32 %v6222, %v6238
  %v6288 = vmul.f32 %v6223, %v6238
  %v6289 = vmul.f32 %v6224, %v6238
  %v6290 = vmul.f32 %v6225, %v6238
  %v6291 = vmul.f32 %v6226, %v6238
  %v6292 = vmul.f32 %v6227, %v6238
  %v6293 = vmul.f32 %v6228, %v6238
  %v6294 = vmul.f32 %v6229, %v6238
  %v6295 = vmul.f32 %v6230, %v6238
  %v6296 = vmul.f32 %v6231, %v6238
  %v6297 = vmul.f32 %v6232, %v6238
  %v6298 = vmul.f32 %v6233, %v6238
  %v6299 = vmul.f32 %v6234, %v6238
  %v6300 = vmul.f32 %v6235, %v6238
  %v6301 = vmul.f32 %v6236, %v6238
  %v6302 = vmul.f32 %v6237, %v6238
  %v6303 = vadd.f32 %v5599, %v6239
  %v6304 = vadd.f32 %v5600, %v6240
  %v6305 = vadd.f32 %v5601, %v6241
  %v6306 = vadd.f32 %v5602, %v6242
  %v6307 = vadd.f32 %v5603, %v6243
  %v6308 = vadd.f32 %v5604, %v6244
  %v6309 = vadd.f32 %v5605, %v6245
  %v6310 = vadd.f32 %v5606, %v6246
  %v6311 = vadd.f32 %v5607, %v6247
  %v6312 = vadd.f32 %v5608, %v6248
  %v6313 = vadd.f32 %v5609, %v6249
  %v6314 = vadd.f32 %v5610, %v6250
  %v6315 = vadd.f32 %v5611, %v6251
  %v6316 = vadd.f32 %v5612, %v6252
  %v6317 = vadd.f32 %v5613, %v6253
  %v6318 = vadd.f32 %v5614, %v6254
  %v6319 = vadd.f32 %v5615, %v6255
  %v6320 = vadd.f32 %v5616, %v6256
  %v6321 = vadd.f32 %v5617, %v6257
  %v6322 = vadd.f32 %v5618, %v6258
  %v6323 = vadd.f32 %v5619, %v6259
  %v6324 = vadd.f32 %v5620, %v6260
  %v6325 = vadd.f32 %v5621, %v6261
  %v6326 = vadd.f32 %v5622, %v6262
  %v6327 = vadd.f32 %v5623, %v6263
  %v6328 = vadd.f32 %v5624, %v6264
  %v6329 = vadd.f32 %v5625, %v6265
  %v6330 = vadd.f32 %v5626, %v6266
  %v6331 = vadd.f32 %v5627, %v6267
  %v6332 = vadd.f32 %v5628, %v6268
  %v6333 = vadd.f32 %v5629, %v6269
  %v6334 = vadd.f32 %v5630, %v6270
  %v6335 = vadd.f32 %v5631, %v6271
  %v6336 = vadd.f32 %v5632, %v6272
  %v6337 = vadd.f32 %v5633, %v6273
  %v6338 = vadd.f32 %v5634, %v6274
  %v6339 = vadd.f32 %v5635, %v6275
  %v6340 = vadd.f32 %v5636, %v6276
  %v6341 = vadd.f32 %v5637, %v6277
  %v6342 = vadd.f32 %v5638, %v6278
  %v6343 = vadd.f32 %v5639, %v6279
  %v6344 = vadd.f32 %v5640, %v6280
  %v6345 = vadd.f32 %v5641, %v6281
  %v6346 = vadd.f32 %v5642, %v6282
  %v6347 = vadd.f32 %v5643, %v6283
  %v6348 = vadd.f32 %v5644, %v6284
  %v6349 = vadd.f32 %v5645, %v6285
  %v6350 = vadd.f32 %v5646, %v6286
  %v6351 = vadd.f32 %v5647, %v6287
  %v6352 = vadd.f32 %v5648, %v6288
  %v6353 = vadd.f32 %v5649, %v6289
  %v6354 = vadd.f32 %v5650, %v6290
  %v6355 = vadd.f32 %v5651, %v6291
  %v6356 = vadd.f32 %v5652, %v6292
  %v6357 = vadd.f32 %v5653, %v6293
  %v6358 = vadd.f32 %v5654, %v6294
  %v6359 = vadd.f32 %v5655, %v6295
  %v6360 = vadd.f32 %v5656, %v6296
  %v6361 = vadd.f32 %v5657, %v6297
  %v6362 = vadd.f32 %v5658, %v6298
  %v6363 = vadd.f32 %v5659, %v6299
  %v6364 = vadd.f32 %v5660, %v6300
  %v6365 = vadd.f32 %v5661, %v6301
  %v6366 = vadd.f32 %v5662, %v6302
  %v6367 = vmul.f32 %v6112, %v3872
  %v6368 = vmul.f32 %v6113, %v3876
  %v6369 = vmul.f32 %v6114, %v3880
  %v6370 = vmul.f32 %v6115, %v3884
  %v6371 = vmul.f32 %v6116, %v3888
  %v6372 = vmul.f32 %v6117, %v3892
  %v6373 = vmul.f32 %v6118, %v3896
  %v6374 = vmul.f32 %v6119, %v3900
  %v6375 = vmul.f32 %v6120, %v3904
  %v6376 = vmul.f32 %v6121, %v3908
  %v6377 = vmul.f32 %v6122, %v3912
  %v6378 = vmul.f32 %v6123, %v3916
  %v6379 = vmul.f32 %v6124, %v3920
  %v6380 = vmul.f32 %v6125, %v3924
  %v6381 = vmul.f32 %v6126, %v3928
  %v6382 = vmul.f32 %v6127, %v3932
  %v6383 = vmul.f32 %v6128, %v3936
  %v6384 = vmul.f32 %v6129, %v3940
  %v6385 = vmul.f32 %v6130, %v3944
  %v6386 = vmul.f32 %v6131, %v3948
  %v6387 = vmul.f32 %v6132, %v3952
  %v6388 = vmul.f32 %v6133, %v3956
  %v6389 = vmul.f32 %v6134, %v3960
  %v6390 = vmul.f32 %v6135, %v3964
  %v6391 = vmul.f32 %v6136, %v3968
  %v6392 = vmul.f32 %v6137, %v3972
  %v6393 = vmul.f32 %v6138, %v3976
  %v6394 = vmul.f32 %v6139, %v3980
  %v6395 = vmul.f32 %v6140, %v3984
  %v6396 = vmul.f32 %v6141, %v3988
  %v6397 = vmul.f32 %v6142, %v3992
  %v6398 = vmul.f32 %v6143, %v3996
  %v6399 = vmul.f32 %v6144, %v4000
  %v6400 = vmul.f32 %v6145, %v4004
  %v6401 = vmul.f32 %v6146, %v4008
  %v6402 = vmul.f32 %v6147, %v4012
  %v6403 = vmul.f32 %v6148, %v4016
  %v6404 = vmul.f32 %v6149, %v4020
  %v6405 = vmul.f32 %v6150, %v4024
  %v6406 = vmul.f32 %v6151, %v4028
  %v6407 = vmul.f32 %v6152, %v4032
  %v6408 = vmul.f32 %v6153, %v4036
  %v6409 = vmul.f32 %v6154, %v4040
  %v6410 = vmul.f32 %v6155, %v4044
  %v6411 = vmul.f32 %v6156, %v4048
  %v6412 = vmul.f32 %v6157, %v4052
  %v6413 = vmul.f32 %v6158, %v4056
  %v6414 = vmul.f32 %v6159, %v4060
  %v6415 = vmul.f32 %v6160, %v4064
  %v6416 = vmul.f32 %v6161, %v4068
  %v6417 = vmul.f32 %v6162, %v4072
  %v6418 = vmul.f32 %v6163, %v4076
  %v6419 = vmul.f32 %v6164, %v4080
  %v6420 = vmul.f32 %v6165, %v4084
  %v6421 = vmul.f32 %v6166, %v4088
  %v6422 = vmul.f32 %v6167, %v4092
  %v6423 = vmul.f32 %v6168, %v4096
  %v6424 = vmul.f32 %v6169, %v4100
  %v6425 = vmul.f32 %v6170, %v4104
  %v6426 = vmul.f32 %v6171, %v4108
  %v6427 = vmul.f32 %v6172, %v4112
  %v6428 = vmul.f32 %v6173, %v4116
  %v6429 = vmul.f32 %v6174, %v4120
  %v6430 = vmul.f32 %v6175, %v4124
  %v6431 = vperm.slane %v2778, 5
  %v6432 = vmul.f32 %v6367, %v6431
  %v6433 = vmul.f32 %v6368, %v6431
  %v6434 = vmul.f32 %v6369, %v6431
  %v6435 = vmul.f32 %v6370, %v6431
  %v6436 = vmul.f32 %v6371, %v6431
  %v6437 = vmul.f32 %v6372, %v6431
  %v6438 = vmul.f32 %v6373, %v6431
  %v6439 = vmul.f32 %v6374, %v6431
  %v6440 = vmul.f32 %v6375, %v6431
  %v6441 = vmul.f32 %v6376, %v6431
  %v6442 = vmul.f32 %v6377, %v6431
  %v6443 = vmul.f32 %v6378, %v6431
  %v6444 = vmul.f32 %v6379, %v6431
  %v6445 = vmul.f32 %v6380, %v6431
  %v6446 = vmul.f32 %v6381, %v6431
  %v6447 = vmul.f32 %v6382, %v6431
  %v6448 = vmul.f32 %v6383, %v6431
  %v6449 = vmul.f32 %v6384, %v6431
  %v6450 = vmul.f32 %v6385, %v6431
  %v6451 = vmul.f32 %v6386, %v6431
  %v6452 = vmul.f32 %v6387, %v6431
  %v6453 = vmul.f32 %v6388, %v6431
  %v6454 = vmul.f32 %v6389, %v6431
  %v6455 = vmul.f32 %v6390, %v6431
  %v6456 = vmul.f32 %v6391, %v6431
  %v6457 = vmul.f32 %v6392, %v6431
  %v6458 = vmul.f32 %v6393, %v6431
  %v6459 = vmul.f32 %v6394, %v6431
  %v6460 = vmul.f32 %v6395, %v6431
  %v6461 = vmul.f32 %v6396, %v6431
  %v6462 = vmul.f32 %v6397, %v6431
  %v6463 = vmul.f32 %v6398, %v6431
  %v6464 = vmul.f32 %v6399, %v6431
  %v6465 = vmul.f32 %v6400, %v6431
  %v6466 = vmul.f32 %v6401, %v6431
  %v6467 = vmul.f32 %v6402, %v6431
  %v6468 = vmul.f32 %v6403, %v6431
  %v6469 = vmul.f32 %v6404, %v6431
  %v6470 = vmul.f32 %v6405, %v6431
  %v6471 = vmul.f32 %v6406, %v6431
  %v6472 = vmul.f32 %v6407, %v6431
  %v6473 = vmul.f32 %v6408, %v6431
  %v6474 = vmul.f32 %v6409, %v6431
  %v6475 = vmul.f32 %v6410, %v6431
  %v6476 = vmul.f32 %v6411, %v6431
  %v6477 = vmul.f32 %v6412, %v6431
  %v6478 = vmul.f32 %v6413, %v6431
  %v6479 = vmul.f32 %v6414, %v6431
  %v6480 = vmul.f32 %v6415, %v6431
  %v6481 = vmul.f32 %v6416, %v6431
  %v6482 = vmul.f32 %v6417, %v6431
  %v6483 = vmul.f32 %v6418, %v6431
  %v6484 = vmul.f32 %v6419, %v6431
  %v6485 = vmul.f32 %v6420, %v6431
  %v6486 = vmul.f32 %v6421, %v6431
  %v6487 = vmul.f32 %v6422, %v6431
  %v6488 = vmul.f32 %v6423, %v6431
  %v6489 = vmul.f32 %v6424, %v6431
  %v6490 = vmul.f32 %v6425, %v6431
  %v6491 = vmul.f32 %v6426, %v6431
  %v6492 = vmul.f32 %v6427, %v6431
  %v6493 = vmul.f32 %v6428, %v6431
  %v6494 = vmul.f32 %v6429, %v6431
  %v6495 = vmul.f32 %v6430, %v6431
  %v6496 = vadd.f32 %v6303, %v6432
  %v6497 = vadd.f32 %v6304, %v6433
  %v6498 = vadd.f32 %v6305, %v6434
  %v6499 = vadd.f32 %v6306, %v6435
  %v6500 = vadd.f32 %v6307, %v6436
  %v6501 = vadd.f32 %v6308, %v6437
  %v6502 = vadd.f32 %v6309, %v6438
  %v6503 = vadd.f32 %v6310, %v6439
  %v6504 = vadd.f32 %v6311, %v6440
  %v6505 = vadd.f32 %v6312, %v6441
  %v6506 = vadd.f32 %v6313, %v6442
  %v6507 = vadd.f32 %v6314, %v6443
  %v6508 = vadd.f32 %v6315, %v6444
  %v6509 = vadd.f32 %v6316, %v6445
  %v6510 = vadd.f32 %v6317, %v6446
  %v6511 = vadd.f32 %v6318, %v6447
  %v6512 = vadd.f32 %v6319, %v6448
  %v6513 = vadd.f32 %v6320, %v6449
  %v6514 = vadd.f32 %v6321, %v6450
  %v6515 = vadd.f32 %v6322, %v6451
  %v6516 = vadd.f32 %v6323, %v6452
  %v6517 = vadd.f32 %v6324, %v6453
  %v6518 = vadd.f32 %v6325, %v6454
  %v6519 = vadd.f32 %v6326, %v6455
  %v6520 = vadd.f32 %v6327, %v6456
  %v6521 = vadd.f32 %v6328, %v6457
  %v6522 = vadd.f32 %v6329, %v6458
  %v6523 = vadd.f32 %v6330, %v6459
  %v6524 = vadd.f32 %v6331, %v6460
  %v6525 = vadd.f32 %v6332, %v6461
  %v6526 = vadd.f32 %v6333, %v6462
  %v6527 = vadd.f32 %v6334, %v6463
  %v6528 = vadd.f32 %v6335, %v6464
  %v6529 = vadd.f32 %v6336, %v6465
  %v6530 = vadd.f32 %v6337, %v6466
  %v6531 = vadd.f32 %v6338, %v6467
  %v6532 = vadd.f32 %v6339, %v6468
  %v6533 = vadd.f32 %v6340, %v6469
  %v6534 = vadd.f32 %v6341, %v6470
  %v6535 = vadd.f32 %v6342, %v6471
  %v6536 = vadd.f32 %v6343, %v6472
  %v6537 = vadd.f32 %v6344, %v6473
  %v6538 = vadd.f32 %v6345, %v6474
  %v6539 = vadd.f32 %v6346, %v6475
  %v6540 = vadd.f32 %v6347, %v6476
  %v6541 = vadd.f32 %v6348, %v6477
  %v6542 = vadd.f32 %v6349, %v6478
  %v6543 = vadd.f32 %v6350, %v6479
  %v6544 = vadd.f32 %v6351, %v6480
  %v6545 = vadd.f32 %v6352, %v6481
  %v6546 = vadd.f32 %v6353, %v6482
  %v6547 = vadd.f32 %v6354, %v6483
  %v6548 = vadd.f32 %v6355, %v6484
  %v6549 = vadd.f32 %v6356, %v6485
  %v6550 = vadd.f32 %v6357, %v6486
  %v6551 = vadd.f32 %v6358, %v6487
  %v6552 = vadd.f32 %v6359, %v6488
  %v6553 = vadd.f32 %v6360, %v6489
  %v6554 = vadd.f32 %v6361, %v6490
  %v6555 = vadd.f32 %v6362, %v6491
  %v6556 = vadd.f32 %v6363, %v6492
  %v6557 = vadd.f32 %v6364, %v6493
  %v6558 = vadd.f32 %v6365, %v6494
  %v6559 = vadd.f32 %v6366, %v6495
  %v6560 = vmul.f32 %v6114, %v4321
  %v6561 = vmul.f32 %v6115, %v4325
  %v6562 = vmul.f32 %v6116, %v4329
  %v6563 = vmul.f32 %v6117, %v4333
  %v6564 = vmul.f32 %v6118, %v4337
  %v6565 = vmul.f32 %v6119, %v4341
  %v6566 = vmul.f32 %v6120, %v4345
  %v6567 = vmul.f32 %v6121, %v4349
  %v6568 = vmul.f32 %v6122, %v4353
  %v6569 = vmul.f32 %v6123, %v4357
  %v6570 = vmul.f32 %v6124, %v4361
  %v6571 = vmul.f32 %v6125, %v4365
  %v6572 = vmul.f32 %v6126, %v4369
  %v6573 = vmul.f32 %v6127, %v4373
  %v6574 = vmul.f32 %v6128, %v4377
  %v6575 = vmul.f32 %v6129, %v4381
  %v6576 = vmul.f32 %v6130, %v4385
  %v6577 = vmul.f32 %v6131, %v4389
  %v6578 = vmul.f32 %v6132, %v4393
  %v6579 = vmul.f32 %v6133, %v4397
  %v6580 = vmul.f32 %v6134, %v4401
  %v6581 = vmul.f32 %v6135, %v4405
  %v6582 = vmul.f32 %v6136, %v4409
  %v6583 = vmul.f32 %v6137, %v4413
  %v6584 = vmul.f32 %v6138, %v4417
  %v6585 = vmul.f32 %v6139, %v4421
  %v6586 = vmul.f32 %v6140, %v4425
  %v6587 = vmul.f32 %v6141, %v4429
  %v6588 = vmul.f32 %v6142, %v4433
  %v6589 = vmul.f32 %v6143, %v4437
  %v6590 = vmul.f32 %v6144, %v4441
  %v6591 = vmul.f32 %v6145, %v4445
  %v6592 = vmul.f32 %v6146, %v4449
  %v6593 = vmul.f32 %v6147, %v4453
  %v6594 = vmul.f32 %v6148, %v4457
  %v6595 = vmul.f32 %v6149, %v4461
  %v6596 = vmul.f32 %v6150, %v4465
  %v6597 = vmul.f32 %v6151, %v4469
  %v6598 = vmul.f32 %v6152, %v4473
  %v6599 = vmul.f32 %v6153, %v4477
  %v6600 = vmul.f32 %v6154, %v4481
  %v6601 = vmul.f32 %v6155, %v4485
  %v6602 = vmul.f32 %v6156, %v4489
  %v6603 = vmul.f32 %v6157, %v4493
  %v6604 = vmul.f32 %v6158, %v4497
  %v6605 = vmul.f32 %v6159, %v4501
  %v6606 = vmul.f32 %v6160, %v4505
  %v6607 = vmul.f32 %v6161, %v4509
  %v6608 = vmul.f32 %v6162, %v4513
  %v6609 = vmul.f32 %v6163, %v4517
  %v6610 = vmul.f32 %v6164, %v4521
  %v6611 = vmul.f32 %v6165, %v4525
  %v6612 = vmul.f32 %v6166, %v4529
  %v6613 = vmul.f32 %v6167, %v4533
  %v6614 = vmul.f32 %v6168, %v4537
  %v6615 = vmul.f32 %v6169, %v4541
  %v6616 = vmul.f32 %v6170, %v4545
  %v6617 = vmul.f32 %v6171, %v4549
  %v6618 = vmul.f32 %v6172, %v4553
  %v6619 = vmul.f32 %v6173, %v4557
  %v6620 = vmul.f32 %v6174, %v4561
  %v6621 = vmul.f32 %v6175, %v4565
  %v6622 = vperm.slane %v2779, 0
  %v6623 = vmul.f32 %v6560, %v6622
  %v6624 = vmul.f32 %v6561, %v6622
  %v6625 = vmul.f32 %v6562, %v6622
  %v6626 = vmul.f32 %v6563, %v6622
  %v6627 = vmul.f32 %v6564, %v6622
  %v6628 = vmul.f32 %v6565, %v6622
  %v6629 = vmul.f32 %v6566, %v6622
  %v6630 = vmul.f32 %v6567, %v6622
  %v6631 = vmul.f32 %v6568, %v6622
  %v6632 = vmul.f32 %v6569, %v6622
  %v6633 = vmul.f32 %v6570, %v6622
  %v6634 = vmul.f32 %v6571, %v6622
  %v6635 = vmul.f32 %v6572, %v6622
  %v6636 = vmul.f32 %v6573, %v6622
  %v6637 = vmul.f32 %v6574, %v6622
  %v6638 = vmul.f32 %v6575, %v6622
  %v6639 = vmul.f32 %v6576, %v6622
  %v6640 = vmul.f32 %v6577, %v6622
  %v6641 = vmul.f32 %v6578, %v6622
  %v6642 = vmul.f32 %v6579, %v6622
  %v6643 = vmul.f32 %v6580, %v6622
  %v6644 = vmul.f32 %v6581, %v6622
  %v6645 = vmul.f32 %v6582, %v6622
  %v6646 = vmul.f32 %v6583, %v6622
  %v6647 = vmul.f32 %v6584, %v6622
  %v6648 = vmul.f32 %v6585, %v6622
  %v6649 = vmul.f32 %v6586, %v6622
  %v6650 = vmul.f32 %v6587, %v6622
  %v6651 = vmul.f32 %v6588, %v6622
  %v6652 = vmul.f32 %v6589, %v6622
  %v6653 = vmul.f32 %v6590, %v6622
  %v6654 = vmul.f32 %v6591, %v6622
  %v6655 = vmul.f32 %v6592, %v6622
  %v6656 = vmul.f32 %v6593, %v6622
  %v6657 = vmul.f32 %v6594, %v6622
  %v6658 = vmul.f32 %v6595, %v6622
  %v6659 = vmul.f32 %v6596, %v6622
  %v6660 = vmul.f32 %v6597, %v6622
  %v6661 = vmul.f32 %v6598, %v6622
  %v6662 = vmul.f32 %v6599, %v6622
  %v6663 = vmul.f32 %v6600, %v6622
  %v6664 = vmul.f32 %v6601, %v6622
  %v6665 = vmul.f32 %v6602, %v6622
  %v6666 = vmul.f32 %v6603, %v6622
  %v6667 = vmul.f32 %v6604, %v6622
  %v6668 = vmul.f32 %v6605, %v6622
  %v6669 = vmul.f32 %v6606, %v6622
  %v6670 = vmul.f32 %v6607, %v6622
  %v6671 = vmul.f32 %v6608, %v6622
  %v6672 = vmul.f32 %v6609, %v6622
  %v6673 = vmul.f32 %v6610, %v6622
  %v6674 = vmul.f32 %v6611, %v6622
  %v6675 = vmul.f32 %v6612, %v6622
  %v6676 = vmul.f32 %v6613, %v6622
  %v6677 = vmul.f32 %v6614, %v6622
  %v6678 = vmul.f32 %v6615, %v6622
  %v6679 = vmul.f32 %v6616, %v6622
  %v6680 = vmul.f32 %v6617, %v6622
  %v6681 = vmul.f32 %v6618, %v6622
  %v6682 = vmul.f32 %v6619, %v6622
  %v6683 = vmul.f32 %v6620, %v6622
  %v6684 = vmul.f32 %v6621, %v6622
  %v6685 = vmul.f32 %v4637, %v6622
  %v6686 = vmul.f32 %v4638, %v6622
  %v6687 = vadd.f32 %v6496, %v6623
  %v6688 = vadd.f32 %v6497, %v6624
  %v6689 = vadd.f32 %v6498, %v6625
  %v6690 = vadd.f32 %v6499, %v6626
  %v6691 = vadd.f32 %v6500, %v6627
  %v6692 = vadd.f32 %v6501, %v6628
  %v6693 = vadd.f32 %v6502, %v6629
  %v6694 = vadd.f32 %v6503, %v6630
  %v6695 = vadd.f32 %v6504, %v6631
  %v6696 = vadd.f32 %v6505, %v6632
  %v6697 = vadd.f32 %v6506, %v6633
  %v6698 = vadd.f32 %v6507, %v6634
  %v6699 = vadd.f32 %v6508, %v6635
  %v6700 = vadd.f32 %v6509, %v6636
  %v6701 = vadd.f32 %v6510, %v6637
  %v6702 = vadd.f32 %v6511, %v6638
  %v6703 = vadd.f32 %v6512, %v6639
  %v6704 = vadd.f32 %v6513, %v6640
  %v6705 = vadd.f32 %v6514, %v6641
  %v6706 = vadd.f32 %v6515, %v6642
  %v6707 = vadd.f32 %v6516, %v6643
  %v6708 = vadd.f32 %v6517, %v6644
  %v6709 = vadd.f32 %v6518, %v6645
  %v6710 = vadd.f32 %v6519, %v6646
  %v6711 = vadd.f32 %v6520, %v6647
  %v6712 = vadd.f32 %v6521, %v6648
  %v6713 = vadd.f32 %v6522, %v6649
  %v6714 = vadd.f32 %v6523, %v6650
  %v6715 = vadd.f32 %v6524, %v6651
  %v6716 = vadd.f32 %v6525, %v6652
  %v6717 = vadd.f32 %v6526, %v6653
  %v6718 = vadd.f32 %v6527, %v6654
  %v6719 = vadd.f32 %v6528, %v6655
  %v6720 = vadd.f32 %v6529, %v6656
  %v6721 = vadd.f32 %v6530, %v6657
  %v6722 = vadd.f32 %v6531, %v6658
  %v6723 = vadd.f32 %v6532, %v6659
  %v6724 = vadd.f32 %v6533, %v6660
  %v6725 = vadd.f32 %v6534, %v6661
  %v6726 = vadd.f32 %v6535, %v6662
  %v6727 = vadd.f32 %v6536, %v6663
  %v6728 = vadd.f32 %v6537, %v6664
  %v6729 = vadd.f32 %v6538, %v6665
  %v6730 = vadd.f32 %v6539, %v6666
  %v6731 = vadd.f32 %v6540, %v6667
  %v6732 = vadd.f32 %v6541, %v6668
  %v6733 = vadd.f32 %v6542, %v6669
  %v6734 = vadd.f32 %v6543, %v6670
  %v6735 = vadd.f32 %v6544, %v6671
  %v6736 = vadd.f32 %v6545, %v6672
  %v6737 = vadd.f32 %v6546, %v6673
  %v6738 = vadd.f32 %v6547, %v6674
  %v6739 = vadd.f32 %v6548, %v6675
  %v6740 = vadd.f32 %v6549, %v6676
  %v6741 = vadd.f32 %v6550, %v6677
  %v6742 = vadd.f32 %v6551, %v6678
  %v6743 = vadd.f32 %v6552, %v6679
  %v6744 = vadd.f32 %v6553, %v6680
  %v6745 = vadd.f32 %v6554, %v6681
  %v6746 = vadd.f32 %v6555, %v6682
  %v6747 = vadd.f32 %v6556, %v6683
  %v6748 = vadd.f32 %v6557, %v6684
  %v6749 = vadd.f32 %v6558, %v6685
  %v6750 = vadd.f32 %v6559, %v6686
  %6751 = vrot.lane.b32.xlu0 %v160, 104
  %v6752 = vpop.permute.xlu0 %6751
  %v6754 = vadd.f32 %v6687, %v6752
  %v6755 = vadd.f32 %v6688, %v6752
  %v6756 = vadd.f32 %v6689, %v6752
  %v6757 = vadd.f32 %v6690, %v6752
  %v6758 = vadd.f32 %v6691, %v6752
  %v6759 = vadd.f32 %v6692, %v6752
  %v6760 = vadd.f32 %v6693, %v6752
  %v6761 = vadd.f32 %v6694, %v6752
  %v6762 = vadd.f32 %v6695, %v6752
  %v6763 = vadd.f32 %v6696, %v6752
  %v6764 = vadd.f32 %v6697, %v6752
  %v6765 = vadd.f32 %v6698, %v6752
  %v6766 = vadd.f32 %v6699, %v6752
  %v6767 = vadd.f32 %v6700, %v6752
  %v6768 = vadd.f32 %v6701, %v6752
  %v6769 = vadd.f32 %v6702, %v6752
  %v6770 = vadd.f32 %v6703, %v6752
  %v6771 = vadd.f32 %v6704, %v6752
  %v6772 = vadd.f32 %v6705, %v6752
  %v6773 = vadd.f32 %v6706, %v6752
  %v6774 = vadd.f32 %v6707, %v6752
  %v6775 = vadd.f32 %v6708, %v6752
  %v6776 = vadd.f32 %v6709, %v6752
  %v6777 = vadd.f32 %v6710, %v6752
  %v6778 = vadd.f32 %v6711, %v6752
  %v6779 = vadd.f32 %v6712, %v6752
  %v6780 = vadd.f32 %v6713, %v6752
  %v6781 = vadd.f32 %v6714, %v6752
  %v6782 = vadd.f32 %v6715, %v6752
  %v6783 = vadd.f32 %v6716, %v6752
  %v6784 = vadd.f32 %v6717, %v6752
  %v6785 = vadd.f32 %v6718, %v6752
  %v6786 = vadd.f32 %v6719, %v6752
  %v6787 = vadd.f32 %v6720, %v6752
  %v6788 = vadd.f32 %v6721, %v6752
  %v6789 = vadd.f32 %v6722, %v6752
  %v6790 = vadd.f32 %v6723, %v6752
  %v6791 = vadd.f32 %v6724, %v6752
  %v6792 = vadd.f32 %v6725, %v6752
  %v6793 = vadd.f32 %v6726, %v6752
  %v6794 = vadd.f32 %v6727, %v6752
  %v6795 = vadd.f32 %v6728, %v6752
  %v6796 = vadd.f32 %v6729, %v6752
  %v6797 = vadd.f32 %v6730, %v6752
  %v6798 = vadd.f32 %v6731, %v6752
  %v6799 = vadd.f32 %v6732, %v6752
  %v6800 = vadd.f32 %v6733, %v6752
  %v6801 = vadd.f32 %v6734, %v6752
  %v6802 = vadd.f32 %v6735, %v6752
  %v6803 = vadd.f32 %v6736, %v6752
  %v6804 = vadd.f32 %v6737, %v6752
  %v6805 = vadd.f32 %v6738, %v6752
  %v6806 = vadd.f32 %v6739, %v6752
  %v6807 = vadd.f32 %v6740, %v6752
  %v6808 = vadd.f32 %v6741, %v6752
  %v6809 = vadd.f32 %v6742, %v6752
  %v6810 = vadd.f32 %v6743, %v6752
  %v6811 = vadd.f32 %v6744, %v6752
  %v6812 = vadd.f32 %v6745, %v6752
  %v6813 = vadd.f32 %v6746, %v6752
  %v6814 = vadd.f32 %v6747, %v6752
  %v6815 = vadd.f32 %v6748, %v6752
  %v6816 = vadd.f32 %v6749, %v6752
  %v6817 = vadd.f32 %v6750, %v6752
  %6818 = vset.pattern.permute.xlu0 6
  %6819 = vperm.xlu0 %6818, %v93
  %v6820 = vpop.permute.xlu0 %6819
  %6822 = vset.pattern.permute.xlu0 6
  %6823 = vperm.xlu0 %6822, %v94
  %v6824 = vpop.permute.xlu0 %6823
  %6826 = vset.pattern.permute.xlu0 6
  %6827 = vperm.xlu0 %6826, %v95
  %v6828 = vpop.permute.xlu0 %6827
  %6830 = vset.pattern.permute.xlu0 6
  %6831 = vperm.xlu0 %6830, %v96
  %v6832 = vpop.permute.xlu0 %6831
  %6834 = vset.pattern.permute.xlu0 6
  %6835 = vperm.xlu0 %6834, %v97
  %v6836 = vpop.permute.xlu0 %6835
  %6838 = vset.pattern.permute.xlu0 6
  %6839 = vperm.xlu0 %6838, %v98
  %v6840 = vpop.permute.xlu0 %6839
  %6842 = vset.pattern.permute.xlu0 6
  %6843 = vperm.xlu0 %6842, %v99
  %v6844 = vpop.permute.xlu0 %6843
  %6846 = vset.pattern.permute.xlu0 6
  %6847 = vperm.xlu0 %6846, %v100
  %v6848 = vpop.permute.xlu0 %6847
  %6850 = vset.pattern.permute.xlu0 6
  %6851 = vperm.xlu0 %6850, %v101
  %v6852 = vpop.permute.xlu0 %6851
  %6854 = vset.pattern.permute.xlu0 6
  %6855 = vperm.xlu0 %6854, %v102
  %v6856 = vpop.permute.xlu0 %6855
  %6858 = vset.pattern.permute.xlu0 6
  %6859 = vperm.xlu0 %6858, %v103
  %v6860 = vpop.permute.xlu0 %6859
  %6862 = vset.pattern.permute.xlu0 6
  %6863 = vperm.xlu0 %6862, %v104
  %v6864 = vpop.permute.xlu0 %6863
  %6866 = vset.pattern.permute.xlu0 6
  %6867 = vperm.xlu0 %6866, %v105
  %v6868 = vpop.permute.xlu0 %6867
  %6870 = vset.pattern.permute.xlu0 6
  %6871 = vperm.xlu0 %6870, %v106
  %v6872 = vpop.permute.xlu0 %6871
  %6874 = vset.pattern.permute.xlu0 6
  %6875 = vperm.xlu0 %6874, %v107
  %v6876 = vpop.permute.xlu0 %6875
  %6878 = vset.pattern.permute.xlu0 6
  %6879 = vperm.xlu0 %6878, %v108
  %v6880 = vpop.permute.xlu0 %6879
  %6882 = vset.pattern.permute.xlu0 6
  %6883 = vperm.xlu0 %6882, %v109
  %v6884 = vpop.permute.xlu0 %6883
  %6886 = vset.pattern.permute.xlu0 6
  %6887 = vperm.xlu0 %6886, %v110
  %v6888 = vpop.permute.xlu0 %6887
  %6890 = vset.pattern.permute.xlu0 6
  %6891 = vperm.xlu0 %6890, %v111
  %v6892 = vpop.permute.xlu0 %6891
  %6894 = vset.pattern.permute.xlu0 6
  %6895 = vperm.xlu0 %6894, %v112
  %v6896 = vpop.permute.xlu0 %6895
  %6898 = vset.pattern.permute.xlu0 6
  %6899 = vperm.xlu0 %6898, %v113
  %v6900 = vpop.permute.xlu0 %6899
  %6902 = vset.pattern.permute.xlu0 6
  %6903 = vperm.xlu0 %6902, %v114
  %v6904 = vpop.permute.xlu0 %6903
  %6906 = vset.pattern.permute.xlu0 6
  %6907 = vperm.xlu0 %6906, %v115
  %v6908 = vpop.permute.xlu0 %6907
  %6910 = vset.pattern.permute.xlu0 6
  %6911 = vperm.xlu0 %6910, %v116
  %v6912 = vpop.permute.xlu0 %6911
  %6914 = vset.pattern.permute.xlu0 6
  %6915 = vperm.xlu0 %6914, %v117
  %v6916 = vpop.permute.xlu0 %6915
  %6918 = vset.pattern.permute.xlu0 6
  %6919 = vperm.xlu0 %6918, %v118
  %v6920 = vpop.permute.xlu0 %6919
  %6922 = vset.pattern.permute.xlu0 6
  %6923 = vperm.xlu0 %6922, %v119
  %v6924 = vpop.permute.xlu0 %6923
  %6926 = vset.pattern.permute.xlu0 6
  %6927 = vperm.xlu0 %6926, %v120
  %v6928 = vpop.permute.xlu0 %6927
  %6930 = vset.pattern.permute.xlu0 6
  %6931 = vperm.xlu0 %6930, %v121
  %v6932 = vpop.permute.xlu0 %6931
  %6934 = vset.pattern.permute.xlu0 6
  %6935 = vperm.xlu0 %6934, %v122
  %v6936 = vpop.permute.xlu0 %6935
  %6938 = vset.pattern.permute.xlu0 6
  %6939 = vperm.xlu0 %6938, %v123
  %v6940 = vpop.permute.xlu0 %6939
  %6942 = vset.pattern.permute.xlu0 6
  %6943 = vperm.xlu0 %6942, %v124
  %v6944 = vpop.permute.xlu0 %6943
  %6946 = vset.pattern.permute.xlu0 6
  %6947 = vperm.xlu0 %6946, %v125
  %v6948 = vpop.permute.xlu0 %6947
  %6950 = vset.pattern.permute.xlu0 6
  %6951 = vperm.xlu0 %6950, %v126
  %v6952 = vpop.permute.xlu0 %6951
  %6954 = vset.pattern.permute.xlu0 6
  %6955 = vperm.xlu0 %6954, %v127
  %v6956 = vpop.permute.xlu0 %6955
  %6958 = vset.pattern.permute.xlu0 6
  %6959 = vperm.xlu0 %6958, %v128
  %v6960 = vpop.permute.xlu0 %6959
  %6962 = vset.pattern.permute.xlu0 6
  %6963 = vperm.xlu0 %6962, %v129
  %v6964 = vpop.permute.xlu0 %6963
  %6966 = vset.pattern.permute.xlu0 6
  %6967 = vperm.xlu0 %6966, %v130
  %v6968 = vpop.permute.xlu0 %6967
  %6970 = vset.pattern.permute.xlu0 6
  %6971 = vperm.xlu0 %6970, %v131
  %v6972 = vpop.permute.xlu0 %6971
  %6974 = vset.pattern.permute.xlu0 6
  %6975 = vperm.xlu0 %6974, %v132
  %v6976 = vpop.permute.xlu0 %6975
  %6978 = vset.pattern.permute.xlu0 6
  %6979 = vperm.xlu0 %6978, %v133
  %v6980 = vpop.permute.xlu0 %6979
  %6982 = vset.pattern.permute.xlu0 6
  %6983 = vperm.xlu0 %6982, %v134
  %v6984 = vpop.permute.xlu0 %6983
  %6986 = vset.pattern.permute.xlu0 6
  %6987 = vperm.xlu0 %6986, %v135
  %v6988 = vpop.permute.xlu0 %6987
  %6990 = vset.pattern.permute.xlu0 6
  %6991 = vperm.xlu0 %6990, %v136
  %v6992 = vpop.permute.xlu0 %6991
  %6994 = vset.pattern.permute.xlu0 6
  %6995 = vperm.xlu0 %6994, %v137
  %v6996 = vpop.permute.xlu0 %6995
  %6998 = vset.pattern.permute.xlu0 6
  %6999 = vperm.xlu0 %6998, %v138
  %v7000 = vpop.permute.xlu0 %6999
  %7002 = vset.pattern.permute.xlu0 6
  %7003 = vperm.xlu0 %7002, %v139
  %v7004 = vpop.permute.xlu0 %7003
  %7006 = vset.pattern.permute.xlu0 6
  %7007 = vperm.xlu0 %7006, %v140
  %v7008 = vpop.permute.xlu0 %7007
  %7010 = vset.pattern.permute.xlu0 6
  %7011 = vperm.xlu0 %7010, %v141
  %v7012 = vpop.permute.xlu0 %7011
  %7014 = vset.pattern.permute.xlu0 6
  %7015 = vperm.xlu0 %7014, %v142
  %v7016 = vpop.permute.xlu0 %7015
  %7018 = vset.pattern.permute.xlu0 6
  %7019 = vperm.xlu0 %7018, %v143
  %v7020 = vpop.permute.xlu0 %7019
  %7022 = vset.pattern.permute.xlu0 6
  %7023 = vperm.xlu0 %7022, %v144
  %v7024 = vpop.permute.xlu0 %7023
  %7026 = vset.pattern.permute.xlu0 6
  %7027 = vperm.xlu0 %7026, %v145
  %v7028 = vpop.permute.xlu0 %7027
  %7030 = vset.pattern.permute.xlu0 6
  %7031 = vperm.xlu0 %7030, %v146
  %v7032 = vpop.permute.xlu0 %7031
  %7034 = vset.pattern.permute.xlu0 6
  %7035 = vperm.xlu0 %7034, %v147
  %v7036 = vpop.permute.xlu0 %7035
  %7038 = vset.pattern.permute.xlu0 6
  %7039 = vperm.xlu0 %7038, %v148
  %v7040 = vpop.permute.xlu0 %7039
  %7042 = vset.pattern.permute.xlu0 6
  %7043 = vperm.xlu0 %7042, %v149
  %v7044 = vpop.permute.xlu0 %7043
  %7046 = vset.pattern.permute.xlu0 6
  %7047 = vperm.xlu0 %7046, %v150
  %v7048 = vpop.permute.xlu0 %7047
  %7050 = vset.pattern.permute.xlu0 6
  %7051 = vperm.xlu0 %7050, %v151
  %v7052 = vpop.permute.xlu0 %7051
  %7054 = vset.pattern.permute.xlu0 6
  %7055 = vperm.xlu0 %7054, %v152
  %v7056 = vpop.permute.xlu0 %7055
  %7058 = vset.pattern.permute.xlu0 6
  %7059 = vperm.xlu0 %7058, %v153
  %v7060 = vpop.permute.xlu0 %7059
  %7062 = vset.pattern.permute.xlu0 6
  %7063 = vperm.xlu0 %7062, %v154
  %v7064 = vpop.permute.xlu0 %7063
  %7066 = vset.pattern.permute.xlu0 6
  %7067 = vperm.xlu0 %7066, %v155
  %v7068 = vpop.permute.xlu0 %7067
  %7070 = vset.pattern.permute.xlu0 6
  %7071 = vperm.xlu0 %7070, %v156
  %v7072 = vpop.permute.xlu0 %7071
  %v7074 = vmul.f32 %v6754, %v6820
  %v7075 = vmul.f32 %v6755, %v6824
  %v7076 = vmul.f32 %v6756, %v6828
  %v7077 = vmul.f32 %v6757, %v6832
  %v7078 = vmul.f32 %v6758, %v6836
  %v7079 = vmul.f32 %v6759, %v6840
  %v7080 = vmul.f32 %v6760, %v6844
  %v7081 = vmul.f32 %v6761, %v6848
  %v7082 = vmul.f32 %v6762, %v6852
  %v7083 = vmul.f32 %v6763, %v6856
  %v7084 = vmul.f32 %v6764, %v6860
  %v7085 = vmul.f32 %v6765, %v6864
  %v7086 = vmul.f32 %v6766, %v6868
  %v7087 = vmul.f32 %v6767, %v6872
  %v7088 = vmul.f32 %v6768, %v6876
  %v7089 = vmul.f32 %v6769, %v6880
  %v7090 = vmul.f32 %v6770, %v6884
  %v7091 = vmul.f32 %v6771, %v6888
  %v7092 = vmul.f32 %v6772, %v6892
  %v7093 = vmul.f32 %v6773, %v6896
  %v7094 = vmul.f32 %v6774, %v6900
  %v7095 = vmul.f32 %v6775, %v6904
  %v7096 = vmul.f32 %v6776, %v6908
  %v7097 = vmul.f32 %v6777, %v6912
  %v7098 = vmul.f32 %v6778, %v6916
  %v7099 = vmul.f32 %v6779, %v6920
  %v7100 = vmul.f32 %v6780, %v6924
  %v7101 = vmul.f32 %v6781, %v6928
  %v7102 = vmul.f32 %v6782, %v6932
  %v7103 = vmul.f32 %v6783, %v6936
  %v7104 = vmul.f32 %v6784, %v6940
  %v7105 = vmul.f32 %v6785, %v6944
  %v7106 = vmul.f32 %v6786, %v6948
  %v7107 = vmul.f32 %v6787, %v6952
  %v7108 = vmul.f32 %v6788, %v6956
  %v7109 = vmul.f32 %v6789, %v6960
  %v7110 = vmul.f32 %v6790, %v6964
  %v7111 = vmul.f32 %v6791, %v6968
  %v7112 = vmul.f32 %v6792, %v6972
  %v7113 = vmul.f32 %v6793, %v6976
  %v7114 = vmul.f32 %v6794, %v6980
  %v7115 = vmul.f32 %v6795, %v6984
  %v7116 = vmul.f32 %v6796, %v6988
  %v7117 = vmul.f32 %v6797, %v6992
  %v7118 = vmul.f32 %v6798, %v6996
  %v7119 = vmul.f32 %v6799, %v7000
  %v7120 = vmul.f32 %v6800, %v7004
  %v7121 = vmul.f32 %v6801, %v7008
  %v7122 = vmul.f32 %v6802, %v7012
  %v7123 = vmul.f32 %v6803, %v7016
  %v7124 = vmul.f32 %v6804, %v7020
  %v7125 = vmul.f32 %v6805, %v7024
  %v7126 = vmul.f32 %v6806, %v7028
  %v7127 = vmul.f32 %v6807, %v7032
  %v7128 = vmul.f32 %v6808, %v7036
  %v7129 = vmul.f32 %v6809, %v7040
  %v7130 = vmul.f32 %v6810, %v7044
  %v7131 = vmul.f32 %v6811, %v7048
  %v7132 = vmul.f32 %v6812, %v7052
  %v7133 = vmul.f32 %v6813, %v7056
  %v7134 = vmul.f32 %v6814, %v7060
  %v7135 = vmul.f32 %v6815, %v7064
  %v7136 = vmul.f32 %v6816, %v7068
  %v7137 = vmul.f32 %v6817, %v7072
  %vm7138 = vcmask 130048
  %v7139 = vsel %vm7138, %v7074, 0.0
  %v7140 = vsel %vm7138, %v7075, 0.0
  %v7141 = vadd.f32 %v7139, %v7140
  %v7142 = vsel %vm7138, %v7076, 0.0
  %v7143 = vadd.f32 %v7141, %v7142
  %v7144 = vsel %vm7138, %v7077, 0.0
  %v7145 = vadd.f32 %v7143, %v7144
  %v7146 = vsel %vm7138, %v7078, 0.0
  %v7147 = vadd.f32 %v7145, %v7146
  %v7148 = vsel %vm7138, %v7079, 0.0
  %v7149 = vadd.f32 %v7147, %v7148
  %v7150 = vsel %vm7138, %v7080, 0.0
  %v7151 = vadd.f32 %v7149, %v7150
  %v7152 = vsel %vm7138, %v7081, 0.0
  %v7153 = vadd.f32 %v7151, %v7152
  %v7154 = vsel %vm7138, %v7082, 0.0
  %v7155 = vadd.f32 %v7153, %v7154
  %v7156 = vsel %vm7138, %v7083, 0.0
  %v7157 = vadd.f32 %v7155, %v7156
  %v7158 = vsel %vm7138, %v7084, 0.0
  %v7159 = vadd.f32 %v7157, %v7158
  %v7160 = vsel %vm7138, %v7085, 0.0
  %v7161 = vadd.f32 %v7159, %v7160
  %v7162 = vsel %vm7138, %v7086, 0.0
  %v7163 = vadd.f32 %v7161, %v7162
  %v7164 = vsel %vm7138, %v7087, 0.0
  %v7165 = vadd.f32 %v7163, %v7164
  %v7166 = vsel %vm7138, %v7088, 0.0
  %v7167 = vadd.f32 %v7165, %v7166
  %v7168 = vsel %vm7138, %v7089, 0.0
  %v7169 = vadd.f32 %v7167, %v7168
  %v7170 = vsel %vm7138, %v7090, 0.0
  %v7171 = vadd.f32 %v7169, %v7170
  %v7172 = vsel %vm7138, %v7091, 0.0
  %v7173 = vadd.f32 %v7171, %v7172
  %v7174 = vsel %vm7138, %v7092, 0.0
  %v7175 = vadd.f32 %v7173, %v7174
  %v7176 = vsel %vm7138, %v7093, 0.0
  %v7177 = vadd.f32 %v7175, %v7176
  %v7178 = vsel %vm7138, %v7094, 0.0
  %v7179 = vadd.f32 %v7177, %v7178
  %v7180 = vsel %vm7138, %v7095, 0.0
  %v7181 = vadd.f32 %v7179, %v7180
  %v7182 = vsel %vm7138, %v7096, 0.0
  %v7183 = vadd.f32 %v7181, %v7182
  %v7184 = vsel %vm7138, %v7097, 0.0
  %v7185 = vadd.f32 %v7183, %v7184
  %v7186 = vsel %vm7138, %v7098, 0.0
  %v7187 = vadd.f32 %v7185, %v7186
  %v7188 = vsel %vm7138, %v7099, 0.0
  %v7189 = vadd.f32 %v7187, %v7188
  %v7190 = vsel %vm7138, %v7100, 0.0
  %v7191 = vadd.f32 %v7189, %v7190
  %v7192 = vsel %vm7138, %v7101, 0.0
  %v7193 = vadd.f32 %v7191, %v7192
  %v7194 = vsel %vm7138, %v7102, 0.0
  %v7195 = vadd.f32 %v7193, %v7194
  %v7196 = vsel %vm7138, %v7103, 0.0
  %v7197 = vadd.f32 %v7195, %v7196
  %v7198 = vsel %vm7138, %v7104, 0.0
  %v7199 = vadd.f32 %v7197, %v7198
  %v7200 = vsel %vm7138, %v7105, 0.0
  %v7201 = vadd.f32 %v7199, %v7200
  %v7202 = vsel %vm7138, %v7106, 0.0
  %v7203 = vadd.f32 %v7201, %v7202
  %v7204 = vsel %vm7138, %v7107, 0.0
  %v7205 = vadd.f32 %v7203, %v7204
  %v7206 = vsel %vm7138, %v7108, 0.0
  %v7207 = vadd.f32 %v7205, %v7206
  %v7208 = vsel %vm7138, %v7109, 0.0
  %v7209 = vadd.f32 %v7207, %v7208
  %v7210 = vsel %vm7138, %v7110, 0.0
  %v7211 = vadd.f32 %v7209, %v7210
  %v7212 = vsel %vm7138, %v7111, 0.0
  %v7213 = vadd.f32 %v7211, %v7212
  %v7214 = vsel %vm7138, %v7112, 0.0
  %v7215 = vadd.f32 %v7213, %v7214
  %v7216 = vsel %vm7138, %v7113, 0.0
  %v7217 = vadd.f32 %v7215, %v7216
  %v7218 = vsel %vm7138, %v7114, 0.0
  %v7219 = vadd.f32 %v7217, %v7218
  %v7220 = vsel %vm7138, %v7115, 0.0
  %v7221 = vadd.f32 %v7219, %v7220
  %v7222 = vsel %vm7138, %v7116, 0.0
  %v7223 = vadd.f32 %v7221, %v7222
  %v7224 = vsel %vm7138, %v7117, 0.0
  %v7225 = vadd.f32 %v7223, %v7224
  %v7226 = vsel %vm7138, %v7118, 0.0
  %v7227 = vadd.f32 %v7225, %v7226
  %v7228 = vsel %vm7138, %v7119, 0.0
  %v7229 = vadd.f32 %v7227, %v7228
  %v7230 = vsel %vm7138, %v7120, 0.0
  %v7231 = vadd.f32 %v7229, %v7230
  %v7232 = vsel %vm7138, %v7121, 0.0
  %v7233 = vadd.f32 %v7231, %v7232
  %v7234 = vsel %vm7138, %v7122, 0.0
  %v7235 = vadd.f32 %v7233, %v7234
  %v7236 = vsel %vm7138, %v7123, 0.0
  %v7237 = vadd.f32 %v7235, %v7236
  %v7238 = vsel %vm7138, %v7124, 0.0
  %v7239 = vadd.f32 %v7237, %v7238
  %v7240 = vsel %vm7138, %v7125, 0.0
  %v7241 = vadd.f32 %v7239, %v7240
  %v7242 = vsel %vm7138, %v7126, 0.0
  %v7243 = vadd.f32 %v7241, %v7242
  %v7244 = vsel %vm7138, %v7127, 0.0
  %v7245 = vadd.f32 %v7243, %v7244
  %v7246 = vsel %vm7138, %v7128, 0.0
  %v7247 = vadd.f32 %v7245, %v7246
  %v7248 = vsel %vm7138, %v7129, 0.0
  %v7249 = vadd.f32 %v7247, %v7248
  %v7250 = vsel %vm7138, %v7130, 0.0
  %v7251 = vadd.f32 %v7249, %v7250
  %v7252 = vsel %vm7138, %v7131, 0.0
  %v7253 = vadd.f32 %v7251, %v7252
  %v7254 = vsel %vm7138, %v7132, 0.0
  %v7255 = vadd.f32 %v7253, %v7254
  %v7256 = vsel %vm7138, %v7133, 0.0
  %v7257 = vadd.f32 %v7255, %v7256
  %v7258 = vsel %vm7138, %v7134, 0.0
  %v7259 = vadd.f32 %v7257, %v7258
  %v7260 = vsel %vm7138, %v7135, 0.0
  %v7261 = vadd.f32 %v7259, %v7260
  %v7262 = vsel %vm7138, %v7136, 0.0
  %v7263 = vadd.f32 %v7261, %v7262
  %v7264 = vsel %vm7138, %v7137, 0.0
  %v7265 = vadd.f32 %v7263, %v7264
  %v7266 = vrot.slane %v7265, 4
  %v7267 = vadd.f32 %v7265, %v7266
  %v7268 = vrot.slane %v7267, 2
  %v7269 = vadd.f32 %v7267, %v7268
  %v7270 = vrot.slane %v7269, 1
  %v7271 = vadd.f32 %v7269, %v7270
  %v7272 = vmul.f32 %v7271, 0.00390625
  %7273 = vset.pattern.permute.xlu0 7
  %7274 = vperm.xlu0 %7273, %v93
  %v7275 = vpop.permute.xlu0 %7274
  %7277 = vset.pattern.permute.xlu0 7
  %7278 = vperm.xlu0 %7277, %v94
  %v7279 = vpop.permute.xlu0 %7278
  %7281 = vset.pattern.permute.xlu0 7
  %7282 = vperm.xlu0 %7281, %v95
  %v7283 = vpop.permute.xlu0 %7282
  %7285 = vset.pattern.permute.xlu0 7
  %7286 = vperm.xlu0 %7285, %v96
  %v7287 = vpop.permute.xlu0 %7286
  %7289 = vset.pattern.permute.xlu0 7
  %7290 = vperm.xlu0 %7289, %v97
  %v7291 = vpop.permute.xlu0 %7290
  %7293 = vset.pattern.permute.xlu0 7
  %7294 = vperm.xlu0 %7293, %v98
  %v7295 = vpop.permute.xlu0 %7294
  %7297 = vset.pattern.permute.xlu0 7
  %7298 = vperm.xlu0 %7297, %v99
  %v7299 = vpop.permute.xlu0 %7298
  %7301 = vset.pattern.permute.xlu0 7
  %7302 = vperm.xlu0 %7301, %v100
  %v7303 = vpop.permute.xlu0 %7302
  %7305 = vset.pattern.permute.xlu0 7
  %7306 = vperm.xlu0 %7305, %v101
  %v7307 = vpop.permute.xlu0 %7306
  %7309 = vset.pattern.permute.xlu0 7
  %7310 = vperm.xlu0 %7309, %v102
  %v7311 = vpop.permute.xlu0 %7310
  %7313 = vset.pattern.permute.xlu0 7
  %7314 = vperm.xlu0 %7313, %v103
  %v7315 = vpop.permute.xlu0 %7314
  %7317 = vset.pattern.permute.xlu0 7
  %7318 = vperm.xlu0 %7317, %v104
  %v7319 = vpop.permute.xlu0 %7318
  %7321 = vset.pattern.permute.xlu0 7
  %7322 = vperm.xlu0 %7321, %v105
  %v7323 = vpop.permute.xlu0 %7322
  %7325 = vset.pattern.permute.xlu0 7
  %7326 = vperm.xlu0 %7325, %v106
  %v7327 = vpop.permute.xlu0 %7326
  %7329 = vset.pattern.permute.xlu0 7
  %7330 = vperm.xlu0 %7329, %v107
  %v7331 = vpop.permute.xlu0 %7330
  %7333 = vset.pattern.permute.xlu0 7
  %7334 = vperm.xlu0 %7333, %v108
  %v7335 = vpop.permute.xlu0 %7334
  %7337 = vset.pattern.permute.xlu0 7
  %7338 = vperm.xlu0 %7337, %v109
  %v7339 = vpop.permute.xlu0 %7338
  %7341 = vset.pattern.permute.xlu0 7
  %7342 = vperm.xlu0 %7341, %v110
  %v7343 = vpop.permute.xlu0 %7342
  %7345 = vset.pattern.permute.xlu0 7
  %7346 = vperm.xlu0 %7345, %v111
  %v7347 = vpop.permute.xlu0 %7346
  %7349 = vset.pattern.permute.xlu0 7
  %7350 = vperm.xlu0 %7349, %v112
  %v7351 = vpop.permute.xlu0 %7350
  %7353 = vset.pattern.permute.xlu0 7
  %7354 = vperm.xlu0 %7353, %v113
  %v7355 = vpop.permute.xlu0 %7354
  %7357 = vset.pattern.permute.xlu0 7
  %7358 = vperm.xlu0 %7357, %v114
  %v7359 = vpop.permute.xlu0 %7358
  %7361 = vset.pattern.permute.xlu0 7
  %7362 = vperm.xlu0 %7361, %v115
  %v7363 = vpop.permute.xlu0 %7362
  %7365 = vset.pattern.permute.xlu0 7
  %7366 = vperm.xlu0 %7365, %v116
  %v7367 = vpop.permute.xlu0 %7366
  %7369 = vset.pattern.permute.xlu0 7
  %7370 = vperm.xlu0 %7369, %v117
  %v7371 = vpop.permute.xlu0 %7370
  %7373 = vset.pattern.permute.xlu0 7
  %7374 = vperm.xlu0 %7373, %v118
  %v7375 = vpop.permute.xlu0 %7374
  %7377 = vset.pattern.permute.xlu0 7
  %7378 = vperm.xlu0 %7377, %v119
  %v7379 = vpop.permute.xlu0 %7378
  %7381 = vset.pattern.permute.xlu0 7
  %7382 = vperm.xlu0 %7381, %v120
  %v7383 = vpop.permute.xlu0 %7382
  %7385 = vset.pattern.permute.xlu0 7
  %7386 = vperm.xlu0 %7385, %v121
  %v7387 = vpop.permute.xlu0 %7386
  %7389 = vset.pattern.permute.xlu0 7
  %7390 = vperm.xlu0 %7389, %v122
  %v7391 = vpop.permute.xlu0 %7390
  %7393 = vset.pattern.permute.xlu0 7
  %7394 = vperm.xlu0 %7393, %v123
  %v7395 = vpop.permute.xlu0 %7394
  %7397 = vset.pattern.permute.xlu0 7
  %7398 = vperm.xlu0 %7397, %v124
  %v7399 = vpop.permute.xlu0 %7398
  %7401 = vset.pattern.permute.xlu0 7
  %7402 = vperm.xlu0 %7401, %v125
  %v7403 = vpop.permute.xlu0 %7402
  %7405 = vset.pattern.permute.xlu0 7
  %7406 = vperm.xlu0 %7405, %v126
  %v7407 = vpop.permute.xlu0 %7406
  %7409 = vset.pattern.permute.xlu0 7
  %7410 = vperm.xlu0 %7409, %v127
  %v7411 = vpop.permute.xlu0 %7410
  %7413 = vset.pattern.permute.xlu0 7
  %7414 = vperm.xlu0 %7413, %v128
  %v7415 = vpop.permute.xlu0 %7414
  %7417 = vset.pattern.permute.xlu0 7
  %7418 = vperm.xlu0 %7417, %v129
  %v7419 = vpop.permute.xlu0 %7418
  %7421 = vset.pattern.permute.xlu0 7
  %7422 = vperm.xlu0 %7421, %v130
  %v7423 = vpop.permute.xlu0 %7422
  %7425 = vset.pattern.permute.xlu0 7
  %7426 = vperm.xlu0 %7425, %v131
  %v7427 = vpop.permute.xlu0 %7426
  %7429 = vset.pattern.permute.xlu0 7
  %7430 = vperm.xlu0 %7429, %v132
  %v7431 = vpop.permute.xlu0 %7430
  %7433 = vset.pattern.permute.xlu0 7
  %7434 = vperm.xlu0 %7433, %v133
  %v7435 = vpop.permute.xlu0 %7434
  %7437 = vset.pattern.permute.xlu0 7
  %7438 = vperm.xlu0 %7437, %v134
  %v7439 = vpop.permute.xlu0 %7438
  %7441 = vset.pattern.permute.xlu0 7
  %7442 = vperm.xlu0 %7441, %v135
  %v7443 = vpop.permute.xlu0 %7442
  %7445 = vset.pattern.permute.xlu0 7
  %7446 = vperm.xlu0 %7445, %v136
  %v7447 = vpop.permute.xlu0 %7446
  %7449 = vset.pattern.permute.xlu0 7
  %7450 = vperm.xlu0 %7449, %v137
  %v7451 = vpop.permute.xlu0 %7450
  %7453 = vset.pattern.permute.xlu0 7
  %7454 = vperm.xlu0 %7453, %v138
  %v7455 = vpop.permute.xlu0 %7454
  %7457 = vset.pattern.permute.xlu0 7
  %7458 = vperm.xlu0 %7457, %v139
  %v7459 = vpop.permute.xlu0 %7458
  %7461 = vset.pattern.permute.xlu0 7
  %7462 = vperm.xlu0 %7461, %v140
  %v7463 = vpop.permute.xlu0 %7462
  %7465 = vset.pattern.permute.xlu0 7
  %7466 = vperm.xlu0 %7465, %v141
  %v7467 = vpop.permute.xlu0 %7466
  %7469 = vset.pattern.permute.xlu0 7
  %7470 = vperm.xlu0 %7469, %v142
  %v7471 = vpop.permute.xlu0 %7470
  %7473 = vset.pattern.permute.xlu0 7
  %7474 = vperm.xlu0 %7473, %v143
  %v7475 = vpop.permute.xlu0 %7474
  %7477 = vset.pattern.permute.xlu0 7
  %7478 = vperm.xlu0 %7477, %v144
  %v7479 = vpop.permute.xlu0 %7478
  %7481 = vset.pattern.permute.xlu0 7
  %7482 = vperm.xlu0 %7481, %v145
  %v7483 = vpop.permute.xlu0 %7482
  %7485 = vset.pattern.permute.xlu0 7
  %7486 = vperm.xlu0 %7485, %v146
  %v7487 = vpop.permute.xlu0 %7486
  %7489 = vset.pattern.permute.xlu0 7
  %7490 = vperm.xlu0 %7489, %v147
  %v7491 = vpop.permute.xlu0 %7490
  %7493 = vset.pattern.permute.xlu0 7
  %7494 = vperm.xlu0 %7493, %v148
  %v7495 = vpop.permute.xlu0 %7494
  %7497 = vset.pattern.permute.xlu0 7
  %7498 = vperm.xlu0 %7497, %v149
  %v7499 = vpop.permute.xlu0 %7498
  %7501 = vset.pattern.permute.xlu0 7
  %7502 = vperm.xlu0 %7501, %v150
  %v7503 = vpop.permute.xlu0 %7502
  %7505 = vset.pattern.permute.xlu0 7
  %7506 = vperm.xlu0 %7505, %v151
  %v7507 = vpop.permute.xlu0 %7506
  %7509 = vset.pattern.permute.xlu0 7
  %7510 = vperm.xlu0 %7509, %v152
  %v7511 = vpop.permute.xlu0 %7510
  %7513 = vset.pattern.permute.xlu0 7
  %7514 = vperm.xlu0 %7513, %v153
  %v7515 = vpop.permute.xlu0 %7514
  %7517 = vset.pattern.permute.xlu0 7
  %7518 = vperm.xlu0 %7517, %v154
  %v7519 = vpop.permute.xlu0 %7518
  %7521 = vset.pattern.permute.xlu0 7
  %7522 = vperm.xlu0 %7521, %v155
  %v7523 = vpop.permute.xlu0 %7522
  %7525 = vset.pattern.permute.xlu0 7
  %7526 = vperm.xlu0 %7525, %v156
  %v7527 = vpop.permute.xlu0 %7526
  %v7529 = vmul.f32 %v6754, %v7275
  %v7530 = vmul.f32 %v6755, %v7279
  %v7531 = vmul.f32 %v6756, %v7283
  %v7532 = vmul.f32 %v6757, %v7287
  %v7533 = vmul.f32 %v6758, %v7291
  %v7534 = vmul.f32 %v6759, %v7295
  %v7535 = vmul.f32 %v6760, %v7299
  %v7536 = vmul.f32 %v6761, %v7303
  %v7537 = vmul.f32 %v6762, %v7307
  %v7538 = vmul.f32 %v6763, %v7311
  %v7539 = vmul.f32 %v6764, %v7315
  %v7540 = vmul.f32 %v6765, %v7319
  %v7541 = vmul.f32 %v6766, %v7323
  %v7542 = vmul.f32 %v6767, %v7327
  %v7543 = vmul.f32 %v6768, %v7331
  %v7544 = vmul.f32 %v6769, %v7335
  %v7545 = vmul.f32 %v6770, %v7339
  %v7546 = vmul.f32 %v6771, %v7343
  %v7547 = vmul.f32 %v6772, %v7347
  %v7548 = vmul.f32 %v6773, %v7351
  %v7549 = vmul.f32 %v6774, %v7355
  %v7550 = vmul.f32 %v6775, %v7359
  %v7551 = vmul.f32 %v6776, %v7363
  %v7552 = vmul.f32 %v6777, %v7367
  %v7553 = vmul.f32 %v6778, %v7371
  %v7554 = vmul.f32 %v6779, %v7375
  %v7555 = vmul.f32 %v6780, %v7379
  %v7556 = vmul.f32 %v6781, %v7383
  %v7557 = vmul.f32 %v6782, %v7387
  %v7558 = vmul.f32 %v6783, %v7391
  %v7559 = vmul.f32 %v6784, %v7395
  %v7560 = vmul.f32 %v6785, %v7399
  %v7561 = vmul.f32 %v6786, %v7403
  %v7562 = vmul.f32 %v6787, %v7407
  %v7563 = vmul.f32 %v6788, %v7411
  %v7564 = vmul.f32 %v6789, %v7415
  %v7565 = vmul.f32 %v6790, %v7419
  %v7566 = vmul.f32 %v6791, %v7423
  %v7567 = vmul.f32 %v6792, %v7427
  %v7568 = vmul.f32 %v6793, %v7431
  %v7569 = vmul.f32 %v6794, %v7435
  %v7570 = vmul.f32 %v6795, %v7439
  %v7571 = vmul.f32 %v6796, %v7443
  %v7572 = vmul.f32 %v6797, %v7447
  %v7573 = vmul.f32 %v6798, %v7451
  %v7574 = vmul.f32 %v6799, %v7455
  %v7575 = vmul.f32 %v6800, %v7459
  %v7576 = vmul.f32 %v6801, %v7463
  %v7577 = vmul.f32 %v6802, %v7467
  %v7578 = vmul.f32 %v6803, %v7471
  %v7579 = vmul.f32 %v6804, %v7475
  %v7580 = vmul.f32 %v6805, %v7479
  %v7581 = vmul.f32 %v6806, %v7483
  %v7582 = vmul.f32 %v6807, %v7487
  %v7583 = vmul.f32 %v6808, %v7491
  %v7584 = vmul.f32 %v6809, %v7495
  %v7585 = vmul.f32 %v6810, %v7499
  %v7586 = vmul.f32 %v6811, %v7503
  %v7587 = vmul.f32 %v6812, %v7507
  %v7588 = vmul.f32 %v6813, %v7511
  %v7589 = vmul.f32 %v6814, %v7515
  %v7590 = vmul.f32 %v6815, %v7519
  %v7591 = vmul.f32 %v6816, %v7523
  %v7592 = vmul.f32 %v6817, %v7527
  %v7593 = vsel %vm7138, %v7529, 0.0
  %v7594 = vsel %vm7138, %v7530, 0.0
  %v7595 = vadd.f32 %v7593, %v7594
  %v7596 = vsel %vm7138, %v7531, 0.0
  %v7597 = vadd.f32 %v7595, %v7596
  %v7598 = vsel %vm7138, %v7532, 0.0
  %v7599 = vadd.f32 %v7597, %v7598
  %v7600 = vsel %vm7138, %v7533, 0.0
  %v7601 = vadd.f32 %v7599, %v7600
  %v7602 = vsel %vm7138, %v7534, 0.0
  %v7603 = vadd.f32 %v7601, %v7602
  %v7604 = vsel %vm7138, %v7535, 0.0
  %v7605 = vadd.f32 %v7603, %v7604
  %v7606 = vsel %vm7138, %v7536, 0.0
  %v7607 = vadd.f32 %v7605, %v7606
  %v7608 = vsel %vm7138, %v7537, 0.0
  %v7609 = vadd.f32 %v7607, %v7608
  %v7610 = vsel %vm7138, %v7538, 0.0
  %v7611 = vadd.f32 %v7609, %v7610
  %v7612 = vsel %vm7138, %v7539, 0.0
  %v7613 = vadd.f32 %v7611, %v7612
  %v7614 = vsel %vm7138, %v7540, 0.0
  %v7615 = vadd.f32 %v7613, %v7614
  %v7616 = vsel %vm7138, %v7541, 0.0
  %v7617 = vadd.f32 %v7615, %v7616
  %v7618 = vsel %vm7138, %v7542, 0.0
  %v7619 = vadd.f32 %v7617, %v7618
  %v7620 = vsel %vm7138, %v7543, 0.0
  %v7621 = vadd.f32 %v7619, %v7620
  %v7622 = vsel %vm7138, %v7544, 0.0
  %v7623 = vadd.f32 %v7621, %v7622
  %v7624 = vsel %vm7138, %v7545, 0.0
  %v7625 = vadd.f32 %v7623, %v7624
  %v7626 = vsel %vm7138, %v7546, 0.0
  %v7627 = vadd.f32 %v7625, %v7626
  %v7628 = vsel %vm7138, %v7547, 0.0
  %v7629 = vadd.f32 %v7627, %v7628
  %v7630 = vsel %vm7138, %v7548, 0.0
  %v7631 = vadd.f32 %v7629, %v7630
  %v7632 = vsel %vm7138, %v7549, 0.0
  %v7633 = vadd.f32 %v7631, %v7632
  %v7634 = vsel %vm7138, %v7550, 0.0
  %v7635 = vadd.f32 %v7633, %v7634
  %v7636 = vsel %vm7138, %v7551, 0.0
  %v7637 = vadd.f32 %v7635, %v7636
  %v7638 = vsel %vm7138, %v7552, 0.0
  %v7639 = vadd.f32 %v7637, %v7638
  %v7640 = vsel %vm7138, %v7553, 0.0
  %v7641 = vadd.f32 %v7639, %v7640
  %v7642 = vsel %vm7138, %v7554, 0.0
  %v7643 = vadd.f32 %v7641, %v7642
  %v7644 = vsel %vm7138, %v7555, 0.0
  %v7645 = vadd.f32 %v7643, %v7644
  %v7646 = vsel %vm7138, %v7556, 0.0
  %v7647 = vadd.f32 %v7645, %v7646
  %v7648 = vsel %vm7138, %v7557, 0.0
  %v7649 = vadd.f32 %v7647, %v7648
  %v7650 = vsel %vm7138, %v7558, 0.0
  %v7651 = vadd.f32 %v7649, %v7650
  %v7652 = vsel %vm7138, %v7559, 0.0
  %v7653 = vadd.f32 %v7651, %v7652
  %v7654 = vsel %vm7138, %v7560, 0.0
  %v7655 = vadd.f32 %v7653, %v7654
  %v7656 = vsel %vm7138, %v7561, 0.0
  %v7657 = vadd.f32 %v7655, %v7656
  %v7658 = vsel %vm7138, %v7562, 0.0
  %v7659 = vadd.f32 %v7657, %v7658
  %v7660 = vsel %vm7138, %v7563, 0.0
  %v7661 = vadd.f32 %v7659, %v7660
  %v7662 = vsel %vm7138, %v7564, 0.0
  %v7663 = vadd.f32 %v7661, %v7662
  %v7664 = vsel %vm7138, %v7565, 0.0
  %v7665 = vadd.f32 %v7663, %v7664
  %v7666 = vsel %vm7138, %v7566, 0.0
  %v7667 = vadd.f32 %v7665, %v7666
  %v7668 = vsel %vm7138, %v7567, 0.0
  %v7669 = vadd.f32 %v7667, %v7668
  %v7670 = vsel %vm7138, %v7568, 0.0
  %v7671 = vadd.f32 %v7669, %v7670
  %v7672 = vsel %vm7138, %v7569, 0.0
  %v7673 = vadd.f32 %v7671, %v7672
  %v7674 = vsel %vm7138, %v7570, 0.0
  %v7675 = vadd.f32 %v7673, %v7674
  %v7676 = vsel %vm7138, %v7571, 0.0
  %v7677 = vadd.f32 %v7675, %v7676
  %v7678 = vsel %vm7138, %v7572, 0.0
  %v7679 = vadd.f32 %v7677, %v7678
  %v7680 = vsel %vm7138, %v7573, 0.0
  %v7681 = vadd.f32 %v7679, %v7680
  %v7682 = vsel %vm7138, %v7574, 0.0
  %v7683 = vadd.f32 %v7681, %v7682
  %v7684 = vsel %vm7138, %v7575, 0.0
  %v7685 = vadd.f32 %v7683, %v7684
  %v7686 = vsel %vm7138, %v7576, 0.0
  %v7687 = vadd.f32 %v7685, %v7686
  %v7688 = vsel %vm7138, %v7577, 0.0
  %v7689 = vadd.f32 %v7687, %v7688
  %v7690 = vsel %vm7138, %v7578, 0.0
  %v7691 = vadd.f32 %v7689, %v7690
  %v7692 = vsel %vm7138, %v7579, 0.0
  %v7693 = vadd.f32 %v7691, %v7692
  %v7694 = vsel %vm7138, %v7580, 0.0
  %v7695 = vadd.f32 %v7693, %v7694
  %v7696 = vsel %vm7138, %v7581, 0.0
  %v7697 = vadd.f32 %v7695, %v7696
  %v7698 = vsel %vm7138, %v7582, 0.0
  %v7699 = vadd.f32 %v7697, %v7698
  %v7700 = vsel %vm7138, %v7583, 0.0
  %v7701 = vadd.f32 %v7699, %v7700
  %v7702 = vsel %vm7138, %v7584, 0.0
  %v7703 = vadd.f32 %v7701, %v7702
  %v7704 = vsel %vm7138, %v7585, 0.0
  %v7705 = vadd.f32 %v7703, %v7704
  %v7706 = vsel %vm7138, %v7586, 0.0
  %v7707 = vadd.f32 %v7705, %v7706
  %v7708 = vsel %vm7138, %v7587, 0.0
  %v7709 = vadd.f32 %v7707, %v7708
  %v7710 = vsel %vm7138, %v7588, 0.0
  %v7711 = vadd.f32 %v7709, %v7710
  %v7712 = vsel %vm7138, %v7589, 0.0
  %v7713 = vadd.f32 %v7711, %v7712
  %v7714 = vsel %vm7138, %v7590, 0.0
  %v7715 = vadd.f32 %v7713, %v7714
  %v7716 = vsel %vm7138, %v7591, 0.0
  %v7717 = vadd.f32 %v7715, %v7716
  %v7718 = vsel %vm7138, %v7592, 0.0
  %v7719 = vadd.f32 %v7717, %v7718
  %v7720 = vrot.slane %v7719, 4
  %v7721 = vadd.f32 %v7719, %v7720
  %v7722 = vrot.slane %v7721, 2
  %v7723 = vadd.f32 %v7721, %v7722
  %v7724 = vrot.slane %v7723, 1
  %v7725 = vadd.f32 %v7723, %v7724
  %v7726 = vmul.f32 %v7725, 0.00390625
  %v7727 = vsel %vm2844, %v7272, %v7726
  %v7728 = vld [vmem:[%s4] sm:$0xff]
  %v7729 = vld [vmem:[%s4 + $0x8] sm:$0xff]
  %7730 = vrot.lane.b32.xlu0 %v160, 88
  %v7731 = vpop.permute.xlu0 %7730
  %v7734 = vsel %vm7138, %v7727, 0
  %7736 = vmatpush.msra.mxu0 0.0
  %7737 = vmatpush.msra.mxu0 0.0
  %7738 = vmatpush.msra.mxu0 0.0
  %7739 = vmatpush.msra.mxu0 0.0
  %7740 = vmatpush.msra.mxu0 0.0
  %7741 = vmatpush.msra.mxu0 0.0
  %7742 = vmatpush.msra.mxu0 0.0
  %7743 = vmatpush.msra.mxu0 0.0
  %7744 = vmatpush.msra.mxu0 0.0
  %7745 = vmatpush.msra.mxu0 0.0
  %7746 = vmatpush.msra.mxu0 0.0
  %7747 = vmatpush.msra.mxu0 0.0
  %7748 = vmatpush.msra.mxu0 0.0
  %7749 = vmatpush.msra.mxu0 0.0
  %v7750 = vand.u32 %v7729, 4294901760
  %7751 = vmatpush.msra.mxu0 %v7750
  %v7752 = vand.u32 %v7728, 4294901760
  %7753 = vmatpush.msra.mxu0 %v7752
  %v7754 = vand.u32 %v7734, 4294901760
  %v7755 = vsub.f32 %v7734, %v7754
  %v7756 = vand.u32 %v7755, 4294901760
  %v7757 = vsub.f32 %v7755, %v7756
  %v7758 = vand.u32 %v7757, 4294901760
  %7759 = vmatmul.f32.gmra.mxu0 %v7758
  %v7760 = vpop.f32.mrf.mxu0
  %v7761 = vadd.f32 %v7731, %v7760
  %7762 = vdwg.mxu0
  %7763 = vmatpush.msra.mxu0 0.0
  %7764 = vmatpush.msra.mxu0 0.0
  %7765 = vmatpush.msra.mxu0 0.0
  %7766 = vmatpush.msra.mxu0 0.0
  %7767 = vmatpush.msra.mxu0 0.0
  %7768 = vmatpush.msra.mxu0 0.0
  %7769 = vmatpush.msra.mxu0 0.0
  %7770 = vmatpush.msra.mxu0 0.0
  %7771 = vmatpush.msra.mxu0 0.0
  %7772 = vmatpush.msra.mxu0 0.0
  %7773 = vmatpush.msra.mxu0 0.0
  %7774 = vmatpush.msra.mxu0 0.0
  %7775 = vmatpush.msra.mxu0 0.0
  %7776 = vmatpush.msra.mxu0 0.0
  %v7777 = vand.u32 %v7729, 4294901760
  %v7778 = vsub.f32 %v7729, %v7777
  %v7779 = vand.u32 %v7778, 4294901760
  %v7780 = vsub.f32 %v7778, %v7779
  %v7781 = vand.u32 %v7780, 4294901760
  %7782 = vmatpush.msra.mxu0 %v7781
  %v7783 = vand.u32 %v7728, 4294901760
  %v7784 = vsub.f32 %v7728, %v7783
  %v7785 = vand.u32 %v7784, 4294901760
  %v7786 = vsub.f32 %v7784, %v7785
  %v7787 = vand.u32 %v7786, 4294901760
  %7788 = vmatpush.msra.mxu0 %v7787
  %v7789 = vand.u32 %v7734, 4294901760
  %7790 = vmatmul.f32.gmra.mxu0 %v7789
  %v7791 = vpop.f32.mrf.mxu0
  %v7792 = vadd.f32 %v7761, %v7791
  %7793 = vdwg.mxu0
  %7794 = vmatpush.msra.mxu0 0.0
  %7795 = vmatpush.msra.mxu0 0.0
  %7796 = vmatpush.msra.mxu0 0.0
  %7797 = vmatpush.msra.mxu0 0.0
  %7798 = vmatpush.msra.mxu0 0.0
  %7799 = vmatpush.msra.mxu0 0.0
  %7800 = vmatpush.msra.mxu0 0.0
  %7801 = vmatpush.msra.mxu0 0.0
  %7802 = vmatpush.msra.mxu0 0.0
  %7803 = vmatpush.msra.mxu0 0.0
  %7804 = vmatpush.msra.mxu0 0.0
  %7805 = vmatpush.msra.mxu0 0.0
  %7806 = vmatpush.msra.mxu0 0.0
  %7807 = vmatpush.msra.mxu0 0.0
  %v7808 = vand.u32 %v7729, 4294901760
  %v7809 = vsub.f32 %v7729, %v7808
  %7810 = vmatpush.msra.mxu0 %v7809
  %v7811 = vand.u32 %v7728, 4294901760
  %v7812 = vsub.f32 %v7728, %v7811
  %7813 = vmatpush.msra.mxu0 %v7812
  %v7814 = vand.u32 %v7734, 4294901760
  %v7815 = vsub.f32 %v7734, %v7814
  %7816 = vmatmul.f32.gmra.mxu0 %v7815
  %v7817 = vpop.f32.mrf.mxu0
  %v7818 = vadd.f32 %v7792, %v7817
  %7819 = vdwg.mxu0
  %7820 = vmatpush.msra.mxu0 0.0
  %7821 = vmatpush.msra.mxu0 0.0
  %7822 = vmatpush.msra.mxu0 0.0
  %7823 = vmatpush.msra.mxu0 0.0
  %7824 = vmatpush.msra.mxu0 0.0
  %7825 = vmatpush.msra.mxu0 0.0
  %7826 = vmatpush.msra.mxu0 0.0
  %7827 = vmatpush.msra.mxu0 0.0
  %7828 = vmatpush.msra.mxu0 0.0
  %7829 = vmatpush.msra.mxu0 0.0
  %7830 = vmatpush.msra.mxu0 0.0
  %7831 = vmatpush.msra.mxu0 0.0
  %7832 = vmatpush.msra.mxu0 0.0
  %7833 = vmatpush.msra.mxu0 0.0
  %v7834 = vand.u32 %v7729, 4294901760
  %7835 = vmatpush.msra.mxu0 %v7834
  %v7836 = vand.u32 %v7728, 4294901760
  %7837 = vmatpush.msra.mxu0 %v7836
  %v7838 = vand.u32 %v7734, 4294901760
  %v7839 = vsub.f32 %v7734, %v7838
  %v7840 = vand.u32 %v7839, 4294901760
  %7841 = vmatmul.f32.gmra.mxu0 %v7840
  %v7842 = vpop.f32.mrf.mxu0
  %v7843 = vadd.f32 %v7818, %v7842
  %7844 = vdwg.mxu0
  %7845 = vmatpush.msra.mxu0 0.0
  %7846 = vmatpush.msra.mxu0 0.0
  %7847 = vmatpush.msra.mxu0 0.0
  %7848 = vmatpush.msra.mxu0 0.0
  %7849 = vmatpush.msra.mxu0 0.0
  %7850 = vmatpush.msra.mxu0 0.0
  %7851 = vmatpush.msra.mxu0 0.0
  %7852 = vmatpush.msra.mxu0 0.0
  %7853 = vmatpush.msra.mxu0 0.0
  %7854 = vmatpush.msra.mxu0 0.0
  %7855 = vmatpush.msra.mxu0 0.0
  %7856 = vmatpush.msra.mxu0 0.0
  %7857 = vmatpush.msra.mxu0 0.0
  %7858 = vmatpush.msra.mxu0 0.0
  %v7859 = vand.u32 %v7729, 4294901760
  %v7860 = vsub.f32 %v7729, %v7859
  %v7861 = vand.u32 %v7860, 4294901760
  %7862 = vmatpush.msra.mxu0 %v7861
  %v7863 = vand.u32 %v7728, 4294901760
  %v7864 = vsub.f32 %v7728, %v7863
  %v7865 = vand.u32 %v7864, 4294901760
  %7866 = vmatpush.msra.mxu0 %v7865
  %v7867 = vand.u32 %v7734, 4294901760
  %7868 = vmatmul.f32.gmra.mxu0 %v7867
  %v7869 = vpop.f32.mrf.mxu0
  %v7870 = vadd.f32 %v7843, %v7869
  %7871 = vdwg.mxu0
  %7872 = vmatpush.msra.mxu0 0.0
  %7873 = vmatpush.msra.mxu0 0.0
  %7874 = vmatpush.msra.mxu0 0.0
  %7875 = vmatpush.msra.mxu0 0.0
  %7876 = vmatpush.msra.mxu0 0.0
  %7877 = vmatpush.msra.mxu0 0.0
  %7878 = vmatpush.msra.mxu0 0.0
  %7879 = vmatpush.msra.mxu0 0.0
  %7880 = vmatpush.msra.mxu0 0.0
  %7881 = vmatpush.msra.mxu0 0.0
  %7882 = vmatpush.msra.mxu0 0.0
  %7883 = vmatpush.msra.mxu0 0.0
  %7884 = vmatpush.msra.mxu0 0.0
  %7885 = vmatpush.msra.mxu0 0.0
  %v7886 = vand.u32 %v7729, 4294901760
  %7887 = vmatpush.msra.mxu0 %v7886
  %v7888 = vand.u32 %v7728, 4294901760
  %7889 = vmatpush.msra.mxu0 %v7888
  %v7890 = vand.u32 %v7734, 4294901760
  %7891 = vmatmul.f32.gmra.mxu0 %v7890
  %v7892 = vpop.f32.mrf.mxu0
  %v7893 = vadd.f32 %v7870, %v7892
  %7894 = vdwg.mxu0
  %v7895 = vmax.f32 %v7893, 0.0
  %v7896 = vmin.f32 %v7895, 6.0
  %v7897 = vld [vmem:[%s5] sm:$0xf]
  %7898 = vrot.lane.b32.xlu0 %v160, 84
  %v7899 = vpop.permute.xlu0 %7898
  %v7902 = vsel %vm162, %v7896, 0
  %v7905 = vsel %vm355, %v7897, 0
  %7907 = vmatpush.msra.mxu0 0.0
  %7908 = vmatpush.msra.mxu0 0.0
  %7909 = vmatpush.msra.mxu0 0.0
  %7910 = vmatpush.msra.mxu0 0.0
  %7911 = vmatpush.msra.mxu0 0.0
  %7912 = vmatpush.msra.mxu0 0.0
  %7913 = vmatpush.msra.mxu0 0.0
  %7914 = vmatpush.msra.mxu0 0.0
  %7915 = vmatpush.msra.mxu0 0.0
  %7916 = vmatpush.msra.mxu0 0.0
  %7917 = vmatpush.msra.mxu0 0.0
  %7918 = vmatpush.msra.mxu0 0.0
  %7919 = vmatpush.msra.mxu0 0.0
  %7920 = vmatpush.msra.mxu0 0.0
  %7921 = vmatpush.msra.mxu0 0.0
  %v7922 = vand.u32 %v7905, 4294901760
  %7923 = vmatpush.msra.mxu0 %v7922
  %v7924 = vand.u32 %v7902, 4294901760
  %v7925 = vsub.f32 %v7902, %v7924
  %v7926 = vand.u32 %v7925, 4294901760
  %v7927 = vsub.f32 %v7925, %v7926
  %v7928 = vand.u32 %v7927, 4294901760
  %7929 = vmatmul.f32.gmra.mxu0 %v7928
  %v7930 = vpop.f32.mrf.mxu0
  %v7931 = vadd.f32 %v7899, %v7930
  %7932 = vdwg.mxu0
  %7933 = vmatpush.msra.mxu0 0.0
  %7934 = vmatpush.msra.mxu0 0.0
  %7935 = vmatpush.msra.mxu0 0.0
  %7936 = vmatpush.msra.mxu0 0.0
  %7937 = vmatpush.msra.mxu0 0.0
  %7938 = vmatpush.msra.mxu0 0.0
  %7939 = vmatpush.msra.mxu0 0.0
  %7940 = vmatpush.msra.mxu0 0.0
  %7941 = vmatpush.msra.mxu0 0.0
  %7942 = vmatpush.msra.mxu0 0.0
  %7943 = vmatpush.msra.mxu0 0.0
  %7944 = vmatpush.msra.mxu0 0.0
  %7945 = vmatpush.msra.mxu0 0.0
  %7946 = vmatpush.msra.mxu0 0.0
  %7947 = vmatpush.msra.mxu0 0.0
  %v7948 = vand.u32 %v7905, 4294901760
  %v7949 = vsub.f32 %v7905, %v7948
  %v7950 = vand.u32 %v7949, 4294901760
  %v7951 = vsub.f32 %v7949, %v7950
  %v7952 = vand.u32 %v7951, 4294901760
  %7953 = vmatpush.msra.mxu0 %v7952
  %v7954 = vand.u32 %v7902, 4294901760
  %7955 = vmatmul.f32.gmra.mxu0 %v7954
  %v7956 = vpop.f32.mrf.mxu0
  %v7957 = vadd.f32 %v7931, %v7956
  %7958 = vdwg.mxu0
  %7959 = vmatpush.msra.mxu0 0.0
  %7960 = vmatpush.msra.mxu0 0.0
  %7961 = vmatpush.msra.mxu0 0.0
  %7962 = vmatpush.msra.mxu0 0.0
  %7963 = vmatpush.msra.mxu0 0.0
  %7964 = vmatpush.msra.mxu0 0.0
  %7965 = vmatpush.msra.mxu0 0.0
  %7966 = vmatpush.msra.mxu0 0.0
  %7967 = vmatpush.msra.mxu0 0.0
  %7968 = vmatpush.msra.mxu0 0.0
  %7969 = vmatpush.msra.mxu0 0.0
  %7970 = vmatpush.msra.mxu0 0.0
  %7971 = vmatpush.msra.mxu0 0.0
  %7972 = vmatpush.msra.mxu0 0.0
  %7973 = vmatpush.msra.mxu0 0.0
  %v7974 = vand.u32 %v7905, 4294901760
  %v7975 = vsub.f32 %v7905, %v7974
  %7976 = vmatpush.msra.mxu0 %v7975
  %v7977 = vand.u32 %v7902, 4294901760
  %v7978 = vsub.f32 %v7902, %v7977
  %7979 = vmatmul.f32.gmra.mxu0 %v7978
  %v7980 = vpop.f32.mrf.mxu0
  %v7981 = vadd.f32 %v7957, %v7980
  %7982 = vdwg.mxu0
  %7983 = vmatpush.msra.mxu0 0.0
  %7984 = vmatpush.msra.mxu0 0.0
  %7985 = vmatpush.msra.mxu0 0.0
  %7986 = vmatpush.msra.mxu0 0.0
  %7987 = vmatpush.msra.mxu0 0.0
  %7988 = vmatpush.msra.mxu0 0.0
  %7989 = vmatpush.msra.mxu0 0.0
  %7990 = vmatpush.msra.mxu0 0.0
  %7991 = vmatpush.msra.mxu0 0.0
  %7992 = vmatpush.msra.mxu0 0.0
  %7993 = vmatpush.msra.mxu0 0.0
  %7994 = vmatpush.msra.mxu0 0.0
  %7995 = vmatpush.msra.mxu0 0.0
  %7996 = vmatpush.msra.mxu0 0.0
  %7997 = vmatpush.msra.mxu0 0.0
  %v7998 = vand.u32 %v7905, 4294901760
  %7999 = vmatpush.msra.mxu0 %v7998
  %v8000 = vand.u32 %v7902, 4294901760
  %v8001 = vsub.f32 %v7902, %v8000
  %v8002 = vand.u32 %v8001, 4294901760
  %8003 = vmatmul.f32.gmra.mxu0 %v8002
  %v8004 = vpop.f32.mrf.mxu0
  %v8005 = vadd.f32 %v7981, %v8004
  %8006 = vdwg.mxu0
  %8007 = vmatpush.msra.mxu0 0.0
  %8008 = vmatpush.msra.mxu0 0.0
  %8009 = vmatpush.msra.mxu0 0.0
  %8010 = vmatpush.msra.mxu0 0.0
  %8011 = vmatpush.msra.mxu0 0.0
  %8012 = vmatpush.msra.mxu0 0.0
  %8013 = vmatpush.msra.mxu0 0.0
  %8014 = vmatpush.msra.mxu0 0.0
  %8015 = vmatpush.msra.mxu0 0.0
  %8016 = vmatpush.msra.mxu0 0.0
  %8017 = vmatpush.msra.mxu0 0.0
  %8018 = vmatpush.msra.mxu0 0.0
  %8019 = vmatpush.msra.mxu0 0.0
  %8020 = vmatpush.msra.mxu0 0.0
  %8021 = vmatpush.msra.mxu0 0.0
  %v8022 = vand.u32 %v7905, 4294901760
  %v8023 = vsub.f32 %v7905, %v8022
  %v8024 = vand.u32 %v8023, 4294901760
  %8025 = vmatpush.msra.mxu0 %v8024
  %v8026 = vand.u32 %v7902, 4294901760
  %8027 = vmatmul.f32.gmra.mxu0 %v8026
  %v8028 = vpop.f32.mrf.mxu0
  %v8029 = vadd.f32 %v8005, %v8028
  %8030 = vdwg.mxu0
  %8031 = vmatpush.msra.mxu0 0.0
  %8032 = vmatpush.msra.mxu0 0.0
  %8033 = vmatpush.msra.mxu0 0.0
  %8034 = vmatpush.msra.mxu0 0.0
  %8035 = vmatpush.msra.mxu0 0.0
  %8036 = vmatpush.msra.mxu0 0.0
  %8037 = vmatpush.msra.mxu0 0.0
  %8038 = vmatpush.msra.mxu0 0.0
  %8039 = vmatpush.msra.mxu0 0.0
  %8040 = vmatpush.msra.mxu0 0.0
  %8041 = vmatpush.msra.mxu0 0.0
  %8042 = vmatpush.msra.mxu0 0.0
  %8043 = vmatpush.msra.mxu0 0.0
  %8044 = vmatpush.msra.mxu0 0.0
  %8045 = vmatpush.msra.mxu0 0.0
  %v8046 = vand.u32 %v7905, 4294901760
  %8047 = vmatpush.msra.mxu0 %v8046
  %v8048 = vand.u32 %v7902, 4294901760
  %8049 = vmatmul.f32.gmra.mxu0 %v8048
  %v8050 = vpop.f32.mrf.mxu0
  %v8051 = vadd.f32 %v8029, %v8050
  %8052 = vdwg.mxu0
  %v8053 = vadd.f32 %v8051, 3.0
  %v8054 = vmax.f32 %v8053, 0.0
  %v8055 = vmin.f32 %v8054, 6.0
  %v8056 = vmul.f32 %v8055, 0.16666667
  %v8057 = vperm.slane %v8056, 0
  %v8058 = vmul.f32 %v6820, %v8057
  %v8059 = vmul.f32 %v6824, %v8057
  %v8060 = vmul.f32 %v6828, %v8057
  %v8061 = vmul.f32 %v6832, %v8057
  %v8062 = vmul.f32 %v6836, %v8057
  %v8063 = vmul.f32 %v6840, %v8057
  %v8064 = vmul.f32 %v6844, %v8057
  %v8065 = vmul.f32 %v6848, %v8057
  %v8066 = vmul.f32 %v6852, %v8057
  %v8067 = vmul.f32 %v6856, %v8057
  %v8068 = vmul.f32 %v6860, %v8057
  %v8069 = vmul.f32 %v6864, %v8057
  %v8070 = vmul.f32 %v6868, %v8057
  %v8071 = vmul.f32 %v6872, %v8057
  %v8072 = vmul.f32 %v6876, %v8057
  %v8073 = vmul.f32 %v6880, %v8057
  %v8074 = vmul.f32 %v6884, %v8057
  %v8075 = vmul.f32 %v6888, %v8057
  %v8076 = vmul.f32 %v6892, %v8057
  %v8077 = vmul.f32 %v6896, %v8057
  %v8078 = vmul.f32 %v6900, %v8057
  %v8079 = vmul.f32 %v6904, %v8057
  %v8080 = vmul.f32 %v6908, %v8057
  %v8081 = vmul.f32 %v6912, %v8057
  %v8082 = vmul.f32 %v6916, %v8057
  %v8083 = vmul.f32 %v6920, %v8057
  %v8084 = vmul.f32 %v6924, %v8057
  %v8085 = vmul.f32 %v6928, %v8057
  %v8086 = vmul.f32 %v6932, %v8057
  %v8087 = vmul.f32 %v6936, %v8057
  %v8088 = vmul.f32 %v6940, %v8057
  %v8089 = vmul.f32 %v6944, %v8057
  %v8090 = vmul.f32 %v6948, %v8057
  %v8091 = vmul.f32 %v6952, %v8057
  %v8092 = vmul.f32 %v6956, %v8057
  %v8093 = vmul.f32 %v6960, %v8057
  %v8094 = vmul.f32 %v6964, %v8057
  %v8095 = vmul.f32 %v6968, %v8057
  %v8096 = vmul.f32 %v6972, %v8057
  %v8097 = vmul.f32 %v6976, %v8057
  %v8098 = vmul.f32 %v6980, %v8057
  %v8099 = vmul.f32 %v6984, %v8057
  %v8100 = vmul.f32 %v6988, %v8057
  %v8101 = vmul.f32 %v6992, %v8057
  %v8102 = vmul.f32 %v6996, %v8057
  %v8103 = vmul.f32 %v7000, %v8057
  %v8104 = vmul.f32 %v7004, %v8057
  %v8105 = vmul.f32 %v7008, %v8057
  %v8106 = vmul.f32 %v7012, %v8057
  %v8107 = vmul.f32 %v7016, %v8057
  %v8108 = vmul.f32 %v7020, %v8057
  %v8109 = vmul.f32 %v7024, %v8057
  %v8110 = vmul.f32 %v7028, %v8057
  %v8111 = vmul.f32 %v7032, %v8057
  %v8112 = vmul.f32 %v7036, %v8057
  %v8113 = vmul.f32 %v7040, %v8057
  %v8114 = vmul.f32 %v7044, %v8057
  %v8115 = vmul.f32 %v7048, %v8057
  %v8116 = vmul.f32 %v7052, %v8057
  %v8117 = vmul.f32 %v7056, %v8057
  %v8118 = vmul.f32 %v7060, %v8057
  %v8119 = vmul.f32 %v7064, %v8057
  %v8120 = vmul.f32 %v7068, %v8057
  %v8121 = vmul.f32 %v7072, %v8057
  %v8122 = vperm.slane %v8056, 1
  %v8123 = vmul.f32 %v7275, %v8122
  %v8124 = vmul.f32 %v7279, %v8122
  %v8125 = vmul.f32 %v7283, %v8122
  %v8126 = vmul.f32 %v7287, %v8122
  %v8127 = vmul.f32 %v7291, %v8122
  %v8128 = vmul.f32 %v7295, %v8122
  %v8129 = vmul.f32 %v7299, %v8122
  %v8130 = vmul.f32 %v7303, %v8122
  %v8131 = vmul.f32 %v7307, %v8122
  %v8132 = vmul.f32 %v7311, %v8122
  %v8133 = vmul.f32 %v7315, %v8122
  %v8134 = vmul.f32 %v7319, %v8122
  %v8135 = vmul.f32 %v7323, %v8122
  %v8136 = vmul.f32 %v7327, %v8122
  %v8137 = vmul.f32 %v7331, %v8122
  %v8138 = vmul.f32 %v7335, %v8122
  %v8139 = vmul.f32 %v7339, %v8122
  %v8140 = vmul.f32 %v7343, %v8122
  %v8141 = vmul.f32 %v7347, %v8122
  %v8142 = vmul.f32 %v7351, %v8122
  %v8143 = vmul.f32 %v7355, %v8122
  %v8144 = vmul.f32 %v7359, %v8122
  %v8145 = vmul.f32 %v7363, %v8122
  %v8146 = vmul.f32 %v7367, %v8122
  %v8147 = vmul.f32 %v7371, %v8122
  %v8148 = vmul.f32 %v7375, %v8122
  %v8149 = vmul.f32 %v7379, %v8122
  %v8150 = vmul.f32 %v7383, %v8122
  %v8151 = vmul.f32 %v7387, %v8122
  %v8152 = vmul.f32 %v7391, %v8122
  %v8153 = vmul.f32 %v7395, %v8122
  %v8154 = vmul.f32 %v7399, %v8122
  %v8155 = vmul.f32 %v7403, %v8122
  %v8156 = vmul.f32 %v7407, %v8122
  %v8157 = vmul.f32 %v7411, %v8122
  %v8158 = vmul.f32 %v7415, %v8122
  %v8159 = vmul.f32 %v7419, %v8122
  %v8160 = vmul.f32 %v7423, %v8122
  %v8161 = vmul.f32 %v7427, %v8122
  %v8162 = vmul.f32 %v7431, %v8122
  %v8163 = vmul.f32 %v7435, %v8122
  %v8164 = vmul.f32 %v7439, %v8122
  %v8165 = vmul.f32 %v7443, %v8122
  %v8166 = vmul.f32 %v7447, %v8122
  %v8167 = vmul.f32 %v7451, %v8122
  %v8168 = vmul.f32 %v7455, %v8122
  %v8169 = vmul.f32 %v7459, %v8122
  %v8170 = vmul.f32 %v7463, %v8122
  %v8171 = vmul.f32 %v7467, %v8122
  %v8172 = vmul.f32 %v7471, %v8122
  %v8173 = vmul.f32 %v7475, %v8122
  %v8174 = vmul.f32 %v7479, %v8122
  %v8175 = vmul.f32 %v7483, %v8122
  %v8176 = vmul.f32 %v7487, %v8122
  %v8177 = vmul.f32 %v7491, %v8122
  %v8178 = vmul.f32 %v7495, %v8122
  %v8179 = vmul.f32 %v7499, %v8122
  %v8180 = vmul.f32 %v7503, %v8122
  %v8181 = vmul.f32 %v7507, %v8122
  %v8182 = vmul.f32 %v7511, %v8122
  %v8183 = vmul.f32 %v7515, %v8122
  %v8184 = vmul.f32 %v7519, %v8122
  %v8185 = vmul.f32 %v7523, %v8122
  %v8186 = vmul.f32 %v7527, %v8122
  %v8187 = vadd.f32 %v8058, %v8123
  %v8188 = vadd.f32 %v8059, %v8124
  %v8189 = vadd.f32 %v8060, %v8125
  %v8190 = vadd.f32 %v8061, %v8126
  %v8191 = vadd.f32 %v8062, %v8127
  %v8192 = vadd.f32 %v8063, %v8128
  %v8193 = vadd.f32 %v8064, %v8129
  %v8194 = vadd.f32 %v8065, %v8130
  %v8195 = vadd.f32 %v8066, %v8131
  %v8196 = vadd.f32 %v8067, %v8132
  %v8197 = vadd.f32 %v8068, %v8133
  %v8198 = vadd.f32 %v8069, %v8134
  %v8199 = vadd.f32 %v8070, %v8135
  %v8200 = vadd.f32 %v8071, %v8136
  %v8201 = vadd.f32 %v8072, %v8137
  %v8202 = vadd.f32 %v8073, %v8138
  %v8203 = vadd.f32 %v8074, %v8139
  %v8204 = vadd.f32 %v8075, %v8140
  %v8205 = vadd.f32 %v8076, %v8141
  %v8206 = vadd.f32 %v8077, %v8142
  %v8207 = vadd.f32 %v8078, %v8143
  %v8208 = vadd.f32 %v8079, %v8144
  %v8209 = vadd.f32 %v8080, %v8145
  %v8210 = vadd.f32 %v8081, %v8146
  %v8211 = vadd.f32 %v8082, %v8147
  %v8212 = vadd.f32 %v8083, %v8148
  %v8213 = vadd.f32 %v8084, %v8149
  %v8214 = vadd.f32 %v8085, %v8150
  %v8215 = vadd.f32 %v8086, %v8151
  %v8216 = vadd.f32 %v8087, %v8152
  %v8217 = vadd.f32 %v8088, %v8153
  %v8218 = vadd.f32 %v8089, %v8154
  %v8219 = vadd.f32 %v8090, %v8155
  %v8220 = vadd.f32 %v8091, %v8156
  %v8221 = vadd.f32 %v8092, %v8157
  %v8222 = vadd.f32 %v8093, %v8158
  %v8223 = vadd.f32 %v8094, %v8159
  %v8224 = vadd.f32 %v8095, %v8160
  %v8225 = vadd.f32 %v8096, %v8161
  %v8226 = vadd.f32 %v8097, %v8162
  %v8227 = vadd.f32 %v8098, %v8163
  %v8228 = vadd.f32 %v8099, %v8164
  %v8229 = vadd.f32 %v8100, %v8165
  %v8230 = vadd.f32 %v8101, %v8166
  %v8231 = vadd.f32 %v8102, %v8167
  %v8232 = vadd.f32 %v8103, %v8168
  %v8233 = vadd.f32 %v8104, %v8169
  %v8234 = vadd.f32 %v8105, %v8170
  %v8235 = vadd.f32 %v8106, %v8171
  %v8236 = vadd.f32 %v8107, %v8172
  %v8237 = vadd.f32 %v8108, %v8173
  %v8238 = vadd.f32 %v8109, %v8174
  %v8239 = vadd.f32 %v8110, %v8175
  %v8240 = vadd.f32 %v8111, %v8176
  %v8241 = vadd.f32 %v8112, %v8177
  %v8242 = vadd.f32 %v8113, %v8178
  %v8243 = vadd.f32 %v8114, %v8179
  %v8244 = vadd.f32 %v8115, %v8180
  %v8245 = vadd.f32 %v8116, %v8181
  %v8246 = vadd.f32 %v8117, %v8182
  %v8247 = vadd.f32 %v8118, %v8183
  %v8248 = vadd.f32 %v8119, %v8184
  %v8249 = vadd.f32 %v8120, %v8185
  %v8250 = vadd.f32 %v8121, %v8186
  %v8251 = vmul.f32 %v6754, %v8187
  %v8252 = vmul.f32 %v6755, %v8188
  %v8253 = vmul.f32 %v6756, %v8189
  %v8254 = vmul.f32 %v6757, %v8190
  %v8255 = vmul.f32 %v6758, %v8191
  %v8256 = vmul.f32 %v6759, %v8192
  %v8257 = vmul.f32 %v6760, %v8193
  %v8258 = vmul.f32 %v6761, %v8194
  %v8259 = vmul.f32 %v6762, %v8195
  %v8260 = vmul.f32 %v6763, %v8196
  %v8261 = vmul.f32 %v6764, %v8197
  %v8262 = vmul.f32 %v6765, %v8198
  %v8263 = vmul.f32 %v6766, %v8199
  %v8264 = vmul.f32 %v6767, %v8200
  %v8265 = vmul.f32 %v6768, %v8201
  %v8266 = vmul.f32 %v6769, %v8202
  %v8267 = vmul.f32 %v6770, %v8203
  %v8268 = vmul.f32 %v6771, %v8204
  %v8269 = vmul.f32 %v6772, %v8205
  %v8270 = vmul.f32 %v6773, %v8206
  %v8271 = vmul.f32 %v6774, %v8207
  %v8272 = vmul.f32 %v6775, %v8208
  %v8273 = vmul.f32 %v6776, %v8209
  %v8274 = vmul.f32 %v6777, %v8210
  %v8275 = vmul.f32 %v6778, %v8211
  %v8276 = vmul.f32 %v6779, %v8212
  %v8277 = vmul.f32 %v6780, %v8213
  %v8278 = vmul.f32 %v6781, %v8214
  %v8279 = vmul.f32 %v6782, %v8215
  %v8280 = vmul.f32 %v6783, %v8216
  %v8281 = vmul.f32 %v6784, %v8217
  %v8282 = vmul.f32 %v6785, %v8218
  %v8283 = vmul.f32 %v6786, %v8219
  %v8284 = vmul.f32 %v6787, %v8220
  %v8285 = vmul.f32 %v6788, %v8221
  %v8286 = vmul.f32 %v6789, %v8222
  %v8287 = vmul.f32 %v6790, %v8223
  %v8288 = vmul.f32 %v6791, %v8224
  %v8289 = vmul.f32 %v6792, %v8225
  %v8290 = vmul.f32 %v6793, %v8226
  %v8291 = vmul.f32 %v6794, %v8227
  %v8292 = vmul.f32 %v6795, %v8228
  %v8293 = vmul.f32 %v6796, %v8229
  %v8294 = vmul.f32 %v6797, %v8230
  %v8295 = vmul.f32 %v6798, %v8231
  %v8296 = vmul.f32 %v6799, %v8232
  %v8297 = vmul.f32 %v6800, %v8233
  %v8298 = vmul.f32 %v6801, %v8234
  %v8299 = vmul.f32 %v6802, %v8235
  %v8300 = vmul.f32 %v6803, %v8236
  %v8301 = vmul.f32 %v6804, %v8237
  %v8302 = vmul.f32 %v6805, %v8238
  %v8303 = vmul.f32 %v6806, %v8239
  %v8304 = vmul.f32 %v6807, %v8240
  %v8305 = vmul.f32 %v6808, %v8241
  %v8306 = vmul.f32 %v6809, %v8242
  %v8307 = vmul.f32 %v6810, %v8243
  %v8308 = vmul.f32 %v6811, %v8244
  %v8309 = vmul.f32 %v6812, %v8245
  %v8310 = vmul.f32 %v6813, %v8246
  %v8311 = vmul.f32 %v6814, %v8247
  %v8312 = vmul.f32 %v6815, %v8248
  %v8313 = vmul.f32 %v6816, %v8249
  %v8314 = vmul.f32 %v6817, %v8250
  %v8315 = vadd.f32 %v8251, 3.0
  %v8316 = vadd.f32 %v8252, 3.0
  %v8317 = vadd.f32 %v8253, 3.0
  %v8318 = vadd.f32 %v8254, 3.0
  %v8319 = vadd.f32 %v8255, 3.0
  %v8320 = vadd.f32 %v8256, 3.0
  %v8321 = vadd.f32 %v8257, 3.0
  %v8322 = vadd.f32 %v8258, 3.0
  %v8323 = vadd.f32 %v8259, 3.0
  %v8324 = vadd.f32 %v8260, 3.0
  %v8325 = vadd.f32 %v8261, 3.0
  %v8326 = vadd.f32 %v8262, 3.0
  %v8327 = vadd.f32 %v8263, 3.0
  %v8328 = vadd.f32 %v8264, 3.0
  %v8329 = vadd.f32 %v8265, 3.0
  %v8330 = vadd.f32 %v8266, 3.0
  %v8331 = vadd.f32 %v8267, 3.0
  %v8332 = vadd.f32 %v8268, 3.0
  %v8333 = vadd.f32 %v8269, 3.0
  %v8334 = vadd.f32 %v8270, 3.0
  %v8335 = vadd.f32 %v8271, 3.0
  %v8336 = vadd.f32 %v8272, 3.0
  %v8337 = vadd.f32 %v8273, 3.0
  %v8338 = vadd.f32 %v8274, 3.0
  %v8339 = vadd.f32 %v8275, 3.0
  %v8340 = vadd.f32 %v8276, 3.0
  %v8341 = vadd.f32 %v8277, 3.0
  %v8342 = vadd.f32 %v8278, 3.0
  %v8343 = vadd.f32 %v8279, 3.0
  %v8344 = vadd.f32 %v8280, 3.0
  %v8345 = vadd.f32 %v8281, 3.0
  %v8346 = vadd.f32 %v8282, 3.0
  %v8347 = vadd.f32 %v8283, 3.0
  %v8348 = vadd.f32 %v8284, 3.0
  %v8349 = vadd.f32 %v8285, 3.0
  %v8350 = vadd.f32 %v8286, 3.0
  %v8351 = vadd.f32 %v8287, 3.0
  %v8352 = vadd.f32 %v8288, 3.0
  %v8353 = vadd.f32 %v8289, 3.0
  %v8354 = vadd.f32 %v8290, 3.0
  %v8355 = vadd.f32 %v8291, 3.0
  %v8356 = vadd.f32 %v8292, 3.0
  %v8357 = vadd.f32 %v8293, 3.0
  %v8358 = vadd.f32 %v8294, 3.0
  %v8359 = vadd.f32 %v8295, 3.0
  %v8360 = vadd.f32 %v8296, 3.0
  %v8361 = vadd.f32 %v8297, 3.0
  %v8362 = vadd.f32 %v8298, 3.0
  %v8363 = vadd.f32 %v8299, 3.0
  %v8364 = vadd.f32 %v8300, 3.0
  %v8365 = vadd.f32 %v8301, 3.0
  %v8366 = vadd.f32 %v8302, 3.0
  %v8367 = vadd.f32 %v8303, 3.0
  %v8368 = vadd.f32 %v8304, 3.0
  %v8369 = vadd.f32 %v8305, 3.0
  %v8370 = vadd.f32 %v8306, 3.0
  %v8371 = vadd.f32 %v8307, 3.0
  %v8372 = vadd.f32 %v8308, 3.0
  %v8373 = vadd.f32 %v8309, 3.0
  %v8374 = vadd.f32 %v8310, 3.0
  %v8375 = vadd.f32 %v8311, 3.0
  %v8376 = vadd.f32 %v8312, 3.0
  %v8377 = vadd.f32 %v8313, 3.0
  %v8378 = vadd.f32 %v8314, 3.0
  %v8379 = vmax.f32 %v8315, 0.0
  %v8380 = vmax.f32 %v8316, 0.0
  %v8381 = vmax.f32 %v8317, 0.0
  %v8382 = vmax.f32 %v8318, 0.0
  %v8383 = vmax.f32 %v8319, 0.0
  %v8384 = vmax.f32 %v8320, 0.0
  %v8385 = vmax.f32 %v8321, 0.0
  %v8386 = vmax.f32 %v8322, 0.0
  %v8387 = vmax.f32 %v8323, 0.0
  %v8388 = vmax.f32 %v8324, 0.0
  %v8389 = vmax.f32 %v8325, 0.0
  %v8390 = vmax.f32 %v8326, 0.0
  %v8391 = vmax.f32 %v8327, 0.0
  %v8392 = vmax.f32 %v8328, 0.0
  %v8393 = vmax.f32 %v8329, 0.0
  %v8394 = vmax.f32 %v8330, 0.0
  %v8395 = vmax.f32 %v8331, 0.0
  %v8396 = vmax.f32 %v8332, 0.0
  %v8397 = vmax.f32 %v8333, 0.0
  %v8398 = vmax.f32 %v8334, 0.0
  %v8399 = vmax.f32 %v8335, 0.0
  %v8400 = vmax.f32 %v8336, 0.0
  %v8401 = vmax.f32 %v8337, 0.0
  %v8402 = vmax.f32 %v8338, 0.0
  %v8403 = vmax.f32 %v8339, 0.0
  %v8404 = vmax.f32 %v8340, 0.0
  %v8405 = vmax.f32 %v8341, 0.0
  %v8406 = vmax.f32 %v8342, 0.0
  %v8407 = vmax.f32 %v8343, 0.0
  %v8408 = vmax.f32 %v8344, 0.0
  %v8409 = vmax.f32 %v8345, 0.0
  %v8410 = vmax.f32 %v8346, 0.0
  %v8411 = vmax.f32 %v8347, 0.0
  %v8412 = vmax.f32 %v8348, 0.0
  %v8413 = vmax.f32 %v8349, 0.0
  %v8414 = vmax.f32 %v8350, 0.0
  %v8415 = vmax.f32 %v8351, 0.0
  %v8416 = vmax.f32 %v8352, 0.0
  %v8417 = vmax.f32 %v8353, 0.0
  %v8418 = vmax.f32 %v8354, 0.0
  %v8419 = vmax.f32 %v8355, 0.0
  %v8420 = vmax.f32 %v8356, 0.0
  %v8421 = vmax.f32 %v8357, 0.0
  %v8422 = vmax.f32 %v8358, 0.0
  %v8423 = vmax.f32 %v8359, 0.0
  %v8424 = vmax.f32 %v8360, 0.0
  %v8425 = vmax.f32 %v8361, 0.0
  %v8426 = vmax.f32 %v8362, 0.0
  %v8427 = vmax.f32 %v8363, 0.0
  %v8428 = vmax.f32 %v8364, 0.0
  %v8429 = vmax.f32 %v8365, 0.0
  %v8430 = vmax.f32 %v8366, 0.0
  %v8431 = vmax.f32 %v8367, 0.0
  %v8432 = vmax.f32 %v8368, 0.0
  %v8433 = vmax.f32 %v8369, 0.0
  %v8434 = vmax.f32 %v8370, 0.0
  %v8435 = vmax.f32 %v8371, 0.0
  %v8436 = vmax.f32 %v8372, 0.0
  %v8437 = vmax.f32 %v8373, 0.0
  %v8438 = vmax.f32 %v8374, 0.0
  %v8439 = vmax.f32 %v8375, 0.0
  %v8440 = vmax.f32 %v8376, 0.0
  %v8441 = vmax.f32 %v8377, 0.0
  %v8442 = vmax.f32 %v8378, 0.0
  %v8443 = vmin.f32 %v8379, 6.0
  %v8444 = vmin.f32 %v8380, 6.0
  %v8445 = vmin.f32 %v8381, 6.0
  %v8446 = vmin.f32 %v8382, 6.0
  %v8447 = vmin.f32 %v8383, 6.0
  %v8448 = vmin.f32 %v8384, 6.0
  %v8449 = vmin.f32 %v8385, 6.0
  %v8450 = vmin.f32 %v8386, 6.0
  %v8451 = vmin.f32 %v8387, 6.0
  %v8452 = vmin.f32 %v8388, 6.0
  %v8453 = vmin.f32 %v8389, 6.0
  %v8454 = vmin.f32 %v8390, 6.0
  %v8455 = vmin.f32 %v8391, 6.0
  %v8456 = vmin.f32 %v8392, 6.0
  %v8457 = vmin.f32 %v8393, 6.0
  %v8458 = vmin.f32 %v8394, 6.0
  %v8459 = vmin.f32 %v8395, 6.0
  %v8460 = vmin.f32 %v8396, 6.0
  %v8461 = vmin.f32 %v8397, 6.0
  %v8462 = vmin.f32 %v8398, 6.0
  %v8463 = vmin.f32 %v8399, 6.0
  %v8464 = vmin.f32 %v8400, 6.0
  %v8465 = vmin.f32 %v8401, 6.0
  %v8466 = vmin.f32 %v8402, 6.0
  %v8467 = vmin.f32 %v8403, 6.0
  %v8468 = vmin.f32 %v8404, 6.0
  %v8469 = vmin.f32 %v8405, 6.0
  %v8470 = vmin.f32 %v8406, 6.0
  %v8471 = vmin.f32 %v8407, 6.0
  %v8472 = vmin.f32 %v8408, 6.0
  %v8473 = vmin.f32 %v8409, 6.0
  %v8474 = vmin.f32 %v8410, 6.0
  %v8475 = vmin.f32 %v8411, 6.0
  %v8476 = vmin.f32 %v8412, 6.0
  %v8477 = vmin.f32 %v8413, 6.0
  %v8478 = vmin.f32 %v8414, 6.0
  %v8479 = vmin.f32 %v8415, 6.0
  %v8480 = vmin.f32 %v8416, 6.0
  %v8481 = vmin.f32 %v8417, 6.0
  %v8482 = vmin.f32 %v8418, 6.0
  %v8483 = vmin.f32 %v8419, 6.0
  %v8484 = vmin.f32 %v8420, 6.0
  %v8485 = vmin.f32 %v8421, 6.0
  %v8486 = vmin.f32 %v8422, 6.0
  %v8487 = vmin.f32 %v8423, 6.0
  %v8488 = vmin.f32 %v8424, 6.0
  %v8489 = vmin.f32 %v8425, 6.0
  %v8490 = vmin.f32 %v8426, 6.0
  %v8491 = vmin.f32 %v8427, 6.0
  %v8492 = vmin.f32 %v8428, 6.0
  %v8493 = vmin.f32 %v8429, 6.0
  %v8494 = vmin.f32 %v8430, 6.0
  %v8495 = vmin.f32 %v8431, 6.0
  %v8496 = vmin.f32 %v8432, 6.0
  %v8497 = vmin.f32 %v8433, 6.0
  %v8498 = vmin.f32 %v8434, 6.0
  %v8499 = vmin.f32 %v8435, 6.0
  %v8500 = vmin.f32 %v8436, 6.0
  %v8501 = vmin.f32 %v8437, 6.0
  %v8502 = vmin.f32 %v8438, 6.0
  %v8503 = vmin.f32 %v8439, 6.0
  %v8504 = vmin.f32 %v8440, 6.0
  %v8505 = vmin.f32 %v8441, 6.0
  %v8506 = vmin.f32 %v8442, 6.0
  %v8507 = vmul.f32 %v8251, %v8443
  %v8508 = vmul.f32 %v8252, %v8444
  %v8509 = vmul.f32 %v8253, %v8445
  %v8510 = vmul.f32 %v8254, %v8446
  %v8511 = vmul.f32 %v8255, %v8447
  %v8512 = vmul.f32 %v8256, %v8448
  %v8513 = vmul.f32 %v8257, %v8449
  %v8514 = vmul.f32 %v8258, %v8450
  %v8515 = vmul.f32 %v8259, %v8451
  %v8516 = vmul.f32 %v8260, %v8452
  %v8517 = vmul.f32 %v8261, %v8453
  %v8518 = vmul.f32 %v8262, %v8454
  %v8519 = vmul.f32 %v8263, %v8455
  %v8520 = vmul.f32 %v8264, %v8456
  %v8521 = vmul.f32 %v8265, %v8457
  %v8522 = vmul.f32 %v8266, %v8458
  %v8523 = vmul.f32 %v8267, %v8459
  %v8524 = vmul.f32 %v8268, %v8460
  %v8525 = vmul.f32 %v8269, %v8461
  %v8526 = vmul.f32 %v8270, %v8462
  %v8527 = vmul.f32 %v8271, %v8463
  %v8528 = vmul.f32 %v8272, %v8464
  %v8529 = vmul.f32 %v8273, %v8465
  %v8530 = vmul.f32 %v8274, %v8466
  %v8531 = vmul.f32 %v8275, %v8467
  %v8532 = vmul.f32 %v8276, %v8468
  %v8533 = vmul.f32 %v8277, %v8469
  %v8534 = vmul.f32 %v8278, %v8470
  %v8535 = vmul.f32 %v8279, %v8471
  %v8536 = vmul.f32 %v8280, %v8472
  %v8537 = vmul.f32 %v8281, %v8473
  %v8538 = vmul.f32 %v8282, %v8474
  %v8539 = vmul.f32 %v8283, %v8475
  %v8540 = vmul.f32 %v8284, %v8476
  %v8541 = vmul.f32 %v8285, %v8477
  %v8542 = vmul.f32 %v8286, %v8478
  %v8543 = vmul.f32 %v8287, %v8479
  %v8544 = vmul.f32 %v8288, %v8480
  %v8545 = vmul.f32 %v8289, %v8481
  %v8546 = vmul.f32 %v8290, %v8482
  %v8547 = vmul.f32 %v8291, %v8483
  %v8548 = vmul.f32 %v8292, %v8484
  %v8549 = vmul.f32 %v8293, %v8485
  %v8550 = vmul.f32 %v8294, %v8486
  %v8551 = vmul.f32 %v8295, %v8487
  %v8552 = vmul.f32 %v8296, %v8488
  %v8553 = vmul.f32 %v8297, %v8489
  %v8554 = vmul.f32 %v8298, %v8490
  %v8555 = vmul.f32 %v8299, %v8491
  %v8556 = vmul.f32 %v8300, %v8492
  %v8557 = vmul.f32 %v8301, %v8493
  %v8558 = vmul.f32 %v8302, %v8494
  %v8559 = vmul.f32 %v8303, %v8495
  %v8560 = vmul.f32 %v8304, %v8496
  %v8561 = vmul.f32 %v8305, %v8497
  %v8562 = vmul.f32 %v8306, %v8498
  %v8563 = vmul.f32 %v8307, %v8499
  %v8564 = vmul.f32 %v8308, %v8500
  %v8565 = vmul.f32 %v8309, %v8501
  %v8566 = vmul.f32 %v8310, %v8502
  %v8567 = vmul.f32 %v8311, %v8503
  %v8568 = vmul.f32 %v8312, %v8504
  %v8569 = vmul.f32 %v8313, %v8505
  %v8570 = vmul.f32 %v8314, %v8506
  %v8571 = vmul.f32 %v8507, 0.16666667
  %v8572 = vmul.f32 %v8508, 0.16666667
  %v8573 = vmul.f32 %v8509, 0.16666667
  %v8574 = vmul.f32 %v8510, 0.16666667
  %v8575 = vmul.f32 %v8511, 0.16666667
  %v8576 = vmul.f32 %v8512, 0.16666667
  %v8577 = vmul.f32 %v8513, 0.16666667
  %v8578 = vmul.f32 %v8514, 0.16666667
  %v8579 = vmul.f32 %v8515, 0.16666667
  %v8580 = vmul.f32 %v8516, 0.16666667
  %v8581 = vmul.f32 %v8517, 0.16666667
  %v8582 = vmul.f32 %v8518, 0.16666667
  %v8583 = vmul.f32 %v8519, 0.16666667
  %v8584 = vmul.f32 %v8520, 0.16666667
  %v8585 = vmul.f32 %v8521, 0.16666667
  %v8586 = vmul.f32 %v8522, 0.16666667
  %v8587 = vmul.f32 %v8523, 0.16666667
  %v8588 = vmul.f32 %v8524, 0.16666667
  %v8589 = vmul.f32 %v8525, 0.16666667
  %v8590 = vmul.f32 %v8526, 0.16666667
  %v8591 = vmul.f32 %v8527, 0.16666667
  %v8592 = vmul.f32 %v8528, 0.16666667
  %v8593 = vmul.f32 %v8529, 0.16666667
  %v8594 = vmul.f32 %v8530, 0.16666667
  %v8595 = vmul.f32 %v8531, 0.16666667
  %v8596 = vmul.f32 %v8532, 0.16666667
  %v8597 = vmul.f32 %v8533, 0.16666667
  %v8598 = vmul.f32 %v8534, 0.16666667
  %v8599 = vmul.f32 %v8535, 0.16666667
  %v8600 = vmul.f32 %v8536, 0.16666667
  %v8601 = vmul.f32 %v8537, 0.16666667
  %v8602 = vmul.f32 %v8538, 0.16666667
  %v8603 = vmul.f32 %v8539, 0.16666667
  %v8604 = vmul.f32 %v8540, 0.16666667
  %v8605 = vmul.f32 %v8541, 0.16666667
  %v8606 = vmul.f32 %v8542, 0.16666667
  %v8607 = vmul.f32 %v8543, 0.16666667
  %v8608 = vmul.f32 %v8544, 0.16666667
  %v8609 = vmul.f32 %v8545, 0.16666667
  %v8610 = vmul.f32 %v8546, 0.16666667
  %v8611 = vmul.f32 %v8547, 0.16666667
  %v8612 = vmul.f32 %v8548, 0.16666667
  %v8613 = vmul.f32 %v8549, 0.16666667
  %v8614 = vmul.f32 %v8550, 0.16666667
  %v8615 = vmul.f32 %v8551, 0.16666667
  %v8616 = vmul.f32 %v8552, 0.16666667
  %v8617 = vmul.f32 %v8553, 0.16666667
  %v8618 = vmul.f32 %v8554, 0.16666667
  %v8619 = vmul.f32 %v8555, 0.16666667
  %v8620 = vmul.f32 %v8556, 0.16666667
  %v8621 = vmul.f32 %v8557, 0.16666667
  %v8622 = vmul.f32 %v8558, 0.16666667
  %v8623 = vmul.f32 %v8559, 0.16666667
  %v8624 = vmul.f32 %v8560, 0.16666667
  %v8625 = vmul.f32 %v8561, 0.16666667
  %v8626 = vmul.f32 %v8562, 0.16666667
  %v8627 = vmul.f32 %v8563, 0.16666667
  %v8628 = vmul.f32 %v8564, 0.16666667
  %v8629 = vmul.f32 %v8565, 0.16666667
  %v8630 = vmul.f32 %v8566, 0.16666667
  %v8631 = vmul.f32 %v8567, 0.16666667
  %v8632 = vmul.f32 %v8568, 0.16666667
  %v8633 = vmul.f32 %v8569, 0.16666667
  %v8634 = vmul.f32 %v8570, 0.16666667
  %v8635 = vld [vmem:[%s6] sm:$0xff]
  %v8636 = vld [vmem:[%s6 + $0x8] sm:$0xff]
  %8637 = vrot.lane.b32.xlu0 %v160, 68
  %v8638 = vpop.permute.xlu0 %8637
  %v8641 = vsel %vm7138, %v8571, 0
  %v8644 = vsel %vm7138, %v8572, 0
  %v8647 = vsel %vm7138, %v8573, 0
  %v8650 = vsel %vm7138, %v8574, 0
  %v8653 = vsel %vm7138, %v8575, 0
  %v8656 = vsel %vm7138, %v8576, 0
  %v8659 = vsel %vm7138, %v8577, 0
  %v8662 = vsel %vm7138, %v8578, 0
  %v8665 = vsel %vm7138, %v8579, 0
  %v8668 = vsel %vm7138, %v8580, 0
  %v8671 = vsel %vm7138, %v8581, 0
  %v8674 = vsel %vm7138, %v8582, 0
  %v8677 = vsel %vm7138, %v8583, 0
  %v8680 = vsel %vm7138, %v8584, 0
  %v8683 = vsel %vm7138, %v8585, 0
  %v8686 = vsel %vm7138, %v8586, 0
  %v8689 = vsel %vm7138, %v8587, 0
  %v8692 = vsel %vm7138, %v8588, 0
  %v8695 = vsel %vm7138, %v8589, 0
  %v8698 = vsel %vm7138, %v8590, 0
  %v8701 = vsel %vm7138, %v8591, 0
  %v8704 = vsel %vm7138, %v8592, 0
  %v8707 = vsel %vm7138, %v8593, 0
  %v8710 = vsel %vm7138, %v8594, 0
  %v8713 = vsel %vm7138, %v8595, 0
  %v8716 = vsel %vm7138, %v8596, 0
  %v8719 = vsel %vm7138, %v8597, 0
  %v8722 = vsel %vm7138, %v8598, 0
  %v8725 = vsel %vm7138, %v8599, 0
  %v8728 = vsel %vm7138, %v8600, 0
  %v8731 = vsel %vm7138, %v8601, 0
  %v8734 = vsel %vm7138, %v8602, 0
  %v8737 = vsel %vm7138, %v8603, 0
  %v8740 = vsel %vm7138, %v8604, 0
  %v8743 = vsel %vm7138, %v8605, 0
  %v8746 = vsel %vm7138, %v8606, 0
  %v8749 = vsel %vm7138, %v8607, 0
  %v8752 = vsel %vm7138, %v8608, 0
  %v8755 = vsel %vm7138, %v8609, 0
  %v8758 = vsel %vm7138, %v8610, 0
  %v8761 = vsel %vm7138, %v8611, 0
  %v8764 = vsel %vm7138, %v8612, 0
  %v8767 = vsel %vm7138, %v8613, 0
  %v8770 = vsel %vm7138, %v8614, 0
  %v8773 = vsel %vm7138, %v8615, 0
  %v8776 = vsel %vm7138, %v8616, 0
  %v8779 = vsel %vm7138, %v8617, 0
  %v8782 = vsel %vm7138, %v8618, 0
  %v8785 = vsel %vm7138, %v8619, 0
  %v8788 = vsel %vm7138, %v8620, 0
  %v8791 = vsel %vm7138, %v8621, 0
  %v8794 = vsel %vm7138, %v8622, 0
  %v8797 = vsel %vm7138, %v8623, 0
  %v8800 = vsel %vm7138, %v8624, 0
  %v8803 = vsel %vm7138, %v8625, 0
  %v8806 = vsel %vm7138, %v8626, 0
  %v8809 = vsel %vm7138, %v8627, 0
  %v8812 = vsel %vm7138, %v8628, 0
  %v8815 = vsel %vm7138, %v8629, 0
  %v8818 = vsel %vm7138, %v8630, 0
  %v8821 = vsel %vm7138, %v8631, 0
  %v8824 = vsel %vm7138, %v8632, 0
  %v8827 = vsel %vm7138, %v8633, 0
  %v8830 = vsel %vm7138, %v8634, 0
  %8832 = vmatpush.msra.mxu0 0.0
  %8833 = vmatpush.msra.mxu0 0.0
  %8834 = vmatpush.msra.mxu0 0.0
  %8835 = vmatpush.msra.mxu0 0.0
  %8836 = vmatpush.msra.mxu0 0.0
  %8837 = vmatpush.msra.mxu0 0.0
  %8838 = vmatpush.msra.mxu0 0.0
  %8839 = vmatpush.msra.mxu0 0.0
  %8840 = vmatpush.msra.mxu0 0.0
  %8841 = vmatpush.msra.mxu0 0.0
  %8842 = vmatpush.msra.mxu0 0.0
  %8843 = vmatpush.msra.mxu0 0.0
  %8844 = vmatpush.msra.mxu0 0.0
  %8845 = vmatpush.msra.mxu0 0.0
  %v8846 = vand.u32 %v8636, 4294901760
  %8847 = vmatpush.msra.mxu0 %v8846
  %v8848 = vand.u32 %v8635, 4294901760
  %8849 = vmatpush.msra.mxu0 %v8848
  %v8850 = vand.u32 %v8641, 4294901760
  %v8851 = vsub.f32 %v8641, %v8850
  %v8852 = vand.u32 %v8851, 4294901760
  %v8853 = vsub.f32 %v8851, %v8852
  %v8854 = vand.u32 %v8853, 4294901760
  %8855 = vmatmul.f32.gmra.mxu0 %v8854
  %v8856 = vpop.f32.mrf.mxu0
  %v8857 = vadd.f32 %v8638, %v8856
  %v8858 = vand.u32 %v8644, 4294901760
  %v8859 = vsub.f32 %v8644, %v8858
  %v8860 = vand.u32 %v8859, 4294901760
  %v8861 = vsub.f32 %v8859, %v8860
  %v8862 = vand.u32 %v8861, 4294901760
  %8863 = vmatmul.f32.gmra.mxu0 %v8862
  %v8864 = vpop.f32.mrf.mxu0
  %v8865 = vadd.f32 %v8638, %v8864
  %v8866 = vand.u32 %v8647, 4294901760
  %v8867 = vsub.f32 %v8647, %v8866
  %v8868 = vand.u32 %v8867, 4294901760
  %v8869 = vsub.f32 %v8867, %v8868
  %v8870 = vand.u32 %v8869, 4294901760
  %8871 = vmatmul.f32.gmra.mxu0 %v8870
  %v8872 = vpop.f32.mrf.mxu0
  %v8873 = vadd.f32 %v8638, %v8872
  %v8874 = vand.u32 %v8650, 4294901760
  %v8875 = vsub.f32 %v8650, %v8874
  %v8876 = vand.u32 %v8875, 4294901760
  %v8877 = vsub.f32 %v8875, %v8876
  %v8878 = vand.u32 %v8877, 4294901760
  %8879 = vmatmul.f32.gmra.mxu0 %v8878
  %v8880 = vpop.f32.mrf.mxu0
  %v8881 = vadd.f32 %v8638, %v8880
  %v8882 = vand.u32 %v8653, 4294901760
  %v8883 = vsub.f32 %v8653, %v8882
  %v8884 = vand.u32 %v8883, 4294901760
  %v8885 = vsub.f32 %v8883, %v8884
  %v8886 = vand.u32 %v8885, 4294901760
  %8887 = vmatmul.f32.gmra.mxu0 %v8886
  %v8888 = vpop.f32.mrf.mxu0
  %v8889 = vadd.f32 %v8638, %v8888
  %v8890 = vand.u32 %v8656, 4294901760
  %v8891 = vsub.f32 %v8656, %v8890
  %v8892 = vand.u32 %v8891, 4294901760
  %v8893 = vsub.f32 %v8891, %v8892
  %v8894 = vand.u32 %v8893, 4294901760
  %8895 = vmatmul.f32.gmra.mxu0 %v8894
  %v8896 = vpop.f32.mrf.mxu0
  %v8897 = vadd.f32 %v8638, %v8896
  %v8898 = vand.u32 %v8659, 4294901760
  %v8899 = vsub.f32 %v8659, %v8898
  %v8900 = vand.u32 %v8899, 4294901760
  %v8901 = vsub.f32 %v8899, %v8900
  %v8902 = vand.u32 %v8901, 4294901760
  %8903 = vmatmul.f32.gmra.mxu0 %v8902
  %v8904 = vpop.f32.mrf.mxu0
  %v8905 = vadd.f32 %v8638, %v8904
  %v8906 = vand.u32 %v8662, 4294901760
  %v8907 = vsub.f32 %v8662, %v8906
  %v8908 = vand.u32 %v8907, 4294901760
  %v8909 = vsub.f32 %v8907, %v8908
  %v8910 = vand.u32 %v8909, 4294901760
  %8911 = vmatmul.f32.gmra.mxu0 %v8910
  %v8912 = vpop.f32.mrf.mxu0
  %v8913 = vadd.f32 %v8638, %v8912
  %v8914 = vand.u32 %v8665, 4294901760
  %v8915 = vsub.f32 %v8665, %v8914
  %v8916 = vand.u32 %v8915, 4294901760
  %v8917 = vsub.f32 %v8915, %v8916
  %v8918 = vand.u32 %v8917, 4294901760
  %8919 = vmatmul.f32.gmra.mxu0 %v8918
  %v8920 = vpop.f32.mrf.mxu0
  %v8921 = vadd.f32 %v8638, %v8920
  %v8922 = vand.u32 %v8668, 4294901760
  %v8923 = vsub.f32 %v8668, %v8922
  %v8924 = vand.u32 %v8923, 4294901760
  %v8925 = vsub.f32 %v8923, %v8924
  %v8926 = vand.u32 %v8925, 4294901760
  %8927 = vmatmul.f32.gmra.mxu0 %v8926
  %v8928 = vpop.f32.mrf.mxu0
  %v8929 = vadd.f32 %v8638, %v8928
  %v8930 = vand.u32 %v8671, 4294901760
  %v8931 = vsub.f32 %v8671, %v8930
  %v8932 = vand.u32 %v8931, 4294901760
  %v8933 = vsub.f32 %v8931, %v8932
  %v8934 = vand.u32 %v8933, 4294901760
  %8935 = vmatmul.f32.gmra.mxu0 %v8934
  %v8936 = vpop.f32.mrf.mxu0
  %v8937 = vadd.f32 %v8638, %v8936
  %v8938 = vand.u32 %v8674, 4294901760
  %v8939 = vsub.f32 %v8674, %v8938
  %v8940 = vand.u32 %v8939, 4294901760
  %v8941 = vsub.f32 %v8939, %v8940
  %v8942 = vand.u32 %v8941, 4294901760
  %8943 = vmatmul.f32.gmra.mxu0 %v8942
  %v8944 = vpop.f32.mrf.mxu0
  %v8945 = vadd.f32 %v8638, %v8944
  %v8946 = vand.u32 %v8677, 4294901760
  %v8947 = vsub.f32 %v8677, %v8946
  %v8948 = vand.u32 %v8947, 4294901760
  %v8949 = vsub.f32 %v8947, %v8948
  %v8950 = vand.u32 %v8949, 4294901760
  %8951 = vmatmul.f32.gmra.mxu0 %v8950
  %v8952 = vpop.f32.mrf.mxu0
  %v8953 = vadd.f32 %v8638, %v8952
  %v8954 = vand.u32 %v8680, 4294901760
  %v8955 = vsub.f32 %v8680, %v8954
  %v8956 = vand.u32 %v8955, 4294901760
  %v8957 = vsub.f32 %v8955, %v8956
  %v8958 = vand.u32 %v8957, 4294901760
  %8959 = vmatmul.f32.gmra.mxu0 %v8958
  %v8960 = vpop.f32.mrf.mxu0
  %v8961 = vadd.f32 %v8638, %v8960
  %v8962 = vand.u32 %v8683, 4294901760
  %v8963 = vsub.f32 %v8683, %v8962
  %v8964 = vand.u32 %v8963, 4294901760
  %v8965 = vsub.f32 %v8963, %v8964
  %v8966 = vand.u32 %v8965, 4294901760
  %8967 = vmatmul.f32.gmra.mxu0 %v8966
  %v8968 = vpop.f32.mrf.mxu0
  %v8969 = vadd.f32 %v8638, %v8968
  %v8970 = vand.u32 %v8686, 4294901760
  %v8971 = vsub.f32 %v8686, %v8970
  %v8972 = vand.u32 %v8971, 4294901760
  %v8973 = vsub.f32 %v8971, %v8972
  %v8974 = vand.u32 %v8973, 4294901760
  %8975 = vmatmul.f32.gmra.mxu0 %v8974
  %v8976 = vpop.f32.mrf.mxu0
  %v8977 = vadd.f32 %v8638, %v8976
  %v8978 = vand.u32 %v8689, 4294901760
  %v8979 = vsub.f32 %v8689, %v8978
  %v8980 = vand.u32 %v8979, 4294901760
  %v8981 = vsub.f32 %v8979, %v8980
  %v8982 = vand.u32 %v8981, 4294901760
  %8983 = vmatmul.f32.gmra.mxu0 %v8982
  %v8984 = vpop.f32.mrf.mxu0
  %v8985 = vadd.f32 %v8638, %v8984
  %v8986 = vand.u32 %v8692, 4294901760
  %v8987 = vsub.f32 %v8692, %v8986
  %v8988 = vand.u32 %v8987, 4294901760
  %v8989 = vsub.f32 %v8987, %v8988
  %v8990 = vand.u32 %v8989, 4294901760
  %8991 = vmatmul.f32.gmra.mxu0 %v8990
  %v8992 = vpop.f32.mrf.mxu0
  %v8993 = vadd.f32 %v8638, %v8992
  %v8994 = vand.u32 %v8695, 4294901760
  %v8995 = vsub.f32 %v8695, %v8994
  %v8996 = vand.u32 %v8995, 4294901760
  %v8997 = vsub.f32 %v8995, %v8996
  %v8998 = vand.u32 %v8997, 4294901760
  %8999 = vmatmul.f32.gmra.mxu0 %v8998
  %v9000 = vpop.f32.mrf.mxu0
  %v9001 = vadd.f32 %v8638, %v9000
  %v9002 = vand.u32 %v8698, 4294901760
  %v9003 = vsub.f32 %v8698, %v9002
  %v9004 = vand.u32 %v9003, 4294901760
  %v9005 = vsub.f32 %v9003, %v9004
  %v9006 = vand.u32 %v9005, 4294901760
  %9007 = vmatmul.f32.gmra.mxu0 %v9006
  %v9008 = vpop.f32.mrf.mxu0
  %v9009 = vadd.f32 %v8638, %v9008
  %v9010 = vand.u32 %v8701, 4294901760
  %v9011 = vsub.f32 %v8701, %v9010
  %v9012 = vand.u32 %v9011, 4294901760
  %v9013 = vsub.f32 %v9011, %v9012
  %v9014 = vand.u32 %v9013, 4294901760
  %9015 = vmatmul.f32.gmra.mxu0 %v9014
  %v9016 = vpop.f32.mrf.mxu0
  %v9017 = vadd.f32 %v8638, %v9016
  %v9018 = vand.u32 %v8704, 4294901760
  %v9019 = vsub.f32 %v8704, %v9018
  %v9020 = vand.u32 %v9019, 4294901760
  %v9021 = vsub.f32 %v9019, %v9020
  %v9022 = vand.u32 %v9021, 4294901760
  %9023 = vmatmul.f32.gmra.mxu0 %v9022
  %v9024 = vpop.f32.mrf.mxu0
  %v9025 = vadd.f32 %v8638, %v9024
  %v9026 = vand.u32 %v8707, 4294901760
  %v9027 = vsub.f32 %v8707, %v9026
  %v9028 = vand.u32 %v9027, 4294901760
  %v9029 = vsub.f32 %v9027, %v9028
  %v9030 = vand.u32 %v9029, 4294901760
  %9031 = vmatmul.f32.gmra.mxu0 %v9030
  %v9032 = vpop.f32.mrf.mxu0
  %v9033 = vadd.f32 %v8638, %v9032
  %v9034 = vand.u32 %v8710, 4294901760
  %v9035 = vsub.f32 %v8710, %v9034
  %v9036 = vand.u32 %v9035, 4294901760
  %v9037 = vsub.f32 %v9035, %v9036
  %v9038 = vand.u32 %v9037, 4294901760
  %9039 = vmatmul.f32.gmra.mxu0 %v9038
  %v9040 = vpop.f32.mrf.mxu0
  %v9041 = vadd.f32 %v8638, %v9040
  %v9042 = vand.u32 %v8713, 4294901760
  %v9043 = vsub.f32 %v8713, %v9042
  %v9044 = vand.u32 %v9043, 4294901760
  %v9045 = vsub.f32 %v9043, %v9044
  %v9046 = vand.u32 %v9045, 4294901760
  %9047 = vmatmul.f32.gmra.mxu0 %v9046
  %v9048 = vpop.f32.mrf.mxu0
  %v9049 = vadd.f32 %v8638, %v9048
  %v9050 = vand.u32 %v8716, 4294901760
  %v9051 = vsub.f32 %v8716, %v9050
  %v9052 = vand.u32 %v9051, 4294901760
  %v9053 = vsub.f32 %v9051, %v9052
  %v9054 = vand.u32 %v9053, 4294901760
  %9055 = vmatmul.f32.gmra.mxu0 %v9054
  %v9056 = vpop.f32.mrf.mxu0
  %v9057 = vadd.f32 %v8638, %v9056
  %v9058 = vand.u32 %v8719, 4294901760
  %v9059 = vsub.f32 %v8719, %v9058
  %v9060 = vand.u32 %v9059, 4294901760
  %v9061 = vsub.f32 %v9059, %v9060
  %v9062 = vand.u32 %v9061, 4294901760
  %9063 = vmatmul.f32.gmra.mxu0 %v9062
  %v9064 = vpop.f32.mrf.mxu0
  %v9065 = vadd.f32 %v8638, %v9064
  %v9066 = vand.u32 %v8722, 4294901760
  %v9067 = vsub.f32 %v8722, %v9066
  %v9068 = vand.u32 %v9067, 4294901760
  %v9069 = vsub.f32 %v9067, %v9068
  %v9070 = vand.u32 %v9069, 4294901760
  %9071 = vmatmul.f32.gmra.mxu0 %v9070
  %v9072 = vpop.f32.mrf.mxu0
  %v9073 = vadd.f32 %v8638, %v9072
  %v9074 = vand.u32 %v8725, 4294901760
  %v9075 = vsub.f32 %v8725, %v9074
  %v9076 = vand.u32 %v9075, 4294901760
  %v9077 = vsub.f32 %v9075, %v9076
  %v9078 = vand.u32 %v9077, 4294901760
  %9079 = vmatmul.f32.gmra.mxu0 %v9078
  %v9080 = vpop.f32.mrf.mxu0
  %v9081 = vadd.f32 %v8638, %v9080
  %v9082 = vand.u32 %v8728, 4294901760
  %v9083 = vsub.f32 %v8728, %v9082
  %v9084 = vand.u32 %v9083, 4294901760
  %v9085 = vsub.f32 %v9083, %v9084
  %v9086 = vand.u32 %v9085, 4294901760
  %9087 = vmatmul.f32.gmra.mxu0 %v9086
  %v9088 = vpop.f32.mrf.mxu0
  %v9089 = vadd.f32 %v8638, %v9088
  %v9090 = vand.u32 %v8731, 4294901760
  %v9091 = vsub.f32 %v8731, %v9090
  %v9092 = vand.u32 %v9091, 4294901760
  %v9093 = vsub.f32 %v9091, %v9092
  %v9094 = vand.u32 %v9093, 4294901760
  %9095 = vmatmul.f32.gmra.mxu0 %v9094
  %v9096 = vpop.f32.mrf.mxu0
  %v9097 = vadd.f32 %v8638, %v9096
  %v9098 = vand.u32 %v8734, 4294901760
  %v9099 = vsub.f32 %v8734, %v9098
  %v9100 = vand.u32 %v9099, 4294901760
  %v9101 = vsub.f32 %v9099, %v9100
  %v9102 = vand.u32 %v9101, 4294901760
  %9103 = vmatmul.f32.gmra.mxu0 %v9102
  %v9104 = vpop.f32.mrf.mxu0
  %v9105 = vadd.f32 %v8638, %v9104
  %v9106 = vand.u32 %v8737, 4294901760
  %v9107 = vsub.f32 %v8737, %v9106
  %v9108 = vand.u32 %v9107, 4294901760
  %v9109 = vsub.f32 %v9107, %v9108
  %v9110 = vand.u32 %v9109, 4294901760
  %9111 = vmatmul.f32.gmra.mxu0 %v9110
  %v9112 = vpop.f32.mrf.mxu0
  %v9113 = vadd.f32 %v8638, %v9112
  %v9114 = vand.u32 %v8740, 4294901760
  %v9115 = vsub.f32 %v8740, %v9114
  %v9116 = vand.u32 %v9115, 4294901760
  %v9117 = vsub.f32 %v9115, %v9116
  %v9118 = vand.u32 %v9117, 4294901760
  %9119 = vmatmul.f32.gmra.mxu0 %v9118
  %v9120 = vpop.f32.mrf.mxu0
  %v9121 = vadd.f32 %v8638, %v9120
  %v9122 = vand.u32 %v8743, 4294901760
  %v9123 = vsub.f32 %v8743, %v9122
  %v9124 = vand.u32 %v9123, 4294901760
  %v9125 = vsub.f32 %v9123, %v9124
  %v9126 = vand.u32 %v9125, 4294901760
  %9127 = vmatmul.f32.gmra.mxu0 %v9126
  %v9128 = vpop.f32.mrf.mxu0
  %v9129 = vadd.f32 %v8638, %v9128
  %v9130 = vand.u32 %v8746, 4294901760
  %v9131 = vsub.f32 %v8746, %v9130
  %v9132 = vand.u32 %v9131, 4294901760
  %v9133 = vsub.f32 %v9131, %v9132
  %v9134 = vand.u32 %v9133, 4294901760
  %9135 = vmatmul.f32.gmra.mxu0 %v9134
  %v9136 = vpop.f32.mrf.mxu0
  %v9137 = vadd.f32 %v8638, %v9136
  %v9138 = vand.u32 %v8749, 4294901760
  %v9139 = vsub.f32 %v8749, %v9138
  %v9140 = vand.u32 %v9139, 4294901760
  %v9141 = vsub.f32 %v9139, %v9140
  %v9142 = vand.u32 %v9141, 4294901760
  %9143 = vmatmul.f32.gmra.mxu0 %v9142
  %v9144 = vpop.f32.mrf.mxu0
  %v9145 = vadd.f32 %v8638, %v9144
  %v9146 = vand.u32 %v8752, 4294901760
  %v9147 = vsub.f32 %v8752, %v9146
  %v9148 = vand.u32 %v9147, 4294901760
  %v9149 = vsub.f32 %v9147, %v9148
  %v9150 = vand.u32 %v9149, 4294901760
  %9151 = vmatmul.f32.gmra.mxu0 %v9150
  %v9152 = vpop.f32.mrf.mxu0
  %v9153 = vadd.f32 %v8638, %v9152
  %v9154 = vand.u32 %v8755, 4294901760
  %v9155 = vsub.f32 %v8755, %v9154
  %v9156 = vand.u32 %v9155, 4294901760
  %v9157 = vsub.f32 %v9155, %v9156
  %v9158 = vand.u32 %v9157, 4294901760
  %9159 = vmatmul.f32.gmra.mxu0 %v9158
  %v9160 = vpop.f32.mrf.mxu0
  %v9161 = vadd.f32 %v8638, %v9160
  %v9162 = vand.u32 %v8758, 4294901760
  %v9163 = vsub.f32 %v8758, %v9162
  %v9164 = vand.u32 %v9163, 4294901760
  %v9165 = vsub.f32 %v9163, %v9164
  %v9166 = vand.u32 %v9165, 4294901760
  %9167 = vmatmul.f32.gmra.mxu0 %v9166
  %v9168 = vpop.f32.mrf.mxu0
  %v9169 = vadd.f32 %v8638, %v9168
  %v9170 = vand.u32 %v8761, 4294901760
  %v9171 = vsub.f32 %v8761, %v9170
  %v9172 = vand.u32 %v9171, 4294901760
  %v9173 = vsub.f32 %v9171, %v9172
  %v9174 = vand.u32 %v9173, 4294901760
  %9175 = vmatmul.f32.gmra.mxu0 %v9174
  %v9176 = vpop.f32.mrf.mxu0
  %v9177 = vadd.f32 %v8638, %v9176
  %v9178 = vand.u32 %v8764, 4294901760
  %v9179 = vsub.f32 %v8764, %v9178
  %v9180 = vand.u32 %v9179, 4294901760
  %v9181 = vsub.f32 %v9179, %v9180
  %v9182 = vand.u32 %v9181, 4294901760
  %9183 = vmatmul.f32.gmra.mxu0 %v9182
  %v9184 = vpop.f32.mrf.mxu0
  %v9185 = vadd.f32 %v8638, %v9184
  %v9186 = vand.u32 %v8767, 4294901760
  %v9187 = vsub.f32 %v8767, %v9186
  %v9188 = vand.u32 %v9187, 4294901760
  %v9189 = vsub.f32 %v9187, %v9188
  %v9190 = vand.u32 %v9189, 4294901760
  %9191 = vmatmul.f32.gmra.mxu0 %v9190
  %v9192 = vpop.f32.mrf.mxu0
  %v9193 = vadd.f32 %v8638, %v9192
  %v9194 = vand.u32 %v8770, 4294901760
  %v9195 = vsub.f32 %v8770, %v9194
  %v9196 = vand.u32 %v9195, 4294901760
  %v9197 = vsub.f32 %v9195, %v9196
  %v9198 = vand.u32 %v9197, 4294901760
  %9199 = vmatmul.f32.gmra.mxu0 %v9198
  %v9200 = vpop.f32.mrf.mxu0
  %v9201 = vadd.f32 %v8638, %v9200
  %v9202 = vand.u32 %v8773, 4294901760
  %v9203 = vsub.f32 %v8773, %v9202
  %v9204 = vand.u32 %v9203, 4294901760
  %v9205 = vsub.f32 %v9203, %v9204
  %v9206 = vand.u32 %v9205, 4294901760
  %9207 = vmatmul.f32.gmra.mxu0 %v9206
  %v9208 = vpop.f32.mrf.mxu0
  %v9209 = vadd.f32 %v8638, %v9208
  %v9210 = vand.u32 %v8776, 4294901760
  %v9211 = vsub.f32 %v8776, %v9210
  %v9212 = vand.u32 %v9211, 4294901760
  %v9213 = vsub.f32 %v9211, %v9212
  %v9214 = vand.u32 %v9213, 4294901760
  %9215 = vmatmul.f32.gmra.mxu0 %v9214
  %v9216 = vpop.f32.mrf.mxu0
  %v9217 = vadd.f32 %v8638, %v9216
  %v9218 = vand.u32 %v8779, 4294901760
  %v9219 = vsub.f32 %v8779, %v9218
  %v9220 = vand.u32 %v9219, 4294901760
  %v9221 = vsub.f32 %v9219, %v9220
  %v9222 = vand.u32 %v9221, 4294901760
  %9223 = vmatmul.f32.gmra.mxu0 %v9222
  %v9224 = vpop.f32.mrf.mxu0
  %v9225 = vadd.f32 %v8638, %v9224
  %v9226 = vand.u32 %v8782, 4294901760
  %v9227 = vsub.f32 %v8782, %v9226
  %v9228 = vand.u32 %v9227, 4294901760
  %v9229 = vsub.f32 %v9227, %v9228
  %v9230 = vand.u32 %v9229, 4294901760
  %9231 = vmatmul.f32.gmra.mxu0 %v9230
  %v9232 = vpop.f32.mrf.mxu0
  %v9233 = vadd.f32 %v8638, %v9232
  %v9234 = vand.u32 %v8785, 4294901760
  %v9235 = vsub.f32 %v8785, %v9234
  %v9236 = vand.u32 %v9235, 4294901760
  %v9237 = vsub.f32 %v9235, %v9236
  %v9238 = vand.u32 %v9237, 4294901760
  %9239 = vmatmul.f32.gmra.mxu0 %v9238
  %v9240 = vpop.f32.mrf.mxu0
  %v9241 = vadd.f32 %v8638, %v9240
  %v9242 = vand.u32 %v8788, 4294901760
  %v9243 = vsub.f32 %v8788, %v9242
  %v9244 = vand.u32 %v9243, 4294901760
  %v9245 = vsub.f32 %v9243, %v9244
  %v9246 = vand.u32 %v9245, 4294901760
  %9247 = vmatmul.f32.gmra.mxu0 %v9246
  %v9248 = vpop.f32.mrf.mxu0
  %v9249 = vadd.f32 %v8638, %v9248
  %v9250 = vand.u32 %v8791, 4294901760
  %v9251 = vsub.f32 %v8791, %v9250
  %v9252 = vand.u32 %v9251, 4294901760
  %v9253 = vsub.f32 %v9251, %v9252
  %v9254 = vand.u32 %v9253, 4294901760
  %9255 = vmatmul.f32.gmra.mxu0 %v9254
  %v9256 = vpop.f32.mrf.mxu0
  %v9257 = vadd.f32 %v8638, %v9256
  %v9258 = vand.u32 %v8794, 4294901760
  %v9259 = vsub.f32 %v8794, %v9258
  %v9260 = vand.u32 %v9259, 4294901760
  %v9261 = vsub.f32 %v9259, %v9260
  %v9262 = vand.u32 %v9261, 4294901760
  %9263 = vmatmul.f32.gmra.mxu0 %v9262
  %v9264 = vpop.f32.mrf.mxu0
  %v9265 = vadd.f32 %v8638, %v9264
  %v9266 = vand.u32 %v8797, 4294901760
  %v9267 = vsub.f32 %v8797, %v9266
  %v9268 = vand.u32 %v9267, 4294901760
  %v9269 = vsub.f32 %v9267, %v9268
  %v9270 = vand.u32 %v9269, 4294901760
  %9271 = vmatmul.f32.gmra.mxu0 %v9270
  %v9272 = vpop.f32.mrf.mxu0
  %v9273 = vadd.f32 %v8638, %v9272
  %v9274 = vand.u32 %v8800, 4294901760
  %v9275 = vsub.f32 %v8800, %v9274
  %v9276 = vand.u32 %v9275, 4294901760
  %v9277 = vsub.f32 %v9275, %v9276
  %v9278 = vand.u32 %v9277, 4294901760
  %9279 = vmatmul.f32.gmra.mxu0 %v9278
  %v9280 = vpop.f32.mrf.mxu0
  %v9281 = vadd.f32 %v8638, %v9280
  %v9282 = vand.u32 %v8803, 4294901760
  %v9283 = vsub.f32 %v8803, %v9282
  %v9284 = vand.u32 %v9283, 4294901760
  %v9285 = vsub.f32 %v9283, %v9284
  %v9286 = vand.u32 %v9285, 4294901760
  %9287 = vmatmul.f32.gmra.mxu0 %v9286
  %v9288 = vpop.f32.mrf.mxu0
  %v9289 = vadd.f32 %v8638, %v9288
  %v9290 = vand.u32 %v8806, 4294901760
  %v9291 = vsub.f32 %v8806, %v9290
  %v9292 = vand.u32 %v9291, 4294901760
  %v9293 = vsub.f32 %v9291, %v9292
  %v9294 = vand.u32 %v9293, 4294901760
  %9295 = vmatmul.f32.gmra.mxu0 %v9294
  %v9296 = vpop.f32.mrf.mxu0
  %v9297 = vadd.f32 %v8638, %v9296
  %v9298 = vand.u32 %v8809, 4294901760
  %v9299 = vsub.f32 %v8809, %v9298
  %v9300 = vand.u32 %v9299, 4294901760
  %v9301 = vsub.f32 %v9299, %v9300
  %v9302 = vand.u32 %v9301, 4294901760
  %9303 = vmatmul.f32.gmra.mxu0 %v9302
  %v9304 = vpop.f32.mrf.mxu0
  %v9305 = vadd.f32 %v8638, %v9304
  %v9306 = vand.u32 %v8812, 4294901760
  %v9307 = vsub.f32 %v8812, %v9306
  %v9308 = vand.u32 %v9307, 4294901760
  %v9309 = vsub.f32 %v9307, %v9308
  %v9310 = vand.u32 %v9309, 4294901760
  %9311 = vmatmul.f32.gmra.mxu0 %v9310
  %v9312 = vpop.f32.mrf.mxu0
  %v9313 = vadd.f32 %v8638, %v9312
  %v9314 = vand.u32 %v8815, 4294901760
  %v9315 = vsub.f32 %v8815, %v9314
  %v9316 = vand.u32 %v9315, 4294901760
  %v9317 = vsub.f32 %v9315, %v9316
  %v9318 = vand.u32 %v9317, 4294901760
  %9319 = vmatmul.f32.gmra.mxu0 %v9318
  %v9320 = vpop.f32.mrf.mxu0
  %v9321 = vadd.f32 %v8638, %v9320
  %v9322 = vand.u32 %v8818, 4294901760
  %v9323 = vsub.f32 %v8818, %v9322
  %v9324 = vand.u32 %v9323, 4294901760
  %v9325 = vsub.f32 %v9323, %v9324
  %v9326 = vand.u32 %v9325, 4294901760
  %9327 = vmatmul.f32.gmra.mxu0 %v9326
  %v9328 = vpop.f32.mrf.mxu0
  %v9329 = vadd.f32 %v8638, %v9328
  %v9330 = vand.u32 %v8821, 4294901760
  %v9331 = vsub.f32 %v8821, %v9330
  %v9332 = vand.u32 %v9331, 4294901760
  %v9333 = vsub.f32 %v9331, %v9332
  %v9334 = vand.u32 %v9333, 4294901760
  %9335 = vmatmul.f32.gmra.mxu0 %v9334
  %v9336 = vpop.f32.mrf.mxu0
  %v9337 = vadd.f32 %v8638, %v9336
  %v9338 = vand.u32 %v8824, 4294901760
  %v9339 = vsub.f32 %v8824, %v9338
  %v9340 = vand.u32 %v9339, 4294901760
  %v9341 = vsub.f32 %v9339, %v9340
  %v9342 = vand.u32 %v9341, 4294901760
  %9343 = vmatmul.f32.gmra.mxu0 %v9342
  %v9344 = vpop.f32.mrf.mxu0
  %v9345 = vadd.f32 %v8638, %v9344
  %v9346 = vand.u32 %v8827, 4294901760
  %v9347 = vsub.f32 %v8827, %v9346
  %v9348 = vand.u32 %v9347, 4294901760
  %v9349 = vsub.f32 %v9347, %v9348
  %v9350 = vand.u32 %v9349, 4294901760
  %9351 = vmatmul.f32.gmra.mxu0 %v9350
  %v9352 = vpop.f32.mrf.mxu0
  %v9353 = vadd.f32 %v8638, %v9352
  %v9354 = vand.u32 %v8830, 4294901760
  %v9355 = vsub.f32 %v8830, %v9354
  %v9356 = vand.u32 %v9355, 4294901760
  %v9357 = vsub.f32 %v9355, %v9356
  %v9358 = vand.u32 %v9357, 4294901760
  %9359 = vmatmul.f32.gmra.mxu0 %v9358
  %v9360 = vpop.f32.mrf.mxu0
  %v9361 = vadd.f32 %v8638, %v9360
  %9362 = vdwg.mxu0
  %9363 = vmatpush.msra.mxu0 0.0
  %9364 = vmatpush.msra.mxu0 0.0
  %9365 = vmatpush.msra.mxu0 0.0
  %9366 = vmatpush.msra.mxu0 0.0
  %9367 = vmatpush.msra.mxu0 0.0
  %9368 = vmatpush.msra.mxu0 0.0
  %9369 = vmatpush.msra.mxu0 0.0
  %9370 = vmatpush.msra.mxu0 0.0
  %9371 = vmatpush.msra.mxu0 0.0
  %9372 = vmatpush.msra.mxu0 0.0
  %9373 = vmatpush.msra.mxu0 0.0
  %9374 = vmatpush.msra.mxu0 0.0
  %9375 = vmatpush.msra.mxu0 0.0
  %9376 = vmatpush.msra.mxu0 0.0
  %v9377 = vand.u32 %v8636, 4294901760
  %v9378 = vsub.f32 %v8636, %v9377
  %v9379 = vand.u32 %v9378, 4294901760
  %v9380 = vsub.f32 %v9378, %v9379
  %v9381 = vand.u32 %v9380, 4294901760
  %9382 = vmatpush.msra.mxu0 %v9381
  %v9383 = vand.u32 %v8635, 4294901760
  %v9384 = vsub.f32 %v8635, %v9383
  %v9385 = vand.u32 %v9384, 4294901760
  %v9386 = vsub.f32 %v9384, %v9385
  %v9387 = vand.u32 %v9386, 4294901760
  %9388 = vmatpush.msra.mxu0 %v9387
  %v9389 = vand.u32 %v8641, 4294901760
  %9390 = vmatmul.f32.gmra.mxu0 %v9389
  %v9391 = vpop.f32.mrf.mxu0
  %v9392 = vadd.f32 %v8857, %v9391
  %v9393 = vand.u32 %v8644, 4294901760
  %9394 = vmatmul.f32.gmra.mxu0 %v9393
  %v9395 = vpop.f32.mrf.mxu0
  %v9396 = vadd.f32 %v8865, %v9395
  %v9397 = vand.u32 %v8647, 4294901760
  %9398 = vmatmul.f32.gmra.mxu0 %v9397
  %v9399 = vpop.f32.mrf.mxu0
  %v9400 = vadd.f32 %v8873, %v9399
  %v9401 = vand.u32 %v8650, 4294901760
  %9402 = vmatmul.f32.gmra.mxu0 %v9401
  %v9403 = vpop.f32.mrf.mxu0
  %v9404 = vadd.f32 %v8881, %v9403
  %v9405 = vand.u32 %v8653, 4294901760
  %9406 = vmatmul.f32.gmra.mxu0 %v9405
  %v9407 = vpop.f32.mrf.mxu0
  %v9408 = vadd.f32 %v8889, %v9407
  %v9409 = vand.u32 %v8656, 4294901760
  %9410 = vmatmul.f32.gmra.mxu0 %v9409
  %v9411 = vpop.f32.mrf.mxu0
  %v9412 = vadd.f32 %v8897, %v9411
  %v9413 = vand.u32 %v8659, 4294901760
  %9414 = vmatmul.f32.gmra.mxu0 %v9413
  %v9415 = vpop.f32.mrf.mxu0
  %v9416 = vadd.f32 %v8905, %v9415
  %v9417 = vand.u32 %v8662, 4294901760
  %9418 = vmatmul.f32.gmra.mxu0 %v9417
  %v9419 = vpop.f32.mrf.mxu0
  %v9420 = vadd.f32 %v8913, %v9419
  %v9421 = vand.u32 %v8665, 4294901760
  %9422 = vmatmul.f32.gmra.mxu0 %v9421
  %v9423 = vpop.f32.mrf.mxu0
  %v9424 = vadd.f32 %v8921, %v9423
  %v9425 = vand.u32 %v8668, 4294901760
  %9426 = vmatmul.f32.gmra.mxu0 %v9425
  %v9427 = vpop.f32.mrf.mxu0
  %v9428 = vadd.f32 %v8929, %v9427
  %v9429 = vand.u32 %v8671, 4294901760
  %9430 = vmatmul.f32.gmra.mxu0 %v9429
  %v9431 = vpop.f32.mrf.mxu0
  %v9432 = vadd.f32 %v8937, %v9431
  %v9433 = vand.u32 %v8674, 4294901760
  %9434 = vmatmul.f32.gmra.mxu0 %v9433
  %v9435 = vpop.f32.mrf.mxu0
  %v9436 = vadd.f32 %v8945, %v9435
  %v9437 = vand.u32 %v8677, 4294901760
  %9438 = vmatmul.f32.gmra.mxu0 %v9437
  %v9439 = vpop.f32.mrf.mxu0
  %v9440 = vadd.f32 %v8953, %v9439
  %v9441 = vand.u32 %v8680, 4294901760
  %9442 = vmatmul.f32.gmra.mxu0 %v9441
  %v9443 = vpop.f32.mrf.mxu0
  %v9444 = vadd.f32 %v8961, %v9443
  %v9445 = vand.u32 %v8683, 4294901760
  %9446 = vmatmul.f32.gmra.mxu0 %v9445
  %v9447 = vpop.f32.mrf.mxu0
  %v9448 = vadd.f32 %v8969, %v9447
  %v9449 = vand.u32 %v8686, 4294901760
  %9450 = vmatmul.f32.gmra.mxu0 %v9449
  %v9451 = vpop.f32.mrf.mxu0
  %v9452 = vadd.f32 %v8977, %v9451
  %v9453 = vand.u32 %v8689, 4294901760
  %9454 = vmatmul.f32.gmra.mxu0 %v9453
  %v9455 = vpop.f32.mrf.mxu0
  %v9456 = vadd.f32 %v8985, %v9455
  %v9457 = vand.u32 %v8692, 4294901760
  %9458 = vmatmul.f32.gmra.mxu0 %v9457
  %v9459 = vpop.f32.mrf.mxu0
  %v9460 = vadd.f32 %v8993, %v9459
  %v9461 = vand.u32 %v8695, 4294901760
  %9462 = vmatmul.f32.gmra.mxu0 %v9461
  %v9463 = vpop.f32.mrf.mxu0
  %v9464 = vadd.f32 %v9001, %v9463
  %v9465 = vand.u32 %v8698, 4294901760
  %9466 = vmatmul.f32.gmra.mxu0 %v9465
  %v9467 = vpop.f32.mrf.mxu0
  %v9468 = vadd.f32 %v9009, %v9467
  %v9469 = vand.u32 %v8701, 4294901760
  %9470 = vmatmul.f32.gmra.mxu0 %v9469
  %v9471 = vpop.f32.mrf.mxu0
  %v9472 = vadd.f32 %v9017, %v9471
  %v9473 = vand.u32 %v8704, 4294901760
  %9474 = vmatmul.f32.gmra.mxu0 %v9473
  %v9475 = vpop.f32.mrf.mxu0
  %v9476 = vadd.f32 %v9025, %v9475
  %v9477 = vand.u32 %v8707, 4294901760
  %9478 = vmatmul.f32.gmra.mxu0 %v9477
  %v9479 = vpop.f32.mrf.mxu0
  %v9480 = vadd.f32 %v9033, %v9479
  %v9481 = vand.u32 %v8710, 4294901760
  %9482 = vmatmul.f32.gmra.mxu0 %v9481
  %v9483 = vpop.f32.mrf.mxu0
  %v9484 = vadd.f32 %v9041, %v9483
  %v9485 = vand.u32 %v8713, 4294901760
  %9486 = vmatmul.f32.gmra.mxu0 %v9485
  %v9487 = vpop.f32.mrf.mxu0
  %v9488 = vadd.f32 %v9049, %v9487
  %v9489 = vand.u32 %v8716, 4294901760
  %9490 = vmatmul.f32.gmra.mxu0 %v9489
  %v9491 = vpop.f32.mrf.mxu0
  %v9492 = vadd.f32 %v9057, %v9491
  %v9493 = vand.u32 %v8719, 4294901760
  %9494 = vmatmul.f32.gmra.mxu0 %v9493
  %v9495 = vpop.f32.mrf.mxu0
  %v9496 = vadd.f32 %v9065, %v9495
  %v9497 = vand.u32 %v8722, 4294901760
  %9498 = vmatmul.f32.gmra.mxu0 %v9497
  %v9499 = vpop.f32.mrf.mxu0
  %v9500 = vadd.f32 %v9073, %v9499
  %v9501 = vand.u32 %v8725, 4294901760
  %9502 = vmatmul.f32.gmra.mxu0 %v9501
  %v9503 = vpop.f32.mrf.mxu0
  %v9504 = vadd.f32 %v9081, %v9503
  %v9505 = vand.u32 %v8728, 4294901760
  %9506 = vmatmul.f32.gmra.mxu0 %v9505
  %v9507 = vpop.f32.mrf.mxu0
  %v9508 = vadd.f32 %v9089, %v9507
  %v9509 = vand.u32 %v8731, 4294901760
  %9510 = vmatmul.f32.gmra.mxu0 %v9509
  %v9511 = vpop.f32.mrf.mxu0
  %v9512 = vadd.f32 %v9097, %v9511
  %v9513 = vand.u32 %v8734, 4294901760
  %9514 = vmatmul.f32.gmra.mxu0 %v9513
  %v9515 = vpop.f32.mrf.mxu0
  %v9516 = vadd.f32 %v9105, %v9515
  %v9517 = vand.u32 %v8737, 4294901760
  %9518 = vmatmul.f32.gmra.mxu0 %v9517
  %v9519 = vpop.f32.mrf.mxu0
  %v9520 = vadd.f32 %v9113, %v9519
  %v9521 = vand.u32 %v8740, 4294901760
  %9522 = vmatmul.f32.gmra.mxu0 %v9521
  %v9523 = vpop.f32.mrf.mxu0
  %v9524 = vadd.f32 %v9121, %v9523
  %v9525 = vand.u32 %v8743, 4294901760
  %9526 = vmatmul.f32.gmra.mxu0 %v9525
  %v9527 = vpop.f32.mrf.mxu0
  %v9528 = vadd.f32 %v9129, %v9527
  %v9529 = vand.u32 %v8746, 4294901760
  %9530 = vmatmul.f32.gmra.mxu0 %v9529
  %v9531 = vpop.f32.mrf.mxu0
  %v9532 = vadd.f32 %v9137, %v9531
  %v9533 = vand.u32 %v8749, 4294901760
  %9534 = vmatmul.f32.gmra.mxu0 %v9533
  %v9535 = vpop.f32.mrf.mxu0
  %v9536 = vadd.f32 %v9145, %v9535
  %v9537 = vand.u32 %v8752, 4294901760
  %9538 = vmatmul.f32.gmra.mxu0 %v9537
  %v9539 = vpop.f32.mrf.mxu0
  %v9540 = vadd.f32 %v9153, %v9539
  %v9541 = vand.u32 %v8755, 4294901760
  %9542 = vmatmul.f32.gmra.mxu0 %v9541
  %v9543 = vpop.f32.mrf.mxu0
  %v9544 = vadd.f32 %v9161, %v9543
  %v9545 = vand.u32 %v8758, 4294901760
  %9546 = vmatmul.f32.gmra.mxu0 %v9545
  %v9547 = vpop.f32.mrf.mxu0
  %v9548 = vadd.f32 %v9169, %v9547
  %v9549 = vand.u32 %v8761, 4294901760
  %9550 = vmatmul.f32.gmra.mxu0 %v9549
  %v9551 = vpop.f32.mrf.mxu0
  %v9552 = vadd.f32 %v9177, %v9551
  %v9553 = vand.u32 %v8764, 4294901760
  %9554 = vmatmul.f32.gmra.mxu0 %v9553
  %v9555 = vpop.f32.mrf.mxu0
  %v9556 = vadd.f32 %v9185, %v9555
  %v9557 = vand.u32 %v8767, 4294901760
  %9558 = vmatmul.f32.gmra.mxu0 %v9557
  %v9559 = vpop.f32.mrf.mxu0
  %v9560 = vadd.f32 %v9193, %v9559
  %v9561 = vand.u32 %v8770, 4294901760
  %9562 = vmatmul.f32.gmra.mxu0 %v9561
  %v9563 = vpop.f32.mrf.mxu0
  %v9564 = vadd.f32 %v9201, %v9563
  %v9565 = vand.u32 %v8773, 4294901760
  %9566 = vmatmul.f32.gmra.mxu0 %v9565
  %v9567 = vpop.f32.mrf.mxu0
  %v9568 = vadd.f32 %v9209, %v9567
  %v9569 = vand.u32 %v8776, 4294901760
  %9570 = vmatmul.f32.gmra.mxu0 %v9569
  %v9571 = vpop.f32.mrf.mxu0
  %v9572 = vadd.f32 %v9217, %v9571
  %v9573 = vand.u32 %v8779, 4294901760
  %9574 = vmatmul.f32.gmra.mxu0 %v9573
  %v9575 = vpop.f32.mrf.mxu0
  %v9576 = vadd.f32 %v9225, %v9575
  %v9577 = vand.u32 %v8782, 4294901760
  %9578 = vmatmul.f32.gmra.mxu0 %v9577
  %v9579 = vpop.f32.mrf.mxu0
  %v9580 = vadd.f32 %v9233, %v9579
  %v9581 = vand.u32 %v8785, 4294901760
  %9582 = vmatmul.f32.gmra.mxu0 %v9581
  %v9583 = vpop.f32.mrf.mxu0
  %v9584 = vadd.f32 %v9241, %v9583
  %v9585 = vand.u32 %v8788, 4294901760
  %9586 = vmatmul.f32.gmra.mxu0 %v9585
  %v9587 = vpop.f32.mrf.mxu0
  %v9588 = vadd.f32 %v9249, %v9587
  %v9589 = vand.u32 %v8791, 4294901760
  %9590 = vmatmul.f32.gmra.mxu0 %v9589
  %v9591 = vpop.f32.mrf.mxu0
  %v9592 = vadd.f32 %v9257, %v9591
  %v9593 = vand.u32 %v8794, 4294901760
  %9594 = vmatmul.f32.gmra.mxu0 %v9593
  %v9595 = vpop.f32.mrf.mxu0
  %v9596 = vadd.f32 %v9265, %v9595
  %v9597 = vand.u32 %v8797, 4294901760
  %9598 = vmatmul.f32.gmra.mxu0 %v9597
  %v9599 = vpop.f32.mrf.mxu0
  %v9600 = vadd.f32 %v9273, %v9599
  %v9601 = vand.u32 %v8800, 4294901760
  %9602 = vmatmul.f32.gmra.mxu0 %v9601
  %v9603 = vpop.f32.mrf.mxu0
  %v9604 = vadd.f32 %v9281, %v9603
  %v9605 = vand.u32 %v8803, 4294901760
  %9606 = vmatmul.f32.gmra.mxu0 %v9605
  %v9607 = vpop.f32.mrf.mxu0
  %v9608 = vadd.f32 %v9289, %v9607
  %v9609 = vand.u32 %v8806, 4294901760
  %9610 = vmatmul.f32.gmra.mxu0 %v9609
  %v9611 = vpop.f32.mrf.mxu0
  %v9612 = vadd.f32 %v9297, %v9611
  %v9613 = vand.u32 %v8809, 4294901760
  %9614 = vmatmul.f32.gmra.mxu0 %v9613
  %v9615 = vpop.f32.mrf.mxu0
  %v9616 = vadd.f32 %v9305, %v9615
  %v9617 = vand.u32 %v8812, 4294901760
  %9618 = vmatmul.f32.gmra.mxu0 %v9617
  %v9619 = vpop.f32.mrf.mxu0
  %v9620 = vadd.f32 %v9313, %v9619
  %v9621 = vand.u32 %v8815, 4294901760
  %9622 = vmatmul.f32.gmra.mxu0 %v9621
  %v9623 = vpop.f32.mrf.mxu0
  %v9624 = vadd.f32 %v9321, %v9623
  %v9625 = vand.u32 %v8818, 4294901760
  %9626 = vmatmul.f32.gmra.mxu0 %v9625
  %v9627 = vpop.f32.mrf.mxu0
  %v9628 = vadd.f32 %v9329, %v9627
  %v9629 = vand.u32 %v8821, 4294901760
  %9630 = vmatmul.f32.gmra.mxu0 %v9629
  %v9631 = vpop.f32.mrf.mxu0
  %v9632 = vadd.f32 %v9337, %v9631
  %v9633 = vand.u32 %v8824, 4294901760
  %9634 = vmatmul.f32.gmra.mxu0 %v9633
  %v9635 = vpop.f32.mrf.mxu0
  %v9636 = vadd.f32 %v9345, %v9635
  %v9637 = vand.u32 %v8827, 4294901760
  %9638 = vmatmul.f32.gmra.mxu0 %v9637
  %v9639 = vpop.f32.mrf.mxu0
  %v9640 = vadd.f32 %v9353, %v9639
  %v9641 = vand.u32 %v8830, 4294901760
  %9642 = vmatmul.f32.gmra.mxu0 %v9641
  %v9643 = vpop.f32.mrf.mxu0
  %v9644 = vadd.f32 %v9361, %v9643
  %9645 = vdwg.mxu0
  %9646 = vmatpush.msra.mxu0 0.0
  %9647 = vmatpush.msra.mxu0 0.0
  %9648 = vmatpush.msra.mxu0 0.0
  %9649 = vmatpush.msra.mxu0 0.0
  %9650 = vmatpush.msra.mxu0 0.0
  %9651 = vmatpush.msra.mxu0 0.0
  %9652 = vmatpush.msra.mxu0 0.0
  %9653 = vmatpush.msra.mxu0 0.0
  %9654 = vmatpush.msra.mxu0 0.0
  %9655 = vmatpush.msra.mxu0 0.0
  %9656 = vmatpush.msra.mxu0 0.0
  %9657 = vmatpush.msra.mxu0 0.0
  %9658 = vmatpush.msra.mxu0 0.0
  %9659 = vmatpush.msra.mxu0 0.0
  %v9660 = vand.u32 %v8636, 4294901760
  %v9661 = vsub.f32 %v8636, %v9660
  %9662 = vmatpush.msra.mxu0 %v9661
  %v9663 = vand.u32 %v8635, 4294901760
  %v9664 = vsub.f32 %v8635, %v9663
  %9665 = vmatpush.msra.mxu0 %v9664
  %v9666 = vand.u32 %v8641, 4294901760
  %v9667 = vsub.f32 %v8641, %v9666
  %9668 = vmatmul.f32.gmra.mxu0 %v9667
  %v9669 = vpop.f32.mrf.mxu0
  %v9670 = vadd.f32 %v9392, %v9669
  %v9671 = vand.u32 %v8644, 4294901760
  %v9672 = vsub.f32 %v8644, %v9671
  %9673 = vmatmul.f32.gmra.mxu0 %v9672
  %v9674 = vpop.f32.mrf.mxu0
  %v9675 = vadd.f32 %v9396, %v9674
  %v9676 = vand.u32 %v8647, 4294901760
  %v9677 = vsub.f32 %v8647, %v9676
  %9678 = vmatmul.f32.gmra.mxu0 %v9677
  %v9679 = vpop.f32.mrf.mxu0
  %v9680 = vadd.f32 %v9400, %v9679
  %v9681 = vand.u32 %v8650, 4294901760
  %v9682 = vsub.f32 %v8650, %v9681
  %9683 = vmatmul.f32.gmra.mxu0 %v9682
  %v9684 = vpop.f32.mrf.mxu0
  %v9685 = vadd.f32 %v9404, %v9684
  %v9686 = vand.u32 %v8653, 4294901760
  %v9687 = vsub.f32 %v8653, %v9686
  %9688 = vmatmul.f32.gmra.mxu0 %v9687
  %v9689 = vpop.f32.mrf.mxu0
  %v9690 = vadd.f32 %v9408, %v9689
  %v9691 = vand.u32 %v8656, 4294901760
  %v9692 = vsub.f32 %v8656, %v9691
  %9693 = vmatmul.f32.gmra.mxu0 %v9692
  %v9694 = vpop.f32.mrf.mxu0
  %v9695 = vadd.f32 %v9412, %v9694
  %v9696 = vand.u32 %v8659, 4294901760
  %v9697 = vsub.f32 %v8659, %v9696
  %9698 = vmatmul.f32.gmra.mxu0 %v9697
  %v9699 = vpop.f32.mrf.mxu0
  %v9700 = vadd.f32 %v9416, %v9699
  %v9701 = vand.u32 %v8662, 4294901760
  %v9702 = vsub.f32 %v8662, %v9701
  %9703 = vmatmul.f32.gmra.mxu0 %v9702
  %v9704 = vpop.f32.mrf.mxu0
  %v9705 = vadd.f32 %v9420, %v9704
  %v9706 = vand.u32 %v8665, 4294901760
  %v9707 = vsub.f32 %v8665, %v9706
  %9708 = vmatmul.f32.gmra.mxu0 %v9707
  %v9709 = vpop.f32.mrf.mxu0
  %v9710 = vadd.f32 %v9424, %v9709
  %v9711 = vand.u32 %v8668, 4294901760
  %v9712 = vsub.f32 %v8668, %v9711
  %9713 = vmatmul.f32.gmra.mxu0 %v9712
  %v9714 = vpop.f32.mrf.mxu0
  %v9715 = vadd.f32 %v9428, %v9714
  %v9716 = vand.u32 %v8671, 4294901760
  %v9717 = vsub.f32 %v8671, %v9716
  %9718 = vmatmul.f32.gmra.mxu0 %v9717
  %v9719 = vpop.f32.mrf.mxu0
  %v9720 = vadd.f32 %v9432, %v9719
  %v9721 = vand.u32 %v8674, 4294901760
  %v9722 = vsub.f32 %v8674, %v9721
  %9723 = vmatmul.f32.gmra.mxu0 %v9722
  %v9724 = vpop.f32.mrf.mxu0
  %v9725 = vadd.f32 %v9436, %v9724
  %v9726 = vand.u32 %v8677, 4294901760
  %v9727 = vsub.f32 %v8677, %v9726
  %9728 = vmatmul.f32.gmra.mxu0 %v9727
  %v9729 = vpop.f32.mrf.mxu0
  %v9730 = vadd.f32 %v9440, %v9729
  %v9731 = vand.u32 %v8680, 4294901760
  %v9732 = vsub.f32 %v8680, %v9731
  %9733 = vmatmul.f32.gmra.mxu0 %v9732
  %v9734 = vpop.f32.mrf.mxu0
  %v9735 = vadd.f32 %v9444, %v9734
  %v9736 = vand.u32 %v8683, 4294901760
  %v9737 = vsub.f32 %v8683, %v9736
  %9738 = vmatmul.f32.gmra.mxu0 %v9737
  %v9739 = vpop.f32.mrf.mxu0
  %v9740 = vadd.f32 %v9448, %v9739
  %v9741 = vand.u32 %v8686, 4294901760
  %v9742 = vsub.f32 %v8686, %v9741
  %9743 = vmatmul.f32.gmra.mxu0 %v9742
  %v9744 = vpop.f32.mrf.mxu0
  %v9745 = vadd.f32 %v9452, %v9744
  %v9746 = vand.u32 %v8689, 4294901760
  %v9747 = vsub.f32 %v8689, %v9746
  %9748 = vmatmul.f32.gmra.mxu0 %v9747
  %v9749 = vpop.f32.mrf.mxu0
  %v9750 = vadd.f32 %v9456, %v9749
  %v9751 = vand.u32 %v8692, 4294901760
  %v9752 = vsub.f32 %v8692, %v9751
  %9753 = vmatmul.f32.gmra.mxu0 %v9752
  %v9754 = vpop.f32.mrf.mxu0
  %v9755 = vadd.f32 %v9460, %v9754
  %v9756 = vand.u32 %v8695, 4294901760
  %v9757 = vsub.f32 %v8695, %v9756
  %9758 = vmatmul.f32.gmra.mxu0 %v9757
  %v9759 = vpop.f32.mrf.mxu0
  %v9760 = vadd.f32 %v9464, %v9759
  %v9761 = vand.u32 %v8698, 4294901760
  %v9762 = vsub.f32 %v8698, %v9761
  %9763 = vmatmul.f32.gmra.mxu0 %v9762
  %v9764 = vpop.f32.mrf.mxu0
  %v9765 = vadd.f32 %v9468, %v9764
  %v9766 = vand.u32 %v8701, 4294901760
  %v9767 = vsub.f32 %v8701, %v9766
  %9768 = vmatmul.f32.gmra.mxu0 %v9767
  %v9769 = vpop.f32.mrf.mxu0
  %v9770 = vadd.f32 %v9472, %v9769
  %v9771 = vand.u32 %v8704, 4294901760
  %v9772 = vsub.f32 %v8704, %v9771
  %9773 = vmatmul.f32.gmra.mxu0 %v9772
  %v9774 = vpop.f32.mrf.mxu0
  %v9775 = vadd.f32 %v9476, %v9774
  %v9776 = vand.u32 %v8707, 4294901760
  %v9777 = vsub.f32 %v8707, %v9776
  %9778 = vmatmul.f32.gmra.mxu0 %v9777
  %v9779 = vpop.f32.mrf.mxu0
  %v9780 = vadd.f32 %v9480, %v9779
  %v9781 = vand.u32 %v8710, 4294901760
  %v9782 = vsub.f32 %v8710, %v9781
  %9783 = vmatmul.f32.gmra.mxu0 %v9782
  %v9784 = vpop.f32.mrf.mxu0
  %v9785 = vadd.f32 %v9484, %v9784
  %v9786 = vand.u32 %v8713, 4294901760
  %v9787 = vsub.f32 %v8713, %v9786
  %9788 = vmatmul.f32.gmra.mxu0 %v9787
  %v9789 = vpop.f32.mrf.mxu0
  %v9790 = vadd.f32 %v9488, %v9789
  %v9791 = vand.u32 %v8716, 4294901760
  %v9792 = vsub.f32 %v8716, %v9791
  %9793 = vmatmul.f32.gmra.mxu0 %v9792
  %v9794 = vpop.f32.mrf.mxu0
  %v9795 = vadd.f32 %v9492, %v9794
  %v9796 = vand.u32 %v8719, 4294901760
  %v9797 = vsub.f32 %v8719, %v9796
  %9798 = vmatmul.f32.gmra.mxu0 %v9797
  %v9799 = vpop.f32.mrf.mxu0
  %v9800 = vadd.f32 %v9496, %v9799
  %v9801 = vand.u32 %v8722, 4294901760
  %v9802 = vsub.f32 %v8722, %v9801
  %9803 = vmatmul.f32.gmra.mxu0 %v9802
  %v9804 = vpop.f32.mrf.mxu0
  %v9805 = vadd.f32 %v9500, %v9804
  %v9806 = vand.u32 %v8725, 4294901760
  %v9807 = vsub.f32 %v8725, %v9806
  %9808 = vmatmul.f32.gmra.mxu0 %v9807
  %v9809 = vpop.f32.mrf.mxu0
  %v9810 = vadd.f32 %v9504, %v9809
  %v9811 = vand.u32 %v8728, 4294901760
  %v9812 = vsub.f32 %v8728, %v9811
  %9813 = vmatmul.f32.gmra.mxu0 %v9812
  %v9814 = vpop.f32.mrf.mxu0
  %v9815 = vadd.f32 %v9508, %v9814
  %v9816 = vand.u32 %v8731, 4294901760
  %v9817 = vsub.f32 %v8731, %v9816
  %9818 = vmatmul.f32.gmra.mxu0 %v9817
  %v9819 = vpop.f32.mrf.mxu0
  %v9820 = vadd.f32 %v9512, %v9819
  %v9821 = vand.u32 %v8734, 4294901760
  %v9822 = vsub.f32 %v8734, %v9821
  %9823 = vmatmul.f32.gmra.mxu0 %v9822
  %v9824 = vpop.f32.mrf.mxu0
  %v9825 = vadd.f32 %v9516, %v9824
  %v9826 = vand.u32 %v8737, 4294901760
  %v9827 = vsub.f32 %v8737, %v9826
  %9828 = vmatmul.f32.gmra.mxu0 %v9827
  %v9829 = vpop.f32.mrf.mxu0
  %v9830 = vadd.f32 %v9520, %v9829
  %v9831 = vand.u32 %v8740, 4294901760
  %v9832 = vsub.f32 %v8740, %v9831
  %9833 = vmatmul.f32.gmra.mxu0 %v9832
  %v9834 = vpop.f32.mrf.mxu0
  %v9835 = vadd.f32 %v9524, %v9834
  %v9836 = vand.u32 %v8743, 4294901760
  %v9837 = vsub.f32 %v8743, %v9836
  %9838 = vmatmul.f32.gmra.mxu0 %v9837
  %v9839 = vpop.f32.mrf.mxu0
  %v9840 = vadd.f32 %v9528, %v9839
  %v9841 = vand.u32 %v8746, 4294901760
  %v9842 = vsub.f32 %v8746, %v9841
  %9843 = vmatmul.f32.gmra.mxu0 %v9842
  %v9844 = vpop.f32.mrf.mxu0
  %v9845 = vadd.f32 %v9532, %v9844
  %v9846 = vand.u32 %v8749, 4294901760
  %v9847 = vsub.f32 %v8749, %v9846
  %9848 = vmatmul.f32.gmra.mxu0 %v9847
  %v9849 = vpop.f32.mrf.mxu0
  %v9850 = vadd.f32 %v9536, %v9849
  %v9851 = vand.u32 %v8752, 4294901760
  %v9852 = vsub.f32 %v8752, %v9851
  %9853 = vmatmul.f32.gmra.mxu0 %v9852
  %v9854 = vpop.f32.mrf.mxu0
  %v9855 = vadd.f32 %v9540, %v9854
  %v9856 = vand.u32 %v8755, 4294901760
  %v9857 = vsub.f32 %v8755, %v9856
  %9858 = vmatmul.f32.gmra.mxu0 %v9857
  %v9859 = vpop.f32.mrf.mxu0
  %v9860 = vadd.f32 %v9544, %v9859
  %v9861 = vand.u32 %v8758, 4294901760
  %v9862 = vsub.f32 %v8758, %v9861
  %9863 = vmatmul.f32.gmra.mxu0 %v9862
  %v9864 = vpop.f32.mrf.mxu0
  %v9865 = vadd.f32 %v9548, %v9864
  %v9866 = vand.u32 %v8761, 4294901760
  %v9867 = vsub.f32 %v8761, %v9866
  %9868 = vmatmul.f32.gmra.mxu0 %v9867
  %v9869 = vpop.f32.mrf.mxu0
  %v9870 = vadd.f32 %v9552, %v9869
  %v9871 = vand.u32 %v8764, 4294901760
  %v9872 = vsub.f32 %v8764, %v9871
  %9873 = vmatmul.f32.gmra.mxu0 %v9872
  %v9874 = vpop.f32.mrf.mxu0
  %v9875 = vadd.f32 %v9556, %v9874
  %v9876 = vand.u32 %v8767, 4294901760
  %v9877 = vsub.f32 %v8767, %v9876
  %9878 = vmatmul.f32.gmra.mxu0 %v9877
  %v9879 = vpop.f32.mrf.mxu0
  %v9880 = vadd.f32 %v9560, %v9879
  %v9881 = vand.u32 %v8770, 4294901760
  %v9882 = vsub.f32 %v8770, %v9881
  %9883 = vmatmul.f32.gmra.mxu0 %v9882
  %v9884 = vpop.f32.mrf.mxu0
  %v9885 = vadd.f32 %v9564, %v9884
  %v9886 = vand.u32 %v8773, 4294901760
  %v9887 = vsub.f32 %v8773, %v9886
  %9888 = vmatmul.f32.gmra.mxu0 %v9887
  %v9889 = vpop.f32.mrf.mxu0
  %v9890 = vadd.f32 %v9568, %v9889
  %v9891 = vand.u32 %v8776, 4294901760
  %v9892 = vsub.f32 %v8776, %v9891
  %9893 = vmatmul.f32.gmra.mxu0 %v9892
  %v9894 = vpop.f32.mrf.mxu0
  %v9895 = vadd.f32 %v9572, %v9894
  %v9896 = vand.u32 %v8779, 4294901760
  %v9897 = vsub.f32 %v8779, %v9896
  %9898 = vmatmul.f32.gmra.mxu0 %v9897
  %v9899 = vpop.f32.mrf.mxu0
  %v9900 = vadd.f32 %v9576, %v9899
  %v9901 = vand.u32 %v8782, 4294901760
  %v9902 = vsub.f32 %v8782, %v9901
  %9903 = vmatmul.f32.gmra.mxu0 %v9902
  %v9904 = vpop.f32.mrf.mxu0
  %v9905 = vadd.f32 %v9580, %v9904
  %v9906 = vand.u32 %v8785, 4294901760
  %v9907 = vsub.f32 %v8785, %v9906
  %9908 = vmatmul.f32.gmra.mxu0 %v9907
  %v9909 = vpop.f32.mrf.mxu0
  %v9910 = vadd.f32 %v9584, %v9909
  %v9911 = vand.u32 %v8788, 4294901760
  %v9912 = vsub.f32 %v8788, %v9911
  %9913 = vmatmul.f32.gmra.mxu0 %v9912
  %v9914 = vpop.f32.mrf.mxu0
  %v9915 = vadd.f32 %v9588, %v9914
  %v9916 = vand.u32 %v8791, 4294901760
  %v9917 = vsub.f32 %v8791, %v9916
  %9918 = vmatmul.f32.gmra.mxu0 %v9917
  %v9919 = vpop.f32.mrf.mxu0
  %v9920 = vadd.f32 %v9592, %v9919
  %v9921 = vand.u32 %v8794, 4294901760
  %v9922 = vsub.f32 %v8794, %v9921
  %9923 = vmatmul.f32.gmra.mxu0 %v9922
  %v9924 = vpop.f32.mrf.mxu0
  %v9925 = vadd.f32 %v9596, %v9924
  %v9926 = vand.u32 %v8797, 4294901760
  %v9927 = vsub.f32 %v8797, %v9926
  %9928 = vmatmul.f32.gmra.mxu0 %v9927
  %v9929 = vpop.f32.mrf.mxu0
  %v9930 = vadd.f32 %v9600, %v9929
  %v9931 = vand.u32 %v8800, 4294901760
  %v9932 = vsub.f32 %v8800, %v9931
  %9933 = vmatmul.f32.gmra.mxu0 %v9932
  %v9934 = vpop.f32.mrf.mxu0
  %v9935 = vadd.f32 %v9604, %v9934
  %v9936 = vand.u32 %v8803, 4294901760
  %v9937 = vsub.f32 %v8803, %v9936
  %9938 = vmatmul.f32.gmra.mxu0 %v9937
  %v9939 = vpop.f32.mrf.mxu0
  %v9940 = vadd.f32 %v9608, %v9939
  %v9941 = vand.u32 %v8806, 4294901760
  %v9942 = vsub.f32 %v8806, %v9941
  %9943 = vmatmul.f32.gmra.mxu0 %v9942
  %v9944 = vpop.f32.mrf.mxu0
  %v9945 = vadd.f32 %v9612, %v9944
  %v9946 = vand.u32 %v8809, 4294901760
  %v9947 = vsub.f32 %v8809, %v9946
  %9948 = vmatmul.f32.gmra.mxu0 %v9947
  %v9949 = vpop.f32.mrf.mxu0
  %v9950 = vadd.f32 %v9616, %v9949
  %v9951 = vand.u32 %v8812, 4294901760
  %v9952 = vsub.f32 %v8812, %v9951
  %9953 = vmatmul.f32.gmra.mxu0 %v9952
  %v9954 = vpop.f32.mrf.mxu0
  %v9955 = vadd.f32 %v9620, %v9954
  %v9956 = vand.u32 %v8815, 4294901760
  %v9957 = vsub.f32 %v8815, %v9956
  %9958 = vmatmul.f32.gmra.mxu0 %v9957
  %v9959 = vpop.f32.mrf.mxu0
  %v9960 = vadd.f32 %v9624, %v9959
  %v9961 = vand.u32 %v8818, 4294901760
  %v9962 = vsub.f32 %v8818, %v9961
  %9963 = vmatmul.f32.gmra.mxu0 %v9962
  %v9964 = vpop.f32.mrf.mxu0
  %v9965 = vadd.f32 %v9628, %v9964
  %v9966 = vand.u32 %v8821, 4294901760
  %v9967 = vsub.f32 %v8821, %v9966
  %9968 = vmatmul.f32.gmra.mxu0 %v9967
  %v9969 = vpop.f32.mrf.mxu0
  %v9970 = vadd.f32 %v9632, %v9969
  %v9971 = vand.u32 %v8824, 4294901760
  %v9972 = vsub.f32 %v8824, %v9971
  %9973 = vmatmul.f32.gmra.mxu0 %v9972
  %v9974 = vpop.f32.mrf.mxu0
  %v9975 = vadd.f32 %v9636, %v9974
  %v9976 = vand.u32 %v8827, 4294901760
  %v9977 = vsub.f32 %v8827, %v9976
  %9978 = vmatmul.f32.gmra.mxu0 %v9977
  %v9979 = vpop.f32.mrf.mxu0
  %v9980 = vadd.f32 %v9640, %v9979
  %v9981 = vand.u32 %v8830, 4294901760
  %v9982 = vsub.f32 %v8830, %v9981
  %9983 = vmatmul.f32.gmra.mxu0 %v9982
  %v9984 = vpop.f32.mrf.mxu0
  %v9985 = vadd.f32 %v9644, %v9984
  %9986 = vdwg.mxu0
  %9987 = vmatpush.msra.mxu0 0.0
  %9988 = vmatpush.msra.mxu0 0.0
  %9989 = vmatpush.msra.mxu0 0.0
  %9990 = vmatpush.msra.mxu0 0.0
  %9991 = vmatpush.msra.mxu0 0.0
  %9992 = vmatpush.msra.mxu0 0.0
  %9993 = vmatpush.msra.mxu0 0.0
  %9994 = vmatpush.msra.mxu0 0.0
  %9995 = vmatpush.msra.mxu0 0.0
  %9996 = vmatpush.msra.mxu0 0.0
  %9997 = vmatpush.msra.mxu0 0.0
  %9998 = vmatpush.msra.mxu0 0.0
  %9999 = vmatpush.msra.mxu0 0.0
  %10000 = vmatpush.msra.mxu0 0.0
  %v10001 = vand.u32 %v8636, 4294901760
  %10002 = vmatpush.msra.mxu0 %v10001
  %v10003 = vand.u32 %v8635, 4294901760
  %10004 = vmatpush.msra.mxu0 %v10003
  %v10005 = vand.u32 %v8641, 4294901760
  %v10006 = vsub.f32 %v8641, %v10005
  %v10007 = vand.u32 %v10006, 4294901760
  %10008 = vmatmul.f32.gmra.mxu0 %v10007
  %v10009 = vpop.f32.mrf.mxu0
  %v10010 = vadd.f32 %v9670, %v10009
  %v10011 = vand.u32 %v8644, 4294901760
  %v10012 = vsub.f32 %v8644, %v10011
  %v10013 = vand.u32 %v10012, 4294901760
  %10014 = vmatmul.f32.gmra.mxu0 %v10013
  %v10015 = vpop.f32.mrf.mxu0
  %v10016 = vadd.f32 %v9675, %v10015
  %v10017 = vand.u32 %v8647, 4294901760
  %v10018 = vsub.f32 %v8647, %v10017
  %v10019 = vand.u32 %v10018, 4294901760
  %10020 = vmatmul.f32.gmra.mxu0 %v10019
  %v10021 = vpop.f32.mrf.mxu0
  %v10022 = vadd.f32 %v9680, %v10021
  %v10023 = vand.u32 %v8650, 4294901760
  %v10024 = vsub.f32 %v8650, %v10023
  %v10025 = vand.u32 %v10024, 4294901760
  %10026 = vmatmul.f32.gmra.mxu0 %v10025
  %v10027 = vpop.f32.mrf.mxu0
  %v10028 = vadd.f32 %v9685, %v10027
  %v10029 = vand.u32 %v8653, 4294901760
  %v10030 = vsub.f32 %v8653, %v10029
  %v10031 = vand.u32 %v10030, 4294901760
  %10032 = vmatmul.f32.gmra.mxu0 %v10031
  %v10033 = vpop.f32.mrf.mxu0
  %v10034 = vadd.f32 %v9690, %v10033
  %v10035 = vand.u32 %v8656, 4294901760
  %v10036 = vsub.f32 %v8656, %v10035
  %v10037 = vand.u32 %v10036, 4294901760
  %10038 = vmatmul.f32.gmra.mxu0 %v10037
  %v10039 = vpop.f32.mrf.mxu0
  %v10040 = vadd.f32 %v9695, %v10039
  %v10041 = vand.u32 %v8659, 4294901760
  %v10042 = vsub.f32 %v8659, %v10041
  %v10043 = vand.u32 %v10042, 4294901760
  %10044 = vmatmul.f32.gmra.mxu0 %v10043
  %v10045 = vpop.f32.mrf.mxu0
  %v10046 = vadd.f32 %v9700, %v10045
  %v10047 = vand.u32 %v8662, 4294901760
  %v10048 = vsub.f32 %v8662, %v10047
  %v10049 = vand.u32 %v10048, 4294901760
  %10050 = vmatmul.f32.gmra.mxu0 %v10049
  %v10051 = vpop.f32.mrf.mxu0
  %v10052 = vadd.f32 %v9705, %v10051
  %v10053 = vand.u32 %v8665, 4294901760
  %v10054 = vsub.f32 %v8665, %v10053
  %v10055 = vand.u32 %v10054, 4294901760
  %10056 = vmatmul.f32.gmra.mxu0 %v10055
  %v10057 = vpop.f32.mrf.mxu0
  %v10058 = vadd.f32 %v9710, %v10057
  %v10059 = vand.u32 %v8668, 4294901760
  %v10060 = vsub.f32 %v8668, %v10059
  %v10061 = vand.u32 %v10060, 4294901760
  %10062 = vmatmul.f32.gmra.mxu0 %v10061
  %v10063 = vpop.f32.mrf.mxu0
  %v10064 = vadd.f32 %v9715, %v10063
  %v10065 = vand.u32 %v8671, 4294901760
  %v10066 = vsub.f32 %v8671, %v10065
  %v10067 = vand.u32 %v10066, 4294901760
  %10068 = vmatmul.f32.gmra.mxu0 %v10067
  %v10069 = vpop.f32.mrf.mxu0
  %v10070 = vadd.f32 %v9720, %v10069
  %v10071 = vand.u32 %v8674, 4294901760
  %v10072 = vsub.f32 %v8674, %v10071
  %v10073 = vand.u32 %v10072, 4294901760
  %10074 = vmatmul.f32.gmra.mxu0 %v10073
  %v10075 = vpop.f32.mrf.mxu0
  %v10076 = vadd.f32 %v9725, %v10075
  %v10077 = vand.u32 %v8677, 4294901760
  %v10078 = vsub.f32 %v8677, %v10077
  %v10079 = vand.u32 %v10078, 4294901760
  %10080 = vmatmul.f32.gmra.mxu0 %v10079
  %v10081 = vpop.f32.mrf.mxu0
  %v10082 = vadd.f32 %v9730, %v10081
  %v10083 = vand.u32 %v8680, 4294901760
  %v10084 = vsub.f32 %v8680, %v10083
  %v10085 = vand.u32 %v10084, 4294901760
  %10086 = vmatmul.f32.gmra.mxu0 %v10085
  %v10087 = vpop.f32.mrf.mxu0
  %v10088 = vadd.f32 %v9735, %v10087
  %v10089 = vand.u32 %v8683, 4294901760
  %v10090 = vsub.f32 %v8683, %v10089
  %v10091 = vand.u32 %v10090, 4294901760
  %10092 = vmatmul.f32.gmra.mxu0 %v10091
  %v10093 = vpop.f32.mrf.mxu0
  %v10094 = vadd.f32 %v9740, %v10093
  %v10095 = vand.u32 %v8686, 4294901760
  %v10096 = vsub.f32 %v8686, %v10095
  %v10097 = vand.u32 %v10096, 4294901760
  %10098 = vmatmul.f32.gmra.mxu0 %v10097
  %v10099 = vpop.f32.mrf.mxu0
  %v10100 = vadd.f32 %v9745, %v10099
  %v10101 = vand.u32 %v8689, 4294901760
  %v10102 = vsub.f32 %v8689, %v10101
  %v10103 = vand.u32 %v10102, 4294901760
  %10104 = vmatmul.f32.gmra.mxu0 %v10103
  %v10105 = vpop.f32.mrf.mxu0
  %v10106 = vadd.f32 %v9750, %v10105
  %v10107 = vand.u32 %v8692, 4294901760
  %v10108 = vsub.f32 %v8692, %v10107
  %v10109 = vand.u32 %v10108, 4294901760
  %10110 = vmatmul.f32.gmra.mxu0 %v10109
  %v10111 = vpop.f32.mrf.mxu0
  %v10112 = vadd.f32 %v9755, %v10111
  %v10113 = vand.u32 %v8695, 4294901760
  %v10114 = vsub.f32 %v8695, %v10113
  %v10115 = vand.u32 %v10114, 4294901760
  %10116 = vmatmul.f32.gmra.mxu0 %v10115
  %v10117 = vpop.f32.mrf.mxu0
  %v10118 = vadd.f32 %v9760, %v10117
  %v10119 = vand.u32 %v8698, 4294901760
  %v10120 = vsub.f32 %v8698, %v10119
  %v10121 = vand.u32 %v10120, 4294901760
  %10122 = vmatmul.f32.gmra.mxu0 %v10121
  %v10123 = vpop.f32.mrf.mxu0
  %v10124 = vadd.f32 %v9765, %v10123
  %v10125 = vand.u32 %v8701, 4294901760
  %v10126 = vsub.f32 %v8701, %v10125
  %v10127 = vand.u32 %v10126, 4294901760
  %10128 = vmatmul.f32.gmra.mxu0 %v10127
  %v10129 = vpop.f32.mrf.mxu0
  %v10130 = vadd.f32 %v9770, %v10129
  %v10131 = vand.u32 %v8704, 4294901760
  %v10132 = vsub.f32 %v8704, %v10131
  %v10133 = vand.u32 %v10132, 4294901760
  %10134 = vmatmul.f32.gmra.mxu0 %v10133
  %v10135 = vpop.f32.mrf.mxu0
  %v10136 = vadd.f32 %v9775, %v10135
  %v10137 = vand.u32 %v8707, 4294901760
  %v10138 = vsub.f32 %v8707, %v10137
  %v10139 = vand.u32 %v10138, 4294901760
  %10140 = vmatmul.f32.gmra.mxu0 %v10139
  %v10141 = vpop.f32.mrf.mxu0
  %v10142 = vadd.f32 %v9780, %v10141
  %v10143 = vand.u32 %v8710, 4294901760
  %v10144 = vsub.f32 %v8710, %v10143
  %v10145 = vand.u32 %v10144, 4294901760
  %10146 = vmatmul.f32.gmra.mxu0 %v10145
  %v10147 = vpop.f32.mrf.mxu0
  %v10148 = vadd.f32 %v9785, %v10147
  %v10149 = vand.u32 %v8713, 4294901760
  %v10150 = vsub.f32 %v8713, %v10149
  %v10151 = vand.u32 %v10150, 4294901760
  %10152 = vmatmul.f32.gmra.mxu0 %v10151
  %v10153 = vpop.f32.mrf.mxu0
  %v10154 = vadd.f32 %v9790, %v10153
  %v10155 = vand.u32 %v8716, 4294901760
  %v10156 = vsub.f32 %v8716, %v10155
  %v10157 = vand.u32 %v10156, 4294901760
  %10158 = vmatmul.f32.gmra.mxu0 %v10157
  %v10159 = vpop.f32.mrf.mxu0
  %v10160 = vadd.f32 %v9795, %v10159
  %v10161 = vand.u32 %v8719, 4294901760
  %v10162 = vsub.f32 %v8719, %v10161
  %v10163 = vand.u32 %v10162, 4294901760
  %10164 = vmatmul.f32.gmra.mxu0 %v10163
  %v10165 = vpop.f32.mrf.mxu0
  %v10166 = vadd.f32 %v9800, %v10165
  %v10167 = vand.u32 %v8722, 4294901760
  %v10168 = vsub.f32 %v8722, %v10167
  %v10169 = vand.u32 %v10168, 4294901760
  %10170 = vmatmul.f32.gmra.mxu0 %v10169
  %v10171 = vpop.f32.mrf.mxu0
  %v10172 = vadd.f32 %v9805, %v10171
  %v10173 = vand.u32 %v8725, 4294901760
  %v10174 = vsub.f32 %v8725, %v10173
  %v10175 = vand.u32 %v10174, 4294901760
  %10176 = vmatmul.f32.gmra.mxu0 %v10175
  %v10177 = vpop.f32.mrf.mxu0
  %v10178 = vadd.f32 %v9810, %v10177
  %v10179 = vand.u32 %v8728, 4294901760
  %v10180 = vsub.f32 %v8728, %v10179
  %v10181 = vand.u32 %v10180, 4294901760
  %10182 = vmatmul.f32.gmra.mxu0 %v10181
  %v10183 = vpop.f32.mrf.mxu0
  %v10184 = vadd.f32 %v9815, %v10183
  %v10185 = vand.u32 %v8731, 4294901760
  %v10186 = vsub.f32 %v8731, %v10185
  %v10187 = vand.u32 %v10186, 4294901760
  %10188 = vmatmul.f32.gmra.mxu0 %v10187
  %v10189 = vpop.f32.mrf.mxu0
  %v10190 = vadd.f32 %v9820, %v10189
  %v10191 = vand.u32 %v8734, 4294901760
  %v10192 = vsub.f32 %v8734, %v10191
  %v10193 = vand.u32 %v10192, 4294901760
  %10194 = vmatmul.f32.gmra.mxu0 %v10193
  %v10195 = vpop.f32.mrf.mxu0
  %v10196 = vadd.f32 %v9825, %v10195
  %v10197 = vand.u32 %v8737, 4294901760
  %v10198 = vsub.f32 %v8737, %v10197
  %v10199 = vand.u32 %v10198, 4294901760
  %10200 = vmatmul.f32.gmra.mxu0 %v10199
  %v10201 = vpop.f32.mrf.mxu0
  %v10202 = vadd.f32 %v9830, %v10201
  %v10203 = vand.u32 %v8740, 4294901760
  %v10204 = vsub.f32 %v8740, %v10203
  %v10205 = vand.u32 %v10204, 4294901760
  %10206 = vmatmul.f32.gmra.mxu0 %v10205
  %v10207 = vpop.f32.mrf.mxu0
  %v10208 = vadd.f32 %v9835, %v10207
  %v10209 = vand.u32 %v8743, 4294901760
  %v10210 = vsub.f32 %v8743, %v10209
  %v10211 = vand.u32 %v10210, 4294901760
  %10212 = vmatmul.f32.gmra.mxu0 %v10211
  %v10213 = vpop.f32.mrf.mxu0
  %v10214 = vadd.f32 %v9840, %v10213
  %v10215 = vand.u32 %v8746, 4294901760
  %v10216 = vsub.f32 %v8746, %v10215
  %v10217 = vand.u32 %v10216, 4294901760
  %10218 = vmatmul.f32.gmra.mxu0 %v10217
  %v10219 = vpop.f32.mrf.mxu0
  %v10220 = vadd.f32 %v9845, %v10219
  %v10221 = vand.u32 %v8749, 4294901760
  %v10222 = vsub.f32 %v8749, %v10221
  %v10223 = vand.u32 %v10222, 4294901760
  %10224 = vmatmul.f32.gmra.mxu0 %v10223
  %v10225 = vpop.f32.mrf.mxu0
  %v10226 = vadd.f32 %v9850, %v10225
  %v10227 = vand.u32 %v8752, 4294901760
  %v10228 = vsub.f32 %v8752, %v10227
  %v10229 = vand.u32 %v10228, 4294901760
  %10230 = vmatmul.f32.gmra.mxu0 %v10229
  %v10231 = vpop.f32.mrf.mxu0
  %v10232 = vadd.f32 %v9855, %v10231
  %v10233 = vand.u32 %v8755, 4294901760
  %v10234 = vsub.f32 %v8755, %v10233
  %v10235 = vand.u32 %v10234, 4294901760
  %10236 = vmatmul.f32.gmra.mxu0 %v10235
  %v10237 = vpop.f32.mrf.mxu0
  %v10238 = vadd.f32 %v9860, %v10237
  %v10239 = vand.u32 %v8758, 4294901760
  %v10240 = vsub.f32 %v8758, %v10239
  %v10241 = vand.u32 %v10240, 4294901760
  %10242 = vmatmul.f32.gmra.mxu0 %v10241
  %v10243 = vpop.f32.mrf.mxu0
  %v10244 = vadd.f32 %v9865, %v10243
  %v10245 = vand.u32 %v8761, 4294901760
  %v10246 = vsub.f32 %v8761, %v10245
  %v10247 = vand.u32 %v10246, 4294901760
  %10248 = vmatmul.f32.gmra.mxu0 %v10247
  %v10249 = vpop.f32.mrf.mxu0
  %v10250 = vadd.f32 %v9870, %v10249
  %v10251 = vand.u32 %v8764, 4294901760
  %v10252 = vsub.f32 %v8764, %v10251
  %v10253 = vand.u32 %v10252, 4294901760
  %10254 = vmatmul.f32.gmra.mxu0 %v10253
  %v10255 = vpop.f32.mrf.mxu0
  %v10256 = vadd.f32 %v9875, %v10255
  %v10257 = vand.u32 %v8767, 4294901760
  %v10258 = vsub.f32 %v8767, %v10257
  %v10259 = vand.u32 %v10258, 4294901760
  %10260 = vmatmul.f32.gmra.mxu0 %v10259
  %v10261 = vpop.f32.mrf.mxu0
  %v10262 = vadd.f32 %v9880, %v10261
  %v10263 = vand.u32 %v8770, 4294901760
  %v10264 = vsub.f32 %v8770, %v10263
  %v10265 = vand.u32 %v10264, 4294901760
  %10266 = vmatmul.f32.gmra.mxu0 %v10265
  %v10267 = vpop.f32.mrf.mxu0
  %v10268 = vadd.f32 %v9885, %v10267
  %v10269 = vand.u32 %v8773, 4294901760
  %v10270 = vsub.f32 %v8773, %v10269
  %v10271 = vand.u32 %v10270, 4294901760
  %10272 = vmatmul.f32.gmra.mxu0 %v10271
  %v10273 = vpop.f32.mrf.mxu0
  %v10274 = vadd.f32 %v9890, %v10273
  %v10275 = vand.u32 %v8776, 4294901760
  %v10276 = vsub.f32 %v8776, %v10275
  %v10277 = vand.u32 %v10276, 4294901760
  %10278 = vmatmul.f32.gmra.mxu0 %v10277
  %v10279 = vpop.f32.mrf.mxu0
  %v10280 = vadd.f32 %v9895, %v10279
  %v10281 = vand.u32 %v8779, 4294901760
  %v10282 = vsub.f32 %v8779, %v10281
  %v10283 = vand.u32 %v10282, 4294901760
  %10284 = vmatmul.f32.gmra.mxu0 %v10283
  %v10285 = vpop.f32.mrf.mxu0
  %v10286 = vadd.f32 %v9900, %v10285
  %v10287 = vand.u32 %v8782, 4294901760
  %v10288 = vsub.f32 %v8782, %v10287
  %v10289 = vand.u32 %v10288, 4294901760
  %10290 = vmatmul.f32.gmra.mxu0 %v10289
  %v10291 = vpop.f32.mrf.mxu0
  %v10292 = vadd.f32 %v9905, %v10291
  %v10293 = vand.u32 %v8785, 4294901760
  %v10294 = vsub.f32 %v8785, %v10293
  %v10295 = vand.u32 %v10294, 4294901760
  %10296 = vmatmul.f32.gmra.mxu0 %v10295
  %v10297 = vpop.f32.mrf.mxu0
  %v10298 = vadd.f32 %v9910, %v10297
  %v10299 = vand.u32 %v8788, 4294901760
  %v10300 = vsub.f32 %v8788, %v10299
  %v10301 = vand.u32 %v10300, 4294901760
  %10302 = vmatmul.f32.gmra.mxu0 %v10301
  %v10303 = vpop.f32.mrf.mxu0
  %v10304 = vadd.f32 %v9915, %v10303
  %v10305 = vand.u32 %v8791, 4294901760
  %v10306 = vsub.f32 %v8791, %v10305
  %v10307 = vand.u32 %v10306, 4294901760
  %10308 = vmatmul.f32.gmra.mxu0 %v10307
  %v10309 = vpop.f32.mrf.mxu0
  %v10310 = vadd.f32 %v9920, %v10309
  %v10311 = vand.u32 %v8794, 4294901760
  %v10312 = vsub.f32 %v8794, %v10311
  %v10313 = vand.u32 %v10312, 4294901760
  %10314 = vmatmul.f32.gmra.mxu0 %v10313
  %v10315 = vpop.f32.mrf.mxu0
  %v10316 = vadd.f32 %v9925, %v10315
  %v10317 = vand.u32 %v8797, 4294901760
  %v10318 = vsub.f32 %v8797, %v10317
  %v10319 = vand.u32 %v10318, 4294901760
  %10320 = vmatmul.f32.gmra.mxu0 %v10319
  %v10321 = vpop.f32.mrf.mxu0
  %v10322 = vadd.f32 %v9930, %v10321
  %v10323 = vand.u32 %v8800, 4294901760
  %v10324 = vsub.f32 %v8800, %v10323
  %v10325 = vand.u32 %v10324, 4294901760
  %10326 = vmatmul.f32.gmra.mxu0 %v10325
  %v10327 = vpop.f32.mrf.mxu0
  %v10328 = vadd.f32 %v9935, %v10327
  %v10329 = vand.u32 %v8803, 4294901760
  %v10330 = vsub.f32 %v8803, %v10329
  %v10331 = vand.u32 %v10330, 4294901760
  %10332 = vmatmul.f32.gmra.mxu0 %v10331
  %v10333 = vpop.f32.mrf.mxu0
  %v10334 = vadd.f32 %v9940, %v10333
  %v10335 = vand.u32 %v8806, 4294901760
  %v10336 = vsub.f32 %v8806, %v10335
  %v10337 = vand.u32 %v10336, 4294901760
  %10338 = vmatmul.f32.gmra.mxu0 %v10337
  %v10339 = vpop.f32.mrf.mxu0
  %v10340 = vadd.f32 %v9945, %v10339
  %v10341 = vand.u32 %v8809, 4294901760
  %v10342 = vsub.f32 %v8809, %v10341
  %v10343 = vand.u32 %v10342, 4294901760
  %10344 = vmatmul.f32.gmra.mxu0 %v10343
  %v10345 = vpop.f32.mrf.mxu0
  %v10346 = vadd.f32 %v9950, %v10345
  %v10347 = vand.u32 %v8812, 4294901760
  %v10348 = vsub.f32 %v8812, %v10347
  %v10349 = vand.u32 %v10348, 4294901760
  %10350 = vmatmul.f32.gmra.mxu0 %v10349
  %v10351 = vpop.f32.mrf.mxu0
  %v10352 = vadd.f32 %v9955, %v10351
  %v10353 = vand.u32 %v8815, 4294901760
  %v10354 = vsub.f32 %v8815, %v10353
  %v10355 = vand.u32 %v10354, 4294901760
  %10356 = vmatmul.f32.gmra.mxu0 %v10355
  %v10357 = vpop.f32.mrf.mxu0
  %v10358 = vadd.f32 %v9960, %v10357
  %v10359 = vand.u32 %v8818, 4294901760
  %v10360 = vsub.f32 %v8818, %v10359
  %v10361 = vand.u32 %v10360, 4294901760
  %10362 = vmatmul.f32.gmra.mxu0 %v10361
  %v10363 = vpop.f32.mrf.mxu0
  %v10364 = vadd.f32 %v9965, %v10363
  %v10365 = vand.u32 %v8821, 4294901760
  %v10366 = vsub.f32 %v8821, %v10365
  %v10367 = vand.u32 %v10366, 4294901760
  %10368 = vmatmul.f32.gmra.mxu0 %v10367
  %v10369 = vpop.f32.mrf.mxu0
  %v10370 = vadd.f32 %v9970, %v10369
  %v10371 = vand.u32 %v8824, 4294901760
  %v10372 = vsub.f32 %v8824, %v10371
  %v10373 = vand.u32 %v10372, 4294901760
  %10374 = vmatmul.f32.gmra.mxu0 %v10373
  %v10375 = vpop.f32.mrf.mxu0
  %v10376 = vadd.f32 %v9975, %v10375
  %v10377 = vand.u32 %v8827, 4294901760
  %v10378 = vsub.f32 %v8827, %v10377
  %v10379 = vand.u32 %v10378, 4294901760
  %10380 = vmatmul.f32.gmra.mxu0 %v10379
  %v10381 = vpop.f32.mrf.mxu0
  %v10382 = vadd.f32 %v9980, %v10381
  %v10383 = vand.u32 %v8830, 4294901760
  %v10384 = vsub.f32 %v8830, %v10383
  %v10385 = vand.u32 %v10384, 4294901760
  %10386 = vmatmul.f32.gmra.mxu0 %v10385
  %v10387 = vpop.f32.mrf.mxu0
  %v10388 = vadd.f32 %v9985, %v10387
  %10389 = vdwg.mxu0
  %10390 = vmatpush.msra.mxu0 0.0
  %10391 = vmatpush.msra.mxu0 0.0
  %10392 = vmatpush.msra.mxu0 0.0
  %10393 = vmatpush.msra.mxu0 0.0
  %10394 = vmatpush.msra.mxu0 0.0
  %10395 = vmatpush.msra.mxu0 0.0
  %10396 = vmatpush.msra.mxu0 0.0
  %10397 = vmatpush.msra.mxu0 0.0
  %10398 = vmatpush.msra.mxu0 0.0
  %10399 = vmatpush.msra.mxu0 0.0
  %10400 = vmatpush.msra.mxu0 0.0
  %10401 = vmatpush.msra.mxu0 0.0
  %10402 = vmatpush.msra.mxu0 0.0
  %10403 = vmatpush.msra.mxu0 0.0
  %v10404 = vand.u32 %v8636, 4294901760
  %v10405 = vsub.f32 %v8636, %v10404
  %v10406 = vand.u32 %v10405, 4294901760
  %10407 = vmatpush.msra.mxu0 %v10406
  %v10408 = vand.u32 %v8635, 4294901760
  %v10409 = vsub.f32 %v8635, %v10408
  %v10410 = vand.u32 %v10409, 4294901760
  %10411 = vmatpush.msra.mxu0 %v10410
  %v10412 = vand.u32 %v8641, 4294901760
  %10413 = vmatmul.f32.gmra.mxu0 %v10412
  %v10414 = vpop.f32.mrf.mxu0
  %v10415 = vadd.f32 %v10010, %v10414
  %v10416 = vand.u32 %v8644, 4294901760
  %10417 = vmatmul.f32.gmra.mxu0 %v10416
  %v10418 = vpop.f32.mrf.mxu0
  %v10419 = vadd.f32 %v10016, %v10418
  %v10420 = vand.u32 %v8647, 4294901760
  %10421 = vmatmul.f32.gmra.mxu0 %v10420
  %v10422 = vpop.f32.mrf.mxu0
  %v10423 = vadd.f32 %v10022, %v10422
  %v10424 = vand.u32 %v8650, 4294901760
  %10425 = vmatmul.f32.gmra.mxu0 %v10424
  %v10426 = vpop.f32.mrf.mxu0
  %v10427 = vadd.f32 %v10028, %v10426
  %v10428 = vand.u32 %v8653, 4294901760
  %10429 = vmatmul.f32.gmra.mxu0 %v10428
  %v10430 = vpop.f32.mrf.mxu0
  %v10431 = vadd.f32 %v10034, %v10430
  %v10432 = vand.u32 %v8656, 4294901760
  %10433 = vmatmul.f32.gmra.mxu0 %v10432
  %v10434 = vpop.f32.mrf.mxu0
  %v10435 = vadd.f32 %v10040, %v10434
  %v10436 = vand.u32 %v8659, 4294901760
  %10437 = vmatmul.f32.gmra.mxu0 %v10436
  %v10438 = vpop.f32.mrf.mxu0
  %v10439 = vadd.f32 %v10046, %v10438
  %v10440 = vand.u32 %v8662, 4294901760
  %10441 = vmatmul.f32.gmra.mxu0 %v10440
  %v10442 = vpop.f32.mrf.mxu0
  %v10443 = vadd.f32 %v10052, %v10442
  %v10444 = vand.u32 %v8665, 4294901760
  %10445 = vmatmul.f32.gmra.mxu0 %v10444
  %v10446 = vpop.f32.mrf.mxu0
  %v10447 = vadd.f32 %v10058, %v10446
  %v10448 = vand.u32 %v8668, 4294901760
  %10449 = vmatmul.f32.gmra.mxu0 %v10448
  %v10450 = vpop.f32.mrf.mxu0
  %v10451 = vadd.f32 %v10064, %v10450
  %v10452 = vand.u32 %v8671, 4294901760
  %10453 = vmatmul.f32.gmra.mxu0 %v10452
  %v10454 = vpop.f32.mrf.mxu0
  %v10455 = vadd.f32 %v10070, %v10454
  %v10456 = vand.u32 %v8674, 4294901760
  %10457 = vmatmul.f32.gmra.mxu0 %v10456
  %v10458 = vpop.f32.mrf.mxu0
  %v10459 = vadd.f32 %v10076, %v10458
  %v10460 = vand.u32 %v8677, 4294901760
  %10461 = vmatmul.f32.gmra.mxu0 %v10460
  %v10462 = vpop.f32.mrf.mxu0
  %v10463 = vadd.f32 %v10082, %v10462
  %v10464 = vand.u32 %v8680, 4294901760
  %10465 = vmatmul.f32.gmra.mxu0 %v10464
  %v10466 = vpop.f32.mrf.mxu0
  %v10467 = vadd.f32 %v10088, %v10466
  %v10468 = vand.u32 %v8683, 4294901760
  %10469 = vmatmul.f32.gmra.mxu0 %v10468
  %v10470 = vpop.f32.mrf.mxu0
  %v10471 = vadd.f32 %v10094, %v10470
  %v10472 = vand.u32 %v8686, 4294901760
  %10473 = vmatmul.f32.gmra.mxu0 %v10472
  %v10474 = vpop.f32.mrf.mxu0
  %v10475 = vadd.f32 %v10100, %v10474
  %v10476 = vand.u32 %v8689, 4294901760
  %10477 = vmatmul.f32.gmra.mxu0 %v10476
  %v10478 = vpop.f32.mrf.mxu0
  %v10479 = vadd.f32 %v10106, %v10478
  %v10480 = vand.u32 %v8692, 4294901760
  %10481 = vmatmul.f32.gmra.mxu0 %v10480
  %v10482 = vpop.f32.mrf.mxu0
  %v10483 = vadd.f32 %v10112, %v10482
  %v10484 = vand.u32 %v8695, 4294901760
  %10485 = vmatmul.f32.gmra.mxu0 %v10484
  %v10486 = vpop.f32.mrf.mxu0
  %v10487 = vadd.f32 %v10118, %v10486
  %v10488 = vand.u32 %v8698, 4294901760
  %10489 = vmatmul.f32.gmra.mxu0 %v10488
  %v10490 = vpop.f32.mrf.mxu0
  %v10491 = vadd.f32 %v10124, %v10490
  %v10492 = vand.u32 %v8701, 4294901760
  %10493 = vmatmul.f32.gmra.mxu0 %v10492
  %v10494 = vpop.f32.mrf.mxu0
  %v10495 = vadd.f32 %v10130, %v10494
  %v10496 = vand.u32 %v8704, 4294901760
  %10497 = vmatmul.f32.gmra.mxu0 %v10496
  %v10498 = vpop.f32.mrf.mxu0
  %v10499 = vadd.f32 %v10136, %v10498
  %v10500 = vand.u32 %v8707, 4294901760
  %10501 = vmatmul.f32.gmra.mxu0 %v10500
  %v10502 = vpop.f32.mrf.mxu0
  %v10503 = vadd.f32 %v10142, %v10502
  %v10504 = vand.u32 %v8710, 4294901760
  %10505 = vmatmul.f32.gmra.mxu0 %v10504
  %v10506 = vpop.f32.mrf.mxu0
  %v10507 = vadd.f32 %v10148, %v10506
  %v10508 = vand.u32 %v8713, 4294901760
  %10509 = vmatmul.f32.gmra.mxu0 %v10508
  %v10510 = vpop.f32.mrf.mxu0
  %v10511 = vadd.f32 %v10154, %v10510
  %v10512 = vand.u32 %v8716, 4294901760
  %10513 = vmatmul.f32.gmra.mxu0 %v10512
  %v10514 = vpop.f32.mrf.mxu0
  %v10515 = vadd.f32 %v10160, %v10514
  %v10516 = vand.u32 %v8719, 4294901760
  %10517 = vmatmul.f32.gmra.mxu0 %v10516
  %v10518 = vpop.f32.mrf.mxu0
  %v10519 = vadd.f32 %v10166, %v10518
  %v10520 = vand.u32 %v8722, 4294901760
  %10521 = vmatmul.f32.gmra.mxu0 %v10520
  %v10522 = vpop.f32.mrf.mxu0
  %v10523 = vadd.f32 %v10172, %v10522
  %v10524 = vand.u32 %v8725, 4294901760
  %10525 = vmatmul.f32.gmra.mxu0 %v10524
  %v10526 = vpop.f32.mrf.mxu0
  %v10527 = vadd.f32 %v10178, %v10526
  %v10528 = vand.u32 %v8728, 4294901760
  %10529 = vmatmul.f32.gmra.mxu0 %v10528
  %v10530 = vpop.f32.mrf.mxu0
  %v10531 = vadd.f32 %v10184, %v10530
  %v10532 = vand.u32 %v8731, 4294901760
  %10533 = vmatmul.f32.gmra.mxu0 %v10532
  %v10534 = vpop.f32.mrf.mxu0
  %v10535 = vadd.f32 %v10190, %v10534
  %v10536 = vand.u32 %v8734, 4294901760
  %10537 = vmatmul.f32.gmra.mxu0 %v10536
  %v10538 = vpop.f32.mrf.mxu0
  %v10539 = vadd.f32 %v10196, %v10538
  %v10540 = vand.u32 %v8737, 4294901760
  %10541 = vmatmul.f32.gmra.mxu0 %v10540
  %v10542 = vpop.f32.mrf.mxu0
  %v10543 = vadd.f32 %v10202, %v10542
  %v10544 = vand.u32 %v8740, 4294901760
  %10545 = vmatmul.f32.gmra.mxu0 %v10544
  %v10546 = vpop.f32.mrf.mxu0
  %v10547 = vadd.f32 %v10208, %v10546
  %v10548 = vand.u32 %v8743, 4294901760
  %10549 = vmatmul.f32.gmra.mxu0 %v10548
  %v10550 = vpop.f32.mrf.mxu0
  %v10551 = vadd.f32 %v10214, %v10550
  %v10552 = vand.u32 %v8746, 4294901760
  %10553 = vmatmul.f32.gmra.mxu0 %v10552
  %v10554 = vpop.f32.mrf.mxu0
  %v10555 = vadd.f32 %v10220, %v10554
  %v10556 = vand.u32 %v8749, 4294901760
  %10557 = vmatmul.f32.gmra.mxu0 %v10556
  %v10558 = vpop.f32.mrf.mxu0
  %v10559 = vadd.f32 %v10226, %v10558
  %v10560 = vand.u32 %v8752, 4294901760
  %10561 = vmatmul.f32.gmra.mxu0 %v10560
  %v10562 = vpop.f32.mrf.mxu0
  %v10563 = vadd.f32 %v10232, %v10562
  %v10564 = vand.u32 %v8755, 4294901760
  %10565 = vmatmul.f32.gmra.mxu0 %v10564
  %v10566 = vpop.f32.mrf.mxu0
  %v10567 = vadd.f32 %v10238, %v10566
  %v10568 = vand.u32 %v8758, 4294901760
  %10569 = vmatmul.f32.gmra.mxu0 %v10568
  %v10570 = vpop.f32.mrf.mxu0
  %v10571 = vadd.f32 %v10244, %v10570
  %v10572 = vand.u32 %v8761, 4294901760
  %10573 = vmatmul.f32.gmra.mxu0 %v10572
  %v10574 = vpop.f32.mrf.mxu0
  %v10575 = vadd.f32 %v10250, %v10574
  %v10576 = vand.u32 %v8764, 4294901760
  %10577 = vmatmul.f32.gmra.mxu0 %v10576
  %v10578 = vpop.f32.mrf.mxu0
  %v10579 = vadd.f32 %v10256, %v10578
  %v10580 = vand.u32 %v8767, 4294901760
  %10581 = vmatmul.f32.gmra.mxu0 %v10580
  %v10582 = vpop.f32.mrf.mxu0
  %v10583 = vadd.f32 %v10262, %v10582
  %v10584 = vand.u32 %v8770, 4294901760
  %10585 = vmatmul.f32.gmra.mxu0 %v10584
  %v10586 = vpop.f32.mrf.mxu0
  %v10587 = vadd.f32 %v10268, %v10586
  %v10588 = vand.u32 %v8773, 4294901760
  %10589 = vmatmul.f32.gmra.mxu0 %v10588
  %v10590 = vpop.f32.mrf.mxu0
  %v10591 = vadd.f32 %v10274, %v10590
  %v10592 = vand.u32 %v8776, 4294901760
  %10593 = vmatmul.f32.gmra.mxu0 %v10592
  %v10594 = vpop.f32.mrf.mxu0
  %v10595 = vadd.f32 %v10280, %v10594
  %v10596 = vand.u32 %v8779, 4294901760
  %10597 = vmatmul.f32.gmra.mxu0 %v10596
  %v10598 = vpop.f32.mrf.mxu0
  %v10599 = vadd.f32 %v10286, %v10598
  %v10600 = vand.u32 %v8782, 4294901760
  %10601 = vmatmul.f32.gmra.mxu0 %v10600
  %v10602 = vpop.f32.mrf.mxu0
  %v10603 = vadd.f32 %v10292, %v10602
  %v10604 = vand.u32 %v8785, 4294901760
  %10605 = vmatmul.f32.gmra.mxu0 %v10604
  %v10606 = vpop.f32.mrf.mxu0
  %v10607 = vadd.f32 %v10298, %v10606
  %v10608 = vand.u32 %v8788, 4294901760
  %10609 = vmatmul.f32.gmra.mxu0 %v10608
  %v10610 = vpop.f32.mrf.mxu0
  %v10611 = vadd.f32 %v10304, %v10610
  %v10612 = vand.u32 %v8791, 4294901760
  %10613 = vmatmul.f32.gmra.mxu0 %v10612
  %v10614 = vpop.f32.mrf.mxu0
  %v10615 = vadd.f32 %v10310, %v10614
  %v10616 = vand.u32 %v8794, 4294901760
  %10617 = vmatmul.f32.gmra.mxu0 %v10616
  %v10618 = vpop.f32.mrf.mxu0
  %v10619 = vadd.f32 %v10316, %v10618
  %v10620 = vand.u32 %v8797, 4294901760
  %10621 = vmatmul.f32.gmra.mxu0 %v10620
  %v10622 = vpop.f32.mrf.mxu0
  %v10623 = vadd.f32 %v10322, %v10622
  %v10624 = vand.u32 %v8800, 4294901760
  %10625 = vmatmul.f32.gmra.mxu0 %v10624
  %v10626 = vpop.f32.mrf.mxu0
  %v10627 = vadd.f32 %v10328, %v10626
  %v10628 = vand.u32 %v8803, 4294901760
  %10629 = vmatmul.f32.gmra.mxu0 %v10628
  %v10630 = vpop.f32.mrf.mxu0
  %v10631 = vadd.f32 %v10334, %v10630
  %v10632 = vand.u32 %v8806, 4294901760
  %10633 = vmatmul.f32.gmra.mxu0 %v10632
  %v10634 = vpop.f32.mrf.mxu0
  %v10635 = vadd.f32 %v10340, %v10634
  %v10636 = vand.u32 %v8809, 4294901760
  %10637 = vmatmul.f32.gmra.mxu0 %v10636
  %v10638 = vpop.f32.mrf.mxu0
  %v10639 = vadd.f32 %v10346, %v10638
  %v10640 = vand.u32 %v8812, 4294901760
  %10641 = vmatmul.f32.gmra.mxu0 %v10640
  %v10642 = vpop.f32.mrf.mxu0
  %v10643 = vadd.f32 %v10352, %v10642
  %v10644 = vand.u32 %v8815, 4294901760
  %10645 = vmatmul.f32.gmra.mxu0 %v10644
  %v10646 = vpop.f32.mrf.mxu0
  %v10647 = vadd.f32 %v10358, %v10646
  %v10648 = vand.u32 %v8818, 4294901760
  %10649 = vmatmul.f32.gmra.mxu0 %v10648
  %v10650 = vpop.f32.mrf.mxu0
  %v10651 = vadd.f32 %v10364, %v10650
  %v10652 = vand.u32 %v8821, 4294901760
  %10653 = vmatmul.f32.gmra.mxu0 %v10652
  %v10654 = vpop.f32.mrf.mxu0
  %v10655 = vadd.f32 %v10370, %v10654
  %v10656 = vand.u32 %v8824, 4294901760
  %10657 = vmatmul.f32.gmra.mxu0 %v10656
  %v10658 = vpop.f32.mrf.mxu0
  %v10659 = vadd.f32 %v10376, %v10658
  %v10660 = vand.u32 %v8827, 4294901760
  %10661 = vmatmul.f32.gmra.mxu0 %v10660
  %v10662 = vpop.f32.mrf.mxu0
  %v10663 = vadd.f32 %v10382, %v10662
  %v10664 = vand.u32 %v8830, 4294901760
  %10665 = vmatmul.f32.gmra.mxu0 %v10664
  %v10666 = vpop.f32.mrf.mxu0
  %v10667 = vadd.f32 %v10388, %v10666
  %10668 = vdwg.mxu0
  %10669 = vmatpush.msra.mxu0 0.0
  %10670 = vmatpush.msra.mxu0 0.0
  %10671 = vmatpush.msra.mxu0 0.0
  %10672 = vmatpush.msra.mxu0 0.0
  %10673 = vmatpush.msra.mxu0 0.0
  %10674 = vmatpush.msra.mxu0 0.0
  %10675 = vmatpush.msra.mxu0 0.0
  %10676 = vmatpush.msra.mxu0 0.0
  %10677 = vmatpush.msra.mxu0 0.0
  %10678 = vmatpush.msra.mxu0 0.0
  %10679 = vmatpush.msra.mxu0 0.0
  %10680 = vmatpush.msra.mxu0 0.0
  %10681 = vmatpush.msra.mxu0 0.0
  %10682 = vmatpush.msra.mxu0 0.0
  %v10683 = vand.u32 %v8636, 4294901760
  %10684 = vmatpush.msra.mxu0 %v10683
  %v10685 = vand.u32 %v8635, 4294901760
  %10686 = vmatpush.msra.mxu0 %v10685
  %v10687 = vand.u32 %v8641, 4294901760
  %10688 = vmatmul.f32.gmra.mxu0 %v10687
  %v10689 = vpop.f32.mrf.mxu0
  %v10690 = vadd.f32 %v10415, %v10689
  %v10691 = vand.u32 %v8644, 4294901760
  %10692 = vmatmul.f32.gmra.mxu0 %v10691
  %v10693 = vpop.f32.mrf.mxu0
  %v10694 = vadd.f32 %v10419, %v10693
  %v10695 = vand.u32 %v8647, 4294901760
  %10696 = vmatmul.f32.gmra.mxu0 %v10695
  %v10697 = vpop.f32.mrf.mxu0
  %v10698 = vadd.f32 %v10423, %v10697
  %v10699 = vand.u32 %v8650, 4294901760
  %10700 = vmatmul.f32.gmra.mxu0 %v10699
  %v10701 = vpop.f32.mrf.mxu0
  %v10702 = vadd.f32 %v10427, %v10701
  %v10703 = vand.u32 %v8653, 4294901760
  %10704 = vmatmul.f32.gmra.mxu0 %v10703
  %v10705 = vpop.f32.mrf.mxu0
  %v10706 = vadd.f32 %v10431, %v10705
  %v10707 = vand.u32 %v8656, 4294901760
  %10708 = vmatmul.f32.gmra.mxu0 %v10707
  %v10709 = vpop.f32.mrf.mxu0
  %v10710 = vadd.f32 %v10435, %v10709
  %v10711 = vand.u32 %v8659, 4294901760
  %10712 = vmatmul.f32.gmra.mxu0 %v10711
  %v10713 = vpop.f32.mrf.mxu0
  %v10714 = vadd.f32 %v10439, %v10713
  %v10715 = vand.u32 %v8662, 4294901760
  %10716 = vmatmul.f32.gmra.mxu0 %v10715
  %v10717 = vpop.f32.mrf.mxu0
  %v10718 = vadd.f32 %v10443, %v10717
  %v10719 = vand.u32 %v8665, 4294901760
  %10720 = vmatmul.f32.gmra.mxu0 %v10719
  %v10721 = vpop.f32.mrf.mxu0
  %v10722 = vadd.f32 %v10447, %v10721
  %v10723 = vand.u32 %v8668, 4294901760
  %10724 = vmatmul.f32.gmra.mxu0 %v10723
  %v10725 = vpop.f32.mrf.mxu0
  %v10726 = vadd.f32 %v10451, %v10725
  %v10727 = vand.u32 %v8671, 4294901760
  %10728 = vmatmul.f32.gmra.mxu0 %v10727
  %v10729 = vpop.f32.mrf.mxu0
  %v10730 = vadd.f32 %v10455, %v10729
  %v10731 = vand.u32 %v8674, 4294901760
  %10732 = vmatmul.f32.gmra.mxu0 %v10731
  %v10733 = vpop.f32.mrf.mxu0
  %v10734 = vadd.f32 %v10459, %v10733
  %v10735 = vand.u32 %v8677, 4294901760
  %10736 = vmatmul.f32.gmra.mxu0 %v10735
  %v10737 = vpop.f32.mrf.mxu0
  %v10738 = vadd.f32 %v10463, %v10737
  %v10739 = vand.u32 %v8680, 4294901760
  %10740 = vmatmul.f32.gmra.mxu0 %v10739
  %v10741 = vpop.f32.mrf.mxu0
  %v10742 = vadd.f32 %v10467, %v10741
  %v10743 = vand.u32 %v8683, 4294901760
  %10744 = vmatmul.f32.gmra.mxu0 %v10743
  %v10745 = vpop.f32.mrf.mxu0
  %v10746 = vadd.f32 %v10471, %v10745
  %v10747 = vand.u32 %v8686, 4294901760
  %10748 = vmatmul.f32.gmra.mxu0 %v10747
  %v10749 = vpop.f32.mrf.mxu0
  %v10750 = vadd.f32 %v10475, %v10749
  %v10751 = vand.u32 %v8689, 4294901760
  %10752 = vmatmul.f32.gmra.mxu0 %v10751
  %v10753 = vpop.f32.mrf.mxu0
  %v10754 = vadd.f32 %v10479, %v10753
  %v10755 = vand.u32 %v8692, 4294901760
  %10756 = vmatmul.f32.gmra.mxu0 %v10755
  %v10757 = vpop.f32.mrf.mxu0
  %v10758 = vadd.f32 %v10483, %v10757
  %v10759 = vand.u32 %v8695, 4294901760
  %10760 = vmatmul.f32.gmra.mxu0 %v10759
  %v10761 = vpop.f32.mrf.mxu0
  %v10762 = vadd.f32 %v10487, %v10761
  %v10763 = vand.u32 %v8698, 4294901760
  %10764 = vmatmul.f32.gmra.mxu0 %v10763
  %v10765 = vpop.f32.mrf.mxu0
  %v10766 = vadd.f32 %v10491, %v10765
  %v10767 = vand.u32 %v8701, 4294901760
  %10768 = vmatmul.f32.gmra.mxu0 %v10767
  %v10769 = vpop.f32.mrf.mxu0
  %v10770 = vadd.f32 %v10495, %v10769
  %v10771 = vand.u32 %v8704, 4294901760
  %10772 = vmatmul.f32.gmra.mxu0 %v10771
  %v10773 = vpop.f32.mrf.mxu0
  %v10774 = vadd.f32 %v10499, %v10773
  %v10775 = vand.u32 %v8707, 4294901760
  %10776 = vmatmul.f32.gmra.mxu0 %v10775
  %v10777 = vpop.f32.mrf.mxu0
  %v10778 = vadd.f32 %v10503, %v10777
  %v10779 = vand.u32 %v8710, 4294901760
  %10780 = vmatmul.f32.gmra.mxu0 %v10779
  %v10781 = vpop.f32.mrf.mxu0
  %v10782 = vadd.f32 %v10507, %v10781
  %v10783 = vand.u32 %v8713, 4294901760
  %10784 = vmatmul.f32.gmra.mxu0 %v10783
  %v10785 = vpop.f32.mrf.mxu0
  %v10786 = vadd.f32 %v10511, %v10785
  %v10787 = vand.u32 %v8716, 4294901760
  %10788 = vmatmul.f32.gmra.mxu0 %v10787
  %v10789 = vpop.f32.mrf.mxu0
  %v10790 = vadd.f32 %v10515, %v10789
  %v10791 = vand.u32 %v8719, 4294901760
  %10792 = vmatmul.f32.gmra.mxu0 %v10791
  %v10793 = vpop.f32.mrf.mxu0
  %v10794 = vadd.f32 %v10519, %v10793
  %v10795 = vand.u32 %v8722, 4294901760
  %10796 = vmatmul.f32.gmra.mxu0 %v10795
  %v10797 = vpop.f32.mrf.mxu0
  %v10798 = vadd.f32 %v10523, %v10797
  %v10799 = vand.u32 %v8725, 4294901760
  %10800 = vmatmul.f32.gmra.mxu0 %v10799
  %v10801 = vpop.f32.mrf.mxu0
  %v10802 = vadd.f32 %v10527, %v10801
  %v10803 = vand.u32 %v8728, 4294901760
  %10804 = vmatmul.f32.gmra.mxu0 %v10803
  %v10805 = vpop.f32.mrf.mxu0
  %v10806 = vadd.f32 %v10531, %v10805
  %v10807 = vand.u32 %v8731, 4294901760
  %10808 = vmatmul.f32.gmra.mxu0 %v10807
  %v10809 = vpop.f32.mrf.mxu0
  %v10810 = vadd.f32 %v10535, %v10809
  %v10811 = vand.u32 %v8734, 4294901760
  %10812 = vmatmul.f32.gmra.mxu0 %v10811
  %v10813 = vpop.f32.mrf.mxu0
  %v10814 = vadd.f32 %v10539, %v10813
  %v10815 = vand.u32 %v8737, 4294901760
  %10816 = vmatmul.f32.gmra.mxu0 %v10815
  %v10817 = vpop.f32.mrf.mxu0
  %v10818 = vadd.f32 %v10543, %v10817
  %v10819 = vand.u32 %v8740, 4294901760
  %10820 = vmatmul.f32.gmra.mxu0 %v10819
  %v10821 = vpop.f32.mrf.mxu0
  %v10822 = vadd.f32 %v10547, %v10821
  %v10823 = vand.u32 %v8743, 4294901760
  %10824 = vmatmul.f32.gmra.mxu0 %v10823
  %v10825 = vpop.f32.mrf.mxu0
  %v10826 = vadd.f32 %v10551, %v10825
  %v10827 = vand.u32 %v8746, 4294901760
  %10828 = vmatmul.f32.gmra.mxu0 %v10827
  %v10829 = vpop.f32.mrf.mxu0
  %v10830 = vadd.f32 %v10555, %v10829
  %v10831 = vand.u32 %v8749, 4294901760
  %10832 = vmatmul.f32.gmra.mxu0 %v10831
  %v10833 = vpop.f32.mrf.mxu0
  %v10834 = vadd.f32 %v10559, %v10833
  %v10835 = vand.u32 %v8752, 4294901760
  %10836 = vmatmul.f32.gmra.mxu0 %v10835
  %v10837 = vpop.f32.mrf.mxu0
  %v10838 = vadd.f32 %v10563, %v10837
  %v10839 = vand.u32 %v8755, 4294901760
  %10840 = vmatmul.f32.gmra.mxu0 %v10839
  %v10841 = vpop.f32.mrf.mxu0
  %v10842 = vadd.f32 %v10567, %v10841
  %v10843 = vand.u32 %v8758, 4294901760
  %10844 = vmatmul.f32.gmra.mxu0 %v10843
  %v10845 = vpop.f32.mrf.mxu0
  %v10846 = vadd.f32 %v10571, %v10845
  %v10847 = vand.u32 %v8761, 4294901760
  %10848 = vmatmul.f32.gmra.mxu0 %v10847
  %v10849 = vpop.f32.mrf.mxu0
  %v10850 = vadd.f32 %v10575, %v10849
  %v10851 = vand.u32 %v8764, 4294901760
  %10852 = vmatmul.f32.gmra.mxu0 %v10851
  %v10853 = vpop.f32.mrf.mxu0
  %v10854 = vadd.f32 %v10579, %v10853
  %v10855 = vand.u32 %v8767, 4294901760
  %10856 = vmatmul.f32.gmra.mxu0 %v10855
  %v10857 = vpop.f32.mrf.mxu0
  %v10858 = vadd.f32 %v10583, %v10857
  %v10859 = vand.u32 %v8770, 4294901760
  %10860 = vmatmul.f32.gmra.mxu0 %v10859
  %v10861 = vpop.f32.mrf.mxu0
  %v10862 = vadd.f32 %v10587, %v10861
  %v10863 = vand.u32 %v8773, 4294901760
  %10864 = vmatmul.f32.gmra.mxu0 %v10863
  %v10865 = vpop.f32.mrf.mxu0
  %v10866 = vadd.f32 %v10591, %v10865
  %v10867 = vand.u32 %v8776, 4294901760
  %10868 = vmatmul.f32.gmra.mxu0 %v10867
  %v10869 = vpop.f32.mrf.mxu0
  %v10870 = vadd.f32 %v10595, %v10869
  %v10871 = vand.u32 %v8779, 4294901760
  %10872 = vmatmul.f32.gmra.mxu0 %v10871
  %v10873 = vpop.f32.mrf.mxu0
  %v10874 = vadd.f32 %v10599, %v10873
  %v10875 = vand.u32 %v8782, 4294901760
  %10876 = vmatmul.f32.gmra.mxu0 %v10875
  %v10877 = vpop.f32.mrf.mxu0
  %v10878 = vadd.f32 %v10603, %v10877
  %v10879 = vand.u32 %v8785, 4294901760
  %10880 = vmatmul.f32.gmra.mxu0 %v10879
  %v10881 = vpop.f32.mrf.mxu0
  %v10882 = vadd.f32 %v10607, %v10881
  %v10883 = vand.u32 %v8788, 4294901760
  %10884 = vmatmul.f32.gmra.mxu0 %v10883
  %v10885 = vpop.f32.mrf.mxu0
  %v10886 = vadd.f32 %v10611, %v10885
  %v10887 = vand.u32 %v8791, 4294901760
  %10888 = vmatmul.f32.gmra.mxu0 %v10887
  %v10889 = vpop.f32.mrf.mxu0
  %v10890 = vadd.f32 %v10615, %v10889
  %v10891 = vand.u32 %v8794, 4294901760
  %10892 = vmatmul.f32.gmra.mxu0 %v10891
  %v10893 = vpop.f32.mrf.mxu0
  %v10894 = vadd.f32 %v10619, %v10893
  %v10895 = vand.u32 %v8797, 4294901760
  %10896 = vmatmul.f32.gmra.mxu0 %v10895
  %v10897 = vpop.f32.mrf.mxu0
  %v10898 = vadd.f32 %v10623, %v10897
  %v10899 = vand.u32 %v8800, 4294901760
  %10900 = vmatmul.f32.gmra.mxu0 %v10899
  %v10901 = vpop.f32.mrf.mxu0
  %v10902 = vadd.f32 %v10627, %v10901
  %v10903 = vand.u32 %v8803, 4294901760
  %10904 = vmatmul.f32.gmra.mxu0 %v10903
  %v10905 = vpop.f32.mrf.mxu0
  %v10906 = vadd.f32 %v10631, %v10905
  %v10907 = vand.u32 %v8806, 4294901760
  %10908 = vmatmul.f32.gmra.mxu0 %v10907
  %v10909 = vpop.f32.mrf.mxu0
  %v10910 = vadd.f32 %v10635, %v10909
  %v10911 = vand.u32 %v8809, 4294901760
  %10912 = vmatmul.f32.gmra.mxu0 %v10911
  %v10913 = vpop.f32.mrf.mxu0
  %v10914 = vadd.f32 %v10639, %v10913
  %v10915 = vand.u32 %v8812, 4294901760
  %10916 = vmatmul.f32.gmra.mxu0 %v10915
  %v10917 = vpop.f32.mrf.mxu0
  %v10918 = vadd.f32 %v10643, %v10917
  %v10919 = vand.u32 %v8815, 4294901760
  %10920 = vmatmul.f32.gmra.mxu0 %v10919
  %v10921 = vpop.f32.mrf.mxu0
  %v10922 = vadd.f32 %v10647, %v10921
  %v10923 = vand.u32 %v8818, 4294901760
  %10924 = vmatmul.f32.gmra.mxu0 %v10923
  %v10925 = vpop.f32.mrf.mxu0
  %v10926 = vadd.f32 %v10651, %v10925
  %v10927 = vand.u32 %v8821, 4294901760
  %10928 = vmatmul.f32.gmra.mxu0 %v10927
  %v10929 = vpop.f32.mrf.mxu0
  %v10930 = vadd.f32 %v10655, %v10929
  %v10931 = vand.u32 %v8824, 4294901760
  %10932 = vmatmul.f32.gmra.mxu0 %v10931
  %v10933 = vpop.f32.mrf.mxu0
  %v10934 = vadd.f32 %v10659, %v10933
  %v10935 = vand.u32 %v8827, 4294901760
  %10936 = vmatmul.f32.gmra.mxu0 %v10935
  %v10937 = vpop.f32.mrf.mxu0
  %v10938 = vadd.f32 %v10663, %v10937
  %v10939 = vand.u32 %v8830, 4294901760
  %10940 = vmatmul.f32.gmra.mxu0 %v10939
  %v10941 = vpop.f32.mrf.mxu0
  %v10942 = vadd.f32 %v10667, %v10941
  %10943 = vdwg.mxu0
  %11008 = vrot.lane.b32.xlu0 %v2204, 112
  %v11009 = vpop.permute.xlu0 %11008
  %11010 = vrot.lane.b32.xlu0 %v2208, 112
  %v11011 = vpop.permute.xlu0 %11010
  %11012 = vrot.lane.b32.xlu0 %v2212, 112
  %v11013 = vpop.permute.xlu0 %11012
  %11014 = vrot.lane.b32.xlu0 %v2216, 112
  %v11015 = vpop.permute.xlu0 %11014
  %11016 = vrot.lane.b32.xlu0 %v2220, 112
  %v11017 = vpop.permute.xlu0 %11016
  %11018 = vrot.lane.b32.xlu0 %v2224, 112
  %v11019 = vpop.permute.xlu0 %11018
  %11020 = vrot.lane.b32.xlu0 %v2228, 112
  %v11021 = vpop.permute.xlu0 %11020
  %11022 = vrot.lane.b32.xlu0 %v2232, 112
  %v11023 = vpop.permute.xlu0 %11022
  %11024 = vrot.lane.b32.xlu0 %v2236, 112
  %v11025 = vpop.permute.xlu0 %11024
  %11026 = vrot.lane.b32.xlu0 %v2240, 112
  %v11027 = vpop.permute.xlu0 %11026
  %11028 = vrot.lane.b32.xlu0 %v2244, 112
  %v11029 = vpop.permute.xlu0 %11028
  %11030 = vrot.lane.b32.xlu0 %v2248, 112
  %v11031 = vpop.permute.xlu0 %11030
  %11032 = vrot.lane.b32.xlu0 %v2252, 112
  %v11033 = vpop.permute.xlu0 %11032
  %11034 = vrot.lane.b32.xlu0 %v2256, 112
  %v11035 = vpop.permute.xlu0 %11034
  %11036 = vrot.lane.b32.xlu0 %v2260, 112
  %v11037 = vpop.permute.xlu0 %11036
  %11038 = vrot.lane.b32.xlu0 %v2264, 112
  %v11039 = vpop.permute.xlu0 %11038
  %11040 = vrot.lane.b32.xlu0 %v2268, 112
  %v11041 = vpop.permute.xlu0 %11040
  %11042 = vrot.lane.b32.xlu0 %v2272, 112
  %v11043 = vpop.permute.xlu0 %11042
  %11044 = vrot.lane.b32.xlu0 %v2276, 112
  %v11045 = vpop.permute.xlu0 %11044
  %11046 = vrot.lane.b32.xlu0 %v2280, 112
  %v11047 = vpop.permute.xlu0 %11046
  %11048 = vrot.lane.b32.xlu0 %v2284, 112
  %v11049 = vpop.permute.xlu0 %11048
  %11050 = vrot.lane.b32.xlu0 %v2288, 112
  %v11051 = vpop.permute.xlu0 %11050
  %11052 = vrot.lane.b32.xlu0 %v2292, 112
  %v11053 = vpop.permute.xlu0 %11052
  %11054 = vrot.lane.b32.xlu0 %v2296, 112
  %v11055 = vpop.permute.xlu0 %11054
  %11056 = vrot.lane.b32.xlu0 %v2300, 112
  %v11057 = vpop.permute.xlu0 %11056
  %11058 = vrot.lane.b32.xlu0 %v2304, 112
  %v11059 = vpop.permute.xlu0 %11058
  %11060 = vrot.lane.b32.xlu0 %v2308, 112
  %v11061 = vpop.permute.xlu0 %11060
  %11062 = vrot.lane.b32.xlu0 %v2312, 112
  %v11063 = vpop.permute.xlu0 %11062
  %11064 = vrot.lane.b32.xlu0 %v2316, 112
  %v11065 = vpop.permute.xlu0 %11064
  %11066 = vrot.lane.b32.xlu0 %v2320, 112
  %v11067 = vpop.permute.xlu0 %11066
  %11068 = vrot.lane.b32.xlu0 %v2324, 112
  %v11069 = vpop.permute.xlu0 %11068
  %11070 = vrot.lane.b32.xlu0 %v2328, 112
  %v11071 = vpop.permute.xlu0 %11070
  %11072 = vrot.lane.b32.xlu0 %v2332, 112
  %v11073 = vpop.permute.xlu0 %11072
  %11074 = vrot.lane.b32.xlu0 %v2336, 112
  %v11075 = vpop.permute.xlu0 %11074
  %11076 = vrot.lane.b32.xlu0 %v2340, 112
  %v11077 = vpop.permute.xlu0 %11076
  %11078 = vrot.lane.b32.xlu0 %v2344, 112
  %v11079 = vpop.permute.xlu0 %11078
  %11080 = vrot.lane.b32.xlu0 %v2348, 112
  %v11081 = vpop.permute.xlu0 %11080
  %11082 = vrot.lane.b32.xlu0 %v2352, 112
  %v11083 = vpop.permute.xlu0 %11082
  %11084 = vrot.lane.b32.xlu0 %v2356, 112
  %v11085 = vpop.permute.xlu0 %11084
  %11086 = vrot.lane.b32.xlu0 %v2360, 112
  %v11087 = vpop.permute.xlu0 %11086
  %11088 = vrot.lane.b32.xlu0 %v2364, 112
  %v11089 = vpop.permute.xlu0 %11088
  %11090 = vrot.lane.b32.xlu0 %v2368, 112
  %v11091 = vpop.permute.xlu0 %11090
  %11092 = vrot.lane.b32.xlu0 %v2372, 112
  %v11093 = vpop.permute.xlu0 %11092
  %11094 = vrot.lane.b32.xlu0 %v2376, 112
  %v11095 = vpop.permute.xlu0 %11094
  %11096 = vrot.lane.b32.xlu0 %v2380, 112
  %v11097 = vpop.permute.xlu0 %11096
  %11098 = vrot.lane.b32.xlu0 %v2384, 112
  %v11099 = vpop.permute.xlu0 %11098
  %11100 = vrot.lane.b32.xlu0 %v2388, 112
  %v11101 = vpop.permute.xlu0 %11100
  %11102 = vrot.lane.b32.xlu0 %v2392, 112
  %v11103 = vpop.permute.xlu0 %11102
  %11104 = vrot.lane.b32.xlu0 %v2396, 112
  %v11105 = vpop.permute.xlu0 %11104
  %11106 = vrot.lane.b32.xlu0 %v2400, 112
  %v11107 = vpop.permute.xlu0 %11106
  %11108 = vrot.lane.b32.xlu0 %v2404, 112
  %v11109 = vpop.permute.xlu0 %11108
  %11110 = vrot.lane.b32.xlu0 %v2408, 112
  %v11111 = vpop.permute.xlu0 %11110
  %11112 = vrot.lane.b32.xlu0 %v2412, 112
  %v11113 = vpop.permute.xlu0 %11112
  %11114 = vrot.lane.b32.xlu0 %v2416, 112
  %v11115 = vpop.permute.xlu0 %11114
  %11116 = vrot.lane.b32.xlu0 %v2420, 112
  %v11117 = vpop.permute.xlu0 %11116
  %11118 = vrot.lane.b32.xlu0 %v2424, 112
  %v11119 = vpop.permute.xlu0 %11118
  %11120 = vrot.lane.b32.xlu0 %v2428, 112
  %v11121 = vpop.permute.xlu0 %11120
  %11122 = vrot.lane.b32.xlu0 %v2432, 112
  %v11123 = vpop.permute.xlu0 %11122
  %11124 = vrot.lane.b32.xlu0 %v2436, 112
  %v11125 = vpop.permute.xlu0 %11124
  %11126 = vrot.lane.b32.xlu0 %v2440, 112
  %v11127 = vpop.permute.xlu0 %11126
  %11128 = vrot.lane.b32.xlu0 %v2444, 112
  %v11129 = vpop.permute.xlu0 %11128
  %11130 = vrot.lane.b32.xlu0 %v2448, 112
  %v11131 = vpop.permute.xlu0 %11130
  %11132 = vrot.lane.b32.xlu0 %v2452, 112
  %v11133 = vpop.permute.xlu0 %11132
  %11134 = vrot.lane.b32.xlu0 %v2456, 112
  %v11135 = vpop.permute.xlu0 %11134
  %v11200 = vadd.f32 %v10690, %v11009
  %v11201 = vadd.f32 %v10694, %v11011
  %v11202 = vadd.f32 %v10698, %v11013
  %v11203 = vadd.f32 %v10702, %v11015
  %v11204 = vadd.f32 %v10706, %v11017
  %v11205 = vadd.f32 %v10710, %v11019
  %v11206 = vadd.f32 %v10714, %v11021
  %v11207 = vadd.f32 %v10718, %v11023
  %v11208 = vadd.f32 %v10722, %v11025
  %v11209 = vadd.f32 %v10726, %v11027
  %v11210 = vadd.f32 %v10730, %v11029
  %v11211 = vadd.f32 %v10734, %v11031
  %v11212 = vadd.f32 %v10738, %v11033
  %v11213 = vadd.f32 %v10742, %v11035
  %v11214 = vadd.f32 %v10746, %v11037
  %v11215 = vadd.f32 %v10750, %v11039
  %v11216 = vadd.f32 %v10754, %v11041
  %v11217 = vadd.f32 %v10758, %v11043
  %v11218 = vadd.f32 %v10762, %v11045
  %v11219 = vadd.f32 %v10766, %v11047
  %v11220 = vadd.f32 %v10770, %v11049
  %v11221 = vadd.f32 %v10774, %v11051
  %v11222 = vadd.f32 %v10778, %v11053
  %v11223 = vadd.f32 %v10782, %v11055
  %v11224 = vadd.f32 %v10786, %v11057
  %v11225 = vadd.f32 %v10790, %v11059
  %v11226 = vadd.f32 %v10794, %v11061
  %v11227 = vadd.f32 %v10798, %v11063
  %v11228 = vadd.f32 %v10802, %v11065
  %v11229 = vadd.f32 %v10806, %v11067
  %v11230 = vadd.f32 %v10810, %v11069
  %v11231 = vadd.f32 %v10814, %v11071
  %v11232 = vadd.f32 %v10818, %v11073
  %v11233 = vadd.f32 %v10822, %v11075
  %v11234 = vadd.f32 %v10826, %v11077
  %v11235 = vadd.f32 %v10830, %v11079
  %v11236 = vadd.f32 %v10834, %v11081
  %v11237 = vadd.f32 %v10838, %v11083
  %v11238 = vadd.f32 %v10842, %v11085
  %v11239 = vadd.f32 %v10846, %v11087
  %v11240 = vadd.f32 %v10850, %v11089
  %v11241 = vadd.f32 %v10854, %v11091
  %v11242 = vadd.f32 %v10858, %v11093
  %v11243 = vadd.f32 %v10862, %v11095
  %v11244 = vadd.f32 %v10866, %v11097
  %v11245 = vadd.f32 %v10870, %v11099
  %v11246 = vadd.f32 %v10874, %v11101
  %v11247 = vadd.f32 %v10878, %v11103
  %v11248 = vadd.f32 %v10882, %v11105
  %v11249 = vadd.f32 %v10886, %v11107
  %v11250 = vadd.f32 %v10890, %v11109
  %v11251 = vadd.f32 %v10894, %v11111
  %v11252 = vadd.f32 %v10898, %v11113
  %v11253 = vadd.f32 %v10902, %v11115
  %v11254 = vadd.f32 %v10906, %v11117
  %v11255 = vadd.f32 %v10910, %v11119
  %v11256 = vadd.f32 %v10914, %v11121
  %v11257 = vadd.f32 %v10918, %v11123
  %v11258 = vadd.f32 %v10922, %v11125
  %v11259 = vadd.f32 %v10926, %v11127
  %v11260 = vadd.f32 %v10930, %v11129
  %v11261 = vadd.f32 %v10934, %v11131
  %v11262 = vadd.f32 %v10938, %v11133
  %v11263 = vadd.f32 %v10942, %v11135
  %vm11264 = vcmask 64512
  %11265 = vst.msk [vmem:[%s8] sm:$0xff] %vm11264, %v11200
  %11266 = vst.msk [vmem:[%s8 + $0x8] sm:$0xff] %vm11264, %v11201
  %11267 = vst.msk [vmem:[%s8 + $0x10] sm:$0xff] %vm11264, %v11202
  %11268 = vst.msk [vmem:[%s8 + $0x18] sm:$0xff] %vm11264, %v11203
  %11269 = vst.msk [vmem:[%s8 + $0x20] sm:$0xff] %vm11264, %v11204
  %11270 = vst.msk [vmem:[%s8 + $0x28] sm:$0xff] %vm11264, %v11205
  %11271 = vst.msk [vmem:[%s8 + $0x30] sm:$0xff] %vm11264, %v11206
  %11272 = vst.msk [vmem:[%s8 + $0x38] sm:$0xff] %vm11264, %v11207
  %11273 = vst.msk [vmem:[%s8 + $0x40] sm:$0xff] %vm11264, %v11208
  %11274 = vst.msk [vmem:[%s8 + $0x48] sm:$0xff] %vm11264, %v11209
  %11275 = vst.msk [vmem:[%s8 + $0x50] sm:$0xff] %vm11264, %v11210
  %11276 = vst.msk [vmem:[%s8 + $0x58] sm:$0xff] %vm11264, %v11211
  %11277 = vst.msk [vmem:[%s8 + $0x60] sm:$0xff] %vm11264, %v11212
  %11278 = vst.msk [vmem:[%s8 + $0x68] sm:$0xff] %vm11264, %v11213
  %11279 = vst.msk [vmem:[%s8 + $0x70] sm:$0xff] %vm11264, %v11214
  %11280 = vst.msk [vmem:[%s8 + $0x78] sm:$0xff] %vm11264, %v11215
  %11281 = vst.msk [vmem:[%s8 + $0x80] sm:$0xff] %vm11264, %v11216
  %11282 = vst.msk [vmem:[%s8 + $0x88] sm:$0xff] %vm11264, %v11217
  %11283 = vst.msk [vmem:[%s8 + $0x90] sm:$0xff] %vm11264, %v11218
  %11284 = vst.msk [vmem:[%s8 + $0x98] sm:$0xff] %vm11264, %v11219
  %11285 = vst.msk [vmem:[%s8 + $0xa0] sm:$0xff] %vm11264, %v11220
  %11286 = vst.msk [vmem:[%s8 + $0xa8] sm:$0xff] %vm11264, %v11221
  %11287 = vst.msk [vmem:[%s8 + $0xb0] sm:$0xff] %vm11264, %v11222
  %11288 = vst.msk [vmem:[%s8 + $0xb8] sm:$0xff] %vm11264, %v11223
  %11289 = vst.msk [vmem:[%s8 + $0xc0] sm:$0xff] %vm11264, %v11224
  %11290 = vst.msk [vmem:[%s8 + $0xc8] sm:$0xff] %vm11264, %v11225
  %11291 = vst.msk [vmem:[%s8 + $0xd0] sm:$0xff] %vm11264, %v11226
  %11292 = vst.msk [vmem:[%s8 + $0xd8] sm:$0xff] %vm11264, %v11227
  %11293 = vst.msk [vmem:[%s8 + $0xe0] sm:$0xff] %vm11264, %v11228
  %11294 = vst.msk [vmem:[%s8 + $0xe8] sm:$0xff] %vm11264, %v11229
  %11295 = vst.msk [vmem:[%s8 + $0xf0] sm:$0xff] %vm11264, %v11230
  %11296 = vst.msk [vmem:[%s8 + $0xf8] sm:$0xff] %vm11264, %v11231
  %11297 = vst.msk [vmem:[%s8 + $0x100] sm:$0xff] %vm11264, %v11232
  %11298 = vst.msk [vmem:[%s8 + $0x108] sm:$0xff] %vm11264, %v11233
  %11299 = vst.msk [vmem:[%s8 + $0x110] sm:$0xff] %vm11264, %v11234
  %11300 = vst.msk [vmem:[%s8 + $0x118] sm:$0xff] %vm11264, %v11235
  %11301 = vst.msk [vmem:[%s8 + $0x120] sm:$0xff] %vm11264, %v11236
  %11302 = vst.msk [vmem:[%s8 + $0x128] sm:$0xff] %vm11264, %v11237
  %11303 = vst.msk [vmem:[%s8 + $0x130] sm:$0xff] %vm11264, %v11238
  %11304 = vst.msk [vmem:[%s8 + $0x138] sm:$0xff] %vm11264, %v11239
  %11305 = vst.msk [vmem:[%s8 + $0x140] sm:$0xff] %vm11264, %v11240
  %11306 = vst.msk [vmem:[%s8 + $0x148] sm:$0xff] %vm11264, %v11241
  %11307 = vst.msk [vmem:[%s8 + $0x150] sm:$0xff] %vm11264, %v11242
  %11308 = vst.msk [vmem:[%s8 + $0x158] sm:$0xff] %vm11264, %v11243
  %11309 = vst.msk [vmem:[%s8 + $0x160] sm:$0xff] %vm11264, %v11244
  %11310 = vst.msk [vmem:[%s8 + $0x168] sm:$0xff] %vm11264, %v11245
  %11311 = vst.msk [vmem:[%s8 + $0x170] sm:$0xff] %vm11264, %v11246
  %11312 = vst.msk [vmem:[%s8 + $0x178] sm:$0xff] %vm11264, %v11247
  %11313 = vst.msk [vmem:[%s8 + $0x180] sm:$0xff] %vm11264, %v11248
  %11314 = vst.msk [vmem:[%s8 + $0x188] sm:$0xff] %vm11264, %v11249
  %11315 = vst.msk [vmem:[%s8 + $0x190] sm:$0xff] %vm11264, %v11250
  %11316 = vst.msk [vmem:[%s8 + $0x198] sm:$0xff] %vm11264, %v11251
  %11317 = vst.msk [vmem:[%s8 + $0x1a0] sm:$0xff] %vm11264, %v11252
  %11318 = vst.msk [vmem:[%s8 + $0x1a8] sm:$0xff] %vm11264, %v11253
  %11319 = vst.msk [vmem:[%s8 + $0x1b0] sm:$0xff] %vm11264, %v11254
  %11320 = vst.msk [vmem:[%s8 + $0x1b8] sm:$0xff] %vm11264, %v11255
  %11321 = vst.msk [vmem:[%s8 + $0x1c0] sm:$0xff] %vm11264, %v11256
  %11322 = vst.msk [vmem:[%s8 + $0x1c8] sm:$0xff] %vm11264, %v11257
  %11323 = vst.msk [vmem:[%s8 + $0x1d0] sm:$0xff] %vm11264, %v11258
  %11324 = vst.msk [vmem:[%s8 + $0x1d8] sm:$0xff] %vm11264, %v11259
  %11325 = vst.msk [vmem:[%s8 + $0x1e0] sm:$0xff] %vm11264, %v11260
  %11326 = vst.msk [vmem:[%s8 + $0x1e8] sm:$0xff] %vm11264, %v11261
  %11327 = vst.msk [vmem:[%s8 + $0x1f0] sm:$0xff] %vm11264, %v11262
  %11328 = vst.msk [vmem:[%s8 + $0x1f8] sm:$0xff] %vm11264, %v11263
  // Predicated region
  $region34: #{tpu_custom_call.1} parent=0 // pred_check
    _
  $region35: #{tpu_custom_call.1} parent=0 // pred_check_branch
    %11330 = sbr.rel (0) target = $region37
  $region36: #{tpu_custom_call.1} parent=0 // pred_region
    _
  $region37: #{tpu_custom_call.1} parent=0 // pred_fallthru
    _
  // Predicated region
  $region38: #{tpu_custom_call.1} parent=0 // pred_check
    _
  $region39: #{tpu_custom_call.1} parent=0 // pred_check_branch
    %11332 = sbr.rel (0) target = $region41
  $region40: #{tpu_custom_call.1} parent=0 // pred_region
    _
  $region41: #{tpu_custom_call.1} parent=0 // pred_fallthru
    _

</llo_original>
